<compile_context>
chip_gen: v5e
topology: v5e:2x2
jax: 0.10.0
libtpu: 0.0.40
codegen_flags: <defaults>
</compile_context>

<pallas_src>
import jax
import jax.numpy as jnp
from jax.experimental import pallas as pl
from jax.experimental.pallas import tpu as pltpu

# ----------------------------- model sizes (small, TPU-friendly) ------------
B = 2           # batch
T = 8           # caption length
IMG = 16        # spatial size (H = W)
CIN = 3         # image channels (ResNet_18(3))
CONV_CH = 16    # conv channels inside the simplified encoder
EMBED = 128     # stands in for 512 (embedding / image-feature / hidden width)
HIDDEN = 128
VOCAB = 128


# ----------------------------- fused encoder kernel --------------------------
def _encoder_kernel(p1_ref, w1_ref, b1_ref, w2_ref, b2_ref, w3_ref, b3_ref,
                    fcw_ref, fcb_ref, o_ref, buf_ref, patch_ref):
    """Encoder: conv1 -> conv2 -> conv3(+residual) -> GAP -> fc, one kernel.

    p1_ref   : [M, 9*CIN] bf16 im2col patches of the zero-padded input image.
    w*_ref   : conv weights flattened to [9*Cin, Cout], bf16.
    buf_ref  : [B, H+2, W+2, C] f32 padded activation scratch (reused twice).
    patch_ref: [M, 9*C] f32 im2col scratch for conv2 / conv3.
    """
    Bn, Hp, Wp, C = buf_ref.shape
    H, W = Hp - 2, Wp - 2
    M = Bn * H * W

    # conv1: ONE MXU issue (K = 9*CIN, bf16 operands, f32 accumulate) + ReLU.
    y = jnp.maximum(
        jnp.dot(p1_ref[...], w1_ref[...], preferred_element_type=jnp.float32)
        + b1_ref[...], 0.0)                                          # [M, C] f32

    # Zero the padded buffer ONCE; halo stays zero for both convs, interior is
    # overwritten (conv1 output now, conv2 output later) — single scratch.
    buf_ref[...] = jnp.zeros_like(buf_ref)
    buf_ref[:, 1:H + 1, 1:W + 1, :] = y.reshape(Bn, H, W, C)

    def conv3x3_from_buf(w_ref, b_ref):
        # im2col into VMEM scratch: 9 tap slices written lane-contiguously,
        # then ONE matmul with K = 9*C (bf16 operands, f32 accumulation).
        for tap in range(9):
            dh, dw = divmod(tap, 3)
            patch_ref[:, tap * C:(tap + 1) * C] = (
                buf_ref[:, dh:dh + H, dw:dw + W, :].reshape(M, C))
        return jnp.dot(patch_ref[...].astype(jnp.bfloat16), w_ref[...],
                       preferred_element_type=jnp.float32) + b_ref[...]

    # conv2 + ReLU; its output overwrites the buffer interior (halo stays 0).
    z = jnp.maximum(conv3x3_from_buf(w2_ref, b2_ref), 0.0)           # [M, C]
    buf_ref[:, 1:H + 1, 1:W + 1, :] = z.reshape(Bn, H, W, C)

    # conv3 + residual(y) + ReLU (stays in vregs; never goes to HBM).
    # TODO(synk): skip-connection source assumed to be conv1's post-ReLU
    # output (ResNet_18 body not provided in the reference).
    z2 = jnp.maximum(conv3x3_from_buf(w3_ref, b3_ref) + y, 0.0)      # [M, C]

    # Global average pool over spatial, then fc -> lane-dense [B, EMBED] store.
    pooled = jnp.mean(z2.reshape(Bn, H * W, C), axis=1)              # [B, C]
    feat = jnp.dot(pooled.astype(jnp.bfloat16), fcw_ref[...],
                   preferred_element_type=jnp.float32) + fcb_ref[...]
    o_ref[...] = feat.astype(o_ref.dtype)


def pallas_encoder(patches1, enc, batch):
    """patches1: [B*H*W, 9*CIN] bf16 im2col of the image -> [B, EMBED] f32."""
    M = patches1.shape[0]
    C = enc["conv2_w"].shape[-1]
    D = enc["fc_w"].shape[1]
    Hp = IMG + 2
    vmem = pl.BlockSpec(memory_space=pltpu.MemorySpace.VMEM)  # whole array, VMEM
    # TODO(synk): at real ResNet sizes, add a batch-parallel grid axis so v7x's
    # second TensorCore is used; at B=2 / 16x16 it is pure overhead.
    return pl.pallas_call(
        _encoder_kernel,
        out_shape=jax.ShapeDtypeStruct((batch, D), jnp.float32),
        in_specs=[vmem] * 9,
        out_specs=vmem,
        scratch_shapes=[pltpu.VMEM((batch, Hp, Hp, C), jnp.float32),
                        pltpu.VMEM((M, 9 * C), jnp.float32)],
    )(patches1, enc["conv1_w"], enc["conv1_b"], enc["conv2_w"], enc["conv2_b"],
      enc["conv3_w"], enc["conv3_b"], enc["fc_w"], enc["fc_b"])


# ----------------------------- fused decoder kernel --------------------------
def _decoder_kernel(emb_ref, img_ref, wih_ref, whh_ref, bh_ref,
                    wout_ref, bout_ref, o_ref, hall_ref):
    """emb_ref: [T*B, D] bf16 time-major (row = t*B + b); img_ref: [B, D] f32.
    hall_ref: [T*B, H] f32 VMEM scratch for the per-step hidden states.
    Output: [T*B, V] f32 logits (one dense, lane-wide store)."""
    TB = emb_ref.shape[0]
    Bn = img_ref.shape[0]
    Tn = TB // Bn
    Hd = whh_ref.shape[0]

    # Batched input projection for ALL timesteps at once (M = T*B), plus the
    # image-feature projection once: (emb + img) @ W_ih = emb@W_ih + img@W_ih.
    xw = jnp.dot(emb_ref[...], wih_ref[...],
                 preferred_element_type=jnp.float32)                  # [T*B, H]
    iw = jnp.dot(img_ref[...].astype(jnp.bfloat16), wih_ref[...],
                 preferred_element_type=jnp.float32)                  # [B, H]
    pre = xw + bh_ref[...]                                            # + (b_ih+b_hh)

    # Serial recurrence: only h @ W_hh is on the critical path.  Per-step
    # hidden states are written straight into the [T*B, H] VMEM scratch
    # (no cross-sublane concatenate, short h live ranges).
    # TODO(synk): keeping W_hh resident in the MXU across the 8 steps
    # (pltpu.matmul_push_rhs / matmul_acc_lhs / matmul_pop) is left to Mosaic.
    h = jnp.zeros((Bn, Hd), jnp.float32)
    for t in range(Tn):                                               # static unroll
        x_t = pre[t * Bn:(t + 1) * Bn, :] + iw                        # [B, H] f32
        h = jnp.tanh(x_t + jnp.dot(h.astype(jnp.bfloat16), whh_ref[...],
                                   preferred_element_type=jnp.float32))
        hall_ref[t * Bn:(t + 1) * Bn, :] = h

    # Batched output projection, single dense lane-wide store.
    # TODO(synk): at real vocab sizes tile this over V with a BlockSpec grid
    # (w_out + logits would not fit v7x VMEM fully resident).
    logits = jnp.dot(hall_ref[...].astype(jnp.bfloat16), wout_ref[...],
                     preferred_element_type=jnp.float32) + bout_ref[...]
    o_ref[...] = logits.astype(o_ref.dtype)


def pallas_decoder(emb_tm, img_feat, dec):
    """emb_tm: [T*B, D] bf16 time-major caption embeddings -> [T*B, V] logits."""
    TB = emb_tm.shape[0]
    Hd = dec["w_hh"].shape[0]
    V = dec["w_out"].shape[1]
    vmem = pl.BlockSpec(memory_space=pltpu.MemorySpace.VMEM)
    return pl.pallas_call(
        _decoder_kernel,
        out_shape=jax.ShapeDtypeStruct((TB, V), jnp.float32),
        in_specs=[vmem] * 7,
        out_specs=vmem,
        scratch_shapes=[pltpu.VMEM((TB, Hd), jnp.float32)],
    )(emb_tm, img_feat, dec["w_ih"], dec["w_hh"], dec["b_h"],
      dec["w_out"], dec["b_out"])


# ----------------------------- full forward ----------------------------------
def image_caption_forward(params, image, caption):
    Bn, Tn = caption.shape
    enc = params["encoder"]

    # NCHW -> NHWC, zero-pad, im2col for conv1 (cheap XLA layout ops on the raw
    # 3-channel input); bf16 patches so conv1 is one K=27 bf16 MXU issue.
    x = jnp.transpose(image, (0, 2, 3, 1)).astype(jnp.float32)
    xp = jnp.pad(x, ((0, 0), (1, 1), (1, 1), (0, 0)))
    H = x.shape[1]
    cols = [xp[:, dh:dh + H, dw:dw + H, :]
            for dh in range(3) for dw in range(3)]
    patches1 = jnp.concatenate(cols, axis=-1).reshape(Bn * H * H, -1)
    patches1 = patches1.astype(jnp.bfloat16)

    image_feat = pallas_encoder(patches1, enc, Bn)                     # [B, D] f32

    # Embedding lookup stays an XLA gather (table pre-cast to bf16); decoder
    # consumes time-major rows so all T*B rows share one input projection.
    caption_embed = jnp.take(params["embedding"], caption, axis=0)     # [B, T, D]
    emb_tm = jnp.transpose(caption_embed, (1, 0, 2)).reshape(Tn * Bn, -1)

    logits_tm = pallas_decoder(emb_tm, image_feat, params["decoder"])  # [T*B, V]
    V = logits_tm.shape[-1]
    return jnp.transpose(logits_tm.reshape(Tn, Bn, V), (1, 0, 2))      # [B, T, V]


# ----------------------------- parameter init --------------------------------
def init_params(key):
    ks = jax.random.split(key, 8)

    def nrm(k, shape, scale=0.05, dtype=jnp.bfloat16):
        # Matmul operands stored bf16 host-side (halves weight DMA bytes and
        # removes in-kernel casts); biases stay f32.
        return (scale * jax.random.normal(k, shape)).astype(dtype)

    encoder = {
        # conv weights flattened to [9*Cin, Cout] for single-issue im2col matmuls
        "conv1_w": nrm(ks[0], (9 * CIN, CONV_CH)),
        "conv1_b": jnp.zeros((1, CONV_CH), jnp.float32),
        "conv2_w": nrm(ks[1], (9 * CONV_CH, CONV_CH)),
        "conv2_b": jnp.zeros((1, CONV_CH), jnp.float32),
        "conv3_w": nrm(ks[2], (9 * CONV_CH, CONV_CH)),
        "conv3_b": jnp.zeros((1, CONV_CH), jnp.float32),
        "fc_w": nrm(ks[3], (CONV_CH, EMBED)),
        "fc_b": jnp.zeros((1, EMBED), jnp.float32),
    }
    decoder = {
        "w_ih": nrm(ks[4], (EMBED, HIDDEN)),
        "w_hh": nrm(ks[5], (HIDDEN, HIDDEN)),
        "b_h": jnp.zeros((1, HIDDEN), jnp.float32),   # b_ih + b_hh combined
        "w_out": nrm(ks[6], (HIDDEN, VOCAB)),
        "b_out": jnp.zeros((1, VOCAB), jnp.float32),
    }
    return {
        "encoder": encoder,
        "embedding": nrm(ks[7], (VOCAB, EMBED)),
        "decoder": decoder,
    }


# TODO(synk): generate() (temperature softmax + torch.multinomial sampling
# loop) is not part of the requested forward pass and is not implemented.

if __name__ == "__main__":
    key = jax.random.PRNGKey(0)
    pkey, ikey, ckey = jax.random.split(key, 3)

    params = init_params(pkey)
    image = jax.random.normal(ikey, (B, CIN, IMG, IMG), dtype=jnp.float32)  # NCHW
    caption = jax.random.randint(ckey, (B, T), 0, VOCAB, dtype=jnp.int32)

    fwd = jax.jit(image_caption_forward)
    logits = jax.block_until_ready(fwd(params, image, caption))

    assert logits.shape == (B, T, VOCAB), logits.shape
    assert logits.dtype == jnp.float32
    assert bool(jnp.all(jnp.isfinite(logits)))
    print("KERNEL_OK")
</pallas_src>

<mosaic_0001>
module attributes {stable_mosaic.version = 11 : i64} {
  func.func @_encoder_kernel(%arg0: memref<512x27xbf16, #tpu.memory_space<vmem>>, %arg1: memref<27x16xbf16, #tpu.memory_space<vmem>>, %arg2: memref<1x16xf32, #tpu.memory_space<vmem>>, %arg3: memref<144x16xbf16, #tpu.memory_space<vmem>>, %arg4: memref<1x16xf32, #tpu.memory_space<vmem>>, %arg5: memref<144x16xbf16, #tpu.memory_space<vmem>>, %arg6: memref<1x16xf32, #tpu.memory_space<vmem>>, %arg7: memref<16x128xbf16, #tpu.memory_space<vmem>>, %arg8: memref<1x128xf32, #tpu.memory_space<vmem>>, %arg9: memref<2x128xf32, #tpu.memory_space<vmem>>, %arg10: memref<2x18x18x16xf32, #tpu.memory_space<vmem>>, %arg11: memref<512x144xf32, #tpu.memory_space<vmem>>) attributes {dimension_semantics = [], scalar_prefetch = 0 : i64, scratch_operands = 2 : i64, tpu.core_type = #tpu.core_type<tc>} {
    %c0 = arith.constant 0 : index
    %c0_0 = arith.constant 0 : index
    %0 = vector.load %arg0[%c0, %c0_0] : memref<512x27xbf16, #tpu.memory_space<vmem>>, vector<512x27xbf16>
    %c0_1 = arith.constant 0 : index
    %c0_2 = arith.constant 0 : index
    %1 = vector.load %arg1[%c0_1, %c0_2] : memref<27x16xbf16, #tpu.memory_space<vmem>>, vector<27x16xbf16>
    %cst = arith.constant dense<0.000000e+00> : vector<512x16xf32>
    %2 = tpu.matmul %0, %1, %cst {dimension_numbers = #tpu.dot_dimension_numbers<[1], [0], [0], [1], [0, 0, 1, 1], [], []>} : vector<512x27xbf16>, vector<27x16xbf16>, vector<512x16xf32> -> vector<512x16xf32>
    %c0_3 = arith.constant 0 : index
    %c0_4 = arith.constant 0 : index
    %3 = vector.load %arg2[%c0_3, %c0_4] : memref<1x16xf32, #tpu.memory_space<vmem>>, vector<1x16xf32>
    %4 = vector.broadcast %3 : vector<1x16xf32> to vector<512x16xf32>
    %5 = arith.addf %2, %4 : vector<512x16xf32>
    %cst_5 = arith.constant 0.000000e+00 : f32
    %6 = vector.broadcast %cst_5 : f32 to vector<512x16xf32>
    %7 = arith.maximumf %5, %6 : vector<512x16xf32>
    %cst_6 = arith.constant 0.000000e+00 : f32
    %8 = vector.broadcast %cst_6 : f32 to vector<2x18x18x16xf32>
    %c0_7 = arith.constant 0 : index
    %c0_8 = arith.constant 0 : index
    %c0_9 = arith.constant 0 : index
    %c0_10 = arith.constant 0 : index
    %9 = vector.load %arg10[%c0_7, %c0_8, %c0_9, %c0_10] : memref<2x18x18x16xf32, #tpu.memory_space<vmem>>, vector<2x18x18x16xf32>
    tpu.vector_store %arg10[%c0_7, %c0_8, %c0_9, %c0_10], %8 {strides = array<i32>} : memref<2x18x18x16xf32, #tpu.memory_space<vmem>>, vector<2x18x18x16xf32>,
    %10 = vector.shape_cast %7 : vector<512x16xf32> to vector<2x16x16x16xf32>
    %c0_11 = arith.constant 0 : index
    %c1 = arith.constant 1 : index
    %c1_12 = arith.constant 1 : index
    %c0_13 = arith.constant 0 : index
    %11 = vector.load %arg10[%c0_11, %c1, %c1_12, %c0_13] : memref<2x18x18x16xf32, #tpu.memory_space<vmem>>, vector<2x16x16x16xf32>
    tpu.vector_store %arg10[%c0_11, %c1, %c1_12, %c0_13], %10 {strides = array<i32>} : memref<2x18x18x16xf32, #tpu.memory_space<vmem>>, vector<2x16x16x16xf32>,
    %c0_14 = arith.constant 0 : index
    %c0_15 = arith.constant 0 : index
    %c0_16 = arith.constant 0 : index
    %c0_17 = arith.constant 0 : index
    %12 = vector.load %arg10[%c0_14, %c0_15, %c0_16, %c0_17] : memref<2x18x18x16xf32, #tpu.memory_space<vmem>>, vector<2x16x16x16xf32>
    %13 = vector.shape_cast %12 : vector<2x16x16x16xf32> to vector<512x16xf32>
    %c0_18 = arith.constant 0 : index
    %c0_19 = arith.constant 0 : index
    %14 = vector.load %arg11[%c0_18, %c0_19] : memref<512x144xf32, #tpu.memory_space<vmem>>, vector<512x16xf32>
    tpu.vector_store %arg11[%c0_18, %c0_19], %13 {strides = array<i32>} : memref<512x144xf32, #tpu.memory_space<vmem>>, vector<512x16xf32>,
    %c0_20 = arith.constant 0 : index
    %c0_21 = arith.constant 0 : index
    %c1_22 = arith.constant 1 : index
    %c0_23 = arith.constant 0 : index
    %15 = vector.load %arg10[%c0_20, %c0_21, %c1_22, %c0_23] : memref<2x18x18x16xf32, #tpu.memory_space<vmem>>, vector<2x16x16x16xf32>
    %16 = vector.shape_cast %15 : vector<2x16x16x16xf32> to vector<512x16xf32>
    %c0_24 = arith.constant 0 : index
    %c16 = arith.constant 16 : index
    %17 = vector.load %arg11[%c0_24, %c16] : memref<512x144xf32, #tpu.memory_space<vmem>>, vector<512x16xf32>
    tpu.vector_store %arg11[%c0_24, %c16], %16 {strides = array<i32>} : memref<512x144xf32, #tpu.memory_space<vmem>>, vector<512x16xf32>,
    %c0_25 = arith.constant 0 : index
    %c0_26 = arith.constant 0 : index
    %c2 = arith.constant 2 : index
    %c0_27 = arith.constant 0 : index
    %18 = vector.load %arg10[%c0_25, %c0_26, %c2, %c0_27] : memref<2x18x18x16xf32, #tpu.memory_space<vmem>>, vector<2x16x16x16xf32>
    %19 = vector.shape_cast %18 : vector<2x16x16x16xf32> to vector<512x16xf32>
    %c0_28 = arith.constant 0 : index
    %c32 = arith.constant 32 : index
    %20 = vector.load %arg11[%c0_28, %c32] : memref<512x144xf32, #tpu.memory_space<vmem>>, vector<512x16xf32>
    tpu.vector_store %arg11[%c0_28, %c32], %19 {strides = array<i32>} : memref<512x144xf32, #tpu.memory_space<vmem>>, vector<512x16xf32>,
    %c0_29 = arith.constant 0 : index
    %c1_30 = arith.constant 1 : index
    %c0_31 = arith.constant 0 : index
    %c0_32 = arith.constant 0 : index
    %21 = vector.load %arg10[%c0_29, %c1_30, %c0_31, %c0_32] : memref<2x18x18x16xf32, #tpu.memory_space<vmem>>, vector<2x16x16x16xf32>
    %22 = vector.shape_cast %21 : vector<2x16x16x16xf32> to vector<512x16xf32>
    %c0_33 = arith.constant 0 : index
    %c48 = arith.constant 48 : index
    %23 = vector.load %arg11[%c0_33, %c48] : memref<512x144xf32, #tpu.memory_space<vmem>>, vector<512x16xf32>
    tpu.vector_store %arg11[%c0_33, %c48], %22 {strides = array<i32>} : memref<512x144xf32, #tpu.memory_space<vmem>>, vector<512x16xf32>,
    %c0_34 = arith.constant 0 : index
    %c1_35 = arith.constant 1 : index
    %c1_36 = arith.constant 1 : index
    %c0_37 = arith.constant 0 : index
    %24 = vector.load %arg10[%c0_34, %c1_35, %c1_36, %c0_37] : memref<2x18x18x16xf32, #tpu.memory_space<vmem>>, vector<2x16x16x16xf32>
    %25 = vector.shape_cast %24 : vector<2x16x16x16xf32> to vector<512x16xf32>
    %c0_38 = arith.constant 0 : index
    %c64 = arith.constant 64 : index
    %26 = vector.load %arg11[%c0_38, %c64] : memref<512x144xf32, #tpu.memory_space<vmem>>, vector<512x16xf32>
    tpu.vector_store %arg11[%c0_38, %c64], %25 {strides = array<i32>} : memref<512x144xf32, #tpu.memory_space<vmem>>, vector<512x16xf32>,
    %c0_39 = arith.constant 0 : index
    %c1_40 = arith.constant 1 : index
    %c2_41 = arith.constant 2 : index
    %c0_42 = arith.constant 0 : index
    %27 = vector.load %arg10[%c0_39, %c1_40, %c2_41, %c0_42] : memref<2x18x18x16xf32, #tpu.memory_space<vmem>>, vector<2x16x16x16xf32>
    %28 = vector.shape_cast %27 : vector<2x16x16x16xf32> to vector<512x16xf32>
    %c0_43 = arith.constant 0 : index
    %c80 = arith.constant 80 : index
    %29 = vector.load %arg11[%c0_43, %c80] : memref<512x144xf32, #tpu.memory_space<vmem>>, vector<512x16xf32>
    tpu.vector_store %arg11[%c0_43, %c80], %28 {strides = array<i32>} : memref<512x144xf32, #tpu.memory_space<vmem>>, vector<512x16xf32>,
    %c0_44 = arith.constant 0 : index
    %c2_45 = arith.constant 2 : index
    %c0_46 = arith.constant 0 : index
    %c0_47 = arith.constant 0 : index
    %30 = vector.load %arg10[%c0_44, %c2_45, %c0_46, %c0_47] : memref<2x18x18x16xf32, #tpu.memory_space<vmem>>, vector<2x16x16x16xf32>
    %31 = vector.shape_cast %30 : vector<2x16x16x16xf32> to vector<512x16xf32>
    %c0_48 = arith.constant 0 : index
    %c96 = arith.constant 96 : index
    %32 = vector.load %arg11[%c0_48, %c96] : memref<512x144xf32, #tpu.memory_space<vmem>>, vector<512x16xf32>
    tpu.vector_store %arg11[%c0_48, %c96], %31 {strides = array<i32>} : memref<512x144xf32, #tpu.memory_space<vmem>>, vector<512x16xf32>,
    %c0_49 = arith.constant 0 : index
    %c2_50 = arith.constant 2 : index
    %c1_51 = arith.constant 1 : index
    %c0_52 = arith.constant 0 : index
    %33 = vector.load %arg10[%c0_49, %c2_50, %c1_51, %c0_52] : memref<2x18x18x16xf32, #tpu.memory_space<vmem>>, vector<2x16x16x16xf32>
    %34 = vector.shape_cast %33 : vector<2x16x16x16xf32> to vector<512x16xf32>
    %c0_53 = arith.constant 0 : index
    %c112 = arith.constant 112 : index
    %35 = vector.load %arg11[%c0_53, %c112] : memref<512x144xf32, #tpu.memory_space<vmem>>, vector<512x16xf32>
    tpu.vector_store %arg11[%c0_53, %c112], %34 {strides = array<i32>} : memref<512x144xf32, #tpu.memory_space<vmem>>, vector<512x16xf32>,
    %c0_54 = arith.constant 0 : index
    %c2_55 = arith.constant 2 : index
    %c2_56 = arith.constant 2 : index
    %c0_57 = arith.constant 0 : index
    %36 = vector.load %arg10[%c0_54, %c2_55, %c2_56, %c0_57] : memref<2x18x18x16xf32, #tpu.memory_space<vmem>>, vector<2x16x16x16xf32>
    %37 = vector.shape_cast %36 : vector<2x16x16x16xf32> to vector<512x16xf32>
    %c0_58 = arith.constant 0 : index
    %c128 = arith.constant 128 : index
    %38 = vector.load %arg11[%c0_58, %c128] : memref<512x144xf32, #tpu.memory_space<vmem>>, vector<512x16xf32>
    tpu.vector_store %arg11[%c0_58, %c128], %37 {strides = array<i32>} : memref<512x144xf32, #tpu.memory_space<vmem>>, vector<512x16xf32>,
    %c0_59 = arith.constant 0 : index
    %c0_60 = arith.constant 0 : index
    %39 = vector.load %arg11[%c0_59, %c0_60] : memref<512x144xf32, #tpu.memory_space<vmem>>, vector<512x144xf32>
    %40 = arith.truncf %39 : vector<512x144xf32> to vector<512x144xbf16>
    %c0_61 = arith.constant 0 : index
    %c0_62 = arith.constant 0 : index
    %41 = vector.load %arg3[%c0_61, %c0_62] : memref<144x16xbf16, #tpu.memory_space<vmem>>, vector<144x16xbf16>
    %cst_63 = arith.constant dense<0.000000e+00> : vector<512x16xf32>
    %42 = tpu.matmul %40, %41, %cst_63 {dimension_numbers = #tpu.dot_dimension_numbers<[1], [0], [0], [1], [0, 0, 1, 1], [], []>} : vector<512x144xbf16>, vector<144x16xbf16>, vector<512x16xf32> -> vector<512x16xf32>
    %c0_64 = arith.constant 0 : index
    %c0_65 = arith.constant 0 : index
    %43 = vector.load %arg4[%c0_64, %c0_65] : memref<1x16xf32, #tpu.memory_space<vmem>>, vector<1x16xf32>
    %44 = vector.broadcast %43 : vector<1x16xf32> to vector<512x16xf32>
    %45 = arith.addf %42, %44 : vector<512x16xf32>
    %cst_66 = arith.constant 0.000000e+00 : f32
    %46 = vector.broadcast %cst_66 : f32 to vector<512x16xf32>
    %47 = arith.maximumf %45, %46 : vector<512x16xf32>
    %48 = vector.shape_cast %47 : vector<512x16xf32> to vector<2x16x16x16xf32>
    %c0_67 = arith.constant 0 : index
    %c1_68 = arith.constant 1 : index
    %c1_69 = arith.constant 1 : index
    %c0_70 = arith.constant 0 : index
    %49 = vector.load %arg10[%c0_67, %c1_68, %c1_69, %c0_70] : memref<2x18x18x16xf32, #tpu.memory_space<vmem>>, vector<2x16x16x16xf32>
    tpu.vector_store %arg10[%c0_67, %c1_68, %c1_69, %c0_70], %48 {strides = array<i32>} : memref<2x18x18x16xf32, #tpu.memory_space<vmem>>, vector<2x16x16x16xf32>,
    %c0_71 = arith.constant 0 : index
    %c0_72 = arith.constant 0 : index
    %c0_73 = arith.constant 0 : index
    %c0_74 = arith.constant 0 : index
    %50 = vector.load %arg10[%c0_71, %c0_72, %c0_73, %c0_74] : memref<2x18x18x16xf32, #tpu.memory_space<vmem>>, vector<2x16x16x16xf32>
    %51 = vector.shape_cast %50 : vector<2x16x16x16xf32> to vector<512x16xf32>
    %c0_75 = arith.constant 0 : index
    %c0_76 = arith.constant 0 : index
    %52 = vector.load %arg11[%c0_75, %c0_76] : memref<512x144xf32, #tpu.memory_space<vmem>>, vector<512x16xf32>
    tpu.vector_store %arg11[%c0_75, %c0_76], %51 {strides = array<i32>} : memref<512x144xf32, #tpu.memory_space<vmem>>, vector<512x16xf32>,
    %c0_77 = arith.constant 0 : index
    %c0_78 = arith.constant 0 : index
    %c1_79 = arith.constant 1 : index
    %c0_80 = arith.constant 0 : index
    %53 = vector.load %arg10[%c0_77, %c0_78, %c1_79, %c0_80] : memref<2x18x18x16xf32, #tpu.memory_space<vmem>>, vector<2x16x16x16xf32>
    %54 = vector.shape_cast %53 : vector<2x16x16x16xf32> to vector<512x16xf32>
    %c0_81 = arith.constant 0 : index
    %c16_82 = arith.constant 16 : index
    %55 = vector.load %arg11[%c0_81, %c16_82] : memref<512x144xf32, #tpu.memory_space<vmem>>, vector<512x16xf32>
    tpu.vector_store %arg11[%c0_81, %c16_82], %54 {strides = array<i32>} : memref<512x144xf32, #tpu.memory_space<vmem>>, vector<512x16xf32>,
    %c0_83 = arith.constant 0 : index
    %c0_84 = arith.constant 0 : index
    %c2_85 = arith.constant 2 : index
    %c0_86 = arith.constant 0 : index
    %56 = vector.load %arg10[%c0_83, %c0_84, %c2_85, %c0_86] : memref<2x18x18x16xf32, #tpu.memory_space<vmem>>, vector<2x16x16x16xf32>
    %57 = vector.shape_cast %56 : vector<2x16x16x16xf32> to vector<512x16xf32>
    %c0_87 = arith.constant 0 : index
    %c32_88 = arith.constant 32 : index
    %58 = vector.load %arg11[%c0_87, %c32_88] : memref<512x144xf32, #tpu.memory_space<vmem>>, vector<512x16xf32>
    tpu.vector_store %arg11[%c0_87, %c32_88], %57 {strides = array<i32>} : memref<512x144xf32, #tpu.memory_space<vmem>>, vector<512x16xf32>,
    %c0_89 = arith.constant 0 : index
    %c1_90 = arith.constant 1 : index
    %c0_91 = arith.constant 0 : index
    %c0_92 = arith.constant 0 : index
    %59 = vector.load %arg10[%c0_89, %c1_90, %c0_91, %c0_92] : memref<2x18x18x16xf32, #tpu.memory_space<vmem>>, vector<2x16x16x16xf32>
    %60 = vector.shape_cast %59 : vector<2x16x16x16xf32> to vector<512x16xf32>
    %c0_93 = arith.constant 0 : index
    %c48_94 = arith.constant 48 : index
    %61 = vector.load %arg11[%c0_93, %c48_94] : memref<512x144xf32, #tpu.memory_space<vmem>>, vector<512x16xf32>
    tpu.vector_store %arg11[%c0_93, %c48_94], %60 {strides = array<i32>} : memref<512x144xf32, #tpu.memory_space<vmem>>, vector<512x16xf32>,
    %c0_95 = arith.constant 0 : index
    %c1_96 = arith.constant 1 : index
    %c1_97 = arith.constant 1 : index
    %c0_98 = arith.constant 0 : index
    %62 = vector.load %arg10[%c0_95, %c1_96, %c1_97, %c0_98] : memref<2x18x18x16xf32, #tpu.memory_space<vmem>>, vector<2x16x16x16xf32>
    %63 = vector.shape_cast %62 : vector<2x16x16x16xf32> to vector<512x16xf32>
    %c0_99 = arith.constant 0 : index
    %c64_100 = arith.constant 64 : index
    %64 = vector.load %arg11[%c0_99, %c64_100] : memref<512x144xf32, #tpu.memory_space<vmem>>, vector<512x16xf32>
    tpu.vector_store %arg11[%c0_99, %c64_100], %63 {strides = array<i32>} : memref<512x144xf32, #tpu.memory_space<vmem>>, vector<512x16xf32>,
    %c0_101 = arith.constant 0 : index
    %c1_102 = arith.constant 1 : index
    %c2_103 = arith.constant 2 : index
    %c0_104 = arith.constant 0 : index
    %65 = vector.load %arg10[%c0_101, %c1_102, %c2_103, %c0_104] : memref<2x18x18x16xf32, #tpu.memory_space<vmem>>, vector<2x16x16x16xf32>
    %66 = vector.shape_cast %65 : vector<2x16x16x16xf32> to vector<512x16xf32>
    %c0_105 = arith.constant 0 : index
    %c80_106 = arith.constant 80 : index
    %67 = vector.load %arg11[%c0_105, %c80_106] : memref<512x144xf32, #tpu.memory_space<vmem>>, vector<512x16xf32>
    tpu.vector_store %arg11[%c0_105, %c80_106], %66 {strides = array<i32>} : memref<512x144xf32, #tpu.memory_space<vmem>>, vector<512x16xf32>,
    %c0_107 = arith.constant 0 : index
    %c2_108 = arith.constant 2 : index
    %c0_109 = arith.constant 0 : index
    %c0_110 = arith.constant 0 : index
    %68 = vector.load %arg10[%c0_107, %c2_108, %c0_109, %c0_110] : memref<2x18x18x16xf32, #tpu.memory_space<vmem>>, vector<2x16x16x16xf32>
    %69 = vector.shape_cast %68 : vector<2x16x16x16xf32> to vector<512x16xf32>
    %c0_111 = arith.constant 0 : index
    %c96_112 = arith.constant 96 : index
    %70 = vector.load %arg11[%c0_111, %c96_112] : memref<512x144xf32, #tpu.memory_space<vmem>>, vector<512x16xf32>
    tpu.vector_store %arg11[%c0_111, %c96_112], %69 {strides = array<i32>} : memref<512x144xf32, #tpu.memory_space<vmem>>, vector<512x16xf32>,
    %c0_113 = arith.constant 0 : index
    %c2_114 = arith.constant 2 : index
    %c1_115 = arith.constant 1 : index
    %c0_116 = arith.constant 0 : index
    %71 = vector.load %arg10[%c0_113, %c2_114, %c1_115, %c0_116] : memref<2x18x18x16xf32, #tpu.memory_space<vmem>>, vector<2x16x16x16xf32>
    %72 = vector.shape_cast %71 : vector<2x16x16x16xf32> to vector<512x16xf32>
    %c0_117 = arith.constant 0 : index
    %c112_118 = arith.constant 112 : index
    %73 = vector.load %arg11[%c0_117, %c112_118] : memref<512x144xf32, #tpu.memory_space<vmem>>, vector<512x16xf32>
    tpu.vector_store %arg11[%c0_117, %c112_118], %72 {strides = array<i32>} : memref<512x144xf32, #tpu.memory_space<vmem>>, vector<512x16xf32>,
    %c0_119 = arith.constant 0 : index
    %c2_120 = arith.constant 2 : index
    %c2_121 = arith.constant 2 : index
    %c0_122 = arith.constant 0 : index
    %74 = vector.load %arg10[%c0_119, %c2_120, %c2_121, %c0_122] : memref<2x18x18x16xf32, #tpu.memory_space<vmem>>, vector<2x16x16x16xf32>
    %75 = vector.shape_cast %74 : vector<2x16x16x16xf32> to vector<512x16xf32>
    %c0_123 = arith.constant 0 : index
    %c128_124 = arith.constant 128 : index
    %76 = vector.load %arg11[%c0_123, %c128_124] : memref<512x144xf32, #tpu.memory_space<vmem>>, vector<512x16xf32>
    tpu.vector_store %arg11[%c0_123, %c128_124], %75 {strides = array<i32>} : memref<512x144xf32, #tpu.memory_space<vmem>>, vector<512x16xf32>,
    %c0_125 = arith.constant 0 : index
    %c0_126 = arith.constant 0 : index
    %77 = vector.load %arg11[%c0_125, %c0_126] : memref<512x144xf32, #tpu.memory_space<vmem>>, vector<512x144xf32>
    %78 = arith.truncf %77 : vector<512x144xf32> to vector<512x144xbf16>
    %c0_127 = arith.constant 0 : index
    %c0_128 = arith.constant 0 : index
    %79 = vector.load %arg5[%c0_127, %c0_128] : memref<144x16xbf16, #tpu.memory_space<vmem>>, vector<144x16xbf16>
    %cst_129 = arith.constant dense<0.000000e+00> : vector<512x16xf32>
    %80 = tpu.matmul %78, %79, %cst_129 {dimension_numbers = #tpu.dot_dimension_numbers<[1], [0], [0], [1], [0, 0, 1, 1], [], []>} : vector<512x144xbf16>, vector<144x16xbf16>, vector<512x16xf32> -> vector<512x16xf32>
    %c0_130 = arith.constant 0 : index
    %c0_131 = arith.constant 0 : index
    %81 = vector.load %arg6[%c0_130, %c0_131] : memref<1x16xf32, #tpu.memory_space<vmem>>, vector<1x16xf32>
    %82 = vector.broadcast %81 : vector<1x16xf32> to vector<512x16xf32>
    %83 = arith.addf %80, %82 : vector<512x16xf32>
    %84 = arith.addf %83, %7 : vector<512x16xf32>
    %cst_132 = arith.constant 0.000000e+00 : f32
    %85 = vector.broadcast %cst_132 : f32 to vector<512x16xf32>
    %86 = arith.maximumf %84, %85 : vector<512x16xf32>
    %87 = vector.shape_cast %86 : vector<512x16xf32> to vector<2x256x16xf32>
    %cst_133 = arith.constant dense<0.000000e+00> : vector<2x16xf32>
    %88 = vector.multi_reduction <add>, %87, %cst_133 [1] : vector<2x256x16xf32> to vector<2x16xf32>
    %cst_134 = arith.constant 2.560000e+02 : f32
    %89 = vector.broadcast %cst_134 : f32 to vector<2x16xf32>
    %90 = arith.divf %88, %89 : vector<2x16xf32>
    %91 = arith.truncf %90 : vector<2x16xf32> to vector<2x16xbf16>
    %c0_135 = arith.constant 0 : index
    %c0_136 = arith.constant 0 : index
    %92 = vector.load %arg7[%c0_135, %c0_136] : memref<16x128xbf16, #tpu.memory_space<vmem>>, vector<16x128xbf16>
    %cst_137 = arith.constant dense<0.000000e+00> : vector<2x128xf32>
    %93 = tpu.matmul %91, %92, %cst_137 {dimension_numbers = #tpu.dot_dimension_numbers<[1], [0], [0], [1], [0, 0, 1, 1], [], []>} : vector<2x16xbf16>, vector<16x128xbf16>, vector<2x128xf32> -> vector<2x128xf32>
    %c0_138 = arith.constant 0 : index
    %c0_139 = arith.constant 0 : index
    %94 = vector.load %arg8[%c0_138, %c0_139] : memref<1x128xf32, #tpu.memory_space<vmem>>, vector<1x128xf32>
    %95 = vector.broadcast %94 : vector<1x128xf32> to vector<2x128xf32>
    %96 = arith.addf %93, %95 : vector<2x128xf32>
    %c0_140 = arith.constant 0 : index
    %c0_141 = arith.constant 0 : index
    %97 = vector.load %arg9[%c0_140, %c0_141] : memref<2x128xf32, #tpu.memory_space<vmem>>, vector<2x128xf32>
    tpu.vector_store %arg9[%c0_140, %c0_141], %96 {strides = array<i32>} : memref<2x128xf32, #tpu.memory_space<vmem>>, vector<2x128xf32>,
    return
  }
}

module attributes {stable_mosaic.version = 11 : i64} {
  func.func @_decoder_kernel(%arg0: memref<16x128xbf16, #tpu.memory_space<vmem>>, %arg1: memref<2x128xf32, #tpu.memory_space<vmem>>, %arg2: memref<128x128xbf16, #tpu.memory_space<vmem>>, %arg3: memref<128x128xbf16, #tpu.memory_space<vmem>>, %arg4: memref<1x128xf32, #tpu.memory_space<vmem>>, %arg5: memref<128x128xbf16, #tpu.memory_space<vmem>>, %arg6: memref<1x128xf32, #tpu.memory_space<vmem>>, %arg7: memref<16x128xf32, #tpu.memory_space<vmem>>, %arg8: memref<16x128xf32, #tpu.memory_space<vmem>>) attributes {dimension_semantics = [], scalar_prefetch = 0 : i64, scratch_operands = 1 : i64, tpu.core_type = #tpu.core_type<tc>} {
    %c0 = arith.constant 0 : index
    %c0_0 = arith.constant 0 : index
    %0 = vector.load %arg0[%c0, %c0_0] : memref<16x128xbf16, #tpu.memory_space<vmem>>, vector<16x128xbf16>
    %c0_1 = arith.constant 0 : index
    %c0_2 = arith.constant 0 : index
    %1 = vector.load %arg2[%c0_1, %c0_2] : memref<128x128xbf16, #tpu.memory_space<vmem>>, vector<128x128xbf16>
    %cst = arith.constant dense<0.000000e+00> : vector<16x128xf32>
    %2 = tpu.matmul %0, %1, %cst {dimension_numbers = #tpu.dot_dimension_numbers<[1], [0], [0], [1], [0, 0, 1, 1], [], []>} : vector<16x128xbf16>, vector<128x128xbf16>, vector<16x128xf32> -> vector<16x128xf32>
    %c0_3 = arith.constant 0 : index
    %c0_4 = arith.constant 0 : index
    %3 = vector.load %arg1[%c0_3, %c0_4] : memref<2x128xf32, #tpu.memory_space<vmem>>, vector<2x128xf32>
    %4 = arith.truncf %3 : vector<2x128xf32> to vector<2x128xbf16>
    %c0_5 = arith.constant 0 : index
    %c0_6 = arith.constant 0 : index
    %5 = vector.load %arg2[%c0_5, %c0_6] : memref<128x128xbf16, #tpu.memory_space<vmem>>, vector<128x128xbf16>
    %cst_7 = arith.constant dense<0.000000e+00> : vector<2x128xf32>
    %6 = tpu.matmul %4, %5, %cst_7 {dimension_numbers = #tpu.dot_dimension_numbers<[1], [0], [0], [1], [0, 0, 1, 1], [], []>} : vector<2x128xbf16>, vector<128x128xbf16>, vector<2x128xf32> -> vector<2x128xf32>
    %c0_8 = arith.constant 0 : index
    %c0_9 = arith.constant 0 : index
    %7 = vector.load %arg4[%c0_8, %c0_9] : memref<1x128xf32, #tpu.memory_space<vmem>>, vector<1x128xf32>
    %8 = vector.broadcast %7 : vector<1x128xf32> to vector<16x128xf32>
    %9 = arith.addf %2, %8 : vector<16x128xf32>
    %cst_10 = arith.constant 0.000000e+00 : f32
    %10 = vector.broadcast %cst_10 : f32 to vector<2x128xf32>
    %11 = vector.extract_strided_slice %9 {offsets = [0, 0], sizes = [2, 128], strides = [1, 1]} : vector<16x128xf32> to vector<2x128xf32>
    %12 = arith.addf %11, %6 : vector<2x128xf32>
    %13 = arith.truncf %10 : vector<2x128xf32> to vector<2x128xbf16>
    %c0_11 = arith.constant 0 : index
    %c0_12 = arith.constant 0 : index
    %14 = vector.load %arg3[%c0_11, %c0_12] : memref<128x128xbf16, #tpu.memory_space<vmem>>, vector<128x128xbf16>
    %cst_13 = arith.constant dense<0.000000e+00> : vector<2x128xf32>
    %15 = tpu.matmul %13, %14, %cst_13 {dimension_numbers = #tpu.dot_dimension_numbers<[1], [0], [0], [1], [0, 0, 1, 1], [], []>} : vector<2x128xbf16>, vector<128x128xbf16>, vector<2x128xf32> -> vector<2x128xf32>
    %16 = arith.addf %12, %15 : vector<2x128xf32>
    %17 = math.tanh %16 : vector<2x128xf32>
    %c0_14 = arith.constant 0 : index
    %c0_15 = arith.constant 0 : index
    %18 = vector.load %arg8[%c0_14, %c0_15] : memref<16x128xf32, #tpu.memory_space<vmem>>, vector<2x128xf32>
    tpu.vector_store %arg8[%c0_14, %c0_15], %17 {strides = array<i32>} : memref<16x128xf32, #tpu.memory_space<vmem>>, vector<2x128xf32>,
    %19 = vector.extract_strided_slice %9 {offsets = [2, 0], sizes = [2, 128], strides = [1, 1]} : vector<16x128xf32> to vector<2x128xf32>
    %20 = arith.addf %19, %6 : vector<2x128xf32>
    %21 = arith.truncf %17 : vector<2x128xf32> to vector<2x128xbf16>
    %c0_16 = arith.constant 0 : index
    %c0_17 = arith.constant 0 : index
    %22 = vector.load %arg3[%c0_16, %c0_17] : memref<128x128xbf16, #tpu.memory_space<vmem>>, vector<128x128xbf16>
    %cst_18 = arith.constant dense<0.000000e+00> : vector<2x128xf32>
    %23 = tpu.matmul %21, %22, %cst_18 {dimension_numbers = #tpu.dot_dimension_numbers<[1], [0], [0], [1], [0, 0, 1, 1], [], []>} : vector<2x128xbf16>, vector<128x128xbf16>, vector<2x128xf32> -> vector<2x128xf32>
    %24 = arith.addf %20, %23 : vector<2x128xf32>
    %25 = math.tanh %24 : vector<2x128xf32>
    %c2 = arith.constant 2 : index
    %c0_19 = arith.constant 0 : index
    %26 = vector.load %arg8[%c2, %c0_19] : memref<16x128xf32, #tpu.memory_space<vmem>>, vector<2x128xf32>
    tpu.vector_store %arg8[%c2, %c0_19], %25 {strides = array<i32>} : memref<16x128xf32, #tpu.memory_space<vmem>>, vector<2x128xf32>,
    %27 = vector.extract_strided_slice %9 {offsets = [4, 0], sizes = [2, 128], strides = [1, 1]} : vector<16x128xf32> to vector<2x128xf32>
    %28 = arith.addf %27, %6 : vector<2x128xf32>
    %29 = arith.truncf %25 : vector<2x128xf32> to vector<2x128xbf16>
    %c0_20 = arith.constant 0 : index
    %c0_21 = arith.constant 0 : index
    %30 = vector.load %arg3[%c0_20, %c0_21] : memref<128x128xbf16, #tpu.memory_space<vmem>>, vector<128x128xbf16>
    %cst_22 = arith.constant dense<0.000000e+00> : vector<2x128xf32>
    %31 = tpu.matmul %29, %30, %cst_22 {dimension_numbers = #tpu.dot_dimension_numbers<[1], [0], [0], [1], [0, 0, 1, 1], [], []>} : vector<2x128xbf16>, vector<128x128xbf16>, vector<2x128xf32> -> vector<2x128xf32>
    %32 = arith.addf %28, %31 : vector<2x128xf32>
    %33 = math.tanh %32 : vector<2x128xf32>
    %c4 = arith.constant 4 : index
    %c0_23 = arith.constant 0 : index
    %34 = vector.load %arg8[%c4, %c0_23] : memref<16x128xf32, #tpu.memory_space<vmem>>, vector<2x128xf32>
    tpu.vector_store %arg8[%c4, %c0_23], %33 {strides = array<i32>} : memref<16x128xf32, #tpu.memory_space<vmem>>, vector<2x128xf32>,
    %35 = vector.extract_strided_slice %9 {offsets = [6, 0], sizes = [2, 128], strides = [1, 1]} : vector<16x128xf32> to vector<2x128xf32>
    %36 = arith.addf %35, %6 : vector<2x128xf32>
    %37 = arith.truncf %33 : vector<2x128xf32> to vector<2x128xbf16>
    %c0_24 = arith.constant 0 : index
    %c0_25 = arith.constant 0 : index
    %38 = vector.load %arg3[%c0_24, %c0_25] : memref<128x128xbf16, #tpu.memory_space<vmem>>, vector<128x128xbf16>
    %cst_26 = arith.constant dense<0.000000e+00> : vector<2x128xf32>
    %39 = tpu.matmul %37, %38, %cst_26 {dimension_numbers = #tpu.dot_dimension_numbers<[1], [0], [0], [1], [0, 0, 1, 1], [], []>} : vector<2x128xbf16>, vector<128x128xbf16>, vector<2x128xf32> -> vector<2x128xf32>
    %40 = arith.addf %36, %39 : vector<2x128xf32>
    %41 = math.tanh %40 : vector<2x128xf32>
    %c6 = arith.constant 6 : index
    %c0_27 = arith.constant 0 : index
    %42 = vector.load %arg8[%c6, %c0_27] : memref<16x128xf32, #tpu.memory_space<vmem>>, vector<2x128xf32>
    tpu.vector_store %arg8[%c6, %c0_27], %41 {strides = array<i32>} : memref<16x128xf32, #tpu.memory_space<vmem>>, vector<2x128xf32>,
    %43 = vector.extract_strided_slice %9 {offsets = [8, 0], sizes = [2, 128], strides = [1, 1]} : vector<16x128xf32> to vector<2x128xf32>
    %44 = arith.addf %43, %6 : vector<2x128xf32>
    %45 = arith.truncf %41 : vector<2x128xf32> to vector<2x128xbf16>
    %c0_28 = arith.constant 0 : index
    %c0_29 = arith.constant 0 : index
    %46 = vector.load %arg3[%c0_28, %c0_29] : memref<128x128xbf16, #tpu.memory_space<vmem>>, vector<128x128xbf16>
    %cst_30 = arith.constant dense<0.000000e+00> : vector<2x128xf32>
    %47 = tpu.matmul %45, %46, %cst_30 {dimension_numbers = #tpu.dot_dimension_numbers<[1], [0], [0], [1], [0, 0, 1, 1], [], []>} : vector<2x128xbf16>, vector<128x128xbf16>, vector<2x128xf32> -> vector<2x128xf32>
    %48 = arith.addf %44, %47 : vector<2x128xf32>
    %49 = math.tanh %48 : vector<2x128xf32>
    %c8 = arith.constant 8 : index
    %c0_31 = arith.constant 0 : index
    %50 = vector.load %arg8[%c8, %c0_31] : memref<16x128xf32, #tpu.memory_space<vmem>>, vector<2x128xf32>
    tpu.vector_store %arg8[%c8, %c0_31], %49 {strides = array<i32>} : memref<16x128xf32, #tpu.memory_space<vmem>>, vector<2x128xf32>,
    %51 = vector.extract_strided_slice %9 {offsets = [10, 0], sizes = [2, 128], strides = [1, 1]} : vector<16x128xf32> to vector<2x128xf32>
    %52 = arith.addf %51, %6 : vector<2x128xf32>
    %53 = arith.truncf %49 : vector<2x128xf32> to vector<2x128xbf16>
    %c0_32 = arith.constant 0 : index
    %c0_33 = arith.constant 0 : index
    %54 = vector.load %arg3[%c0_32, %c0_33] : memref<128x128xbf16, #tpu.memory_space<vmem>>, vector<128x128xbf16>
    %cst_34 = arith.constant dense<0.000000e+00> : vector<2x128xf32>
    %55 = tpu.matmul %53, %54, %cst_34 {dimension_numbers = #tpu.dot_dimension_numbers<[1], [0], [0], [1], [0, 0, 1, 1], [], []>} : vector<2x128xbf16>, vector<128x128xbf16>, vector<2x128xf32> -> vector<2x128xf32>
    %56 = arith.addf %52, %55 : vector<2x128xf32>
    %57 = math.tanh %56 : vector<2x128xf32>
    %c10 = arith.constant 10 : index
    %c0_35 = arith.constant 0 : index
    %58 = vector.load %arg8[%c10, %c0_35] : memref<16x128xf32, #tpu.memory_space<vmem>>, vector<2x128xf32>
    tpu.vector_store %arg8[%c10, %c0_35], %57 {strides = array<i32>} : memref<16x128xf32, #tpu.memory_space<vmem>>, vector<2x128xf32>,
    %59 = vector.extract_strided_slice %9 {offsets = [12, 0], sizes = [2, 128], strides = [1, 1]} : vector<16x128xf32> to vector<2x128xf32>
    %60 = arith.addf %59, %6 : vector<2x128xf32>
    %61 = arith.truncf %57 : vector<2x128xf32> to vector<2x128xbf16>
    %c0_36 = arith.constant 0 : index
    %c0_37 = arith.constant 0 : index
    %62 = vector.load %arg3[%c0_36, %c0_37] : memref<128x128xbf16, #tpu.memory_space<vmem>>, vector<128x128xbf16>
    %cst_38 = arith.constant dense<0.000000e+00> : vector<2x128xf32>
    %63 = tpu.matmul %61, %62, %cst_38 {dimension_numbers = #tpu.dot_dimension_numbers<[1], [0], [0], [1], [0, 0, 1, 1], [], []>} : vector<2x128xbf16>, vector<128x128xbf16>, vector<2x128xf32> -> vector<2x128xf32>
    %64 = arith.addf %60, %63 : vector<2x128xf32>
    %65 = math.tanh %64 : vector<2x128xf32>
    %c12 = arith.constant 12 : index
    %c0_39 = arith.constant 0 : index
    %66 = vector.load %arg8[%c12, %c0_39] : memref<16x128xf32, #tpu.memory_space<vmem>>, vector<2x128xf32>
    tpu.vector_store %arg8[%c12, %c0_39], %65 {strides = array<i32>} : memref<16x128xf32, #tpu.memory_space<vmem>>, vector<2x128xf32>,
    %67 = vector.extract_strided_slice %9 {offsets = [14, 0], sizes = [2, 128], strides = [1, 1]} : vector<16x128xf32> to vector<2x128xf32>
    %68 = arith.addf %67, %6 : vector<2x128xf32>
    %69 = arith.truncf %65 : vector<2x128xf32> to vector<2x128xbf16>
    %c0_40 = arith.constant 0 : index
    %c0_41 = arith.constant 0 : index
    %70 = vector.load %arg3[%c0_40, %c0_41] : memref<128x128xbf16, #tpu.memory_space<vmem>>, vector<128x128xbf16>
    %cst_42 = arith.constant dense<0.000000e+00> : vector<2x128xf32>
    %71 = tpu.matmul %69, %70, %cst_42 {dimension_numbers = #tpu.dot_dimension_numbers<[1], [0], [0], [1], [0, 0, 1, 1], [], []>} : vector<2x128xbf16>, vector<128x128xbf16>, vector<2x128xf32> -> vector<2x128xf32>
    %72 = arith.addf %68, %71 : vector<2x128xf32>
    %73 = math.tanh %72 : vector<2x128xf32>
    %c14 = arith.constant 14 : index
    %c0_43 = arith.constant 0 : index
    %74 = vector.load %arg8[%c14, %c0_43] : memref<16x128xf32, #tpu.memory_space<vmem>>, vector<2x128xf32>
    tpu.vector_store %arg8[%c14, %c0_43], %73 {strides = array<i32>} : memref<16x128xf32, #tpu.memory_space<vmem>>, vector<2x128xf32>,
    %c0_44 = arith.constant 0 : index
    %c0_45 = arith.constant 0 : index
    %75 = vector.load %arg8[%c0_44, %c0_45] : memref<16x128xf32, #tpu.memory_space<vmem>>, vector<16x128xf32>
    %76 = arith.truncf %75 : vector<16x128xf32> to vector<16x128xbf16>
    %c0_46 = arith.constant 0 : index
    %c0_47 = arith.constant 0 : index
    %77 = vector.load %arg5[%c0_46, %c0_47] : memref<128x128xbf16, #tpu.memory_space<vmem>>, vector<128x128xbf16>
    %cst_48 = arith.constant dense<0.000000e+00> : vector<16x128xf32>
    %78 = tpu.matmul %76, %77, %cst_48 {dimension_numbers = #tpu.dot_dimension_numbers<[1], [0], [0], [1], [0, 0, 1, 1], [], []>} : vector<16x128xbf16>, vector<128x128xbf16>, vector<16x128xf32> -> vector<16x128xf32>
    %c0_49 = arith.constant 0 : index
    %c0_50 = arith.constant 0 : index
    %79 = vector.load %arg6[%c0_49, %c0_50] : memref<1x128xf32, #tpu.memory_space<vmem>>, vector<1x128xf32>
    %80 = vector.broadcast %79 : vector<1x128xf32> to vector<16x128xf32>
    %81 = arith.addf %78, %80 : vector<16x128xf32>
    %c0_51 = arith.constant 0 : index
    %c0_52 = arith.constant 0 : index
    %82 = vector.load %arg7[%c0_51, %c0_52] : memref<16x128xf32, #tpu.memory_space<vmem>>, vector<16x128xf32>
    tpu.vector_store %arg7[%c0_51, %c0_52], %81 {strides = array<i32>} : memref<16x128xf32, #tpu.memory_space<vmem>>, vector<16x128xf32>,
    return
  }
}

</mosaic_0001>

<llo_original>
// kernel: image_caption_forward.3
$region0: #{image_caption_forward.3}
  #allocation0 [shape = 'u32[]', space=smem, size = 0x4, offset = 0x4, fixed_abs, tag = 'smem constant byte address 0x4 - core index']
  #allocation1 [shape = 'u32[72,128]{1,0:T(1,128)}', space=vmem, size = 0x9000, scoped, tag = 'internal scratch']
  #allocation2 [shape = 'f32[16,128]{1,0:T(8,128)}', space=vmem, size = 0x2000, scoped, tag = 'scratch operand']
  %s0 = inlined_call_operand.vmem [shape: bf16[16,128], index: 0, kind: input, shape index: {}]
  %s1 = inlined_call_operand.vmem [shape: f32[2,128], index: 1, kind: input, shape index: {}]
  %s2 = inlined_call_operand.vmem [shape: bf16[128,128], index: 2, kind: input, shape index: {}]
  %s3 = inlined_call_operand.vmem [shape: bf16[128,128], index: 3, kind: input, shape index: {}]
  %s4 = inlined_call_operand.vmem [shape: f32[1,128], index: 4, kind: input, shape index: {}]
  %s5 = inlined_call_operand.vmem [shape: bf16[128,128], index: 5, kind: input, shape index: {}]
  %s6 = inlined_call_operand.vmem [shape: f32[1,128], index: 6, kind: input, shape index: {}]
  %s7 = inlined_call_operand.vmem [shape: f32[16,128], index: 7, kind: output, shape index: {}]
  %s8 = sld [smem:[#allocation0]]
  $region38: #{image_caption_forward.3} parent=0
    _
  %s10 = ssub.s32 1, %s8
  %s11 = scalar_select 0, %s10, %s8
  // Predicated region
  $region2: #{image_caption_forward.3} parent=0 // pred_check
    _
  $region3: #{image_caption_forward.3} parent=0 // pred_check_branch
    %13 = sbr.rel (0) target = $region5
  $region4: #{image_caption_forward.3} parent=0 // pred_region
    _
  $region5: #{image_caption_forward.3} parent=0 // pred_fallthru
    _
  // Predicated region
  $region6: #{image_caption_forward.3} parent=0 // pred_check
    _
  $region7: #{image_caption_forward.3} parent=0 // pred_check_branch
    %15 = sbr.rel (0) target = $region9
  $region8: #{image_caption_forward.3} parent=0 // pred_region
    _
  $region9: #{image_caption_forward.3} parent=0 // pred_fallthru
    _
  // Predicated region
  $region10: #{image_caption_forward.3} parent=0 // pred_check
    _
  $region11: #{image_caption_forward.3} parent=0 // pred_check_branch
    %17 = sbr.rel (0) target = $region13
  $region12: #{image_caption_forward.3} parent=0 // pred_region
    _
  $region13: #{image_caption_forward.3} parent=0 // pred_fallthru
    _
  // Predicated region
  $region14: #{image_caption_forward.3} parent=0 // pred_check
    _
  $region15: #{image_caption_forward.3} parent=0 // pred_check_branch
    %19 = sbr.rel (0) target = $region17
  $region16: #{image_caption_forward.3} parent=0 // pred_region
    _
  $region17: #{image_caption_forward.3} parent=0 // pred_fallthru
    _
  // Predicated region
  $region18: #{image_caption_forward.3} parent=0 // pred_check
    _
  $region19: #{image_caption_forward.3} parent=0 // pred_check_branch
    %21 = sbr.rel (0) target = $region21
  $region20: #{image_caption_forward.3} parent=0 // pred_region
    _
  $region21: #{image_caption_forward.3} parent=0 // pred_fallthru
    _
  // Predicated region
  $region22: #{image_caption_forward.3} parent=0 // pred_check
    _
  $region23: #{image_caption_forward.3} parent=0 // pred_check_branch
    %23 = sbr.rel (0) target = $region25
  $region24: #{image_caption_forward.3} parent=0 // pred_region
    _
  $region25: #{image_caption_forward.3} parent=0 // pred_fallthru
    _
  // Predicated region
  $region26: #{image_caption_forward.3} parent=0 // pred_check
    _
  $region27: #{image_caption_forward.3} parent=0 // pred_check_branch
    %25 = sbr.rel (0) target = $region29
  $region28: #{image_caption_forward.3} parent=0 // pred_region
    _
  $region29: #{image_caption_forward.3} parent=0 // pred_fallthru
    _
  %v27 = vld [vmem:[%s0] sm:$0xf]
  %v28 = vld [vmem:[%s0 + $0x4] sm:$0xf]
  %v29 = vld [vmem:[%s2] sm:$0xf]
  %v30 = vld [vmem:[%s2 + $0x4] sm:$0xf]
  %v31 = vld [vmem:[%s2 + $0x8] sm:$0xf]
  %v32 = vld [vmem:[%s2 + $0xc] sm:$0xf]
  %v33 = vld [vmem:[%s2 + $0x10] sm:$0xf]
  %v34 = vld [vmem:[%s2 + $0x14] sm:$0xf]
  %v35 = vld [vmem:[%s2 + $0x18] sm:$0xf]
  %v36 = vld [vmem:[%s2 + $0x1c] sm:$0xf]
  %v37 = vld [vmem:[%s2 + $0x20] sm:$0xf]
  %v38 = vld [vmem:[%s2 + $0x24] sm:$0xf]
  %v39 = vld [vmem:[%s2 + $0x28] sm:$0xf]
  %v40 = vld [vmem:[%s2 + $0x2c] sm:$0xf]
  %v41 = vld [vmem:[%s2 + $0x30] sm:$0xf]
  %v42 = vld [vmem:[%s2 + $0x34] sm:$0xf]
  %v43 = vld [vmem:[%s2 + $0x38] sm:$0xf]
  %v44 = vld [vmem:[%s2 + $0x3c] sm:$0xf]
  %v45 = vld [vmem:[%s1] sm:$0x3]
  %v46 = vpack.c.bf16 %v45, %v45
  %v63 = vunpack.c.l.b16 %v29
  %v64 = vunpack.c.l.b16 %v30
  %v65 = vunpack.c.l.b16 %v31
  %v66 = vunpack.c.l.b16 %v32
  %v67 = vunpack.c.l.b16 %v33
  %v68 = vunpack.c.l.b16 %v34
  %v69 = vunpack.c.l.b16 %v35
  %v70 = vunpack.c.l.b16 %v36
  %v71 = vunpack.c.l.b16 %v37
  %v72 = vunpack.c.l.b16 %v38
  %v73 = vunpack.c.l.b16 %v39
  %v74 = vunpack.c.l.b16 %v40
  %v75 = vunpack.c.l.b16 %v41
  %v76 = vunpack.c.l.b16 %v42
  %v77 = vunpack.c.l.b16 %v43
  %v78 = vunpack.c.l.b16 %v44
  %v79 = vpack.c.b16 %v64, %v63
  %v80 = vpack.c.b16 %v66, %v65
  %v81 = vpack.c.b16 %v68, %v67
  %v82 = vpack.c.b16 %v70, %v69
  %v83 = vpack.c.b16 %v72, %v71
  %v84 = vpack.c.b16 %v74, %v73
  %v85 = vpack.c.b16 %v76, %v75
  %v86 = vpack.c.b16 %v78, %v77
  %95 = vmatpush.bf16.msra.mxu0 %v86
  %96 = vmatpush.bf16.msra.mxu0 %v85
  %97 = vmatpush.bf16.msra.mxu0 %v84
  %98 = vmatpush.bf16.msra.mxu0 %v83
  %99 = vmatpush.bf16.msra.mxu0 %v82
  %100 = vmatpush.bf16.msra.mxu0 %v81
  %101 = vmatpush.bf16.msra.mxu0 %v80
  %102 = vmatpush.bf16.msra.mxu0 %v79
  %103 = vmatmul.bf16.gmra.mxu0 %v46
  %v104 = vpop.f32.mrf.mxu0
  %v105 = vadd.f32 0.0, %v104
  %v106 = vpop.f32.mrf.mxu0
  %107 = vdwg.mxu0
  %v108 = vld [vmem:[%s4] sm:$0x1]
  %v110 = vperm.slane %v108, 0
  %v114 = vunpack.c.l.b16 %v27
  %v115 = vunpack.c.l.b16 %v28
  %v116 = vpack.c.b16 %v115, %v114
  %118 = vmatpush.bf16.msra.mxu0 %v86
  %119 = vmatpush.bf16.msra.mxu0 %v85
  %120 = vmatpush.bf16.msra.mxu0 %v84
  %121 = vmatpush.bf16.msra.mxu0 %v83
  %122 = vmatpush.bf16.msra.mxu0 %v82
  %123 = vmatpush.bf16.msra.mxu0 %v81
  %124 = vmatpush.bf16.msra.mxu0 %v80
  %125 = vmatpush.bf16.msra.mxu0 %v79
  %126 = vmatmul.bf16.gmra.mxu0 %v116
  %v127 = vpop.f32.mrf.mxu0
  %v128 = vadd.f32 %v110, %v127
  %v129 = vpop.f32.mrf.mxu0
  %v130 = vadd.f32 %v110, %v129
  %131 = vdwg.mxu0
  %v132 = vadd.f32 %v128, %v105
  %v133 = vld [vmem:[%s3] sm:$0xf]
  %v134 = vld [vmem:[%s3 + $0x4] sm:$0xf]
  %v135 = vld [vmem:[%s3 + $0x8] sm:$0xf]
  %v136 = vld [vmem:[%s3 + $0xc] sm:$0xf]
  %v137 = vld [vmem:[%s3 + $0x10] sm:$0xf]
  %v138 = vld [vmem:[%s3 + $0x14] sm:$0xf]
  %v139 = vld [vmem:[%s3 + $0x18] sm:$0xf]
  %v140 = vld [vmem:[%s3 + $0x1c] sm:$0xf]
  %v141 = vld [vmem:[%s3 + $0x20] sm:$0xf]
  %v142 = vld [vmem:[%s3 + $0x24] sm:$0xf]
  %v143 = vld [vmem:[%s3 + $0x28] sm:$0xf]
  %v144 = vld [vmem:[%s3 + $0x2c] sm:$0xf]
  %v145 = vld [vmem:[%s3 + $0x30] sm:$0xf]
  %v146 = vld [vmem:[%s3 + $0x34] sm:$0xf]
  %v147 = vld [vmem:[%s3 + $0x38] sm:$0xf]
  %v148 = vld [vmem:[%s3 + $0x3c] sm:$0xf]
  %v165 = vunpack.c.l.b16 %v133
  %v166 = vunpack.c.l.b16 %v134
  %v167 = vunpack.c.l.b16 %v135
  %v168 = vunpack.c.l.b16 %v136
  %v169 = vunpack.c.l.b16 %v137
  %v170 = vunpack.c.l.b16 %v138
  %v171 = vunpack.c.l.b16 %v139
  %v172 = vunpack.c.l.b16 %v140
  %v173 = vunpack.c.l.b16 %v141
  %v174 = vunpack.c.l.b16 %v142
  %v175 = vunpack.c.l.b16 %v143
  %v176 = vunpack.c.l.b16 %v144
  %v177 = vunpack.c.l.b16 %v145
  %v178 = vunpack.c.l.b16 %v146
  %v179 = vunpack.c.l.b16 %v147
  %v180 = vunpack.c.l.b16 %v148
  %v181 = vpack.c.b16 %v166, %v165
  %v182 = vpack.c.b16 %v168, %v167
  %v183 = vpack.c.b16 %v170, %v169
  %v184 = vpack.c.b16 %v172, %v171
  %v185 = vpack.c.b16 %v174, %v173
  %v186 = vpack.c.b16 %v176, %v175
  %v187 = vpack.c.b16 %v178, %v177
  %v188 = vpack.c.b16 %v180, %v179
  %197 = vmatpush.bf16.msra.mxu0 %v188
  %198 = vmatpush.bf16.msra.mxu0 %v187
  %199 = vmatpush.bf16.msra.mxu0 %v186
  %200 = vmatpush.bf16.msra.mxu0 %v185
  %201 = vmatpush.bf16.msra.mxu0 %v184
  %202 = vmatpush.bf16.msra.mxu0 %v183
  %203 = vmatpush.bf16.msra.mxu0 %v182
  %204 = vmatpush.bf16.msra.mxu0 %v181
  %205 = vmatmul.bf16.gmra.mxu0 0
  %v206 = vpop.f32.mrf.mxu0
  %v207 = vadd.f32 0.0, %v206
  %v208 = vpop.f32.mrf.mxu0
  %209 = vdwg.mxu0
  %v210 = vadd.f32 %v132, %v207
  %v211 = vtanh.pop %v210
  %212 = vst [vmem:[#allocation2] sm:$0x3] %v211
  %v214 = vrot.slane %v105, 6
  %v216 = vadd.f32 %v128, %v214
  %v217 = vpack.c.bf16 %v211, %v211
  %v218 = vld [vmem:[%s3] sm:$0xf]
  %v219 = vld [vmem:[%s3 + $0x4] sm:$0xf]
  %v220 = vld [vmem:[%s3 + $0x8] sm:$0xf]
  %v221 = vld [vmem:[%s3 + $0xc] sm:$0xf]
  %v222 = vld [vmem:[%s3 + $0x10] sm:$0xf]
  %v223 = vld [vmem:[%s3 + $0x14] sm:$0xf]
  %v224 = vld [vmem:[%s3 + $0x18] sm:$0xf]
  %v225 = vld [vmem:[%s3 + $0x1c] sm:$0xf]
  %v226 = vld [vmem:[%s3 + $0x20] sm:$0xf]
  %v227 = vld [vmem:[%s3 + $0x24] sm:$0xf]
  %v228 = vld [vmem:[%s3 + $0x28] sm:$0xf]
  %v229 = vld [vmem:[%s3 + $0x2c] sm:$0xf]
  %v230 = vld [vmem:[%s3 + $0x30] sm:$0xf]
  %v231 = vld [vmem:[%s3 + $0x34] sm:$0xf]
  %v232 = vld [vmem:[%s3 + $0x38] sm:$0xf]
  %v233 = vld [vmem:[%s3 + $0x3c] sm:$0xf]
  %v250 = vunpack.c.l.b16 %v218
  %v251 = vunpack.c.l.b16 %v219
  %v252 = vunpack.c.l.b16 %v220
  %v253 = vunpack.c.l.b16 %v221
  %v254 = vunpack.c.l.b16 %v222
  %v255 = vunpack.c.l.b16 %v223
  %v256 = vunpack.c.l.b16 %v224
  %v257 = vunpack.c.l.b16 %v225
  %v258 = vunpack.c.l.b16 %v226
  %v259 = vunpack.c.l.b16 %v227
  %v260 = vunpack.c.l.b16 %v228
  %v261 = vunpack.c.l.b16 %v229
  %v262 = vunpack.c.l.b16 %v230
  %v263 = vunpack.c.l.b16 %v231
  %v264 = vunpack.c.l.b16 %v232
  %v265 = vunpack.c.l.b16 %v233
  %v266 = vpack.c.b16 %v251, %v250
  %v267 = vpack.c.b16 %v253, %v252
  %v268 = vpack.c.b16 %v255, %v254
  %v269 = vpack.c.b16 %v257, %v256
  %v270 = vpack.c.b16 %v259, %v258
  %v271 = vpack.c.b16 %v261, %v260
  %v272 = vpack.c.b16 %v263, %v262
  %v273 = vpack.c.b16 %v265, %v264
  %282 = vmatpush.bf16.msra.mxu0 %v273
  %283 = vmatpush.bf16.msra.mxu0 %v272
  %284 = vmatpush.bf16.msra.mxu0 %v271
  %285 = vmatpush.bf16.msra.mxu0 %v270
  %286 = vmatpush.bf16.msra.mxu0 %v269
  %287 = vmatpush.bf16.msra.mxu0 %v268
  %288 = vmatpush.bf16.msra.mxu0 %v267
  %289 = vmatpush.bf16.msra.mxu0 %v266
  %290 = vmatmul.bf16.gmra.mxu0 %v217
  %v291 = vpop.f32.mrf.mxu0
  %v292 = vadd.f32 0.0, %v291
  %v293 = vpop.f32.mrf.mxu0
  %294 = vdwg.mxu0
  %v296 = vrot.slane %v292, 6
  %v298 = vadd.f32 %v216, %v296
  %v299 = vtanh.pop %v298
  %300 = vst [vmem:[#allocation2] sm:$0xc] %v299
  %v301 = vrot.slane %v105, 4
  %v303 = vadd.f32 %v128, %v301
  %v304 = vpack.c.bf16 %v299, %v299
  %v305 = vld [vmem:[%s3] sm:$0xf]
  %v306 = vld [vmem:[%s3 + $0x4] sm:$0xf]
  %v307 = vld [vmem:[%s3 + $0x8] sm:$0xf]
  %v308 = vld [vmem:[%s3 + $0xc] sm:$0xf]
  %v309 = vld [vmem:[%s3 + $0x10] sm:$0xf]
  %v310 = vld [vmem:[%s3 + $0x14] sm:$0xf]
  %v311 = vld [vmem:[%s3 + $0x18] sm:$0xf]
  %v312 = vld [vmem:[%s3 + $0x1c] sm:$0xf]
  %v313 = vld [vmem:[%s3 + $0x20] sm:$0xf]
  %v314 = vld [vmem:[%s3 + $0x24] sm:$0xf]
  %v315 = vld [vmem:[%s3 + $0x28] sm:$0xf]
  %v316 = vld [vmem:[%s3 + $0x2c] sm:$0xf]
  %v317 = vld [vmem:[%s3 + $0x30] sm:$0xf]
  %v318 = vld [vmem:[%s3 + $0x34] sm:$0xf]
  %v319 = vld [vmem:[%s3 + $0x38] sm:$0xf]
  %v320 = vld [vmem:[%s3 + $0x3c] sm:$0xf]
  %v322 = vrot.slane %v304, 1
  %v340 = vunpack.c.l.b16 %v305
  %v341 = vunpack.c.l.b16 %v306
  %v342 = vunpack.c.l.b16 %v307
  %v343 = vunpack.c.l.b16 %v308
  %v344 = vunpack.c.l.b16 %v309
  %v345 = vunpack.c.l.b16 %v310
  %v346 = vunpack.c.l.b16 %v311
  %v347 = vunpack.c.l.b16 %v312
  %v348 = vunpack.c.l.b16 %v313
  %v349 = vunpack.c.l.b16 %v314
  %v350 = vunpack.c.l.b16 %v315
  %v351 = vunpack.c.l.b16 %v316
  %v352 = vunpack.c.l.b16 %v317
  %v353 = vunpack.c.l.b16 %v318
  %v354 = vunpack.c.l.b16 %v319
  %v355 = vunpack.c.l.b16 %v320
  %v356 = vpack.c.b16 %v341, %v340
  %v357 = vpack.c.b16 %v343, %v342
  %v358 = vpack.c.b16 %v345, %v344
  %v359 = vpack.c.b16 %v347, %v346
  %v360 = vpack.c.b16 %v349, %v348
  %v361 = vpack.c.b16 %v351, %v350
  %v362 = vpack.c.b16 %v353, %v352
  %v363 = vpack.c.b16 %v355, %v354
  %372 = vmatpush.bf16.msra.mxu0 %v363
  %373 = vmatpush.bf16.msra.mxu0 %v362
  %374 = vmatpush.bf16.msra.mxu0 %v361
  %375 = vmatpush.bf16.msra.mxu0 %v360
  %376 = vmatpush.bf16.msra.mxu0 %v359
  %377 = vmatpush.bf16.msra.mxu0 %v358
  %378 = vmatpush.bf16.msra.mxu0 %v357
  %379 = vmatpush.bf16.msra.mxu0 %v356
  %380 = vmatmul.bf16.gmra.mxu0 %v322
  %v381 = vpop.f32.mrf.mxu0
  %v382 = vadd.f32 0.0, %v381
  %v383 = vpop.f32.mrf.mxu0
  %384 = vdwg.mxu0
  %v386 = vrot.slane %v382, 4
  %v388 = vadd.f32 %v303, %v386
  %v389 = vtanh.pop %v388
  %390 = vst [vmem:[#allocation2] sm:$0x30] %v389
  %v391 = vrot.slane %v105, 2
  %v393 = vadd.f32 %v128, %v391
  %v394 = vpack.c.bf16 %v389, %v389
  %v395 = vld [vmem:[%s3] sm:$0xf]
  %v396 = vld [vmem:[%s3 + $0x4] sm:$0xf]
  %v397 = vld [vmem:[%s3 + $0x8] sm:$0xf]
  %v398 = vld [vmem:[%s3 + $0xc] sm:$0xf]
  %v399 = vld [vmem:[%s3 + $0x10] sm:$0xf]
  %v400 = vld [vmem:[%s3 + $0x14] sm:$0xf]
  %v401 = vld [vmem:[%s3 + $0x18] sm:$0xf]
  %v402 = vld [vmem:[%s3 + $0x1c] sm:$0xf]
  %v403 = vld [vmem:[%s3 + $0x20] sm:$0xf]
  %v404 = vld [vmem:[%s3 + $0x24] sm:$0xf]
  %v405 = vld [vmem:[%s3 + $0x28] sm:$0xf]
  %v406 = vld [vmem:[%s3 + $0x2c] sm:$0xf]
  %v407 = vld [vmem:[%s3 + $0x30] sm:$0xf]
  %v408 = vld [vmem:[%s3 + $0x34] sm:$0xf]
  %v409 = vld [vmem:[%s3 + $0x38] sm:$0xf]
  %v410 = vld [vmem:[%s3 + $0x3c] sm:$0xf]
  %v412 = vrot.slane %v394, 2
  %v430 = vunpack.c.l.b16 %v395
  %v431 = vunpack.c.l.b16 %v396
  %v432 = vunpack.c.l.b16 %v397
  %v433 = vunpack.c.l.b16 %v398
  %v434 = vunpack.c.l.b16 %v399
  %v435 = vunpack.c.l.b16 %v400
  %v436 = vunpack.c.l.b16 %v401
  %v437 = vunpack.c.l.b16 %v402
  %v438 = vunpack.c.l.b16 %v403
  %v439 = vunpack.c.l.b16 %v404
  %v440 = vunpack.c.l.b16 %v405
  %v441 = vunpack.c.l.b16 %v406
  %v442 = vunpack.c.l.b16 %v407
  %v443 = vunpack.c.l.b16 %v408
  %v444 = vunpack.c.l.b16 %v409
  %v445 = vunpack.c.l.b16 %v410
  %v446 = vpack.c.b16 %v431, %v430
  %v447 = vpack.c.b16 %v433, %v432
  %v448 = vpack.c.b16 %v435, %v434
  %v449 = vpack.c.b16 %v437, %v436
  %v450 = vpack.c.b16 %v439, %v438
  %v451 = vpack.c.b16 %v441, %v440
  %v452 = vpack.c.b16 %v443, %v442
  %v453 = vpack.c.b16 %v445, %v444
  %462 = vmatpush.bf16.msra.mxu0 %v453
  %463 = vmatpush.bf16.msra.mxu0 %v452
  %464 = vmatpush.bf16.msra.mxu0 %v451
  %465 = vmatpush.bf16.msra.mxu0 %v450
  %466 = vmatpush.bf16.msra.mxu0 %v449
  %467 = vmatpush.bf16.msra.mxu0 %v448
  %468 = vmatpush.bf16.msra.mxu0 %v447
  %469 = vmatpush.bf16.msra.mxu0 %v446
  %470 = vmatmul.bf16.gmra.mxu0 %v412
  %v471 = vpop.f32.mrf.mxu0
  %v472 = vadd.f32 0.0, %v471
  %v473 = vpop.f32.mrf.mxu0
  %474 = vdwg.mxu0
  %v476 = vrot.slane %v472, 2
  %v478 = vadd.f32 %v393, %v476
  %v479 = vtanh.pop %v478
  %480 = vst [vmem:[#allocation2] sm:$0xc0] %v479
  %v481 = vadd.f32 %v130, %v105
  %v482 = vpack.c.bf16 %v479, %v479
  %v483 = vld [vmem:[%s3] sm:$0xf]
  %v484 = vld [vmem:[%s3 + $0x4] sm:$0xf]
  %v485 = vld [vmem:[%s3 + $0x8] sm:$0xf]
  %v486 = vld [vmem:[%s3 + $0xc] sm:$0xf]
  %v487 = vld [vmem:[%s3 + $0x10] sm:$0xf]
  %v488 = vld [vmem:[%s3 + $0x14] sm:$0xf]
  %v489 = vld [vmem:[%s3 + $0x18] sm:$0xf]
  %v490 = vld [vmem:[%s3 + $0x1c] sm:$0xf]
  %v491 = vld [vmem:[%s3 + $0x20] sm:$0xf]
  %v492 = vld [vmem:[%s3 + $0x24] sm:$0xf]
  %v493 = vld [vmem:[%s3 + $0x28] sm:$0xf]
  %v494 = vld [vmem:[%s3 + $0x2c] sm:$0xf]
  %v495 = vld [vmem:[%s3 + $0x30] sm:$0xf]
  %v496 = vld [vmem:[%s3 + $0x34] sm:$0xf]
  %v497 = vld [vmem:[%s3 + $0x38] sm:$0xf]
  %v498 = vld [vmem:[%s3 + $0x3c] sm:$0xf]
  %v500 = vrot.slane %v482, 3
  %v518 = vunpack.c.l.b16 %v483
  %v519 = vunpack.c.l.b16 %v484
  %v520 = vunpack.c.l.b16 %v485
  %v521 = vunpack.c.l.b16 %v486
  %v522 = vunpack.c.l.b16 %v487
  %v523 = vunpack.c.l.b16 %v488
  %v524 = vunpack.c.l.b16 %v489
  %v525 = vunpack.c.l.b16 %v490
  %v526 = vunpack.c.l.b16 %v491
  %v527 = vunpack.c.l.b16 %v492
  %v528 = vunpack.c.l.b16 %v493
  %v529 = vunpack.c.l.b16 %v494
  %v530 = vunpack.c.l.b16 %v495
  %v531 = vunpack.c.l.b16 %v496
  %v532 = vunpack.c.l.b16 %v497
  %v533 = vunpack.c.l.b16 %v498
  %v534 = vpack.c.b16 %v519, %v518
  %v535 = vpack.c.b16 %v521, %v520
  %v536 = vpack.c.b16 %v523, %v522
  %v537 = vpack.c.b16 %v525, %v524
  %v538 = vpack.c.b16 %v527, %v526
  %v539 = vpack.c.b16 %v529, %v528
  %v540 = vpack.c.b16 %v531, %v530
  %v541 = vpack.c.b16 %v533, %v532
  %550 = vmatpush.bf16.msra.mxu0 %v541
  %551 = vmatpush.bf16.msra.mxu0 %v540
  %552 = vmatpush.bf16.msra.mxu0 %v539
  %553 = vmatpush.bf16.msra.mxu0 %v538
  %554 = vmatpush.bf16.msra.mxu0 %v537
  %555 = vmatpush.bf16.msra.mxu0 %v536
  %556 = vmatpush.bf16.msra.mxu0 %v535
  %557 = vmatpush.bf16.msra.mxu0 %v534
  %558 = vmatmul.bf16.gmra.mxu0 %v500
  %v559 = vpop.f32.mrf.mxu0
  %v560 = vadd.f32 0.0, %v559
  %v561 = vpop.f32.mrf.mxu0
  %562 = vdwg.mxu0
  %v563 = vadd.f32 %v481, %v560
  %v564 = vtanh.pop %v563
  %565 = vst [vmem:[#allocation2 + $0x8] sm:$0x3] %v564
  %v566 = vadd.f32 %v130, %v214
  %v567 = vpack.c.bf16 %v564, %v564
  %v568 = vld [vmem:[%s3] sm:$0xf]
  %v569 = vld [vmem:[%s3 + $0x4] sm:$0xf]
  %v570 = vld [vmem:[%s3 + $0x8] sm:$0xf]
  %v571 = vld [vmem:[%s3 + $0xc] sm:$0xf]
  %v572 = vld [vmem:[%s3 + $0x10] sm:$0xf]
  %v573 = vld [vmem:[%s3 + $0x14] sm:$0xf]
  %v574 = vld [vmem:[%s3 + $0x18] sm:$0xf]
  %v575 = vld [vmem:[%s3 + $0x1c] sm:$0xf]
  %v576 = vld [vmem:[%s3 + $0x20] sm:$0xf]
  %v577 = vld [vmem:[%s3 + $0x24] sm:$0xf]
  %v578 = vld [vmem:[%s3 + $0x28] sm:$0xf]
  %v579 = vld [vmem:[%s3 + $0x2c] sm:$0xf]
  %v580 = vld [vmem:[%s3 + $0x30] sm:$0xf]
  %v581 = vld [vmem:[%s3 + $0x34] sm:$0xf]
  %v582 = vld [vmem:[%s3 + $0x38] sm:$0xf]
  %v583 = vld [vmem:[%s3 + $0x3c] sm:$0xf]
  %v600 = vunpack.c.l.b16 %v568
  %v601 = vunpack.c.l.b16 %v569
  %v602 = vunpack.c.l.b16 %v570
  %v603 = vunpack.c.l.b16 %v571
  %v604 = vunpack.c.l.b16 %v572
  %v605 = vunpack.c.l.b16 %v573
  %v606 = vunpack.c.l.b16 %v574
  %v607 = vunpack.c.l.b16 %v575
  %v608 = vunpack.c.l.b16 %v576
  %v609 = vunpack.c.l.b16 %v577
  %v610 = vunpack.c.l.b16 %v578
  %v611 = vunpack.c.l.b16 %v579
  %v612 = vunpack.c.l.b16 %v580
  %v613 = vunpack.c.l.b16 %v581
  %v614 = vunpack.c.l.b16 %v582
  %v615 = vunpack.c.l.b16 %v583
  %v616 = vpack.c.b16 %v601, %v600
  %v617 = vpack.c.b16 %v603, %v602
  %v618 = vpack.c.b16 %v605, %v604
  %v619 = vpack.c.b16 %v607, %v606
  %v620 = vpack.c.b16 %v609, %v608
  %v621 = vpack.c.b16 %v611, %v610
  %v622 = vpack.c.b16 %v613, %v612
  %v623 = vpack.c.b16 %v615, %v614
  %632 = vmatpush.bf16.msra.mxu0 %v623
  %633 = vmatpush.bf16.msra.mxu0 %v622
  %634 = vmatpush.bf16.msra.mxu0 %v621
  %635 = vmatpush.bf16.msra.mxu0 %v620
  %636 = vmatpush.bf16.msra.mxu0 %v619
  %637 = vmatpush.bf16.msra.mxu0 %v618
  %638 = vmatpush.bf16.msra.mxu0 %v617
  %639 = vmatpush.bf16.msra.mxu0 %v616
  %640 = vmatmul.bf16.gmra.mxu0 %v567
  %v641 = vpop.f32.mrf.mxu0
  %v642 = vadd.f32 0.0, %v641
  %v643 = vpop.f32.mrf.mxu0
  %644 = vdwg.mxu0
  %v646 = vrot.slane %v642, 6
  %v648 = vadd.f32 %v566, %v646
  %v649 = vtanh.pop %v648
  %650 = vst [vmem:[#allocation2 + $0x8] sm:$0xc] %v649
  %v651 = vadd.f32 %v130, %v301
  %v652 = vpack.c.bf16 %v649, %v649
  %v653 = vld [vmem:[%s3] sm:$0xf]
  %v654 = vld [vmem:[%s3 + $0x4] sm:$0xf]
  %v655 = vld [vmem:[%s3 + $0x8] sm:$0xf]
  %v656 = vld [vmem:[%s3 + $0xc] sm:$0xf]
  %v657 = vld [vmem:[%s3 + $0x10] sm:$0xf]
  %v658 = vld [vmem:[%s3 + $0x14] sm:$0xf]
  %v659 = vld [vmem:[%s3 + $0x18] sm:$0xf]
  %v660 = vld [vmem:[%s3 + $0x1c] sm:$0xf]
  %v661 = vld [vmem:[%s3 + $0x20] sm:$0xf]
  %v662 = vld [vmem:[%s3 + $0x24] sm:$0xf]
  %v663 = vld [vmem:[%s3 + $0x28] sm:$0xf]
  %v664 = vld [vmem:[%s3 + $0x2c] sm:$0xf]
  %v665 = vld [vmem:[%s3 + $0x30] sm:$0xf]
  %v666 = vld [vmem:[%s3 + $0x34] sm:$0xf]
  %v667 = vld [vmem:[%s3 + $0x38] sm:$0xf]
  %v668 = vld [vmem:[%s3 + $0x3c] sm:$0xf]
  %v670 = vrot.slane %v652, 1
  %v688 = vunpack.c.l.b16 %v653
  %v689 = vunpack.c.l.b16 %v654
  %v690 = vunpack.c.l.b16 %v655
  %v691 = vunpack.c.l.b16 %v656
  %v692 = vunpack.c.l.b16 %v657
  %v693 = vunpack.c.l.b16 %v658
  %v694 = vunpack.c.l.b16 %v659
  %v695 = vunpack.c.l.b16 %v660
  %v696 = vunpack.c.l.b16 %v661
  %v697 = vunpack.c.l.b16 %v662
  %v698 = vunpack.c.l.b16 %v663
  %v699 = vunpack.c.l.b16 %v664
  %v700 = vunpack.c.l.b16 %v665
  %v701 = vunpack.c.l.b16 %v666
  %v702 = vunpack.c.l.b16 %v667
  %v703 = vunpack.c.l.b16 %v668
  %v704 = vpack.c.b16 %v689, %v688
  %v705 = vpack.c.b16 %v691, %v690
  %v706 = vpack.c.b16 %v693, %v692
  %v707 = vpack.c.b16 %v695, %v694
  %v708 = vpack.c.b16 %v697, %v696
  %v709 = vpack.c.b16 %v699, %v698
  %v710 = vpack.c.b16 %v701, %v700
  %v711 = vpack.c.b16 %v703, %v702
  %720 = vmatpush.bf16.msra.mxu0 %v711
  %721 = vmatpush.bf16.msra.mxu0 %v710
  %722 = vmatpush.bf16.msra.mxu0 %v709
  %723 = vmatpush.bf16.msra.mxu0 %v708
  %724 = vmatpush.bf16.msra.mxu0 %v707
  %725 = vmatpush.bf16.msra.mxu0 %v706
  %726 = vmatpush.bf16.msra.mxu0 %v705
  %727 = vmatpush.bf16.msra.mxu0 %v704
  %728 = vmatmul.bf16.gmra.mxu0 %v670
  %v729 = vpop.f32.mrf.mxu0
  %v730 = vadd.f32 0.0, %v729
  %v731 = vpop.f32.mrf.mxu0
  %732 = vdwg.mxu0
  %v734 = vrot.slane %v730, 4
  %v736 = vadd.f32 %v651, %v734
  %v737 = vtanh.pop %v736
  %738 = vst [vmem:[#allocation2 + $0x8] sm:$0x30] %v737
  %v739 = vadd.f32 %v130, %v391
  %v740 = vpack.c.bf16 %v737, %v737
  %v741 = vld [vmem:[%s3] sm:$0xf]
  %v742 = vld [vmem:[%s3 + $0x4] sm:$0xf]
  %v743 = vld [vmem:[%s3 + $0x8] sm:$0xf]
  %v744 = vld [vmem:[%s3 + $0xc] sm:$0xf]
  %v745 = vld [vmem:[%s3 + $0x10] sm:$0xf]
  %v746 = vld [vmem:[%s3 + $0x14] sm:$0xf]
  %v747 = vld [vmem:[%s3 + $0x18] sm:$0xf]
  %v748 = vld [vmem:[%s3 + $0x1c] sm:$0xf]
  %v749 = vld [vmem:[%s3 + $0x20] sm:$0xf]
  %v750 = vld [vmem:[%s3 + $0x24] sm:$0xf]
  %v751 = vld [vmem:[%s3 + $0x28] sm:$0xf]
  %v752 = vld [vmem:[%s3 + $0x2c] sm:$0xf]
  %v753 = vld [vmem:[%s3 + $0x30] sm:$0xf]
  %v754 = vld [vmem:[%s3 + $0x34] sm:$0xf]
  %v755 = vld [vmem:[%s3 + $0x38] sm:$0xf]
  %v756 = vld [vmem:[%s3 + $0x3c] sm:$0xf]
  %v758 = vrot.slane %v740, 2
  %v776 = vunpack.c.l.b16 %v741
  %v777 = vunpack.c.l.b16 %v742
  %v778 = vunpack.c.l.b16 %v743
  %v779 = vunpack.c.l.b16 %v744
  %v780 = vunpack.c.l.b16 %v745
  %v781 = vunpack.c.l.b16 %v746
  %v782 = vunpack.c.l.b16 %v747
  %v783 = vunpack.c.l.b16 %v748
  %v784 = vunpack.c.l.b16 %v749
  %v785 = vunpack.c.l.b16 %v750
  %v786 = vunpack.c.l.b16 %v751
  %v787 = vunpack.c.l.b16 %v752
  %v788 = vunpack.c.l.b16 %v753
  %v789 = vunpack.c.l.b16 %v754
  %v790 = vunpack.c.l.b16 %v755
  %v791 = vunpack.c.l.b16 %v756
  %v792 = vpack.c.b16 %v777, %v776
  %v793 = vpack.c.b16 %v779, %v778
  %v794 = vpack.c.b16 %v781, %v780
  %v795 = vpack.c.b16 %v783, %v782
  %v796 = vpack.c.b16 %v785, %v784
  %v797 = vpack.c.b16 %v787, %v786
  %v798 = vpack.c.b16 %v789, %v788
  %v799 = vpack.c.b16 %v791, %v790
  %808 = vmatpush.bf16.msra.mxu0 %v799
  %809 = vmatpush.bf16.msra.mxu0 %v798
  %810 = vmatpush.bf16.msra.mxu0 %v797
  %811 = vmatpush.bf16.msra.mxu0 %v796
  %812 = vmatpush.bf16.msra.mxu0 %v795
  %813 = vmatpush.bf16.msra.mxu0 %v794
  %814 = vmatpush.bf16.msra.mxu0 %v793
  %815 = vmatpush.bf16.msra.mxu0 %v792
  %816 = vmatmul.bf16.gmra.mxu0 %v758
  %v817 = vpop.f32.mrf.mxu0
  %v818 = vadd.f32 0.0, %v817
  %v819 = vpop.f32.mrf.mxu0
  %820 = vdwg.mxu0
  %v822 = vrot.slane %v818, 2
  %v824 = vadd.f32 %v739, %v822
  %v825 = vtanh.pop %v824
  %826 = vst [vmem:[#allocation2 + $0x8] sm:$0xc0] %v825
  %v827 = vld [vmem:[#allocation2] sm:$0xff]
  %v828 = vld [vmem:[#allocation2 + $0x8] sm:$0xff]
  %v829 = vpack.c.bf16 %v828, %v827
  %v830 = vld [vmem:[%s5] sm:$0xf]
  %v831 = vld [vmem:[%s5 + $0x4] sm:$0xf]
  %v832 = vld [vmem:[%s5 + $0x8] sm:$0xf]
  %v833 = vld [vmem:[%s5 + $0xc] sm:$0xf]
  %v834 = vld [vmem:[%s5 + $0x10] sm:$0xf]
  %v835 = vld [vmem:[%s5 + $0x14] sm:$0xf]
  %v836 = vld [vmem:[%s5 + $0x18] sm:$0xf]
  %v837 = vld [vmem:[%s5 + $0x1c] sm:$0xf]
  %v838 = vld [vmem:[%s5 + $0x20] sm:$0xf]
  %v839 = vld [vmem:[%s5 + $0x24] sm:$0xf]
  %v840 = vld [vmem:[%s5 + $0x28] sm:$0xf]
  %v841 = vld [vmem:[%s5 + $0x2c] sm:$0xf]
  %v842 = vld [vmem:[%s5 + $0x30] sm:$0xf]
  %v843 = vld [vmem:[%s5 + $0x34] sm:$0xf]
  %v844 = vld [vmem:[%s5 + $0x38] sm:$0xf]
  %v845 = vld [vmem:[%s5 + $0x3c] sm:$0xf]
  %v846 = vld [vmem:[%s6] sm:$0x1]
  %v848 = vperm.slane %v846, 0
  %v866 = vunpack.c.l.b16 %v830
  %v867 = vunpack.c.l.b16 %v831
  %v868 = vunpack.c.l.b16 %v832
  %v869 = vunpack.c.l.b16 %v833
  %v870 = vunpack.c.l.b16 %v834
  %v871 = vunpack.c.l.b16 %v835
  %v872 = vunpack.c.l.b16 %v836
  %v873 = vunpack.c.l.b16 %v837
  %v874 = vunpack.c.l.b16 %v838
  %v875 = vunpack.c.l.b16 %v839
  %v876 = vunpack.c.l.b16 %v840
  %v877 = vunpack.c.l.b16 %v841
  %v878 = vunpack.c.l.b16 %v842
  %v879 = vunpack.c.l.b16 %v843
  %v880 = vunpack.c.l.b16 %v844
  %v881 = vunpack.c.l.b16 %v845
  %v882 = vpack.c.b16 %v867, %v866
  %v883 = vpack.c.b16 %v869, %v868
  %v884 = vpack.c.b16 %v871, %v870
  %v885 = vpack.c.b16 %v873, %v872
  %v886 = vpack.c.b16 %v875, %v874
  %v887 = vpack.c.b16 %v877, %v876
  %v888 = vpack.c.b16 %v879, %v878
  %v889 = vpack.c.b16 %v881, %v880
  %898 = vmatpush.bf16.msra.mxu0 %v889
  %899 = vmatpush.bf16.msra.mxu0 %v888
  %900 = vmatpush.bf16.msra.mxu0 %v887
  %901 = vmatpush.bf16.msra.mxu0 %v886
  %902 = vmatpush.bf16.msra.mxu0 %v885
  %903 = vmatpush.bf16.msra.mxu0 %v884
  %904 = vmatpush.bf16.msra.mxu0 %v883
  %905 = vmatpush.bf16.msra.mxu0 %v882
  %906 = vmatmul.bf16.gmra.mxu0 %v829
  %v907 = vpop.f32.mrf.mxu0
  %v908 = vadd.f32 %v848, %v907
  %v909 = vpop.f32.mrf.mxu0
  %v910 = vadd.f32 %v848, %v909
  %911 = vdwg.mxu0
  %912 = vst [vmem:[%s7] sm:$0xff] %v908
  %913 = vst [vmem:[%s7 + $0x8] sm:$0xff] %v910
  // Predicated region
  $region30: #{image_caption_forward.3} parent=0 // pred_check
    _
  $region31: #{image_caption_forward.3} parent=0 // pred_check_branch
    %915 = sbr.rel (0) target = $region33
  $region32: #{image_caption_forward.3} parent=0 // pred_region
    _
  $region33: #{image_caption_forward.3} parent=0 // pred_fallthru
    _
  // Predicated region
  $region34: #{image_caption_forward.3} parent=0 // pred_check
    _
  $region35: #{image_caption_forward.3} parent=0 // pred_check_branch
    %917 = sbr.rel (0) target = $region37
  $region36: #{image_caption_forward.3} parent=0 // pred_region
    _
  $region37: #{image_caption_forward.3} parent=0 // pred_fallthru
    _

// kernel: image_caption_forward.2
$region0: #{image_caption_forward.2}
  #allocation0 [shape = 'u32[]', space=smem, size = 0x4, offset = 0x4, fixed_abs, tag = 'smem constant byte address 0x4 - core index']
  #allocation1 [shape = 'u32[72,128]{1,0:T(1,128)}', space=vmem, size = 0x9000, scoped, tag = 'internal scratch']
  #allocation2 [shape = 'f32[2,18,18,16]{3,2,1,0:T(8,128)}', space=vmem, size = 0x6c000, scoped, tag = 'scratch operand']
  #allocation3 [shape = 'f32[512,144]{1,0:T(8,128)}', space=vmem, size = 0x80000, scoped, tag = 'scratch operand']
  %s0 = inlined_call_operand.vmem [shape: bf16[512,27], index: 0, kind: input, shape index: {}]
  %s1 = inlined_call_operand.vmem [shape: bf16[27,16], index: 1, kind: input, shape index: {}]
  %s2 = inlined_call_operand.vmem [shape: f32[1,16], index: 2, kind: input, shape index: {}]
  %s3 = inlined_call_operand.vmem [shape: bf16[144,16], index: 3, kind: input, shape index: {}]
  %s4 = inlined_call_operand.vmem [shape: f32[1,16], index: 4, kind: input, shape index: {}]
  %s5 = inlined_call_operand.vmem [shape: bf16[144,16], index: 5, kind: input, shape index: {}]
  %s6 = inlined_call_operand.vmem [shape: f32[1,16], index: 6, kind: input, shape index: {}]
  %s7 = inlined_call_operand.vmem [shape: bf16[16,128], index: 7, kind: input, shape index: {}]
  %s8 = inlined_call_operand.vmem [shape: f32[1,128], index: 8, kind: input, shape index: {}]
  %s9 = inlined_call_operand.vmem [shape: f32[2,128], index: 9, kind: output, shape index: {}]
  %s10 = sld [smem:[#allocation0]]
  $region46: #{image_caption_forward.2} parent=0
    _
  %s12 = ssub.s32 1, %s10
  %s13 = scalar_select 0, %s12, %s10
  // Predicated region
  $region2: #{image_caption_forward.2} parent=0 // pred_check
    _
  $region3: #{image_caption_forward.2} parent=0 // pred_check_branch
    %15 = sbr.rel (0) target = $region5
  $region4: #{image_caption_forward.2} parent=0 // pred_region
    _
  $region5: #{image_caption_forward.2} parent=0 // pred_fallthru
    _
  // Predicated region
  $region6: #{image_caption_forward.2} parent=0 // pred_check
    _
  $region7: #{image_caption_forward.2} parent=0 // pred_check_branch
    %17 = sbr.rel (0) target = $region9
  $region8: #{image_caption_forward.2} parent=0 // pred_region
    _
  $region9: #{image_caption_forward.2} parent=0 // pred_fallthru
    _
  // Predicated region
  $region10: #{image_caption_forward.2} parent=0 // pred_check
    _
  $region11: #{image_caption_forward.2} parent=0 // pred_check_branch
    %19 = sbr.rel (0) target = $region13
  $region12: #{image_caption_forward.2} parent=0 // pred_region
    _
  $region13: #{image_caption_forward.2} parent=0 // pred_fallthru
    _
  // Predicated region
  $region14: #{image_caption_forward.2} parent=0 // pred_check
    _
  $region15: #{image_caption_forward.2} parent=0 // pred_check_branch
    %21 = sbr.rel (0) target = $region17
  $region16: #{image_caption_forward.2} parent=0 // pred_region
    _
  $region17: #{image_caption_forward.2} parent=0 // pred_fallthru
    _
  // Predicated region
  $region18: #{image_caption_forward.2} parent=0 // pred_check
    _
  $region19: #{image_caption_forward.2} parent=0 // pred_check_branch
    %23 = sbr.rel (0) target = $region21
  $region20: #{image_caption_forward.2} parent=0 // pred_region
    _
  $region21: #{image_caption_forward.2} parent=0 // pred_fallthru
    _
  // Predicated region
  $region22: #{image_caption_forward.2} parent=0 // pred_check
    _
  $region23: #{image_caption_forward.2} parent=0 // pred_check_branch
    %25 = sbr.rel (0) target = $region25
  $region24: #{image_caption_forward.2} parent=0 // pred_region
    _
  $region25: #{image_caption_forward.2} parent=0 // pred_fallthru
    _
  // Predicated region
  $region26: #{image_caption_forward.2} parent=0 // pred_check
    _
  $region27: #{image_caption_forward.2} parent=0 // pred_check_branch
    %27 = sbr.rel (0) target = $region29
  $region28: #{image_caption_forward.2} parent=0 // pred_region
    _
  $region29: #{image_caption_forward.2} parent=0 // pred_fallthru
    _
  // Predicated region
  $region30: #{image_caption_forward.2} parent=0 // pred_check
    _
  $region31: #{image_caption_forward.2} parent=0 // pred_check_branch
    %29 = sbr.rel (0) target = $region33
  $region32: #{image_caption_forward.2} parent=0 // pred_region
    _
  $region33: #{image_caption_forward.2} parent=0 // pred_fallthru
    _
  // Predicated region
  $region34: #{image_caption_forward.2} parent=0 // pred_check
    _
  $region35: #{image_caption_forward.2} parent=0 // pred_check_branch
    %31 = sbr.rel (0) target = $region37
  $region36: #{image_caption_forward.2} parent=0 // pred_region
    _
  $region37: #{image_caption_forward.2} parent=0 // pred_fallthru
    _
  %v33 = vld [vmem:[%s0] sm:$0xf]
  %v34 = vld [vmem:[%s0 + $0x4] sm:$0xf]
  %v35 = vld [vmem:[%s0 + $0x8] sm:$0xf]
  %v36 = vld [vmem:[%s0 + $0xc] sm:$0xf]
  %v37 = vld [vmem:[%s0 + $0x10] sm:$0xf]
  %v38 = vld [vmem:[%s0 + $0x14] sm:$0xf]
  %v39 = vld [vmem:[%s0 + $0x18] sm:$0xf]
  %v40 = vld [vmem:[%s0 + $0x1c] sm:$0xf]
  %v41 = vld [vmem:[%s0 + $0x20] sm:$0xf]
  %v42 = vld [vmem:[%s0 + $0x24] sm:$0xf]
  %v43 = vld [vmem:[%s0 + $0x28] sm:$0xf]
  %v44 = vld [vmem:[%s0 + $0x2c] sm:$0xf]
  %v45 = vld [vmem:[%s0 + $0x30] sm:$0xf]
  %v46 = vld [vmem:[%s0 + $0x34] sm:$0xf]
  %v47 = vld [vmem:[%s0 + $0x38] sm:$0xf]
  %v48 = vld [vmem:[%s0 + $0x3c] sm:$0xf]
  %v49 = vld [vmem:[%s0 + $0x40] sm:$0xf]
  %v50 = vld [vmem:[%s0 + $0x44] sm:$0xf]
  %v51 = vld [vmem:[%s0 + $0x48] sm:$0xf]
  %v52 = vld [vmem:[%s0 + $0x4c] sm:$0xf]
  %v53 = vld [vmem:[%s0 + $0x50] sm:$0xf]
  %v54 = vld [vmem:[%s0 + $0x54] sm:$0xf]
  %v55 = vld [vmem:[%s0 + $0x58] sm:$0xf]
  %v56 = vld [vmem:[%s0 + $0x5c] sm:$0xf]
  %v57 = vld [vmem:[%s0 + $0x60] sm:$0xf]
  %v58 = vld [vmem:[%s0 + $0x64] sm:$0xf]
  %v59 = vld [vmem:[%s0 + $0x68] sm:$0xf]
  %v60 = vld [vmem:[%s0 + $0x6c] sm:$0xf]
  %v61 = vld [vmem:[%s0 + $0x70] sm:$0xf]
  %v62 = vld [vmem:[%s0 + $0x74] sm:$0xf]
  %v63 = vld [vmem:[%s0 + $0x78] sm:$0xf]
  %v64 = vld [vmem:[%s0 + $0x7c] sm:$0xf]
  %v65 = vld [vmem:[%s0 + $0x80] sm:$0xf]
  %v66 = vld [vmem:[%s0 + $0x84] sm:$0xf]
  %v67 = vld [vmem:[%s0 + $0x88] sm:$0xf]
  %v68 = vld [vmem:[%s0 + $0x8c] sm:$0xf]
  %v69 = vld [vmem:[%s0 + $0x90] sm:$0xf]
  %v70 = vld [vmem:[%s0 + $0x94] sm:$0xf]
  %v71 = vld [vmem:[%s0 + $0x98] sm:$0xf]
  %v72 = vld [vmem:[%s0 + $0x9c] sm:$0xf]
  %v73 = vld [vmem:[%s0 + $0xa0] sm:$0xf]
  %v74 = vld [vmem:[%s0 + $0xa4] sm:$0xf]
  %v75 = vld [vmem:[%s0 + $0xa8] sm:$0xf]
  %v76 = vld [vmem:[%s0 + $0xac] sm:$0xf]
  %v77 = vld [vmem:[%s0 + $0xb0] sm:$0xf]
  %v78 = vld [vmem:[%s0 + $0xb4] sm:$0xf]
  %v79 = vld [vmem:[%s0 + $0xb8] sm:$0xf]
  %v80 = vld [vmem:[%s0 + $0xbc] sm:$0xf]
  %v81 = vld [vmem:[%s0 + $0xc0] sm:$0xf]
  %v82 = vld [vmem:[%s0 + $0xc4] sm:$0xf]
  %v83 = vld [vmem:[%s0 + $0xc8] sm:$0xf]
  %v84 = vld [vmem:[%s0 + $0xcc] sm:$0xf]
  %v85 = vld [vmem:[%s0 + $0xd0] sm:$0xf]
  %v86 = vld [vmem:[%s0 + $0xd4] sm:$0xf]
  %v87 = vld [vmem:[%s0 + $0xd8] sm:$0xf]
  %v88 = vld [vmem:[%s0 + $0xdc] sm:$0xf]
  %v89 = vld [vmem:[%s0 + $0xe0] sm:$0xf]
  %v90 = vld [vmem:[%s0 + $0xe4] sm:$0xf]
  %v91 = vld [vmem:[%s0 + $0xe8] sm:$0xf]
  %v92 = vld [vmem:[%s0 + $0xec] sm:$0xf]
  %v93 = vld [vmem:[%s0 + $0xf0] sm:$0xf]
  %v94 = vld [vmem:[%s0 + $0xf4] sm:$0xf]
  %v95 = vld [vmem:[%s0 + $0xf8] sm:$0xf]
  %v96 = vld [vmem:[%s0 + $0xfc] sm:$0xf]
  %v97 = vld [vmem:[%s1] sm:$0xf]
  %v98 = vld [vmem:[%s1 + $0x4] sm:$0xf]
  %v99 = vld [vmem:[%s1 + $0x8] sm:$0xf]
  %v100 = vld [vmem:[%s1 + $0xc] sm:$0x3]
  %v101 = vld [vmem:[%s2] sm:$0x1]
  %v103 = vperm.slane %v101, 0
  %v169 = vunpack.c.l.b16 %v33
  %v170 = vunpack.c.l.b16 %v34
  %v171 = vunpack.c.l.b16 %v35
  %v172 = vunpack.c.l.b16 %v36
  %v173 = vunpack.c.l.b16 %v37
  %v174 = vunpack.c.l.b16 %v38
  %v175 = vunpack.c.l.b16 %v39
  %v176 = vunpack.c.l.b16 %v40
  %v177 = vunpack.c.l.b16 %v41
  %v178 = vunpack.c.l.b16 %v42
  %v179 = vunpack.c.l.b16 %v43
  %v180 = vunpack.c.l.b16 %v44
  %v181 = vunpack.c.l.b16 %v45
  %v182 = vunpack.c.l.b16 %v46
  %v183 = vunpack.c.l.b16 %v47
  %v184 = vunpack.c.l.b16 %v48
  %v185 = vunpack.c.l.b16 %v49
  %v186 = vunpack.c.l.b16 %v50
  %v187 = vunpack.c.l.b16 %v51
  %v188 = vunpack.c.l.b16 %v52
  %v189 = vunpack.c.l.b16 %v53
  %v190 = vunpack.c.l.b16 %v54
  %v191 = vunpack.c.l.b16 %v55
  %v192 = vunpack.c.l.b16 %v56
  %v193 = vunpack.c.l.b16 %v57
  %v194 = vunpack.c.l.b16 %v58
  %v195 = vunpack.c.l.b16 %v59
  %v196 = vunpack.c.l.b16 %v60
  %v197 = vunpack.c.l.b16 %v61
  %v198 = vunpack.c.l.b16 %v62
  %v199 = vunpack.c.l.b16 %v63
  %v200 = vunpack.c.l.b16 %v64
  %v201 = vunpack.c.l.b16 %v65
  %v202 = vunpack.c.l.b16 %v66
  %v203 = vunpack.c.l.b16 %v67
  %v204 = vunpack.c.l.b16 %v68
  %v205 = vunpack.c.l.b16 %v69
  %v206 = vunpack.c.l.b16 %v70
  %v207 = vunpack.c.l.b16 %v71
  %v208 = vunpack.c.l.b16 %v72
  %v209 = vunpack.c.l.b16 %v73
  %v210 = vunpack.c.l.b16 %v74
  %v211 = vunpack.c.l.b16 %v75
  %v212 = vunpack.c.l.b16 %v76
  %v213 = vunpack.c.l.b16 %v77
  %v214 = vunpack.c.l.b16 %v78
  %v215 = vunpack.c.l.b16 %v79
  %v216 = vunpack.c.l.b16 %v80
  %v217 = vunpack.c.l.b16 %v81
  %v218 = vunpack.c.l.b16 %v82
  %v219 = vunpack.c.l.b16 %v83
  %v220 = vunpack.c.l.b16 %v84
  %v221 = vunpack.c.l.b16 %v85
  %v222 = vunpack.c.l.b16 %v86
  %v223 = vunpack.c.l.b16 %v87
  %v224 = vunpack.c.l.b16 %v88
  %v225 = vunpack.c.l.b16 %v89
  %v226 = vunpack.c.l.b16 %v90
  %v227 = vunpack.c.l.b16 %v91
  %v228 = vunpack.c.l.b16 %v92
  %v229 = vunpack.c.l.b16 %v93
  %v230 = vunpack.c.l.b16 %v94
  %v231 = vunpack.c.l.b16 %v95
  %v232 = vunpack.c.l.b16 %v96
  %v233 = vpack.c.b16 %v170, %v169
  %v234 = vpack.c.b16 %v172, %v171
  %v235 = vpack.c.b16 %v174, %v173
  %v236 = vpack.c.b16 %v176, %v175
  %v237 = vpack.c.b16 %v178, %v177
  %v238 = vpack.c.b16 %v180, %v179
  %v239 = vpack.c.b16 %v182, %v181
  %v240 = vpack.c.b16 %v184, %v183
  %v241 = vpack.c.b16 %v186, %v185
  %v242 = vpack.c.b16 %v188, %v187
  %v243 = vpack.c.b16 %v190, %v189
  %v244 = vpack.c.b16 %v192, %v191
  %v245 = vpack.c.b16 %v194, %v193
  %v246 = vpack.c.b16 %v196, %v195
  %v247 = vpack.c.b16 %v198, %v197
  %v248 = vpack.c.b16 %v200, %v199
  %v249 = vpack.c.b16 %v202, %v201
  %v250 = vpack.c.b16 %v204, %v203
  %v251 = vpack.c.b16 %v206, %v205
  %v252 = vpack.c.b16 %v208, %v207
  %v253 = vpack.c.b16 %v210, %v209
  %v254 = vpack.c.b16 %v212, %v211
  %v255 = vpack.c.b16 %v214, %v213
  %v256 = vpack.c.b16 %v216, %v215
  %v257 = vpack.c.b16 %v218, %v217
  %v258 = vpack.c.b16 %v220, %v219
  %v259 = vpack.c.b16 %v222, %v221
  %v260 = vpack.c.b16 %v224, %v223
  %v261 = vpack.c.b16 %v226, %v225
  %v262 = vpack.c.b16 %v228, %v227
  %v263 = vpack.c.b16 %v230, %v229
  %v264 = vpack.c.b16 %v232, %v231
  %v269 = vunpack.c.l.b16 %v97
  %v270 = vunpack.c.l.b16 %v98
  %v271 = vunpack.c.l.b16 %v99
  %v272 = vunpack.c.l.b16 %v100
  %v273 = vpack.c.b16 %v270, %v269
  %v274 = vpack.c.b16 %v272, %v271
  %vm276 = vcmask 220160
  %v278 = vsel %vm276, %v233, 0
  %v281 = vsel %vm276, %v234, 0
  %v284 = vsel %vm276, %v235, 0
  %v287 = vsel %vm276, %v236, 0
  %v290 = vsel %vm276, %v237, 0
  %v293 = vsel %vm276, %v238, 0
  %v296 = vsel %vm276, %v239, 0
  %v299 = vsel %vm276, %v240, 0
  %v302 = vsel %vm276, %v241, 0
  %v305 = vsel %vm276, %v242, 0
  %v308 = vsel %vm276, %v243, 0
  %v311 = vsel %vm276, %v244, 0
  %v314 = vsel %vm276, %v245, 0
  %v317 = vsel %vm276, %v246, 0
  %v320 = vsel %vm276, %v247, 0
  %v323 = vsel %vm276, %v248, 0
  %v326 = vsel %vm276, %v249, 0
  %v329 = vsel %vm276, %v250, 0
  %v332 = vsel %vm276, %v251, 0
  %v335 = vsel %vm276, %v252, 0
  %v338 = vsel %vm276, %v253, 0
  %v341 = vsel %vm276, %v254, 0
  %v344 = vsel %vm276, %v255, 0
  %v347 = vsel %vm276, %v256, 0
  %v350 = vsel %vm276, %v257, 0
  %v353 = vsel %vm276, %v258, 0
  %v356 = vsel %vm276, %v259, 0
  %v359 = vsel %vm276, %v260, 0
  %v362 = vsel %vm276, %v261, 0
  %v365 = vsel %vm276, %v262, 0
  %v368 = vsel %vm276, %v263, 0
  %v371 = vsel %vm276, %v264, 0
  %vm373 = vcmask 1044480
  %vm374 = vcmask 1045504
  %v375 = vsel %vm373, 4294967295, 65535
  %v376 = vsel %vm374, %v375, 0
  %v378 = vand.u32 %v274, %v376
  %380 = vmatpush.bf16.msra.mxu0 0
  %381 = vmatpush.bf16.msra.mxu0 0
  %382 = vmatpush.bf16.msra.mxu0 0
  %383 = vmatpush.bf16.msra.mxu0 0
  %384 = vmatpush.bf16.msra.mxu0 0
  %385 = vmatpush.bf16.msra.mxu0 0
  %386 = vmatpush.bf16.msra.mxu0 %v378
  %387 = vmatpush.bf16.msra.mxu0 %v273
  %388 = vmatmul.bf16.gmra.mxu0 %v278
  %v389 = vpop.f32.mrf.mxu0
  %v390 = vadd.f32 %v103, %v389
  %v391 = vpop.f32.mrf.mxu0
  %v392 = vadd.f32 %v103, %v391
  %393 = vmatmul.bf16.gmra.mxu0 %v281
  %v394 = vpop.f32.mrf.mxu0
  %v395 = vadd.f32 %v103, %v394
  %v396 = vpop.f32.mrf.mxu0
  %v397 = vadd.f32 %v103, %v396
  %398 = vmatmul.bf16.gmra.mxu0 %v284
  %v399 = vpop.f32.mrf.mxu0
  %v400 = vadd.f32 %v103, %v399
  %v401 = vpop.f32.mrf.mxu0
  %v402 = vadd.f32 %v103, %v401
  %403 = vmatmul.bf16.gmra.mxu0 %v287
  %v404 = vpop.f32.mrf.mxu0
  %v405 = vadd.f32 %v103, %v404
  %v406 = vpop.f32.mrf.mxu0
  %v407 = vadd.f32 %v103, %v406
  %408 = vmatmul.bf16.gmra.mxu0 %v290
  %v409 = vpop.f32.mrf.mxu0
  %v410 = vadd.f32 %v103, %v409
  %v411 = vpop.f32.mrf.mxu0
  %v412 = vadd.f32 %v103, %v411
  %413 = vmatmul.bf16.gmra.mxu0 %v293
  %v414 = vpop.f32.mrf.mxu0
  %v415 = vadd.f32 %v103, %v414
  %v416 = vpop.f32.mrf.mxu0
  %v417 = vadd.f32 %v103, %v416
  %418 = vmatmul.bf16.gmra.mxu0 %v296
  %v419 = vpop.f32.mrf.mxu0
  %v420 = vadd.f32 %v103, %v419
  %v421 = vpop.f32.mrf.mxu0
  %v422 = vadd.f32 %v103, %v421
  %423 = vmatmul.bf16.gmra.mxu0 %v299
  %v424 = vpop.f32.mrf.mxu0
  %v425 = vadd.f32 %v103, %v424
  %v426 = vpop.f32.mrf.mxu0
  %v427 = vadd.f32 %v103, %v426
  %428 = vmatmul.bf16.gmra.mxu0 %v302
  %v429 = vpop.f32.mrf.mxu0
  %v430 = vadd.f32 %v103, %v429
  %v431 = vpop.f32.mrf.mxu0
  %v432 = vadd.f32 %v103, %v431
  %433 = vmatmul.bf16.gmra.mxu0 %v305
  %v434 = vpop.f32.mrf.mxu0
  %v435 = vadd.f32 %v103, %v434
  %v436 = vpop.f32.mrf.mxu0
  %v437 = vadd.f32 %v103, %v436
  %438 = vmatmul.bf16.gmra.mxu0 %v308
  %v439 = vpop.f32.mrf.mxu0
  %v440 = vadd.f32 %v103, %v439
  %v441 = vpop.f32.mrf.mxu0
  %v442 = vadd.f32 %v103, %v441
  %443 = vmatmul.bf16.gmra.mxu0 %v311
  %v444 = vpop.f32.mrf.mxu0
  %v445 = vadd.f32 %v103, %v444
  %v446 = vpop.f32.mrf.mxu0
  %v447 = vadd.f32 %v103, %v446
  %448 = vmatmul.bf16.gmra.mxu0 %v314
  %v449 = vpop.f32.mrf.mxu0
  %v450 = vadd.f32 %v103, %v449
  %v451 = vpop.f32.mrf.mxu0
  %v452 = vadd.f32 %v103, %v451
  %453 = vmatmul.bf16.gmra.mxu0 %v317
  %v454 = vpop.f32.mrf.mxu0
  %v455 = vadd.f32 %v103, %v454
  %v456 = vpop.f32.mrf.mxu0
  %v457 = vadd.f32 %v103, %v456
  %458 = vmatmul.bf16.gmra.mxu0 %v320
  %v459 = vpop.f32.mrf.mxu0
  %v460 = vadd.f32 %v103, %v459
  %v461 = vpop.f32.mrf.mxu0
  %v462 = vadd.f32 %v103, %v461
  %463 = vmatmul.bf16.gmra.mxu0 %v323
  %v464 = vpop.f32.mrf.mxu0
  %v465 = vadd.f32 %v103, %v464
  %v466 = vpop.f32.mrf.mxu0
  %v467 = vadd.f32 %v103, %v466
  %468 = vmatmul.bf16.gmra.mxu0 %v326
  %v469 = vpop.f32.mrf.mxu0
  %v470 = vadd.f32 %v103, %v469
  %v471 = vpop.f32.mrf.mxu0
  %v472 = vadd.f32 %v103, %v471
  %473 = vmatmul.bf16.gmra.mxu0 %v329
  %v474 = vpop.f32.mrf.mxu0
  %v475 = vadd.f32 %v103, %v474
  %v476 = vpop.f32.mrf.mxu0
  %v477 = vadd.f32 %v103, %v476
  %478 = vmatmul.bf16.gmra.mxu0 %v332
  %v479 = vpop.f32.mrf.mxu0
  %v480 = vadd.f32 %v103, %v479
  %v481 = vpop.f32.mrf.mxu0
  %v482 = vadd.f32 %v103, %v481
  %483 = vmatmul.bf16.gmra.mxu0 %v335
  %v484 = vpop.f32.mrf.mxu0
  %v485 = vadd.f32 %v103, %v484
  %v486 = vpop.f32.mrf.mxu0
  %v487 = vadd.f32 %v103, %v486
  %488 = vmatmul.bf16.gmra.mxu0 %v338
  %v489 = vpop.f32.mrf.mxu0
  %v490 = vadd.f32 %v103, %v489
  %v491 = vpop.f32.mrf.mxu0
  %v492 = vadd.f32 %v103, %v491
  %493 = vmatmul.bf16.gmra.mxu0 %v341
  %v494 = vpop.f32.mrf.mxu0
  %v495 = vadd.f32 %v103, %v494
  %v496 = vpop.f32.mrf.mxu0
  %v497 = vadd.f32 %v103, %v496
  %498 = vmatmul.bf16.gmra.mxu0 %v344
  %v499 = vpop.f32.mrf.mxu0
  %v500 = vadd.f32 %v103, %v499
  %v501 = vpop.f32.mrf.mxu0
  %v502 = vadd.f32 %v103, %v501
  %503 = vmatmul.bf16.gmra.mxu0 %v347
  %v504 = vpop.f32.mrf.mxu0
  %v505 = vadd.f32 %v103, %v504
  %v506 = vpop.f32.mrf.mxu0
  %v507 = vadd.f32 %v103, %v506
  %508 = vmatmul.bf16.gmra.mxu0 %v350
  %v509 = vpop.f32.mrf.mxu0
  %v510 = vadd.f32 %v103, %v509
  %v511 = vpop.f32.mrf.mxu0
  %v512 = vadd.f32 %v103, %v511
  %513 = vmatmul.bf16.gmra.mxu0 %v353
  %v514 = vpop.f32.mrf.mxu0
  %v515 = vadd.f32 %v103, %v514
  %v516 = vpop.f32.mrf.mxu0
  %v517 = vadd.f32 %v103, %v516
  %518 = vmatmul.bf16.gmra.mxu0 %v356
  %v519 = vpop.f32.mrf.mxu0
  %v520 = vadd.f32 %v103, %v519
  %v521 = vpop.f32.mrf.mxu0
  %v522 = vadd.f32 %v103, %v521
  %523 = vmatmul.bf16.gmra.mxu0 %v359
  %v524 = vpop.f32.mrf.mxu0
  %v525 = vadd.f32 %v103, %v524
  %v526 = vpop.f32.mrf.mxu0
  %v527 = vadd.f32 %v103, %v526
  %528 = vmatmul.bf16.gmra.mxu0 %v362
  %v529 = vpop.f32.mrf.mxu0
  %v530 = vadd.f32 %v103, %v529
  %v531 = vpop.f32.mrf.mxu0
  %v532 = vadd.f32 %v103, %v531
  %533 = vmatmul.bf16.gmra.mxu0 %v365
  %v534 = vpop.f32.mrf.mxu0
  %v535 = vadd.f32 %v103, %v534
  %v536 = vpop.f32.mrf.mxu0
  %v537 = vadd.f32 %v103, %v536
  %538 = vmatmul.bf16.gmra.mxu0 %v368
  %v539 = vpop.f32.mrf.mxu0
  %v540 = vadd.f32 %v103, %v539
  %v541 = vpop.f32.mrf.mxu0
  %v542 = vadd.f32 %v103, %v541
  %543 = vmatmul.bf16.gmra.mxu0 %v371
  %v544 = vpop.f32.mrf.mxu0
  %v545 = vadd.f32 %v103, %v544
  %v546 = vpop.f32.mrf.mxu0
  %v547 = vadd.f32 %v103, %v546
  %548 = vdwg.mxu0
  %v549 = vmax.f32 %v390, 0.0
  %v550 = vmax.f32 %v392, 0.0
  %v551 = vmax.f32 %v395, 0.0
  %v552 = vmax.f32 %v397, 0.0
  %v553 = vmax.f32 %v400, 0.0
  %v554 = vmax.f32 %v402, 0.0
  %v555 = vmax.f32 %v405, 0.0
  %v556 = vmax.f32 %v407, 0.0
  %v557 = vmax.f32 %v410, 0.0
  %v558 = vmax.f32 %v412, 0.0
  %v559 = vmax.f32 %v415, 0.0
  %v560 = vmax.f32 %v417, 0.0
  %v561 = vmax.f32 %v420, 0.0
  %v562 = vmax.f32 %v422, 0.0
  %v563 = vmax.f32 %v425, 0.0
  %v564 = vmax.f32 %v427, 0.0
  %v565 = vmax.f32 %v430, 0.0
  %v566 = vmax.f32 %v432, 0.0
  %v567 = vmax.f32 %v435, 0.0
  %v568 = vmax.f32 %v437, 0.0
  %v569 = vmax.f32 %v440, 0.0
  %v570 = vmax.f32 %v442, 0.0
  %v571 = vmax.f32 %v445, 0.0
  %v572 = vmax.f32 %v447, 0.0
  %v573 = vmax.f32 %v450, 0.0
  %v574 = vmax.f32 %v452, 0.0
  %v575 = vmax.f32 %v455, 0.0
  %v576 = vmax.f32 %v457, 0.0
  %v577 = vmax.f32 %v460, 0.0
  %v578 = vmax.f32 %v462, 0.0
  %v579 = vmax.f32 %v465, 0.0
  %v580 = vmax.f32 %v467, 0.0
  %v581 = vmax.f32 %v470, 0.0
  %v582 = vmax.f32 %v472, 0.0
  %v583 = vmax.f32 %v475, 0.0
  %v584 = vmax.f32 %v477, 0.0
  %v585 = vmax.f32 %v480, 0.0
  %v586 = vmax.f32 %v482, 0.0
  %v587 = vmax.f32 %v485, 0.0
  %v588 = vmax.f32 %v487, 0.0
  %v589 = vmax.f32 %v490, 0.0
  %v590 = vmax.f32 %v492, 0.0
  %v591 = vmax.f32 %v495, 0.0
  %v592 = vmax.f32 %v497, 0.0
  %v593 = vmax.f32 %v500, 0.0
  %v594 = vmax.f32 %v502, 0.0
  %v595 = vmax.f32 %v505, 0.0
  %v596 = vmax.f32 %v507, 0.0
  %v597 = vmax.f32 %v510, 0.0
  %v598 = vmax.f32 %v512, 0.0
  %v599 = vmax.f32 %v515, 0.0
  %v600 = vmax.f32 %v517, 0.0
  %v601 = vmax.f32 %v520, 0.0
  %v602 = vmax.f32 %v522, 0.0
  %v603 = vmax.f32 %v525, 0.0
  %v604 = vmax.f32 %v527, 0.0
  %v605 = vmax.f32 %v530, 0.0
  %v606 = vmax.f32 %v532, 0.0
  %v607 = vmax.f32 %v535, 0.0
  %v608 = vmax.f32 %v537, 0.0
  %v609 = vmax.f32 %v540, 0.0
  %v610 = vmax.f32 %v542, 0.0
  %v611 = vmax.f32 %v545, 0.0
  %v612 = vmax.f32 %v547, 0.0
  %vm613 = vcmask 130048
  %614 = vst.msk [vmem:[#allocation2] sm:$0xff] %vm613, 0.0
  %615 = vst.msk [vmem:[#allocation2 + $0x8] sm:$0xff] %vm613, 0.0
  %vm616 = vcmask 123904
  %617 = vst.msk [vmem:[#allocation2 + $0x10] sm:$0x3] %vm616, 0.0
  %618 = vst.msk [vmem:[#allocation2 + $0x18] sm:$0xff] %vm613, 0.0
  %619 = vst.msk [vmem:[#allocation2 + $0x20] sm:$0xff] %vm613, 0.0
  %620 = vst.msk [vmem:[#allocation2 + $0x28] sm:$0x3] %vm616, 0.0
  %621 = vst.msk [vmem:[#allocation2 + $0x30] sm:$0xff] %vm613, 0.0
  %622 = vst.msk [vmem:[#allocation2 + $0x38] sm:$0xff] %vm613, 0.0
  %623 = vst.msk [vmem:[#allocation2 + $0x40] sm:$0x3] %vm616, 0.0
  %624 = vst.msk [vmem:[#allocation2 + $0x48] sm:$0xff] %vm613, 0.0
  %625 = vst.msk [vmem:[#allocation2 + $0x50] sm:$0xff] %vm613, 0.0
  %626 = vst.msk [vmem:[#allocation2 + $0x58] sm:$0x3] %vm616, 0.0
  %627 = vst.msk [vmem:[#allocation2 + $0x60] sm:$0xff] %vm613, 0.0
  %628 = vst.msk [vmem:[#allocation2 + $0x68] sm:$0xff] %vm613, 0.0
  %629 = vst.msk [vmem:[#allocation2 + $0x70] sm:$0x3] %vm616, 0.0
  %630 = vst.msk [vmem:[#allocation2 + $0x78] sm:$0xff] %vm613, 0.0
  %631 = vst.msk [vmem:[#allocation2 + $0x80] sm:$0xff] %vm613, 0.0
  %632 = vst.msk [vmem:[#allocation2 + $0x88] sm:$0x3] %vm616, 0.0
  %633 = vst.msk [vmem:[#allocation2 + $0x90] sm:$0xff] %vm613, 0.0
  %634 = vst.msk [vmem:[#allocation2 + $0x98] sm:$0xff] %vm613, 0.0
  %635 = vst.msk [vmem:[#allocation2 + $0xa0] sm:$0x3] %vm616, 0.0
  %636 = vst.msk [vmem:[#allocation2 + $0xa8] sm:$0xff] %vm613, 0.0
  %637 = vst.msk [vmem:[#allocation2 + $0xb0] sm:$0xff] %vm613, 0.0
  %638 = vst.msk [vmem:[#allocation2 + $0xb8] sm:$0x3] %vm616, 0.0
  %639 = vst.msk [vmem:[#allocation2 + $0xc0] sm:$0xff] %vm613, 0.0
  %640 = vst.msk [vmem:[#allocation2 + $0xc8] sm:$0xff] %vm613, 0.0
  %641 = vst.msk [vmem:[#allocation2 + $0xd0] sm:$0x3] %vm616, 0.0
  %642 = vst.msk [vmem:[#allocation2 + $0xd8] sm:$0xff] %vm613, 0.0
  %643 = vst.msk [vmem:[#allocation2 + $0xe0] sm:$0xff] %vm613, 0.0
  %644 = vst.msk [vmem:[#allocation2 + $0xe8] sm:$0x3] %vm616, 0.0
  %645 = vst.msk [vmem:[#allocation2 + $0xf0] sm:$0xff] %vm613, 0.0
  %646 = vst.msk [vmem:[#allocation2 + $0xf8] sm:$0xff] %vm613, 0.0
  %647 = vst.msk [vmem:[#allocation2 + $0x100] sm:$0x3] %vm616, 0.0
  %648 = vst.msk [vmem:[#allocation2 + $0x108] sm:$0xff] %vm613, 0.0
  %649 = vst.msk [vmem:[#allocation2 + $0x110] sm:$0xff] %vm613, 0.0
  %650 = vst.msk [vmem:[#allocation2 + $0x118] sm:$0x3] %vm616, 0.0
  %651 = vst.msk [vmem:[#allocation2 + $0x120] sm:$0xff] %vm613, 0.0
  %652 = vst.msk [vmem:[#allocation2 + $0x128] sm:$0xff] %vm613, 0.0
  %653 = vst.msk [vmem:[#allocation2 + $0x130] sm:$0x3] %vm616, 0.0
  %654 = vst.msk [vmem:[#allocation2 + $0x138] sm:$0xff] %vm613, 0.0
  %655 = vst.msk [vmem:[#allocation2 + $0x140] sm:$0xff] %vm613, 0.0
  %656 = vst.msk [vmem:[#allocation2 + $0x148] sm:$0x3] %vm616, 0.0
  %657 = vst.msk [vmem:[#allocation2 + $0x150] sm:$0xff] %vm613, 0.0
  %658 = vst.msk [vmem:[#allocation2 + $0x158] sm:$0xff] %vm613, 0.0
  %659 = vst.msk [vmem:[#allocation2 + $0x160] sm:$0x3] %vm616, 0.0
  %660 = vst.msk [vmem:[#allocation2 + $0x168] sm:$0xff] %vm613, 0.0
  %661 = vst.msk [vmem:[#allocation2 + $0x170] sm:$0xff] %vm613, 0.0
  %662 = vst.msk [vmem:[#allocation2 + $0x178] sm:$0x3] %vm616, 0.0
  %663 = vst.msk [vmem:[#allocation2 + $0x180] sm:$0xff] %vm613, 0.0
  %664 = vst.msk [vmem:[#allocation2 + $0x188] sm:$0xff] %vm613, 0.0
  %665 = vst.msk [vmem:[#allocation2 + $0x190] sm:$0x3] %vm616, 0.0
  %666 = vst.msk [vmem:[#allocation2 + $0x198] sm:$0xff] %vm613, 0.0
  %667 = vst.msk [vmem:[#allocation2 + $0x1a0] sm:$0xff] %vm613, 0.0
  %668 = vst.msk [vmem:[#allocation2 + $0x1a8] sm:$0x3] %vm616, 0.0
  %669 = vst.msk [vmem:[#allocation2 + $0x1b0] sm:$0xff] %vm613, 0.0
  %670 = vst.msk [vmem:[#allocation2 + $0x1b8] sm:$0xff] %vm613, 0.0
  %671 = vst.msk [vmem:[#allocation2 + $0x1c0] sm:$0x3] %vm616, 0.0
  %672 = vst.msk [vmem:[#allocation2 + $0x1c8] sm:$0xff] %vm613, 0.0
  %673 = vst.msk [vmem:[#allocation2 + $0x1d0] sm:$0xff] %vm613, 0.0
  %674 = vst.msk [vmem:[#allocation2 + $0x1d8] sm:$0x3] %vm616, 0.0
  %675 = vst.msk [vmem:[#allocation2 + $0x1e0] sm:$0xff] %vm613, 0.0
  %676 = vst.msk [vmem:[#allocation2 + $0x1e8] sm:$0xff] %vm613, 0.0
  %677 = vst.msk [vmem:[#allocation2 + $0x1f0] sm:$0x3] %vm616, 0.0
  %678 = vst.msk [vmem:[#allocation2 + $0x1f8] sm:$0xff] %vm613, 0.0
  %679 = vst.msk [vmem:[#allocation2 + $0x200] sm:$0xff] %vm613, 0.0
  %680 = vst.msk [vmem:[#allocation2 + $0x208] sm:$0x3] %vm616, 0.0
  %681 = vst.msk [vmem:[#allocation2 + $0x210] sm:$0xff] %vm613, 0.0
  %682 = vst.msk [vmem:[#allocation2 + $0x218] sm:$0xff] %vm613, 0.0
  %683 = vst.msk [vmem:[#allocation2 + $0x220] sm:$0x3] %vm616, 0.0
  %684 = vst.msk [vmem:[#allocation2 + $0x228] sm:$0xff] %vm613, 0.0
  %685 = vst.msk [vmem:[#allocation2 + $0x230] sm:$0xff] %vm613, 0.0
  %686 = vst.msk [vmem:[#allocation2 + $0x238] sm:$0x3] %vm616, 0.0
  %687 = vst.msk [vmem:[#allocation2 + $0x240] sm:$0xff] %vm613, 0.0
  %688 = vst.msk [vmem:[#allocation2 + $0x248] sm:$0xff] %vm613, 0.0
  %689 = vst.msk [vmem:[#allocation2 + $0x250] sm:$0x3] %vm616, 0.0
  %690 = vst.msk [vmem:[#allocation2 + $0x258] sm:$0xff] %vm613, 0.0
  %691 = vst.msk [vmem:[#allocation2 + $0x260] sm:$0xff] %vm613, 0.0
  %692 = vst.msk [vmem:[#allocation2 + $0x268] sm:$0x3] %vm616, 0.0
  %693 = vst.msk [vmem:[#allocation2 + $0x270] sm:$0xff] %vm613, 0.0
  %694 = vst.msk [vmem:[#allocation2 + $0x278] sm:$0xff] %vm613, 0.0
  %695 = vst.msk [vmem:[#allocation2 + $0x280] sm:$0x3] %vm616, 0.0
  %696 = vst.msk [vmem:[#allocation2 + $0x288] sm:$0xff] %vm613, 0.0
  %697 = vst.msk [vmem:[#allocation2 + $0x290] sm:$0xff] %vm613, 0.0
  %698 = vst.msk [vmem:[#allocation2 + $0x298] sm:$0x3] %vm616, 0.0
  %699 = vst.msk [vmem:[#allocation2 + $0x2a0] sm:$0xff] %vm613, 0.0
  %700 = vst.msk [vmem:[#allocation2 + $0x2a8] sm:$0xff] %vm613, 0.0
  %701 = vst.msk [vmem:[#allocation2 + $0x2b0] sm:$0x3] %vm616, 0.0
  %702 = vst.msk [vmem:[#allocation2 + $0x2b8] sm:$0xff] %vm613, 0.0
  %703 = vst.msk [vmem:[#allocation2 + $0x2c0] sm:$0xff] %vm613, 0.0
  %704 = vst.msk [vmem:[#allocation2 + $0x2c8] sm:$0x3] %vm616, 0.0
  %705 = vst.msk [vmem:[#allocation2 + $0x2d0] sm:$0xff] %vm613, 0.0
  %706 = vst.msk [vmem:[#allocation2 + $0x2d8] sm:$0xff] %vm613, 0.0
  %707 = vst.msk [vmem:[#allocation2 + $0x2e0] sm:$0x3] %vm616, 0.0
  %708 = vst.msk [vmem:[#allocation2 + $0x2e8] sm:$0xff] %vm613, 0.0
  %709 = vst.msk [vmem:[#allocation2 + $0x2f0] sm:$0xff] %vm613, 0.0
  %710 = vst.msk [vmem:[#allocation2 + $0x2f8] sm:$0x3] %vm616, 0.0
  %711 = vst.msk [vmem:[#allocation2 + $0x300] sm:$0xff] %vm613, 0.0
  %712 = vst.msk [vmem:[#allocation2 + $0x308] sm:$0xff] %vm613, 0.0
  %713 = vst.msk [vmem:[#allocation2 + $0x310] sm:$0x3] %vm616, 0.0
  %714 = vst.msk [vmem:[#allocation2 + $0x318] sm:$0xff] %vm613, 0.0
  %715 = vst.msk [vmem:[#allocation2 + $0x320] sm:$0xff] %vm613, 0.0
  %716 = vst.msk [vmem:[#allocation2 + $0x328] sm:$0x3] %vm616, 0.0
  %717 = vst.msk [vmem:[#allocation2 + $0x330] sm:$0xff] %vm613, 0.0
  %718 = vst.msk [vmem:[#allocation2 + $0x338] sm:$0xff] %vm613, 0.0
  %719 = vst.msk [vmem:[#allocation2 + $0x340] sm:$0x3] %vm616, 0.0
  %720 = vst.msk [vmem:[#allocation2 + $0x348] sm:$0xff] %vm613, 0.0
  %721 = vst.msk [vmem:[#allocation2 + $0x350] sm:$0xff] %vm613, 0.0
  %722 = vst.msk [vmem:[#allocation2 + $0x358] sm:$0x3] %vm616, 0.0
  %s723 = scalar_lea.vmem [#allocation2], 24
  %724 = vst.msk [vmem:[%s723 + $0x1] sm:$0xff] %vm613, %v549
  %725 = vst.msk [vmem:[%s723 + $0x9] sm:$0xff] %vm613, %v550
  %726 = vst.msk [vmem:[%s723 + $0x19] sm:$0xff] %vm613, %v551
  %727 = vst.msk [vmem:[%s723 + $0x21] sm:$0xff] %vm613, %v552
  %728 = vst.msk [vmem:[%s723 + $0x31] sm:$0xff] %vm613, %v553
  %729 = vst.msk [vmem:[%s723 + $0x39] sm:$0xff] %vm613, %v554
  %730 = vst.msk [vmem:[%s723 + $0x49] sm:$0xff] %vm613, %v555
  %731 = vst.msk [vmem:[%s723 + $0x51] sm:$0xff] %vm613, %v556
  %732 = vst.msk [vmem:[%s723 + $0x61] sm:$0xff] %vm613, %v557
  %733 = vst.msk [vmem:[%s723 + $0x69] sm:$0xff] %vm613, %v558
  %734 = vst.msk [vmem:[%s723 + $0x79] sm:$0xff] %vm613, %v559
  %735 = vst.msk [vmem:[%s723 + $0x81] sm:$0xff] %vm613, %v560
  %736 = vst.msk [vmem:[%s723 + $0x91] sm:$0xff] %vm613, %v561
  %737 = vst.msk [vmem:[%s723 + $0x99] sm:$0xff] %vm613, %v562
  %738 = vst.msk [vmem:[%s723 + $0xa9] sm:$0xff] %vm613, %v563
  %739 = vst.msk [vmem:[%s723 + $0xb1] sm:$0xff] %vm613, %v564
  %740 = vst.msk [vmem:[%s723 + $0xc1] sm:$0xff] %vm613, %v565
  %741 = vst.msk [vmem:[%s723 + $0xc9] sm:$0xff] %vm613, %v566
  %742 = vst.msk [vmem:[%s723 + $0xd9] sm:$0xff] %vm613, %v567
  %743 = vst.msk [vmem:[%s723 + $0xe1] sm:$0xff] %vm613, %v568
  %744 = vst.msk [vmem:[%s723 + $0xf1] sm:$0xff] %vm613, %v569
  %745 = vst.msk [vmem:[%s723 + $0xf9] sm:$0xff] %vm613, %v570
  %746 = vst.msk [vmem:[%s723 + $0x109] sm:$0xff] %vm613, %v571
  %747 = vst.msk [vmem:[%s723 + $0x111] sm:$0xff] %vm613, %v572
  %748 = vst.msk [vmem:[%s723 + $0x121] sm:$0xff] %vm613, %v573
  %749 = vst.msk [vmem:[%s723 + $0x129] sm:$0xff] %vm613, %v574
  %750 = vst.msk [vmem:[%s723 + $0x139] sm:$0xff] %vm613, %v575
  %751 = vst.msk [vmem:[%s723 + $0x141] sm:$0xff] %vm613, %v576
  %752 = vst.msk [vmem:[%s723 + $0x151] sm:$0xff] %vm613, %v577
  %753 = vst.msk [vmem:[%s723 + $0x159] sm:$0xff] %vm613, %v578
  %754 = vst.msk [vmem:[%s723 + $0x169] sm:$0xff] %vm613, %v579
  %755 = vst.msk [vmem:[%s723 + $0x171] sm:$0xff] %vm613, %v580
  %756 = vst.msk [vmem:[%s723 + $0x1b1] sm:$0xff] %vm613, %v581
  %757 = vst.msk [vmem:[%s723 + $0x1b9] sm:$0xff] %vm613, %v582
  %758 = vst.msk [vmem:[%s723 + $0x1c9] sm:$0xff] %vm613, %v583
  %759 = vst.msk [vmem:[%s723 + $0x1d1] sm:$0xff] %vm613, %v584
  %760 = vst.msk [vmem:[%s723 + $0x1e1] sm:$0xff] %vm613, %v585
  %761 = vst.msk [vmem:[%s723 + $0x1e9] sm:$0xff] %vm613, %v586
  %762 = vst.msk [vmem:[%s723 + $0x1f9] sm:$0xff] %vm613, %v587
  %763 = vst.msk [vmem:[%s723 + $0x201] sm:$0xff] %vm613, %v588
  %764 = vst.msk [vmem:[%s723 + $0x211] sm:$0xff] %vm613, %v589
  %765 = vst.msk [vmem:[%s723 + $0x219] sm:$0xff] %vm613, %v590
  %766 = vst.msk [vmem:[%s723 + $0x229] sm:$0xff] %vm613, %v591
  %767 = vst.msk [vmem:[%s723 + $0x231] sm:$0xff] %vm613, %v592
  %768 = vst.msk [vmem:[%s723 + $0x241] sm:$0xff] %vm613, %v593
  %769 = vst.msk [vmem:[%s723 + $0x249] sm:$0xff] %vm613, %v594
  %770 = vst.msk [vmem:[%s723 + $0x259] sm:$0xff] %vm613, %v595
  %771 = vst.msk [vmem:[%s723 + $0x261] sm:$0xff] %vm613, %v596
  %772 = vst.msk [vmem:[%s723 + $0x271] sm:$0xff] %vm613, %v597
  %773 = vst.msk [vmem:[%s723 + $0x279] sm:$0xff] %vm613, %v598
  %774 = vst.msk [vmem:[%s723 + $0x289] sm:$0xff] %vm613, %v599
  %775 = vst.msk [vmem:[%s723 + $0x291] sm:$0xff] %vm613, %v600
  %776 = vst.msk [vmem:[%s723 + $0x2a1] sm:$0xff] %vm613, %v601
  %777 = vst.msk [vmem:[%s723 + $0x2a9] sm:$0xff] %vm613, %v602
  %778 = vst.msk [vmem:[%s723 + $0x2b9] sm:$0xff] %vm613, %v603
  %779 = vst.msk [vmem:[%s723 + $0x2c1] sm:$0xff] %vm613, %v604
  %780 = vst.msk [vmem:[%s723 + $0x2d1] sm:$0xff] %vm613, %v605
  %781 = vst.msk [vmem:[%s723 + $0x2d9] sm:$0xff] %vm613, %v606
  %782 = vst.msk [vmem:[%s723 + $0x2e9] sm:$0xff] %vm613, %v607
  %783 = vst.msk [vmem:[%s723 + $0x2f1] sm:$0xff] %vm613, %v608
  %784 = vst.msk [vmem:[%s723 + $0x301] sm:$0xff] %vm613, %v609
  %785 = vst.msk [vmem:[%s723 + $0x309] sm:$0xff] %vm613, %v610
  %786 = vst.msk [vmem:[%s723 + $0x319] sm:$0xff] %vm613, %v611
  %787 = vst.msk [vmem:[%s723 + $0x321] sm:$0xff] %vm613, %v612
  %v788 = vld [vmem:[#allocation2] sm:$0xff]
  %v789 = vld [vmem:[#allocation2 + $0x8] sm:$0xff]
  %v790 = vld [vmem:[#allocation2 + $0x18] sm:$0xff]
  %v791 = vld [vmem:[#allocation2 + $0x20] sm:$0xff]
  %v792 = vld [vmem:[#allocation2 + $0x30] sm:$0xff]
  %v793 = vld [vmem:[#allocation2 + $0x38] sm:$0xff]
  %v794 = vld [vmem:[#allocation2 + $0x48] sm:$0xff]
  %v795 = vld [vmem:[#allocation2 + $0x50] sm:$0xff]
  %v796 = vld [vmem:[#allocation2 + $0x60] sm:$0xff]
  %v797 = vld [vmem:[#allocation2 + $0x68] sm:$0xff]
  %v798 = vld [vmem:[#allocation2 + $0x78] sm:$0xff]
  %v799 = vld [vmem:[#allocation2 + $0x80] sm:$0xff]
  %v800 = vld [vmem:[#allocation2 + $0x90] sm:$0xff]
  %v801 = vld [vmem:[#allocation2 + $0x98] sm:$0xff]
  %v802 = vld [vmem:[#allocation2 + $0xa8] sm:$0xff]
  %v803 = vld [vmem:[#allocation2 + $0xb0] sm:$0xff]
  %v804 = vld [vmem:[#allocation2 + $0xc0] sm:$0xff]
  %v805 = vld [vmem:[#allocation2 + $0xc8] sm:$0xff]
  %v806 = vld [vmem:[#allocation2 + $0xd8] sm:$0xff]
  %v807 = vld [vmem:[#allocation2 + $0xe0] sm:$0xff]
  %v808 = vld [vmem:[#allocation2 + $0xf0] sm:$0xff]
  %v809 = vld [vmem:[#allocation2 + $0xf8] sm:$0xff]
  %v810 = vld [vmem:[#allocation2 + $0x108] sm:$0xff]
  %v811 = vld [vmem:[#allocation2 + $0x110] sm:$0xff]
  %v812 = vld [vmem:[#allocation2 + $0x120] sm:$0xff]
  %v813 = vld [vmem:[#allocation2 + $0x128] sm:$0xff]
  %v814 = vld [vmem:[#allocation2 + $0x138] sm:$0xff]
  %v815 = vld [vmem:[#allocation2 + $0x140] sm:$0xff]
  %v816 = vld [vmem:[#allocation2 + $0x150] sm:$0xff]
  %v817 = vld [vmem:[#allocation2 + $0x158] sm:$0xff]
  %v818 = vld [vmem:[#allocation2 + $0x168] sm:$0xff]
  %v819 = vld [vmem:[#allocation2 + $0x170] sm:$0xff]
  %v820 = vld [vmem:[#allocation2 + $0x1b0] sm:$0xff]
  %v821 = vld [vmem:[#allocation2 + $0x1b8] sm:$0xff]
  %v822 = vld [vmem:[#allocation2 + $0x1c8] sm:$0xff]
  %v823 = vld [vmem:[#allocation2 + $0x1d0] sm:$0xff]
  %v824 = vld [vmem:[#allocation2 + $0x1e0] sm:$0xff]
  %v825 = vld [vmem:[#allocation2 + $0x1e8] sm:$0xff]
  %v826 = vld [vmem:[#allocation2 + $0x1f8] sm:$0xff]
  %v827 = vld [vmem:[#allocation2 + $0x200] sm:$0xff]
  %v828 = vld [vmem:[#allocation2 + $0x210] sm:$0xff]
  %v829 = vld [vmem:[#allocation2 + $0x218] sm:$0xff]
  %v830 = vld [vmem:[#allocation2 + $0x228] sm:$0xff]
  %v831 = vld [vmem:[#allocation2 + $0x230] sm:$0xff]
  %v832 = vld [vmem:[#allocation2 + $0x240] sm:$0xff]
  %v833 = vld [vmem:[#allocation2 + $0x248] sm:$0xff]
  %v834 = vld [vmem:[#allocation2 + $0x258] sm:$0xff]
  %v835 = vld [vmem:[#allocation2 + $0x260] sm:$0xff]
  %v836 = vld [vmem:[#allocation2 + $0x270] sm:$0xff]
  %v837 = vld [vmem:[#allocation2 + $0x278] sm:$0xff]
  %v838 = vld [vmem:[#allocation2 + $0x288] sm:$0xff]
  %v839 = vld [vmem:[#allocation2 + $0x290] sm:$0xff]
  %v840 = vld [vmem:[#allocation2 + $0x2a0] sm:$0xff]
  %v841 = vld [vmem:[#allocation2 + $0x2a8] sm:$0xff]
  %v842 = vld [vmem:[#allocation2 + $0x2b8] sm:$0xff]
  %v843 = vld [vmem:[#allocation2 + $0x2c0] sm:$0xff]
  %v844 = vld [vmem:[#allocation2 + $0x2d0] sm:$0xff]
  %v845 = vld [vmem:[#allocation2 + $0x2d8] sm:$0xff]
  %v846 = vld [vmem:[#allocation2 + $0x2e8] sm:$0xff]
  %v847 = vld [vmem:[#allocation2 + $0x2f0] sm:$0xff]
  %v848 = vld [vmem:[#allocation2 + $0x300] sm:$0xff]
  %v849 = vld [vmem:[#allocation2 + $0x308] sm:$0xff]
  %v850 = vld [vmem:[#allocation2 + $0x318] sm:$0xff]
  %v851 = vld [vmem:[#allocation2 + $0x320] sm:$0xff]
  %852 = vst.msk [vmem:[#allocation3] sm:$0xff] %vm613, %v788
  %853 = vst.msk [vmem:[#allocation3 + $0x10] sm:$0xff] %vm613, %v789
  %854 = vst.msk [vmem:[#allocation3 + $0x20] sm:$0xff] %vm613, %v790
  %855 = vst.msk [vmem:[#allocation3 + $0x30] sm:$0xff] %vm613, %v791
  %856 = vst.msk [vmem:[#allocation3 + $0x40] sm:$0xff] %vm613, %v792
  %857 = vst.msk [vmem:[#allocation3 + $0x50] sm:$0xff] %vm613, %v793
  %858 = vst.msk [vmem:[#allocation3 + $0x60] sm:$0xff] %vm613, %v794
  %859 = vst.msk [vmem:[#allocation3 + $0x70] sm:$0xff] %vm613, %v795
  %860 = vst.msk [vmem:[#allocation3 + $0x80] sm:$0xff] %vm613, %v796
  %861 = vst.msk [vmem:[#allocation3 + $0x90] sm:$0xff] %vm613, %v797
  %862 = vst.msk [vmem:[#allocation3 + $0xa0] sm:$0xff] %vm613, %v798
  %863 = vst.msk [vmem:[#allocation3 + $0xb0] sm:$0xff] %vm613, %v799
  %864 = vst.msk [vmem:[#allocation3 + $0xc0] sm:$0xff] %vm613, %v800
  %865 = vst.msk [vmem:[#allocation3 + $0xd0] sm:$0xff] %vm613, %v801
  %866 = vst.msk [vmem:[#allocation3 + $0xe0] sm:$0xff] %vm613, %v802
  %867 = vst.msk [vmem:[#allocation3 + $0xf0] sm:$0xff] %vm613, %v803
  %868 = vst.msk [vmem:[#allocation3 + $0x100] sm:$0xff] %vm613, %v804
  %869 = vst.msk [vmem:[#allocation3 + $0x110] sm:$0xff] %vm613, %v805
  %870 = vst.msk [vmem:[#allocation3 + $0x120] sm:$0xff] %vm613, %v806
  %871 = vst.msk [vmem:[#allocation3 + $0x130] sm:$0xff] %vm613, %v807
  %872 = vst.msk [vmem:[#allocation3 + $0x140] sm:$0xff] %vm613, %v808
  %873 = vst.msk [vmem:[#allocation3 + $0x150] sm:$0xff] %vm613, %v809
  %874 = vst.msk [vmem:[#allocation3 + $0x160] sm:$0xff] %vm613, %v810
  %875 = vst.msk [vmem:[#allocation3 + $0x170] sm:$0xff] %vm613, %v811
  %876 = vst.msk [vmem:[#allocation3 + $0x180] sm:$0xff] %vm613, %v812
  %877 = vst.msk [vmem:[#allocation3 + $0x190] sm:$0xff] %vm613, %v813
  %878 = vst.msk [vmem:[#allocation3 + $0x1a0] sm:$0xff] %vm613, %v814
  %879 = vst.msk [vmem:[#allocation3 + $0x1b0] sm:$0xff] %vm613, %v815
  %880 = vst.msk [vmem:[#allocation3 + $0x1c0] sm:$0xff] %vm613, %v816
  %881 = vst.msk [vmem:[#allocation3 + $0x1d0] sm:$0xff] %vm613, %v817
  %882 = vst.msk [vmem:[#allocation3 + $0x1e0] sm:$0xff] %vm613, %v818
  %883 = vst.msk [vmem:[#allocation3 + $0x1f0] sm:$0xff] %vm613, %v819
  %884 = vst.msk [vmem:[#allocation3 + $0x200] sm:$0xff] %vm613, %v820
  %885 = vst.msk [vmem:[#allocation3 + $0x210] sm:$0xff] %vm613, %v821
  %886 = vst.msk [vmem:[#allocation3 + $0x220] sm:$0xff] %vm613, %v822
  %887 = vst.msk [vmem:[#allocation3 + $0x230] sm:$0xff] %vm613, %v823
  %888 = vst.msk [vmem:[#allocation3 + $0x240] sm:$0xff] %vm613, %v824
  %889 = vst.msk [vmem:[#allocation3 + $0x250] sm:$0xff] %vm613, %v825
  %890 = vst.msk [vmem:[#allocation3 + $0x260] sm:$0xff] %vm613, %v826
  %891 = vst.msk [vmem:[#allocation3 + $0x270] sm:$0xff] %vm613, %v827
  %892 = vst.msk [vmem:[#allocation3 + $0x280] sm:$0xff] %vm613, %v828
  %893 = vst.msk [vmem:[#allocation3 + $0x290] sm:$0xff] %vm613, %v829
  %894 = vst.msk [vmem:[#allocation3 + $0x2a0] sm:$0xff] %vm613, %v830
  %895 = vst.msk [vmem:[#allocation3 + $0x2b0] sm:$0xff] %vm613, %v831
  %896 = vst.msk [vmem:[#allocation3 + $0x2c0] sm:$0xff] %vm613, %v832
  %897 = vst.msk [vmem:[#allocation3 + $0x2d0] sm:$0xff] %vm613, %v833
  %898 = vst.msk [vmem:[#allocation3 + $0x2e0] sm:$0xff] %vm613, %v834
  %899 = vst.msk [vmem:[#allocation3 + $0x2f0] sm:$0xff] %vm613, %v835
  %900 = vst.msk [vmem:[#allocation3 + $0x300] sm:$0xff] %vm613, %v836
  %901 = vst.msk [vmem:[#allocation3 + $0x310] sm:$0xff] %vm613, %v837
  %902 = vst.msk [vmem:[#allocation3 + $0x320] sm:$0xff] %vm613, %v838
  %903 = vst.msk [vmem:[#allocation3 + $0x330] sm:$0xff] %vm613, %v839
  %904 = vst.msk [vmem:[#allocation3 + $0x340] sm:$0xff] %vm613, %v840
  %905 = vst.msk [vmem:[#allocation3 + $0x350] sm:$0xff] %vm613, %v841
  %906 = vst.msk [vmem:[#allocation3 + $0x360] sm:$0xff] %vm613, %v842
  %907 = vst.msk [vmem:[#allocation3 + $0x370] sm:$0xff] %vm613, %v843
  %908 = vst.msk [vmem:[#allocation3 + $0x380] sm:$0xff] %vm613, %v844
  %909 = vst.msk [vmem:[#allocation3 + $0x390] sm:$0xff] %vm613, %v845
  %910 = vst.msk [vmem:[#allocation3 + $0x3a0] sm:$0xff] %vm613, %v846
  %911 = vst.msk [vmem:[#allocation3 + $0x3b0] sm:$0xff] %vm613, %v847
  %912 = vst.msk [vmem:[#allocation3 + $0x3c0] sm:$0xff] %vm613, %v848
  %913 = vst.msk [vmem:[#allocation3 + $0x3d0] sm:$0xff] %vm613, %v849
  %914 = vst.msk [vmem:[#allocation3 + $0x3e0] sm:$0xff] %vm613, %v850
  %915 = vst.msk [vmem:[#allocation3 + $0x3f0] sm:$0xff] %vm613, %v851
  %v916 = vld [vmem:[#allocation2 + $0x1] sm:$0xff]
  %v917 = vld [vmem:[#allocation2 + $0x9] sm:$0xff]
  %v918 = vld [vmem:[#allocation2 + $0x19] sm:$0xff]
  %v919 = vld [vmem:[#allocation2 + $0x21] sm:$0xff]
  %v920 = vld [vmem:[#allocation2 + $0x31] sm:$0xff]
  %v921 = vld [vmem:[#allocation2 + $0x39] sm:$0xff]
  %v922 = vld [vmem:[#allocation2 + $0x49] sm:$0xff]
  %v923 = vld [vmem:[#allocation2 + $0x51] sm:$0xff]
  %v924 = vld [vmem:[#allocation2 + $0x61] sm:$0xff]
  %v925 = vld [vmem:[#allocation2 + $0x69] sm:$0xff]
  %v926 = vld [vmem:[#allocation2 + $0x79] sm:$0xff]
  %v927 = vld [vmem:[#allocation2 + $0x81] sm:$0xff]
  %v928 = vld [vmem:[#allocation2 + $0x91] sm:$0xff]
  %v929 = vld [vmem:[#allocation2 + $0x99] sm:$0xff]
  %v930 = vld [vmem:[#allocation2 + $0xa9] sm:$0xff]
  %v931 = vld [vmem:[#allocation2 + $0xb1] sm:$0xff]
  %v932 = vld [vmem:[#allocation2 + $0xc1] sm:$0xff]
  %v933 = vld [vmem:[#allocation2 + $0xc9] sm:$0xff]
  %v934 = vld [vmem:[#allocation2 + $0xd9] sm:$0xff]
  %v935 = vld [vmem:[#allocation2 + $0xe1] sm:$0xff]
  %v936 = vld [vmem:[#allocation2 + $0xf1] sm:$0xff]
  %v937 = vld [vmem:[#allocation2 + $0xf9] sm:$0xff]
  %v938 = vld [vmem:[#allocation2 + $0x109] sm:$0xff]
  %v939 = vld [vmem:[#allocation2 + $0x111] sm:$0xff]
  %v940 = vld [vmem:[#allocation2 + $0x121] sm:$0xff]
  %v941 = vld [vmem:[#allocation2 + $0x129] sm:$0xff]
  %v942 = vld [vmem:[#allocation2 + $0x139] sm:$0xff]
  %v943 = vld [vmem:[#allocation2 + $0x141] sm:$0xff]
  %v944 = vld [vmem:[#allocation2 + $0x151] sm:$0xff]
  %v945 = vld [vmem:[#allocation2 + $0x159] sm:$0xff]
  %v946 = vld [vmem:[#allocation2 + $0x169] sm:$0xff]
  %v947 = vld [vmem:[#allocation2 + $0x171] sm:$0xff]
  %v948 = vld [vmem:[#allocation2 + $0x1b1] sm:$0xff]
  %v949 = vld [vmem:[#allocation2 + $0x1b9] sm:$0xff]
  %v950 = vld [vmem:[#allocation2 + $0x1c9] sm:$0xff]
  %v951 = vld [vmem:[#allocation2 + $0x1d1] sm:$0xff]
  %v952 = vld [vmem:[#allocation2 + $0x1e1] sm:$0xff]
  %v953 = vld [vmem:[#allocation2 + $0x1e9] sm:$0xff]
  %v954 = vld [vmem:[#allocation2 + $0x1f9] sm:$0xff]
  %v955 = vld [vmem:[#allocation2 + $0x201] sm:$0xff]
  %v956 = vld [vmem:[#allocation2 + $0x211] sm:$0xff]
  %v957 = vld [vmem:[#allocation2 + $0x219] sm:$0xff]
  %v958 = vld [vmem:[#allocation2 + $0x229] sm:$0xff]
  %v959 = vld [vmem:[#allocation2 + $0x231] sm:$0xff]
  %v960 = vld [vmem:[#allocation2 + $0x241] sm:$0xff]
  %v961 = vld [vmem:[#allocation2 + $0x249] sm:$0xff]
  %v962 = vld [vmem:[#allocation2 + $0x259] sm:$0xff]
  %v963 = vld [vmem:[#allocation2 + $0x261] sm:$0xff]
  %v964 = vld [vmem:[#allocation2 + $0x271] sm:$0xff]
  %v965 = vld [vmem:[#allocation2 + $0x279] sm:$0xff]
  %v966 = vld [vmem:[#allocation2 + $0x289] sm:$0xff]
  %v967 = vld [vmem:[#allocation2 + $0x291] sm:$0xff]
  %v968 = vld [vmem:[#allocation2 + $0x2a1] sm:$0xff]
  %v969 = vld [vmem:[#allocation2 + $0x2a9] sm:$0xff]
  %v970 = vld [vmem:[#allocation2 + $0x2b9] sm:$0xff]
  %v971 = vld [vmem:[#allocation2 + $0x2c1] sm:$0xff]
  %v972 = vld [vmem:[#allocation2 + $0x2d1] sm:$0xff]
  %v973 = vld [vmem:[#allocation2 + $0x2d9] sm:$0xff]
  %v974 = vld [vmem:[#allocation2 + $0x2e9] sm:$0xff]
  %v975 = vld [vmem:[#allocation2 + $0x2f1] sm:$0xff]
  %v976 = vld [vmem:[#allocation2 + $0x301] sm:$0xff]
  %v977 = vld [vmem:[#allocation2 + $0x309] sm:$0xff]
  %v978 = vld [vmem:[#allocation2 + $0x319] sm:$0xff]
  %v979 = vld [vmem:[#allocation2 + $0x321] sm:$0xff]
  %1044 = vrot.lane.b32.xlu0 %v916, 16
  %v1045 = vpop.permute.xlu0 %1044
  %1046 = vrot.lane.b32.xlu0 %v917, 16
  %v1047 = vpop.permute.xlu0 %1046
  %1048 = vrot.lane.b32.xlu0 %v918, 16
  %v1049 = vpop.permute.xlu0 %1048
  %1050 = vrot.lane.b32.xlu0 %v919, 16
  %v1051 = vpop.permute.xlu0 %1050
  %1052 = vrot.lane.b32.xlu0 %v920, 16
  %v1053 = vpop.permute.xlu0 %1052
  %1054 = vrot.lane.b32.xlu0 %v921, 16
  %v1055 = vpop.permute.xlu0 %1054
  %1056 = vrot.lane.b32.xlu0 %v922, 16
  %v1057 = vpop.permute.xlu0 %1056
  %1058 = vrot.lane.b32.xlu0 %v923, 16
  %v1059 = vpop.permute.xlu0 %1058
  %1060 = vrot.lane.b32.xlu0 %v924, 16
  %v1061 = vpop.permute.xlu0 %1060
  %1062 = vrot.lane.b32.xlu0 %v925, 16
  %v1063 = vpop.permute.xlu0 %1062
  %1064 = vrot.lane.b32.xlu0 %v926, 16
  %v1065 = vpop.permute.xlu0 %1064
  %1066 = vrot.lane.b32.xlu0 %v927, 16
  %v1067 = vpop.permute.xlu0 %1066
  %1068 = vrot.lane.b32.xlu0 %v928, 16
  %v1069 = vpop.permute.xlu0 %1068
  %1070 = vrot.lane.b32.xlu0 %v929, 16
  %v1071 = vpop.permute.xlu0 %1070
  %1072 = vrot.lane.b32.xlu0 %v930, 16
  %v1073 = vpop.permute.xlu0 %1072
  %1074 = vrot.lane.b32.xlu0 %v931, 16
  %v1075 = vpop.permute.xlu0 %1074
  %1076 = vrot.lane.b32.xlu0 %v932, 16
  %v1077 = vpop.permute.xlu0 %1076
  %1078 = vrot.lane.b32.xlu0 %v933, 16
  %v1079 = vpop.permute.xlu0 %1078
  %1080 = vrot.lane.b32.xlu0 %v934, 16
  %v1081 = vpop.permute.xlu0 %1080
  %1082 = vrot.lane.b32.xlu0 %v935, 16
  %v1083 = vpop.permute.xlu0 %1082
  %1084 = vrot.lane.b32.xlu0 %v936, 16
  %v1085 = vpop.permute.xlu0 %1084
  %1086 = vrot.lane.b32.xlu0 %v937, 16
  %v1087 = vpop.permute.xlu0 %1086
  %1088 = vrot.lane.b32.xlu0 %v938, 16
  %v1089 = vpop.permute.xlu0 %1088
  %1090 = vrot.lane.b32.xlu0 %v939, 16
  %v1091 = vpop.permute.xlu0 %1090
  %1092 = vrot.lane.b32.xlu0 %v940, 16
  %v1093 = vpop.permute.xlu0 %1092
  %1094 = vrot.lane.b32.xlu0 %v941, 16
  %v1095 = vpop.permute.xlu0 %1094
  %1096 = vrot.lane.b32.xlu0 %v942, 16
  %v1097 = vpop.permute.xlu0 %1096
  %1098 = vrot.lane.b32.xlu0 %v943, 16
  %v1099 = vpop.permute.xlu0 %1098
  %1100 = vrot.lane.b32.xlu0 %v944, 16
  %v1101 = vpop.permute.xlu0 %1100
  %1102 = vrot.lane.b32.xlu0 %v945, 16
  %v1103 = vpop.permute.xlu0 %1102
  %1104 = vrot.lane.b32.xlu0 %v946, 16
  %v1105 = vpop.permute.xlu0 %1104
  %1106 = vrot.lane.b32.xlu0 %v947, 16
  %v1107 = vpop.permute.xlu0 %1106
  %1108 = vrot.lane.b32.xlu0 %v948, 16
  %v1109 = vpop.permute.xlu0 %1108
  %1110 = vrot.lane.b32.xlu0 %v949, 16
  %v1111 = vpop.permute.xlu0 %1110
  %1112 = vrot.lane.b32.xlu0 %v950, 16
  %v1113 = vpop.permute.xlu0 %1112
  %1114 = vrot.lane.b32.xlu0 %v951, 16
  %v1115 = vpop.permute.xlu0 %1114
  %1116 = vrot.lane.b32.xlu0 %v952, 16
  %v1117 = vpop.permute.xlu0 %1116
  %1118 = vrot.lane.b32.xlu0 %v953, 16
  %v1119 = vpop.permute.xlu0 %1118
  %1120 = vrot.lane.b32.xlu0 %v954, 16
  %v1121 = vpop.permute.xlu0 %1120
  %1122 = vrot.lane.b32.xlu0 %v955, 16
  %v1123 = vpop.permute.xlu0 %1122
  %1124 = vrot.lane.b32.xlu0 %v956, 16
  %v1125 = vpop.permute.xlu0 %1124
  %1126 = vrot.lane.b32.xlu0 %v957, 16
  %v1127 = vpop.permute.xlu0 %1126
  %1128 = vrot.lane.b32.xlu0 %v958, 16
  %v1129 = vpop.permute.xlu0 %1128
  %1130 = vrot.lane.b32.xlu0 %v959, 16
  %v1131 = vpop.permute.xlu0 %1130
  %1132 = vrot.lane.b32.xlu0 %v960, 16
  %v1133 = vpop.permute.xlu0 %1132
  %1134 = vrot.lane.b32.xlu0 %v961, 16
  %v1135 = vpop.permute.xlu0 %1134
  %1136 = vrot.lane.b32.xlu0 %v962, 16
  %v1137 = vpop.permute.xlu0 %1136
  %1138 = vrot.lane.b32.xlu0 %v963, 16
  %v1139 = vpop.permute.xlu0 %1138
  %1140 = vrot.lane.b32.xlu0 %v964, 16
  %v1141 = vpop.permute.xlu0 %1140
  %1142 = vrot.lane.b32.xlu0 %v965, 16
  %v1143 = vpop.permute.xlu0 %1142
  %1144 = vrot.lane.b32.xlu0 %v966, 16
  %v1145 = vpop.permute.xlu0 %1144
  %1146 = vrot.lane.b32.xlu0 %v967, 16
  %v1147 = vpop.permute.xlu0 %1146
  %1148 = vrot.lane.b32.xlu0 %v968, 16
  %v1149 = vpop.permute.xlu0 %1148
  %1150 = vrot.lane.b32.xlu0 %v969, 16
  %v1151 = vpop.permute.xlu0 %1150
  %1152 = vrot.lane.b32.xlu0 %v970, 16
  %v1153 = vpop.permute.xlu0 %1152
  %1154 = vrot.lane.b32.xlu0 %v971, 16
  %v1155 = vpop.permute.xlu0 %1154
  %1156 = vrot.lane.b32.xlu0 %v972, 16
  %v1157 = vpop.permute.xlu0 %1156
  %1158 = vrot.lane.b32.xlu0 %v973, 16
  %v1159 = vpop.permute.xlu0 %1158
  %1160 = vrot.lane.b32.xlu0 %v974, 16
  %v1161 = vpop.permute.xlu0 %1160
  %1162 = vrot.lane.b32.xlu0 %v975, 16
  %v1163 = vpop.permute.xlu0 %1162
  %1164 = vrot.lane.b32.xlu0 %v976, 16
  %v1165 = vpop.permute.xlu0 %1164
  %1166 = vrot.lane.b32.xlu0 %v977, 16
  %v1167 = vpop.permute.xlu0 %1166
  %1168 = vrot.lane.b32.xlu0 %v978, 16
  %v1169 = vpop.permute.xlu0 %1168
  %1170 = vrot.lane.b32.xlu0 %v979, 16
  %v1171 = vpop.permute.xlu0 %1170
  %vm1236 = vcmask 261248
  %1237 = vst.msk [vmem:[#allocation3] sm:$0xff] %vm1236, %v1045
  %1238 = vst.msk [vmem:[#allocation3 + $0x10] sm:$0xff] %vm1236, %v1047
  %1239 = vst.msk [vmem:[#allocation3 + $0x20] sm:$0xff] %vm1236, %v1049
  %1240 = vst.msk [vmem:[#allocation3 + $0x30] sm:$0xff] %vm1236, %v1051
  %1241 = vst.msk [vmem:[#allocation3 + $0x40] sm:$0xff] %vm1236, %v1053
  %1242 = vst.msk [vmem:[#allocation3 + $0x50] sm:$0xff] %vm1236, %v1055
  %1243 = vst.msk [vmem:[#allocation3 + $0x60] sm:$0xff] %vm1236, %v1057
  %1244 = vst.msk [vmem:[#allocation3 + $0x70] sm:$0xff] %vm1236, %v1059
  %1245 = vst.msk [vmem:[#allocation3 + $0x80] sm:$0xff] %vm1236, %v1061
  %1246 = vst.msk [vmem:[#allocation3 + $0x90] sm:$0xff] %vm1236, %v1063
  %1247 = vst.msk [vmem:[#allocation3 + $0xa0] sm:$0xff] %vm1236, %v1065
  %1248 = vst.msk [vmem:[#allocation3 + $0xb0] sm:$0xff] %vm1236, %v1067
  %1249 = vst.msk [vmem:[#allocation3 + $0xc0] sm:$0xff] %vm1236, %v1069
  %1250 = vst.msk [vmem:[#allocation3 + $0xd0] sm:$0xff] %vm1236, %v1071
  %1251 = vst.msk [vmem:[#allocation3 + $0xe0] sm:$0xff] %vm1236, %v1073
  %1252 = vst.msk [vmem:[#allocation3 + $0xf0] sm:$0xff] %vm1236, %v1075
  %1253 = vst.msk [vmem:[#allocation3 + $0x100] sm:$0xff] %vm1236, %v1077
  %1254 = vst.msk [vmem:[#allocation3 + $0x110] sm:$0xff] %vm1236, %v1079
  %1255 = vst.msk [vmem:[#allocation3 + $0x120] sm:$0xff] %vm1236, %v1081
  %1256 = vst.msk [vmem:[#allocation3 + $0x130] sm:$0xff] %vm1236, %v1083
  %1257 = vst.msk [vmem:[#allocation3 + $0x140] sm:$0xff] %vm1236, %v1085
  %1258 = vst.msk [vmem:[#allocation3 + $0x150] sm:$0xff] %vm1236, %v1087
  %1259 = vst.msk [vmem:[#allocation3 + $0x160] sm:$0xff] %vm1236, %v1089
  %1260 = vst.msk [vmem:[#allocation3 + $0x170] sm:$0xff] %vm1236, %v1091
  %1261 = vst.msk [vmem:[#allocation3 + $0x180] sm:$0xff] %vm1236, %v1093
  %1262 = vst.msk [vmem:[#allocation3 + $0x190] sm:$0xff] %vm1236, %v1095
  %1263 = vst.msk [vmem:[#allocation3 + $0x1a0] sm:$0xff] %vm1236, %v1097
  %1264 = vst.msk [vmem:[#allocation3 + $0x1b0] sm:$0xff] %vm1236, %v1099
  %1265 = vst.msk [vmem:[#allocation3 + $0x1c0] sm:$0xff] %vm1236, %v1101
  %1266 = vst.msk [vmem:[#allocation3 + $0x1d0] sm:$0xff] %vm1236, %v1103
  %1267 = vst.msk [vmem:[#allocation3 + $0x1e0] sm:$0xff] %vm1236, %v1105
  %1268 = vst.msk [vmem:[#allocation3 + $0x1f0] sm:$0xff] %vm1236, %v1107
  %1269 = vst.msk [vmem:[#allocation3 + $0x200] sm:$0xff] %vm1236, %v1109
  %1270 = vst.msk [vmem:[#allocation3 + $0x210] sm:$0xff] %vm1236, %v1111
  %1271 = vst.msk [vmem:[#allocation3 + $0x220] sm:$0xff] %vm1236, %v1113
  %1272 = vst.msk [vmem:[#allocation3 + $0x230] sm:$0xff] %vm1236, %v1115
  %1273 = vst.msk [vmem:[#allocation3 + $0x240] sm:$0xff] %vm1236, %v1117
  %1274 = vst.msk [vmem:[#allocation3 + $0x250] sm:$0xff] %vm1236, %v1119
  %1275 = vst.msk [vmem:[#allocation3 + $0x260] sm:$0xff] %vm1236, %v1121
  %1276 = vst.msk [vmem:[#allocation3 + $0x270] sm:$0xff] %vm1236, %v1123
  %1277 = vst.msk [vmem:[#allocation3 + $0x280] sm:$0xff] %vm1236, %v1125
  %1278 = vst.msk [vmem:[#allocation3 + $0x290] sm:$0xff] %vm1236, %v1127
  %1279 = vst.msk [vmem:[#allocation3 + $0x2a0] sm:$0xff] %vm1236, %v1129
  %1280 = vst.msk [vmem:[#allocation3 + $0x2b0] sm:$0xff] %vm1236, %v1131
  %1281 = vst.msk [vmem:[#allocation3 + $0x2c0] sm:$0xff] %vm1236, %v1133
  %1282 = vst.msk [vmem:[#allocation3 + $0x2d0] sm:$0xff] %vm1236, %v1135
  %1283 = vst.msk [vmem:[#allocation3 + $0x2e0] sm:$0xff] %vm1236, %v1137
  %1284 = vst.msk [vmem:[#allocation3 + $0x2f0] sm:$0xff] %vm1236, %v1139
  %1285 = vst.msk [vmem:[#allocation3 + $0x300] sm:$0xff] %vm1236, %v1141
  %1286 = vst.msk [vmem:[#allocation3 + $0x310] sm:$0xff] %vm1236, %v1143
  %1287 = vst.msk [vmem:[#allocation3 + $0x320] sm:$0xff] %vm1236, %v1145
  %1288 = vst.msk [vmem:[#allocation3 + $0x330] sm:$0xff] %vm1236, %v1147
  %1289 = vst.msk [vmem:[#allocation3 + $0x340] sm:$0xff] %vm1236, %v1149
  %1290 = vst.msk [vmem:[#allocation3 + $0x350] sm:$0xff] %vm1236, %v1151
  %1291 = vst.msk [vmem:[#allocation3 + $0x360] sm:$0xff] %vm1236, %v1153
  %1292 = vst.msk [vmem:[#allocation3 + $0x370] sm:$0xff] %vm1236, %v1155
  %1293 = vst.msk [vmem:[#allocation3 + $0x380] sm:$0xff] %vm1236, %v1157
  %1294 = vst.msk [vmem:[#allocation3 + $0x390] sm:$0xff] %vm1236, %v1159
  %1295 = vst.msk [vmem:[#allocation3 + $0x3a0] sm:$0xff] %vm1236, %v1161
  %1296 = vst.msk [vmem:[#allocation3 + $0x3b0] sm:$0xff] %vm1236, %v1163
  %1297 = vst.msk [vmem:[#allocation3 + $0x3c0] sm:$0xff] %vm1236, %v1165
  %1298 = vst.msk [vmem:[#allocation3 + $0x3d0] sm:$0xff] %vm1236, %v1167
  %1299 = vst.msk [vmem:[#allocation3 + $0x3e0] sm:$0xff] %vm1236, %v1169
  %1300 = vst.msk [vmem:[#allocation3 + $0x3f0] sm:$0xff] %vm1236, %v1171
  %v1301 = vld [vmem:[#allocation2 + $0x2] sm:$0xff]
  %v1302 = vld [vmem:[#allocation2 + $0xa] sm:$0xff]
  %v1303 = vld [vmem:[#allocation2 + $0x1a] sm:$0xff]
  %v1304 = vld [vmem:[#allocation2 + $0x22] sm:$0xff]
  %v1305 = vld [vmem:[#allocation2 + $0x32] sm:$0xff]
  %v1306 = vld [vmem:[#allocation2 + $0x3a] sm:$0xff]
  %v1307 = vld [vmem:[#allocation2 + $0x4a] sm:$0xff]
  %v1308 = vld [vmem:[#allocation2 + $0x52] sm:$0xff]
  %v1309 = vld [vmem:[#allocation2 + $0x62] sm:$0xff]
  %v1310 = vld [vmem:[#allocation2 + $0x6a] sm:$0xff]
  %v1311 = vld [vmem:[#allocation2 + $0x7a] sm:$0xff]
  %v1312 = vld [vmem:[#allocation2 + $0x82] sm:$0xff]
  %v1313 = vld [vmem:[#allocation2 + $0x92] sm:$0xff]
  %v1314 = vld [vmem:[#allocation2 + $0x9a] sm:$0xff]
  %v1315 = vld [vmem:[#allocation2 + $0xaa] sm:$0xff]
  %v1316 = vld [vmem:[#allocation2 + $0xb2] sm:$0xff]
  %v1317 = vld [vmem:[#allocation2 + $0xc2] sm:$0xff]
  %v1318 = vld [vmem:[#allocation2 + $0xca] sm:$0xff]
  %v1319 = vld [vmem:[#allocation2 + $0xda] sm:$0xff]
  %v1320 = vld [vmem:[#allocation2 + $0xe2] sm:$0xff]
  %v1321 = vld [vmem:[#allocation2 + $0xf2] sm:$0xff]
  %v1322 = vld [vmem:[#allocation2 + $0xfa] sm:$0xff]
  %v1323 = vld [vmem:[#allocation2 + $0x10a] sm:$0xff]
  %v1324 = vld [vmem:[#allocation2 + $0x112] sm:$0xff]
  %v1325 = vld [vmem:[#allocation2 + $0x122] sm:$0xff]
  %v1326 = vld [vmem:[#allocation2 + $0x12a] sm:$0xff]
  %v1327 = vld [vmem:[#allocation2 + $0x13a] sm:$0xff]
  %v1328 = vld [vmem:[#allocation2 + $0x142] sm:$0xff]
  %v1329 = vld [vmem:[#allocation2 + $0x152] sm:$0xff]
  %v1330 = vld [vmem:[#allocation2 + $0x15a] sm:$0xff]
  %v1331 = vld [vmem:[#allocation2 + $0x16a] sm:$0xff]
  %v1332 = vld [vmem:[#allocation2 + $0x172] sm:$0xff]
  %v1333 = vld [vmem:[#allocation2 + $0x1b2] sm:$0xff]
  %v1334 = vld [vmem:[#allocation2 + $0x1ba] sm:$0xff]
  %v1335 = vld [vmem:[#allocation2 + $0x1ca] sm:$0xff]
  %v1336 = vld [vmem:[#allocation2 + $0x1d2] sm:$0xff]
  %v1337 = vld [vmem:[#allocation2 + $0x1e2] sm:$0xff]
  %v1338 = vld [vmem:[#allocation2 + $0x1ea] sm:$0xff]
  %v1339 = vld [vmem:[#allocation2 + $0x1fa] sm:$0xff]
  %v1340 = vld [vmem:[#allocation2 + $0x202] sm:$0xff]
  %v1341 = vld [vmem:[#allocation2 + $0x212] sm:$0xff]
  %v1342 = vld [vmem:[#allocation2 + $0x21a] sm:$0xff]
  %v1343 = vld [vmem:[#allocation2 + $0x22a] sm:$0xff]
  %v1344 = vld [vmem:[#allocation2 + $0x232] sm:$0xff]
  %v1345 = vld [vmem:[#allocation2 + $0x242] sm:$0xff]
  %v1346 = vld [vmem:[#allocation2 + $0x24a] sm:$0xff]
  %v1347 = vld [vmem:[#allocation2 + $0x25a] sm:$0xff]
  %v1348 = vld [vmem:[#allocation2 + $0x262] sm:$0xff]
  %v1349 = vld [vmem:[#allocation2 + $0x272] sm:$0xff]
  %v1350 = vld [vmem:[#allocation2 + $0x27a] sm:$0xff]
  %v1351 = vld [vmem:[#allocation2 + $0x28a] sm:$0xff]
  %v1352 = vld [vmem:[#allocation2 + $0x292] sm:$0xff]
  %v1353 = vld [vmem:[#allocation2 + $0x2a2] sm:$0xff]
  %v1354 = vld [vmem:[#allocation2 + $0x2aa] sm:$0xff]
  %v1355 = vld [vmem:[#allocation2 + $0x2ba] sm:$0xff]
  %v1356 = vld [vmem:[#allocation2 + $0x2c2] sm:$0xff]
  %v1357 = vld [vmem:[#allocation2 + $0x2d2] sm:$0xff]
  %v1358 = vld [vmem:[#allocation2 + $0x2da] sm:$0xff]
  %v1359 = vld [vmem:[#allocation2 + $0x2ea] sm:$0xff]
  %v1360 = vld [vmem:[#allocation2 + $0x2f2] sm:$0xff]
  %v1361 = vld [vmem:[#allocation2 + $0x302] sm:$0xff]
  %v1362 = vld [vmem:[#allocation2 + $0x30a] sm:$0xff]
  %v1363 = vld [vmem:[#allocation2 + $0x31a] sm:$0xff]
  %v1364 = vld [vmem:[#allocation2 + $0x322] sm:$0xff]
  %1429 = vrot.lane.b32.xlu0 %v1301, 32
  %v1430 = vpop.permute.xlu0 %1429
  %1431 = vrot.lane.b32.xlu0 %v1302, 32
  %v1432 = vpop.permute.xlu0 %1431
  %1433 = vrot.lane.b32.xlu0 %v1303, 32
  %v1434 = vpop.permute.xlu0 %1433
  %1435 = vrot.lane.b32.xlu0 %v1304, 32
  %v1436 = vpop.permute.xlu0 %1435
  %1437 = vrot.lane.b32.xlu0 %v1305, 32
  %v1438 = vpop.permute.xlu0 %1437
  %1439 = vrot.lane.b32.xlu0 %v1306, 32
  %v1440 = vpop.permute.xlu0 %1439
  %1441 = vrot.lane.b32.xlu0 %v1307, 32
  %v1442 = vpop.permute.xlu0 %1441
  %1443 = vrot.lane.b32.xlu0 %v1308, 32
  %v1444 = vpop.permute.xlu0 %1443
  %1445 = vrot.lane.b32.xlu0 %v1309, 32
  %v1446 = vpop.permute.xlu0 %1445
  %1447 = vrot.lane.b32.xlu0 %v1310, 32
  %v1448 = vpop.permute.xlu0 %1447
  %1449 = vrot.lane.b32.xlu0 %v1311, 32
  %v1450 = vpop.permute.xlu0 %1449
  %1451 = vrot.lane.b32.xlu0 %v1312, 32
  %v1452 = vpop.permute.xlu0 %1451
  %1453 = vrot.lane.b32.xlu0 %v1313, 32
  %v1454 = vpop.permute.xlu0 %1453
  %1455 = vrot.lane.b32.xlu0 %v1314, 32
  %v1456 = vpop.permute.xlu0 %1455
  %1457 = vrot.lane.b32.xlu0 %v1315, 32
  %v1458 = vpop.permute.xlu0 %1457
  %1459 = vrot.lane.b32.xlu0 %v1316, 32
  %v1460 = vpop.permute.xlu0 %1459
  %1461 = vrot.lane.b32.xlu0 %v1317, 32
  %v1462 = vpop.permute.xlu0 %1461
  %1463 = vrot.lane.b32.xlu0 %v1318, 32
  %v1464 = vpop.permute.xlu0 %1463
  %1465 = vrot.lane.b32.xlu0 %v1319, 32
  %v1466 = vpop.permute.xlu0 %1465
  %1467 = vrot.lane.b32.xlu0 %v1320, 32
  %v1468 = vpop.permute.xlu0 %1467
  %1469 = vrot.lane.b32.xlu0 %v1321, 32
  %v1470 = vpop.permute.xlu0 %1469
  %1471 = vrot.lane.b32.xlu0 %v1322, 32
  %v1472 = vpop.permute.xlu0 %1471
  %1473 = vrot.lane.b32.xlu0 %v1323, 32
  %v1474 = vpop.permute.xlu0 %1473
  %1475 = vrot.lane.b32.xlu0 %v1324, 32
  %v1476 = vpop.permute.xlu0 %1475
  %1477 = vrot.lane.b32.xlu0 %v1325, 32
  %v1478 = vpop.permute.xlu0 %1477
  %1479 = vrot.lane.b32.xlu0 %v1326, 32
  %v1480 = vpop.permute.xlu0 %1479
  %1481 = vrot.lane.b32.xlu0 %v1327, 32
  %v1482 = vpop.permute.xlu0 %1481
  %1483 = vrot.lane.b32.xlu0 %v1328, 32
  %v1484 = vpop.permute.xlu0 %1483
  %1485 = vrot.lane.b32.xlu0 %v1329, 32
  %v1486 = vpop.permute.xlu0 %1485
  %1487 = vrot.lane.b32.xlu0 %v1330, 32
  %v1488 = vpop.permute.xlu0 %1487
  %1489 = vrot.lane.b32.xlu0 %v1331, 32
  %v1490 = vpop.permute.xlu0 %1489
  %1491 = vrot.lane.b32.xlu0 %v1332, 32
  %v1492 = vpop.permute.xlu0 %1491
  %1493 = vrot.lane.b32.xlu0 %v1333, 32
  %v1494 = vpop.permute.xlu0 %1493
  %1495 = vrot.lane.b32.xlu0 %v1334, 32
  %v1496 = vpop.permute.xlu0 %1495
  %1497 = vrot.lane.b32.xlu0 %v1335, 32
  %v1498 = vpop.permute.xlu0 %1497
  %1499 = vrot.lane.b32.xlu0 %v1336, 32
  %v1500 = vpop.permute.xlu0 %1499
  %1501 = vrot.lane.b32.xlu0 %v1337, 32
  %v1502 = vpop.permute.xlu0 %1501
  %1503 = vrot.lane.b32.xlu0 %v1338, 32
  %v1504 = vpop.permute.xlu0 %1503
  %1505 = vrot.lane.b32.xlu0 %v1339, 32
  %v1506 = vpop.permute.xlu0 %1505
  %1507 = vrot.lane.b32.xlu0 %v1340, 32
  %v1508 = vpop.permute.xlu0 %1507
  %1509 = vrot.lane.b32.xlu0 %v1341, 32
  %v1510 = vpop.permute.xlu0 %1509
  %1511 = vrot.lane.b32.xlu0 %v1342, 32
  %v1512 = vpop.permute.xlu0 %1511
  %1513 = vrot.lane.b32.xlu0 %v1343, 32
  %v1514 = vpop.permute.xlu0 %1513
  %1515 = vrot.lane.b32.xlu0 %v1344, 32
  %v1516 = vpop.permute.xlu0 %1515
  %1517 = vrot.lane.b32.xlu0 %v1345, 32
  %v1518 = vpop.permute.xlu0 %1517
  %1519 = vrot.lane.b32.xlu0 %v1346, 32
  %v1520 = vpop.permute.xlu0 %1519
  %1521 = vrot.lane.b32.xlu0 %v1347, 32
  %v1522 = vpop.permute.xlu0 %1521
  %1523 = vrot.lane.b32.xlu0 %v1348, 32
  %v1524 = vpop.permute.xlu0 %1523
  %1525 = vrot.lane.b32.xlu0 %v1349, 32
  %v1526 = vpop.permute.xlu0 %1525
  %1527 = vrot.lane.b32.xlu0 %v1350, 32
  %v1528 = vpop.permute.xlu0 %1527
  %1529 = vrot.lane.b32.xlu0 %v1351, 32
  %v1530 = vpop.permute.xlu0 %1529
  %1531 = vrot.lane.b32.xlu0 %v1352, 32
  %v1532 = vpop.permute.xlu0 %1531
  %1533 = vrot.lane.b32.xlu0 %v1353, 32
  %v1534 = vpop.permute.xlu0 %1533
  %1535 = vrot.lane.b32.xlu0 %v1354, 32
  %v1536 = vpop.permute.xlu0 %1535
  %1537 = vrot.lane.b32.xlu0 %v1355, 32
  %v1538 = vpop.permute.xlu0 %1537
  %1539 = vrot.lane.b32.xlu0 %v1356, 32
  %v1540 = vpop.permute.xlu0 %1539
  %1541 = vrot.lane.b32.xlu0 %v1357, 32
  %v1542 = vpop.permute.xlu0 %1541
  %1543 = vrot.lane.b32.xlu0 %v1358, 32
  %v1544 = vpop.permute.xlu0 %1543
  %1545 = vrot.lane.b32.xlu0 %v1359, 32
  %v1546 = vpop.permute.xlu0 %1545
  %1547 = vrot.lane.b32.xlu0 %v1360, 32
  %v1548 = vpop.permute.xlu0 %1547
  %1549 = vrot.lane.b32.xlu0 %v1361, 32
  %v1550 = vpop.permute.xlu0 %1549
  %1551 = vrot.lane.b32.xlu0 %v1362, 32
  %v1552 = vpop.permute.xlu0 %1551
  %1553 = vrot.lane.b32.xlu0 %v1363, 32
  %v1554 = vpop.permute.xlu0 %1553
  %1555 = vrot.lane.b32.xlu0 %v1364, 32
  %v1556 = vpop.permute.xlu0 %1555
  %vm1621 = vcmask 392448
  %1622 = vst.msk [vmem:[#allocation3] sm:$0xff] %vm1621, %v1430
  %1623 = vst.msk [vmem:[#allocation3 + $0x10] sm:$0xff] %vm1621, %v1432
  %1624 = vst.msk [vmem:[#allocation3 + $0x20] sm:$0xff] %vm1621, %v1434
  %1625 = vst.msk [vmem:[#allocation3 + $0x30] sm:$0xff] %vm1621, %v1436
  %1626 = vst.msk [vmem:[#allocation3 + $0x40] sm:$0xff] %vm1621, %v1438
  %1627 = vst.msk [vmem:[#allocation3 + $0x50] sm:$0xff] %vm1621, %v1440
  %1628 = vst.msk [vmem:[#allocation3 + $0x60] sm:$0xff] %vm1621, %v1442
  %1629 = vst.msk [vmem:[#allocation3 + $0x70] sm:$0xff] %vm1621, %v1444
  %1630 = vst.msk [vmem:[#allocation3 + $0x80] sm:$0xff] %vm1621, %v1446
  %1631 = vst.msk [vmem:[#allocation3 + $0x90] sm:$0xff] %vm1621, %v1448
  %1632 = vst.msk [vmem:[#allocation3 + $0xa0] sm:$0xff] %vm1621, %v1450
  %1633 = vst.msk [vmem:[#allocation3 + $0xb0] sm:$0xff] %vm1621, %v1452
  %1634 = vst.msk [vmem:[#allocation3 + $0xc0] sm:$0xff] %vm1621, %v1454
  %1635 = vst.msk [vmem:[#allocation3 + $0xd0] sm:$0xff] %vm1621, %v1456
  %1636 = vst.msk [vmem:[#allocation3 + $0xe0] sm:$0xff] %vm1621, %v1458
  %1637 = vst.msk [vmem:[#allocation3 + $0xf0] sm:$0xff] %vm1621, %v1460
  %1638 = vst.msk [vmem:[#allocation3 + $0x100] sm:$0xff] %vm1621, %v1462
  %1639 = vst.msk [vmem:[#allocation3 + $0x110] sm:$0xff] %vm1621, %v1464
  %1640 = vst.msk [vmem:[#allocation3 + $0x120] sm:$0xff] %vm1621, %v1466
  %1641 = vst.msk [vmem:[#allocation3 + $0x130] sm:$0xff] %vm1621, %v1468
  %1642 = vst.msk [vmem:[#allocation3 + $0x140] sm:$0xff] %vm1621, %v1470
  %1643 = vst.msk [vmem:[#allocation3 + $0x150] sm:$0xff] %vm1621, %v1472
  %1644 = vst.msk [vmem:[#allocation3 + $0x160] sm:$0xff] %vm1621, %v1474
  %1645 = vst.msk [vmem:[#allocation3 + $0x170] sm:$0xff] %vm1621, %v1476
  %1646 = vst.msk [vmem:[#allocation3 + $0x180] sm:$0xff] %vm1621, %v1478
  %1647 = vst.msk [vmem:[#allocation3 + $0x190] sm:$0xff] %vm1621, %v1480
  %1648 = vst.msk [vmem:[#allocation3 + $0x1a0] sm:$0xff] %vm1621, %v1482
  %1649 = vst.msk [vmem:[#allocation3 + $0x1b0] sm:$0xff] %vm1621, %v1484
  %1650 = vst.msk [vmem:[#allocation3 + $0x1c0] sm:$0xff] %vm1621, %v1486
  %1651 = vst.msk [vmem:[#allocation3 + $0x1d0] sm:$0xff] %vm1621, %v1488
  %1652 = vst.msk [vmem:[#allocation3 + $0x1e0] sm:$0xff] %vm1621, %v1490
  %1653 = vst.msk [vmem:[#allocation3 + $0x1f0] sm:$0xff] %vm1621, %v1492
  %1654 = vst.msk [vmem:[#allocation3 + $0x200] sm:$0xff] %vm1621, %v1494
  %1655 = vst.msk [vmem:[#allocation3 + $0x210] sm:$0xff] %vm1621, %v1496
  %1656 = vst.msk [vmem:[#allocation3 + $0x220] sm:$0xff] %vm1621, %v1498
  %1657 = vst.msk [vmem:[#allocation3 + $0x230] sm:$0xff] %vm1621, %v1500
  %1658 = vst.msk [vmem:[#allocation3 + $0x240] sm:$0xff] %vm1621, %v1502
  %1659 = vst.msk [vmem:[#allocation3 + $0x250] sm:$0xff] %vm1621, %v1504
  %1660 = vst.msk [vmem:[#allocation3 + $0x260] sm:$0xff] %vm1621, %v1506
  %1661 = vst.msk [vmem:[#allocation3 + $0x270] sm:$0xff] %vm1621, %v1508
  %1662 = vst.msk [vmem:[#allocation3 + $0x280] sm:$0xff] %vm1621, %v1510
  %1663 = vst.msk [vmem:[#allocation3 + $0x290] sm:$0xff] %vm1621, %v1512
  %1664 = vst.msk [vmem:[#allocation3 + $0x2a0] sm:$0xff] %vm1621, %v1514
  %1665 = vst.msk [vmem:[#allocation3 + $0x2b0] sm:$0xff] %vm1621, %v1516
  %1666 = vst.msk [vmem:[#allocation3 + $0x2c0] sm:$0xff] %vm1621, %v1518
  %1667 = vst.msk [vmem:[#allocation3 + $0x2d0] sm:$0xff] %vm1621, %v1520
  %1668 = vst.msk [vmem:[#allocation3 + $0x2e0] sm:$0xff] %vm1621, %v1522
  %1669 = vst.msk [vmem:[#allocation3 + $0x2f0] sm:$0xff] %vm1621, %v1524
  %1670 = vst.msk [vmem:[#allocation3 + $0x300] sm:$0xff] %vm1621, %v1526
  %1671 = vst.msk [vmem:[#allocation3 + $0x310] sm:$0xff] %vm1621, %v1528
  %1672 = vst.msk [vmem:[#allocation3 + $0x320] sm:$0xff] %vm1621, %v1530
  %1673 = vst.msk [vmem:[#allocation3 + $0x330] sm:$0xff] %vm1621, %v1532
  %1674 = vst.msk [vmem:[#allocation3 + $0x340] sm:$0xff] %vm1621, %v1534
  %1675 = vst.msk [vmem:[#allocation3 + $0x350] sm:$0xff] %vm1621, %v1536
  %1676 = vst.msk [vmem:[#allocation3 + $0x360] sm:$0xff] %vm1621, %v1538
  %1677 = vst.msk [vmem:[#allocation3 + $0x370] sm:$0xff] %vm1621, %v1540
  %1678 = vst.msk [vmem:[#allocation3 + $0x380] sm:$0xff] %vm1621, %v1542
  %1679 = vst.msk [vmem:[#allocation3 + $0x390] sm:$0xff] %vm1621, %v1544
  %1680 = vst.msk [vmem:[#allocation3 + $0x3a0] sm:$0xff] %vm1621, %v1546
  %1681 = vst.msk [vmem:[#allocation3 + $0x3b0] sm:$0xff] %vm1621, %v1548
  %1682 = vst.msk [vmem:[#allocation3 + $0x3c0] sm:$0xff] %vm1621, %v1550
  %1683 = vst.msk [vmem:[#allocation3 + $0x3d0] sm:$0xff] %vm1621, %v1552
  %1684 = vst.msk [vmem:[#allocation3 + $0x3e0] sm:$0xff] %vm1621, %v1554
  %1685 = vst.msk [vmem:[#allocation3 + $0x3f0] sm:$0xff] %vm1621, %v1556
  %v1686 = vld [vmem:[%s723] sm:$0xff]
  %v1687 = vld [vmem:[%s723 + $0x8] sm:$0xff]
  %v1688 = vld [vmem:[%s723 + $0x18] sm:$0xff]
  %v1689 = vld [vmem:[%s723 + $0x20] sm:$0xff]
  %v1690 = vld [vmem:[%s723 + $0x30] sm:$0xff]
  %v1691 = vld [vmem:[%s723 + $0x38] sm:$0xff]
  %v1692 = vld [vmem:[%s723 + $0x48] sm:$0xff]
  %v1693 = vld [vmem:[%s723 + $0x50] sm:$0xff]
  %v1694 = vld [vmem:[%s723 + $0x60] sm:$0xff]
  %v1695 = vld [vmem:[%s723 + $0x68] sm:$0xff]
  %v1696 = vld [vmem:[%s723 + $0x78] sm:$0xff]
  %v1697 = vld [vmem:[%s723 + $0x80] sm:$0xff]
  %v1698 = vld [vmem:[%s723 + $0x90] sm:$0xff]
  %v1699 = vld [vmem:[%s723 + $0x98] sm:$0xff]
  %v1700 = vld [vmem:[%s723 + $0xa8] sm:$0xff]
  %v1701 = vld [vmem:[%s723 + $0xb0] sm:$0xff]
  %v1702 = vld [vmem:[%s723 + $0xc0] sm:$0xff]
  %v1703 = vld [vmem:[%s723 + $0xc8] sm:$0xff]
  %v1704 = vld [vmem:[%s723 + $0xd8] sm:$0xff]
  %v1705 = vld [vmem:[%s723 + $0xe0] sm:$0xff]
  %v1706 = vld [vmem:[%s723 + $0xf0] sm:$0xff]
  %v1707 = vld [vmem:[%s723 + $0xf8] sm:$0xff]
  %v1708 = vld [vmem:[%s723 + $0x108] sm:$0xff]
  %v1709 = vld [vmem:[%s723 + $0x110] sm:$0xff]
  %v1710 = vld [vmem:[%s723 + $0x120] sm:$0xff]
  %v1711 = vld [vmem:[%s723 + $0x128] sm:$0xff]
  %v1712 = vld [vmem:[%s723 + $0x138] sm:$0xff]
  %v1713 = vld [vmem:[%s723 + $0x140] sm:$0xff]
  %v1714 = vld [vmem:[%s723 + $0x150] sm:$0xff]
  %v1715 = vld [vmem:[%s723 + $0x158] sm:$0xff]
  %v1716 = vld [vmem:[%s723 + $0x168] sm:$0xff]
  %v1717 = vld [vmem:[%s723 + $0x170] sm:$0xff]
  %v1718 = vld [vmem:[%s723 + $0x1b0] sm:$0xff]
  %v1719 = vld [vmem:[%s723 + $0x1b8] sm:$0xff]
  %v1720 = vld [vmem:[%s723 + $0x1c8] sm:$0xff]
  %v1721 = vld [vmem:[%s723 + $0x1d0] sm:$0xff]
  %v1722 = vld [vmem:[%s723 + $0x1e0] sm:$0xff]
  %v1723 = vld [vmem:[%s723 + $0x1e8] sm:$0xff]
  %v1724 = vld [vmem:[%s723 + $0x1f8] sm:$0xff]
  %v1725 = vld [vmem:[%s723 + $0x200] sm:$0xff]
  %v1726 = vld [vmem:[%s723 + $0x210] sm:$0xff]
  %v1727 = vld [vmem:[%s723 + $0x218] sm:$0xff]
  %v1728 = vld [vmem:[%s723 + $0x228] sm:$0xff]
  %v1729 = vld [vmem:[%s723 + $0x230] sm:$0xff]
  %v1730 = vld [vmem:[%s723 + $0x240] sm:$0xff]
  %v1731 = vld [vmem:[%s723 + $0x248] sm:$0xff]
  %v1732 = vld [vmem:[%s723 + $0x258] sm:$0xff]
  %v1733 = vld [vmem:[%s723 + $0x260] sm:$0xff]
  %v1734 = vld [vmem:[%s723 + $0x270] sm:$0xff]
  %v1735 = vld [vmem:[%s723 + $0x278] sm:$0xff]
  %v1736 = vld [vmem:[%s723 + $0x288] sm:$0xff]
  %v1737 = vld [vmem:[%s723 + $0x290] sm:$0xff]
  %v1738 = vld [vmem:[%s723 + $0x2a0] sm:$0xff]
  %v1739 = vld [vmem:[%s723 + $0x2a8] sm:$0xff]
  %v1740 = vld [vmem:[%s723 + $0x2b8] sm:$0xff]
  %v1741 = vld [vmem:[%s723 + $0x2c0] sm:$0xff]
  %v1742 = vld [vmem:[%s723 + $0x2d0] sm:$0xff]
  %v1743 = vld [vmem:[%s723 + $0x2d8] sm:$0xff]
  %v1744 = vld [vmem:[%s723 + $0x2e8] sm:$0xff]
  %v1745 = vld [vmem:[%s723 + $0x2f0] sm:$0xff]
  %v1746 = vld [vmem:[%s723 + $0x300] sm:$0xff]
  %v1747 = vld [vmem:[%s723 + $0x308] sm:$0xff]
  %v1748 = vld [vmem:[%s723 + $0x318] sm:$0xff]
  %v1749 = vld [vmem:[%s723 + $0x320] sm:$0xff]
  %1814 = vrot.lane.b32.xlu0 %v1686, 48
  %v1815 = vpop.permute.xlu0 %1814
  %1816 = vrot.lane.b32.xlu0 %v1687, 48
  %v1817 = vpop.permute.xlu0 %1816
  %1818 = vrot.lane.b32.xlu0 %v1688, 48
  %v1819 = vpop.permute.xlu0 %1818
  %1820 = vrot.lane.b32.xlu0 %v1689, 48
  %v1821 = vpop.permute.xlu0 %1820
  %1822 = vrot.lane.b32.xlu0 %v1690, 48
  %v1823 = vpop.permute.xlu0 %1822
  %1824 = vrot.lane.b32.xlu0 %v1691, 48
  %v1825 = vpop.permute.xlu0 %1824
  %1826 = vrot.lane.b32.xlu0 %v1692, 48
  %v1827 = vpop.permute.xlu0 %1826
  %1828 = vrot.lane.b32.xlu0 %v1693, 48
  %v1829 = vpop.permute.xlu0 %1828
  %1830 = vrot.lane.b32.xlu0 %v1694, 48
  %v1831 = vpop.permute.xlu0 %1830
  %1832 = vrot.lane.b32.xlu0 %v1695, 48
  %v1833 = vpop.permute.xlu0 %1832
  %1834 = vrot.lane.b32.xlu0 %v1696, 48
  %v1835 = vpop.permute.xlu0 %1834
  %1836 = vrot.lane.b32.xlu0 %v1697, 48
  %v1837 = vpop.permute.xlu0 %1836
  %1838 = vrot.lane.b32.xlu0 %v1698, 48
  %v1839 = vpop.permute.xlu0 %1838
  %1840 = vrot.lane.b32.xlu0 %v1699, 48
  %v1841 = vpop.permute.xlu0 %1840
  %1842 = vrot.lane.b32.xlu0 %v1700, 48
  %v1843 = vpop.permute.xlu0 %1842
  %1844 = vrot.lane.b32.xlu0 %v1701, 48
  %v1845 = vpop.permute.xlu0 %1844
  %1846 = vrot.lane.b32.xlu0 %v1702, 48
  %v1847 = vpop.permute.xlu0 %1846
  %1848 = vrot.lane.b32.xlu0 %v1703, 48
  %v1849 = vpop.permute.xlu0 %1848
  %1850 = vrot.lane.b32.xlu0 %v1704, 48
  %v1851 = vpop.permute.xlu0 %1850
  %1852 = vrot.lane.b32.xlu0 %v1705, 48
  %v1853 = vpop.permute.xlu0 %1852
  %1854 = vrot.lane.b32.xlu0 %v1706, 48
  %v1855 = vpop.permute.xlu0 %1854
  %1856 = vrot.lane.b32.xlu0 %v1707, 48
  %v1857 = vpop.permute.xlu0 %1856
  %1858 = vrot.lane.b32.xlu0 %v1708, 48
  %v1859 = vpop.permute.xlu0 %1858
  %1860 = vrot.lane.b32.xlu0 %v1709, 48
  %v1861 = vpop.permute.xlu0 %1860
  %1862 = vrot.lane.b32.xlu0 %v1710, 48
  %v1863 = vpop.permute.xlu0 %1862
  %1864 = vrot.lane.b32.xlu0 %v1711, 48
  %v1865 = vpop.permute.xlu0 %1864
  %1866 = vrot.lane.b32.xlu0 %v1712, 48
  %v1867 = vpop.permute.xlu0 %1866
  %1868 = vrot.lane.b32.xlu0 %v1713, 48
  %v1869 = vpop.permute.xlu0 %1868
  %1870 = vrot.lane.b32.xlu0 %v1714, 48
  %v1871 = vpop.permute.xlu0 %1870
  %1872 = vrot.lane.b32.xlu0 %v1715, 48
  %v1873 = vpop.permute.xlu0 %1872
  %1874 = vrot.lane.b32.xlu0 %v1716, 48
  %v1875 = vpop.permute.xlu0 %1874
  %1876 = vrot.lane.b32.xlu0 %v1717, 48
  %v1877 = vpop.permute.xlu0 %1876
  %1878 = vrot.lane.b32.xlu0 %v1718, 48
  %v1879 = vpop.permute.xlu0 %1878
  %1880 = vrot.lane.b32.xlu0 %v1719, 48
  %v1881 = vpop.permute.xlu0 %1880
  %1882 = vrot.lane.b32.xlu0 %v1720, 48
  %v1883 = vpop.permute.xlu0 %1882
  %1884 = vrot.lane.b32.xlu0 %v1721, 48
  %v1885 = vpop.permute.xlu0 %1884
  %1886 = vrot.lane.b32.xlu0 %v1722, 48
  %v1887 = vpop.permute.xlu0 %1886
  %1888 = vrot.lane.b32.xlu0 %v1723, 48
  %v1889 = vpop.permute.xlu0 %1888
  %1890 = vrot.lane.b32.xlu0 %v1724, 48
  %v1891 = vpop.permute.xlu0 %1890
  %1892 = vrot.lane.b32.xlu0 %v1725, 48
  %v1893 = vpop.permute.xlu0 %1892
  %1894 = vrot.lane.b32.xlu0 %v1726, 48
  %v1895 = vpop.permute.xlu0 %1894
  %1896 = vrot.lane.b32.xlu0 %v1727, 48
  %v1897 = vpop.permute.xlu0 %1896
  %1898 = vrot.lane.b32.xlu0 %v1728, 48
  %v1899 = vpop.permute.xlu0 %1898
  %1900 = vrot.lane.b32.xlu0 %v1729, 48
  %v1901 = vpop.permute.xlu0 %1900
  %1902 = vrot.lane.b32.xlu0 %v1730, 48
  %v1903 = vpop.permute.xlu0 %1902
  %1904 = vrot.lane.b32.xlu0 %v1731, 48
  %v1905 = vpop.permute.xlu0 %1904
  %1906 = vrot.lane.b32.xlu0 %v1732, 48
  %v1907 = vpop.permute.xlu0 %1906
  %1908 = vrot.lane.b32.xlu0 %v1733, 48
  %v1909 = vpop.permute.xlu0 %1908
  %1910 = vrot.lane.b32.xlu0 %v1734, 48
  %v1911 = vpop.permute.xlu0 %1910
  %1912 = vrot.lane.b32.xlu0 %v1735, 48
  %v1913 = vpop.permute.xlu0 %1912
  %1914 = vrot.lane.b32.xlu0 %v1736, 48
  %v1915 = vpop.permute.xlu0 %1914
  %1916 = vrot.lane.b32.xlu0 %v1737, 48
  %v1917 = vpop.permute.xlu0 %1916
  %1918 = vrot.lane.b32.xlu0 %v1738, 48
  %v1919 = vpop.permute.xlu0 %1918
  %1920 = vrot.lane.b32.xlu0 %v1739, 48
  %v1921 = vpop.permute.xlu0 %1920
  %1922 = vrot.lane.b32.xlu0 %v1740, 48
  %v1923 = vpop.permute.xlu0 %1922
  %1924 = vrot.lane.b32.xlu0 %v1741, 48
  %v1925 = vpop.permute.xlu0 %1924
  %1926 = vrot.lane.b32.xlu0 %v1742, 48
  %v1927 = vpop.permute.xlu0 %1926
  %1928 = vrot.lane.b32.xlu0 %v1743, 48
  %v1929 = vpop.permute.xlu0 %1928
  %1930 = vrot.lane.b32.xlu0 %v1744, 48
  %v1931 = vpop.permute.xlu0 %1930
  %1932 = vrot.lane.b32.xlu0 %v1745, 48
  %v1933 = vpop.permute.xlu0 %1932
  %1934 = vrot.lane.b32.xlu0 %v1746, 48
  %v1935 = vpop.permute.xlu0 %1934
  %1936 = vrot.lane.b32.xlu0 %v1747, 48
  %v1937 = vpop.permute.xlu0 %1936
  %1938 = vrot.lane.b32.xlu0 %v1748, 48
  %v1939 = vpop.permute.xlu0 %1938
  %1940 = vrot.lane.b32.xlu0 %v1749, 48
  %v1941 = vpop.permute.xlu0 %1940
  %vm2006 = vcmask 523648
  %2007 = vst.msk [vmem:[#allocation3] sm:$0xff] %vm2006, %v1815
  %2008 = vst.msk [vmem:[#allocation3 + $0x10] sm:$0xff] %vm2006, %v1817
  %2009 = vst.msk [vmem:[#allocation3 + $0x20] sm:$0xff] %vm2006, %v1819
  %2010 = vst.msk [vmem:[#allocation3 + $0x30] sm:$0xff] %vm2006, %v1821
  %2011 = vst.msk [vmem:[#allocation3 + $0x40] sm:$0xff] %vm2006, %v1823
  %2012 = vst.msk [vmem:[#allocation3 + $0x50] sm:$0xff] %vm2006, %v1825
  %2013 = vst.msk [vmem:[#allocation3 + $0x60] sm:$0xff] %vm2006, %v1827
  %2014 = vst.msk [vmem:[#allocation3 + $0x70] sm:$0xff] %vm2006, %v1829
  %2015 = vst.msk [vmem:[#allocation3 + $0x80] sm:$0xff] %vm2006, %v1831
  %2016 = vst.msk [vmem:[#allocation3 + $0x90] sm:$0xff] %vm2006, %v1833
  %2017 = vst.msk [vmem:[#allocation3 + $0xa0] sm:$0xff] %vm2006, %v1835
  %2018 = vst.msk [vmem:[#allocation3 + $0xb0] sm:$0xff] %vm2006, %v1837
  %2019 = vst.msk [vmem:[#allocation3 + $0xc0] sm:$0xff] %vm2006, %v1839
  %2020 = vst.msk [vmem:[#allocation3 + $0xd0] sm:$0xff] %vm2006, %v1841
  %2021 = vst.msk [vmem:[#allocation3 + $0xe0] sm:$0xff] %vm2006, %v1843
  %2022 = vst.msk [vmem:[#allocation3 + $0xf0] sm:$0xff] %vm2006, %v1845
  %2023 = vst.msk [vmem:[#allocation3 + $0x100] sm:$0xff] %vm2006, %v1847
  %2024 = vst.msk [vmem:[#allocation3 + $0x110] sm:$0xff] %vm2006, %v1849
  %2025 = vst.msk [vmem:[#allocation3 + $0x120] sm:$0xff] %vm2006, %v1851
  %2026 = vst.msk [vmem:[#allocation3 + $0x130] sm:$0xff] %vm2006, %v1853
  %2027 = vst.msk [vmem:[#allocation3 + $0x140] sm:$0xff] %vm2006, %v1855
  %2028 = vst.msk [vmem:[#allocation3 + $0x150] sm:$0xff] %vm2006, %v1857
  %2029 = vst.msk [vmem:[#allocation3 + $0x160] sm:$0xff] %vm2006, %v1859
  %2030 = vst.msk [vmem:[#allocation3 + $0x170] sm:$0xff] %vm2006, %v1861
  %2031 = vst.msk [vmem:[#allocation3 + $0x180] sm:$0xff] %vm2006, %v1863
  %2032 = vst.msk [vmem:[#allocation3 + $0x190] sm:$0xff] %vm2006, %v1865
  %2033 = vst.msk [vmem:[#allocation3 + $0x1a0] sm:$0xff] %vm2006, %v1867
  %2034 = vst.msk [vmem:[#allocation3 + $0x1b0] sm:$0xff] %vm2006, %v1869
  %2035 = vst.msk [vmem:[#allocation3 + $0x1c0] sm:$0xff] %vm2006, %v1871
  %2036 = vst.msk [vmem:[#allocation3 + $0x1d0] sm:$0xff] %vm2006, %v1873
  %2037 = vst.msk [vmem:[#allocation3 + $0x1e0] sm:$0xff] %vm2006, %v1875
  %2038 = vst.msk [vmem:[#allocation3 + $0x1f0] sm:$0xff] %vm2006, %v1877
  %2039 = vst.msk [vmem:[#allocation3 + $0x200] sm:$0xff] %vm2006, %v1879
  %2040 = vst.msk [vmem:[#allocation3 + $0x210] sm:$0xff] %vm2006, %v1881
  %2041 = vst.msk [vmem:[#allocation3 + $0x220] sm:$0xff] %vm2006, %v1883
  %2042 = vst.msk [vmem:[#allocation3 + $0x230] sm:$0xff] %vm2006, %v1885
  %2043 = vst.msk [vmem:[#allocation3 + $0x240] sm:$0xff] %vm2006, %v1887
  %2044 = vst.msk [vmem:[#allocation3 + $0x250] sm:$0xff] %vm2006, %v1889
  %2045 = vst.msk [vmem:[#allocation3 + $0x260] sm:$0xff] %vm2006, %v1891
  %2046 = vst.msk [vmem:[#allocation3 + $0x270] sm:$0xff] %vm2006, %v1893
  %2047 = vst.msk [vmem:[#allocation3 + $0x280] sm:$0xff] %vm2006, %v1895
  %2048 = vst.msk [vmem:[#allocation3 + $0x290] sm:$0xff] %vm2006, %v1897
  %2049 = vst.msk [vmem:[#allocation3 + $0x2a0] sm:$0xff] %vm2006, %v1899
  %2050 = vst.msk [vmem:[#allocation3 + $0x2b0] sm:$0xff] %vm2006, %v1901
  %2051 = vst.msk [vmem:[#allocation3 + $0x2c0] sm:$0xff] %vm2006, %v1903
  %2052 = vst.msk [vmem:[#allocation3 + $0x2d0] sm:$0xff] %vm2006, %v1905
  %2053 = vst.msk [vmem:[#allocation3 + $0x2e0] sm:$0xff] %vm2006, %v1907
  %2054 = vst.msk [vmem:[#allocation3 + $0x2f0] sm:$0xff] %vm2006, %v1909
  %2055 = vst.msk [vmem:[#allocation3 + $0x300] sm:$0xff] %vm2006, %v1911
  %2056 = vst.msk [vmem:[#allocation3 + $0x310] sm:$0xff] %vm2006, %v1913
  %2057 = vst.msk [vmem:[#allocation3 + $0x320] sm:$0xff] %vm2006, %v1915
  %2058 = vst.msk [vmem:[#allocation3 + $0x330] sm:$0xff] %vm2006, %v1917
  %2059 = vst.msk [vmem:[#allocation3 + $0x340] sm:$0xff] %vm2006, %v1919
  %2060 = vst.msk [vmem:[#allocation3 + $0x350] sm:$0xff] %vm2006, %v1921
  %2061 = vst.msk [vmem:[#allocation3 + $0x360] sm:$0xff] %vm2006, %v1923
  %2062 = vst.msk [vmem:[#allocation3 + $0x370] sm:$0xff] %vm2006, %v1925
  %2063 = vst.msk [vmem:[#allocation3 + $0x380] sm:$0xff] %vm2006, %v1927
  %2064 = vst.msk [vmem:[#allocation3 + $0x390] sm:$0xff] %vm2006, %v1929
  %2065 = vst.msk [vmem:[#allocation3 + $0x3a0] sm:$0xff] %vm2006, %v1931
  %2066 = vst.msk [vmem:[#allocation3 + $0x3b0] sm:$0xff] %vm2006, %v1933
  %2067 = vst.msk [vmem:[#allocation3 + $0x3c0] sm:$0xff] %vm2006, %v1935
  %2068 = vst.msk [vmem:[#allocation3 + $0x3d0] sm:$0xff] %vm2006, %v1937
  %2069 = vst.msk [vmem:[#allocation3 + $0x3e0] sm:$0xff] %vm2006, %v1939
  %2070 = vst.msk [vmem:[#allocation3 + $0x3f0] sm:$0xff] %vm2006, %v1941
  %v2071 = vld [vmem:[%s723 + $0x1] sm:$0xff]
  %v2072 = vld [vmem:[%s723 + $0x9] sm:$0xff]
  %v2073 = vld [vmem:[%s723 + $0x19] sm:$0xff]
  %v2074 = vld [vmem:[%s723 + $0x21] sm:$0xff]
  %v2075 = vld [vmem:[%s723 + $0x31] sm:$0xff]
  %v2076 = vld [vmem:[%s723 + $0x39] sm:$0xff]
  %v2077 = vld [vmem:[%s723 + $0x49] sm:$0xff]
  %v2078 = vld [vmem:[%s723 + $0x51] sm:$0xff]
  %v2079 = vld [vmem:[%s723 + $0x61] sm:$0xff]
  %v2080 = vld [vmem:[%s723 + $0x69] sm:$0xff]
  %v2081 = vld [vmem:[%s723 + $0x79] sm:$0xff]
  %v2082 = vld [vmem:[%s723 + $0x81] sm:$0xff]
  %v2083 = vld [vmem:[%s723 + $0x91] sm:$0xff]
  %v2084 = vld [vmem:[%s723 + $0x99] sm:$0xff]
  %v2085 = vld [vmem:[%s723 + $0xa9] sm:$0xff]
  %v2086 = vld [vmem:[%s723 + $0xb1] sm:$0xff]
  %v2087 = vld [vmem:[%s723 + $0xc1] sm:$0xff]
  %v2088 = vld [vmem:[%s723 + $0xc9] sm:$0xff]
  %v2089 = vld [vmem:[%s723 + $0xd9] sm:$0xff]
  %v2090 = vld [vmem:[%s723 + $0xe1] sm:$0xff]
  %v2091 = vld [vmem:[%s723 + $0xf1] sm:$0xff]
  %v2092 = vld [vmem:[%s723 + $0xf9] sm:$0xff]
  %v2093 = vld [vmem:[%s723 + $0x109] sm:$0xff]
  %v2094 = vld [vmem:[%s723 + $0x111] sm:$0xff]
  %v2095 = vld [vmem:[%s723 + $0x121] sm:$0xff]
  %v2096 = vld [vmem:[%s723 + $0x129] sm:$0xff]
  %v2097 = vld [vmem:[%s723 + $0x139] sm:$0xff]
  %v2098 = vld [vmem:[%s723 + $0x141] sm:$0xff]
  %v2099 = vld [vmem:[%s723 + $0x151] sm:$0xff]
  %v2100 = vld [vmem:[%s723 + $0x159] sm:$0xff]
  %v2101 = vld [vmem:[%s723 + $0x169] sm:$0xff]
  %v2102 = vld [vmem:[%s723 + $0x171] sm:$0xff]
  %v2103 = vld [vmem:[%s723 + $0x1b1] sm:$0xff]
  %v2104 = vld [vmem:[%s723 + $0x1b9] sm:$0xff]
  %v2105 = vld [vmem:[%s723 + $0x1c9] sm:$0xff]
  %v2106 = vld [vmem:[%s723 + $0x1d1] sm:$0xff]
  %v2107 = vld [vmem:[%s723 + $0x1e1] sm:$0xff]
  %v2108 = vld [vmem:[%s723 + $0x1e9] sm:$0xff]
  %v2109 = vld [vmem:[%s723 + $0x1f9] sm:$0xff]
  %v2110 = vld [vmem:[%s723 + $0x201] sm:$0xff]
  %v2111 = vld [vmem:[%s723 + $0x211] sm:$0xff]
  %v2112 = vld [vmem:[%s723 + $0x219] sm:$0xff]
  %v2113 = vld [vmem:[%s723 + $0x229] sm:$0xff]
  %v2114 = vld [vmem:[%s723 + $0x231] sm:$0xff]
  %v2115 = vld [vmem:[%s723 + $0x241] sm:$0xff]
  %v2116 = vld [vmem:[%s723 + $0x249] sm:$0xff]
  %v2117 = vld [vmem:[%s723 + $0x259] sm:$0xff]
  %v2118 = vld [vmem:[%s723 + $0x261] sm:$0xff]
  %v2119 = vld [vmem:[%s723 + $0x271] sm:$0xff]
  %v2120 = vld [vmem:[%s723 + $0x279] sm:$0xff]
  %v2121 = vld [vmem:[%s723 + $0x289] sm:$0xff]
  %v2122 = vld [vmem:[%s723 + $0x291] sm:$0xff]
  %v2123 = vld [vmem:[%s723 + $0x2a1] sm:$0xff]
  %v2124 = vld [vmem:[%s723 + $0x2a9] sm:$0xff]
  %v2125 = vld [vmem:[%s723 + $0x2b9] sm:$0xff]
  %v2126 = vld [vmem:[%s723 + $0x2c1] sm:$0xff]
  %v2127 = vld [vmem:[%s723 + $0x2d1] sm:$0xff]
  %v2128 = vld [vmem:[%s723 + $0x2d9] sm:$0xff]
  %v2129 = vld [vmem:[%s723 + $0x2e9] sm:$0xff]
  %v2130 = vld [vmem:[%s723 + $0x2f1] sm:$0xff]
  %v2131 = vld [vmem:[%s723 + $0x301] sm:$0xff]
  %v2132 = vld [vmem:[%s723 + $0x309] sm:$0xff]
  %v2133 = vld [vmem:[%s723 + $0x319] sm:$0xff]
  %v2134 = vld [vmem:[%s723 + $0x321] sm:$0xff]
  %2199 = vrot.lane.b32.xlu0 %v2071, 64
  %v2200 = vpop.permute.xlu0 %2199
  %2201 = vrot.lane.b32.xlu0 %v2072, 64
  %v2202 = vpop.permute.xlu0 %2201
  %2203 = vrot.lane.b32.xlu0 %v2073, 64
  %v2204 = vpop.permute.xlu0 %2203
  %2205 = vrot.lane.b32.xlu0 %v2074, 64
  %v2206 = vpop.permute.xlu0 %2205
  %2207 = vrot.lane.b32.xlu0 %v2075, 64
  %v2208 = vpop.permute.xlu0 %2207
  %2209 = vrot.lane.b32.xlu0 %v2076, 64
  %v2210 = vpop.permute.xlu0 %2209
  %2211 = vrot.lane.b32.xlu0 %v2077, 64
  %v2212 = vpop.permute.xlu0 %2211
  %2213 = vrot.lane.b32.xlu0 %v2078, 64
  %v2214 = vpop.permute.xlu0 %2213
  %2215 = vrot.lane.b32.xlu0 %v2079, 64
  %v2216 = vpop.permute.xlu0 %2215
  %2217 = vrot.lane.b32.xlu0 %v2080, 64
  %v2218 = vpop.permute.xlu0 %2217
  %2219 = vrot.lane.b32.xlu0 %v2081, 64
  %v2220 = vpop.permute.xlu0 %2219
  %2221 = vrot.lane.b32.xlu0 %v2082, 64
  %v2222 = vpop.permute.xlu0 %2221
  %2223 = vrot.lane.b32.xlu0 %v2083, 64
  %v2224 = vpop.permute.xlu0 %2223
  %2225 = vrot.lane.b32.xlu0 %v2084, 64
  %v2226 = vpop.permute.xlu0 %2225
  %2227 = vrot.lane.b32.xlu0 %v2085, 64
  %v2228 = vpop.permute.xlu0 %2227
  %2229 = vrot.lane.b32.xlu0 %v2086, 64
  %v2230 = vpop.permute.xlu0 %2229
  %2231 = vrot.lane.b32.xlu0 %v2087, 64
  %v2232 = vpop.permute.xlu0 %2231
  %2233 = vrot.lane.b32.xlu0 %v2088, 64
  %v2234 = vpop.permute.xlu0 %2233
  %2235 = vrot.lane.b32.xlu0 %v2089, 64
  %v2236 = vpop.permute.xlu0 %2235
  %2237 = vrot.lane.b32.xlu0 %v2090, 64
  %v2238 = vpop.permute.xlu0 %2237
  %2239 = vrot.lane.b32.xlu0 %v2091, 64
  %v2240 = vpop.permute.xlu0 %2239
  %2241 = vrot.lane.b32.xlu0 %v2092, 64
  %v2242 = vpop.permute.xlu0 %2241
  %2243 = vrot.lane.b32.xlu0 %v2093, 64
  %v2244 = vpop.permute.xlu0 %2243
  %2245 = vrot.lane.b32.xlu0 %v2094, 64
  %v2246 = vpop.permute.xlu0 %2245
  %2247 = vrot.lane.b32.xlu0 %v2095, 64
  %v2248 = vpop.permute.xlu0 %2247
  %2249 = vrot.lane.b32.xlu0 %v2096, 64
  %v2250 = vpop.permute.xlu0 %2249
  %2251 = vrot.lane.b32.xlu0 %v2097, 64
  %v2252 = vpop.permute.xlu0 %2251
  %2253 = vrot.lane.b32.xlu0 %v2098, 64
  %v2254 = vpop.permute.xlu0 %2253
  %2255 = vrot.lane.b32.xlu0 %v2099, 64
  %v2256 = vpop.permute.xlu0 %2255
  %2257 = vrot.lane.b32.xlu0 %v2100, 64
  %v2258 = vpop.permute.xlu0 %2257
  %2259 = vrot.lane.b32.xlu0 %v2101, 64
  %v2260 = vpop.permute.xlu0 %2259
  %2261 = vrot.lane.b32.xlu0 %v2102, 64
  %v2262 = vpop.permute.xlu0 %2261
  %2263 = vrot.lane.b32.xlu0 %v2103, 64
  %v2264 = vpop.permute.xlu0 %2263
  %2265 = vrot.lane.b32.xlu0 %v2104, 64
  %v2266 = vpop.permute.xlu0 %2265
  %2267 = vrot.lane.b32.xlu0 %v2105, 64
  %v2268 = vpop.permute.xlu0 %2267
  %2269 = vrot.lane.b32.xlu0 %v2106, 64
  %v2270 = vpop.permute.xlu0 %2269
  %2271 = vrot.lane.b32.xlu0 %v2107, 64
  %v2272 = vpop.permute.xlu0 %2271
  %2273 = vrot.lane.b32.xlu0 %v2108, 64
  %v2274 = vpop.permute.xlu0 %2273
  %2275 = vrot.lane.b32.xlu0 %v2109, 64
  %v2276 = vpop.permute.xlu0 %2275
  %2277 = vrot.lane.b32.xlu0 %v2110, 64
  %v2278 = vpop.permute.xlu0 %2277
  %2279 = vrot.lane.b32.xlu0 %v2111, 64
  %v2280 = vpop.permute.xlu0 %2279
  %2281 = vrot.lane.b32.xlu0 %v2112, 64
  %v2282 = vpop.permute.xlu0 %2281
  %2283 = vrot.lane.b32.xlu0 %v2113, 64
  %v2284 = vpop.permute.xlu0 %2283
  %2285 = vrot.lane.b32.xlu0 %v2114, 64
  %v2286 = vpop.permute.xlu0 %2285
  %2287 = vrot.lane.b32.xlu0 %v2115, 64
  %v2288 = vpop.permute.xlu0 %2287
  %2289 = vrot.lane.b32.xlu0 %v2116, 64
  %v2290 = vpop.permute.xlu0 %2289
  %2291 = vrot.lane.b32.xlu0 %v2117, 64
  %v2292 = vpop.permute.xlu0 %2291
  %2293 = vrot.lane.b32.xlu0 %v2118, 64
  %v2294 = vpop.permute.xlu0 %2293
  %2295 = vrot.lane.b32.xlu0 %v2119, 64
  %v2296 = vpop.permute.xlu0 %2295
  %2297 = vrot.lane.b32.xlu0 %v2120, 64
  %v2298 = vpop.permute.xlu0 %2297
  %2299 = vrot.lane.b32.xlu0 %v2121, 64
  %v2300 = vpop.permute.xlu0 %2299
  %2301 = vrot.lane.b32.xlu0 %v2122, 64
  %v2302 = vpop.permute.xlu0 %2301
  %2303 = vrot.lane.b32.xlu0 %v2123, 64
  %v2304 = vpop.permute.xlu0 %2303
  %2305 = vrot.lane.b32.xlu0 %v2124, 64
  %v2306 = vpop.permute.xlu0 %2305
  %2307 = vrot.lane.b32.xlu0 %v2125, 64
  %v2308 = vpop.permute.xlu0 %2307
  %2309 = vrot.lane.b32.xlu0 %v2126, 64
  %v2310 = vpop.permute.xlu0 %2309
  %2311 = vrot.lane.b32.xlu0 %v2127, 64
  %v2312 = vpop.permute.xlu0 %2311
  %2313 = vrot.lane.b32.xlu0 %v2128, 64
  %v2314 = vpop.permute.xlu0 %2313
  %2315 = vrot.lane.b32.xlu0 %v2129, 64
  %v2316 = vpop.permute.xlu0 %2315
  %2317 = vrot.lane.b32.xlu0 %v2130, 64
  %v2318 = vpop.permute.xlu0 %2317
  %2319 = vrot.lane.b32.xlu0 %v2131, 64
  %v2320 = vpop.permute.xlu0 %2319
  %2321 = vrot.lane.b32.xlu0 %v2132, 64
  %v2322 = vpop.permute.xlu0 %2321
  %2323 = vrot.lane.b32.xlu0 %v2133, 64
  %v2324 = vpop.permute.xlu0 %2323
  %2325 = vrot.lane.b32.xlu0 %v2134, 64
  %v2326 = vpop.permute.xlu0 %2325
  %vm2391 = vcmask 654848
  %2392 = vst.msk [vmem:[#allocation3] sm:$0xff] %vm2391, %v2200
  %2393 = vst.msk [vmem:[#allocation3 + $0x10] sm:$0xff] %vm2391, %v2202
  %2394 = vst.msk [vmem:[#allocation3 + $0x20] sm:$0xff] %vm2391, %v2204
  %2395 = vst.msk [vmem:[#allocation3 + $0x30] sm:$0xff] %vm2391, %v2206
  %2396 = vst.msk [vmem:[#allocation3 + $0x40] sm:$0xff] %vm2391, %v2208
  %2397 = vst.msk [vmem:[#allocation3 + $0x50] sm:$0xff] %vm2391, %v2210
  %2398 = vst.msk [vmem:[#allocation3 + $0x60] sm:$0xff] %vm2391, %v2212
  %2399 = vst.msk [vmem:[#allocation3 + $0x70] sm:$0xff] %vm2391, %v2214
  %2400 = vst.msk [vmem:[#allocation3 + $0x80] sm:$0xff] %vm2391, %v2216
  %2401 = vst.msk [vmem:[#allocation3 + $0x90] sm:$0xff] %vm2391, %v2218
  %2402 = vst.msk [vmem:[#allocation3 + $0xa0] sm:$0xff] %vm2391, %v2220
  %2403 = vst.msk [vmem:[#allocation3 + $0xb0] sm:$0xff] %vm2391, %v2222
  %2404 = vst.msk [vmem:[#allocation3 + $0xc0] sm:$0xff] %vm2391, %v2224
  %2405 = vst.msk [vmem:[#allocation3 + $0xd0] sm:$0xff] %vm2391, %v2226
  %2406 = vst.msk [vmem:[#allocation3 + $0xe0] sm:$0xff] %vm2391, %v2228
  %2407 = vst.msk [vmem:[#allocation3 + $0xf0] sm:$0xff] %vm2391, %v2230
  %2408 = vst.msk [vmem:[#allocation3 + $0x100] sm:$0xff] %vm2391, %v2232
  %2409 = vst.msk [vmem:[#allocation3 + $0x110] sm:$0xff] %vm2391, %v2234
  %2410 = vst.msk [vmem:[#allocation3 + $0x120] sm:$0xff] %vm2391, %v2236
  %2411 = vst.msk [vmem:[#allocation3 + $0x130] sm:$0xff] %vm2391, %v2238
  %2412 = vst.msk [vmem:[#allocation3 + $0x140] sm:$0xff] %vm2391, %v2240
  %2413 = vst.msk [vmem:[#allocation3 + $0x150] sm:$0xff] %vm2391, %v2242
  %2414 = vst.msk [vmem:[#allocation3 + $0x160] sm:$0xff] %vm2391, %v2244
  %2415 = vst.msk [vmem:[#allocation3 + $0x170] sm:$0xff] %vm2391, %v2246
  %2416 = vst.msk [vmem:[#allocation3 + $0x180] sm:$0xff] %vm2391, %v2248
  %2417 = vst.msk [vmem:[#allocation3 + $0x190] sm:$0xff] %vm2391, %v2250
  %2418 = vst.msk [vmem:[#allocation3 + $0x1a0] sm:$0xff] %vm2391, %v2252
  %2419 = vst.msk [vmem:[#allocation3 + $0x1b0] sm:$0xff] %vm2391, %v2254
  %2420 = vst.msk [vmem:[#allocation3 + $0x1c0] sm:$0xff] %vm2391, %v2256
  %2421 = vst.msk [vmem:[#allocation3 + $0x1d0] sm:$0xff] %vm2391, %v2258
  %2422 = vst.msk [vmem:[#allocation3 + $0x1e0] sm:$0xff] %vm2391, %v2260
  %2423 = vst.msk [vmem:[#allocation3 + $0x1f0] sm:$0xff] %vm2391, %v2262
  %2424 = vst.msk [vmem:[#allocation3 + $0x200] sm:$0xff] %vm2391, %v2264
  %2425 = vst.msk [vmem:[#allocation3 + $0x210] sm:$0xff] %vm2391, %v2266
  %2426 = vst.msk [vmem:[#allocation3 + $0x220] sm:$0xff] %vm2391, %v2268
  %2427 = vst.msk [vmem:[#allocation3 + $0x230] sm:$0xff] %vm2391, %v2270
  %2428 = vst.msk [vmem:[#allocation3 + $0x240] sm:$0xff] %vm2391, %v2272
  %2429 = vst.msk [vmem:[#allocation3 + $0x250] sm:$0xff] %vm2391, %v2274
  %2430 = vst.msk [vmem:[#allocation3 + $0x260] sm:$0xff] %vm2391, %v2276
  %2431 = vst.msk [vmem:[#allocation3 + $0x270] sm:$0xff] %vm2391, %v2278
  %2432 = vst.msk [vmem:[#allocation3 + $0x280] sm:$0xff] %vm2391, %v2280
  %2433 = vst.msk [vmem:[#allocation3 + $0x290] sm:$0xff] %vm2391, %v2282
  %2434 = vst.msk [vmem:[#allocation3 + $0x2a0] sm:$0xff] %vm2391, %v2284
  %2435 = vst.msk [vmem:[#allocation3 + $0x2b0] sm:$0xff] %vm2391, %v2286
  %2436 = vst.msk [vmem:[#allocation3 + $0x2c0] sm:$0xff] %vm2391, %v2288
  %2437 = vst.msk [vmem:[#allocation3 + $0x2d0] sm:$0xff] %vm2391, %v2290
  %2438 = vst.msk [vmem:[#allocation3 + $0x2e0] sm:$0xff] %vm2391, %v2292
  %2439 = vst.msk [vmem:[#allocation3 + $0x2f0] sm:$0xff] %vm2391, %v2294
  %2440 = vst.msk [vmem:[#allocation3 + $0x300] sm:$0xff] %vm2391, %v2296
  %2441 = vst.msk [vmem:[#allocation3 + $0x310] sm:$0xff] %vm2391, %v2298
  %2442 = vst.msk [vmem:[#allocation3 + $0x320] sm:$0xff] %vm2391, %v2300
  %2443 = vst.msk [vmem:[#allocation3 + $0x330] sm:$0xff] %vm2391, %v2302
  %2444 = vst.msk [vmem:[#allocation3 + $0x340] sm:$0xff] %vm2391, %v2304
  %2445 = vst.msk [vmem:[#allocation3 + $0x350] sm:$0xff] %vm2391, %v2306
  %2446 = vst.msk [vmem:[#allocation3 + $0x360] sm:$0xff] %vm2391, %v2308
  %2447 = vst.msk [vmem:[#allocation3 + $0x370] sm:$0xff] %vm2391, %v2310
  %2448 = vst.msk [vmem:[#allocation3 + $0x380] sm:$0xff] %vm2391, %v2312
  %2449 = vst.msk [vmem:[#allocation3 + $0x390] sm:$0xff] %vm2391, %v2314
  %2450 = vst.msk [vmem:[#allocation3 + $0x3a0] sm:$0xff] %vm2391, %v2316
  %2451 = vst.msk [vmem:[#allocation3 + $0x3b0] sm:$0xff] %vm2391, %v2318
  %2452 = vst.msk [vmem:[#allocation3 + $0x3c0] sm:$0xff] %vm2391, %v2320
  %2453 = vst.msk [vmem:[#allocation3 + $0x3d0] sm:$0xff] %vm2391, %v2322
  %2454 = vst.msk [vmem:[#allocation3 + $0x3e0] sm:$0xff] %vm2391, %v2324
  %2455 = vst.msk [vmem:[#allocation3 + $0x3f0] sm:$0xff] %vm2391, %v2326
  %v2456 = vld [vmem:[%s723 + $0x2] sm:$0xff]
  %v2457 = vld [vmem:[%s723 + $0xa] sm:$0xff]
  %v2458 = vld [vmem:[%s723 + $0x1a] sm:$0xff]
  %v2459 = vld [vmem:[%s723 + $0x22] sm:$0xff]
  %v2460 = vld [vmem:[%s723 + $0x32] sm:$0xff]
  %v2461 = vld [vmem:[%s723 + $0x3a] sm:$0xff]
  %v2462 = vld [vmem:[%s723 + $0x4a] sm:$0xff]
  %v2463 = vld [vmem:[%s723 + $0x52] sm:$0xff]
  %v2464 = vld [vmem:[%s723 + $0x62] sm:$0xff]
  %v2465 = vld [vmem:[%s723 + $0x6a] sm:$0xff]
  %v2466 = vld [vmem:[%s723 + $0x7a] sm:$0xff]
  %v2467 = vld [vmem:[%s723 + $0x82] sm:$0xff]
  %v2468 = vld [vmem:[%s723 + $0x92] sm:$0xff]
  %v2469 = vld [vmem:[%s723 + $0x9a] sm:$0xff]
  %v2470 = vld [vmem:[%s723 + $0xaa] sm:$0xff]
  %v2471 = vld [vmem:[%s723 + $0xb2] sm:$0xff]
  %v2472 = vld [vmem:[%s723 + $0xc2] sm:$0xff]
  %v2473 = vld [vmem:[%s723 + $0xca] sm:$0xff]
  %v2474 = vld [vmem:[%s723 + $0xda] sm:$0xff]
  %v2475 = vld [vmem:[%s723 + $0xe2] sm:$0xff]
  %v2476 = vld [vmem:[%s723 + $0xf2] sm:$0xff]
  %v2477 = vld [vmem:[%s723 + $0xfa] sm:$0xff]
  %v2478 = vld [vmem:[%s723 + $0x10a] sm:$0xff]
  %v2479 = vld [vmem:[%s723 + $0x112] sm:$0xff]
  %v2480 = vld [vmem:[%s723 + $0x122] sm:$0xff]
  %v2481 = vld [vmem:[%s723 + $0x12a] sm:$0xff]
  %v2482 = vld [vmem:[%s723 + $0x13a] sm:$0xff]
  %v2483 = vld [vmem:[%s723 + $0x142] sm:$0xff]
  %v2484 = vld [vmem:[%s723 + $0x152] sm:$0xff]
  %v2485 = vld [vmem:[%s723 + $0x15a] sm:$0xff]
  %v2486 = vld [vmem:[%s723 + $0x16a] sm:$0xff]
  %v2487 = vld [vmem:[%s723 + $0x172] sm:$0xff]
  %v2488 = vld [vmem:[%s723 + $0x1b2] sm:$0xff]
  %v2489 = vld [vmem:[%s723 + $0x1ba] sm:$0xff]
  %v2490 = vld [vmem:[%s723 + $0x1ca] sm:$0xff]
  %v2491 = vld [vmem:[%s723 + $0x1d2] sm:$0xff]
  %v2492 = vld [vmem:[%s723 + $0x1e2] sm:$0xff]
  %v2493 = vld [vmem:[%s723 + $0x1ea] sm:$0xff]
  %v2494 = vld [vmem:[%s723 + $0x1fa] sm:$0xff]
  %v2495 = vld [vmem:[%s723 + $0x202] sm:$0xff]
  %v2496 = vld [vmem:[%s723 + $0x212] sm:$0xff]
  %v2497 = vld [vmem:[%s723 + $0x21a] sm:$0xff]
  %v2498 = vld [vmem:[%s723 + $0x22a] sm:$0xff]
  %v2499 = vld [vmem:[%s723 + $0x232] sm:$0xff]
  %v2500 = vld [vmem:[%s723 + $0x242] sm:$0xff]
  %v2501 = vld [vmem:[%s723 + $0x24a] sm:$0xff]
  %v2502 = vld [vmem:[%s723 + $0x25a] sm:$0xff]
  %v2503 = vld [vmem:[%s723 + $0x262] sm:$0xff]
  %v2504 = vld [vmem:[%s723 + $0x272] sm:$0xff]
  %v2505 = vld [vmem:[%s723 + $0x27a] sm:$0xff]
  %v2506 = vld [vmem:[%s723 + $0x28a] sm:$0xff]
  %v2507 = vld [vmem:[%s723 + $0x292] sm:$0xff]
  %v2508 = vld [vmem:[%s723 + $0x2a2] sm:$0xff]
  %v2509 = vld [vmem:[%s723 + $0x2aa] sm:$0xff]
  %v2510 = vld [vmem:[%s723 + $0x2ba] sm:$0xff]
  %v2511 = vld [vmem:[%s723 + $0x2c2] sm:$0xff]
  %v2512 = vld [vmem:[%s723 + $0x2d2] sm:$0xff]
  %v2513 = vld [vmem:[%s723 + $0x2da] sm:$0xff]
  %v2514 = vld [vmem:[%s723 + $0x2ea] sm:$0xff]
  %v2515 = vld [vmem:[%s723 + $0x2f2] sm:$0xff]
  %v2516 = vld [vmem:[%s723 + $0x302] sm:$0xff]
  %v2517 = vld [vmem:[%s723 + $0x30a] sm:$0xff]
  %v2518 = vld [vmem:[%s723 + $0x31a] sm:$0xff]
  %v2519 = vld [vmem:[%s723 + $0x322] sm:$0xff]
  %2584 = vrot.lane.b32.xlu0 %v2456, 80
  %v2585 = vpop.permute.xlu0 %2584
  %2586 = vrot.lane.b32.xlu0 %v2457, 80
  %v2587 = vpop.permute.xlu0 %2586
  %2588 = vrot.lane.b32.xlu0 %v2458, 80
  %v2589 = vpop.permute.xlu0 %2588
  %2590 = vrot.lane.b32.xlu0 %v2459, 80
  %v2591 = vpop.permute.xlu0 %2590
  %2592 = vrot.lane.b32.xlu0 %v2460, 80
  %v2593 = vpop.permute.xlu0 %2592
  %2594 = vrot.lane.b32.xlu0 %v2461, 80
  %v2595 = vpop.permute.xlu0 %2594
  %2596 = vrot.lane.b32.xlu0 %v2462, 80
  %v2597 = vpop.permute.xlu0 %2596
  %2598 = vrot.lane.b32.xlu0 %v2463, 80
  %v2599 = vpop.permute.xlu0 %2598
  %2600 = vrot.lane.b32.xlu0 %v2464, 80
  %v2601 = vpop.permute.xlu0 %2600
  %2602 = vrot.lane.b32.xlu0 %v2465, 80
  %v2603 = vpop.permute.xlu0 %2602
  %2604 = vrot.lane.b32.xlu0 %v2466, 80
  %v2605 = vpop.permute.xlu0 %2604
  %2606 = vrot.lane.b32.xlu0 %v2467, 80
  %v2607 = vpop.permute.xlu0 %2606
  %2608 = vrot.lane.b32.xlu0 %v2468, 80
  %v2609 = vpop.permute.xlu0 %2608
  %2610 = vrot.lane.b32.xlu0 %v2469, 80
  %v2611 = vpop.permute.xlu0 %2610
  %2612 = vrot.lane.b32.xlu0 %v2470, 80
  %v2613 = vpop.permute.xlu0 %2612
  %2614 = vrot.lane.b32.xlu0 %v2471, 80
  %v2615 = vpop.permute.xlu0 %2614
  %2616 = vrot.lane.b32.xlu0 %v2472, 80
  %v2617 = vpop.permute.xlu0 %2616
  %2618 = vrot.lane.b32.xlu0 %v2473, 80
  %v2619 = vpop.permute.xlu0 %2618
  %2620 = vrot.lane.b32.xlu0 %v2474, 80
  %v2621 = vpop.permute.xlu0 %2620
  %2622 = vrot.lane.b32.xlu0 %v2475, 80
  %v2623 = vpop.permute.xlu0 %2622
  %2624 = vrot.lane.b32.xlu0 %v2476, 80
  %v2625 = vpop.permute.xlu0 %2624
  %2626 = vrot.lane.b32.xlu0 %v2477, 80
  %v2627 = vpop.permute.xlu0 %2626
  %2628 = vrot.lane.b32.xlu0 %v2478, 80
  %v2629 = vpop.permute.xlu0 %2628
  %2630 = vrot.lane.b32.xlu0 %v2479, 80
  %v2631 = vpop.permute.xlu0 %2630
  %2632 = vrot.lane.b32.xlu0 %v2480, 80
  %v2633 = vpop.permute.xlu0 %2632
  %2634 = vrot.lane.b32.xlu0 %v2481, 80
  %v2635 = vpop.permute.xlu0 %2634
  %2636 = vrot.lane.b32.xlu0 %v2482, 80
  %v2637 = vpop.permute.xlu0 %2636
  %2638 = vrot.lane.b32.xlu0 %v2483, 80
  %v2639 = vpop.permute.xlu0 %2638
  %2640 = vrot.lane.b32.xlu0 %v2484, 80
  %v2641 = vpop.permute.xlu0 %2640
  %2642 = vrot.lane.b32.xlu0 %v2485, 80
  %v2643 = vpop.permute.xlu0 %2642
  %2644 = vrot.lane.b32.xlu0 %v2486, 80
  %v2645 = vpop.permute.xlu0 %2644
  %2646 = vrot.lane.b32.xlu0 %v2487, 80
  %v2647 = vpop.permute.xlu0 %2646
  %2648 = vrot.lane.b32.xlu0 %v2488, 80
  %v2649 = vpop.permute.xlu0 %2648
  %2650 = vrot.lane.b32.xlu0 %v2489, 80
  %v2651 = vpop.permute.xlu0 %2650
  %2652 = vrot.lane.b32.xlu0 %v2490, 80
  %v2653 = vpop.permute.xlu0 %2652
  %2654 = vrot.lane.b32.xlu0 %v2491, 80
  %v2655 = vpop.permute.xlu0 %2654
  %2656 = vrot.lane.b32.xlu0 %v2492, 80
  %v2657 = vpop.permute.xlu0 %2656
  %2658 = vrot.lane.b32.xlu0 %v2493, 80
  %v2659 = vpop.permute.xlu0 %2658
  %2660 = vrot.lane.b32.xlu0 %v2494, 80
  %v2661 = vpop.permute.xlu0 %2660
  %2662 = vrot.lane.b32.xlu0 %v2495, 80
  %v2663 = vpop.permute.xlu0 %2662
  %2664 = vrot.lane.b32.xlu0 %v2496, 80
  %v2665 = vpop.permute.xlu0 %2664
  %2666 = vrot.lane.b32.xlu0 %v2497, 80
  %v2667 = vpop.permute.xlu0 %2666
  %2668 = vrot.lane.b32.xlu0 %v2498, 80
  %v2669 = vpop.permute.xlu0 %2668
  %2670 = vrot.lane.b32.xlu0 %v2499, 80
  %v2671 = vpop.permute.xlu0 %2670
  %2672 = vrot.lane.b32.xlu0 %v2500, 80
  %v2673 = vpop.permute.xlu0 %2672
  %2674 = vrot.lane.b32.xlu0 %v2501, 80
  %v2675 = vpop.permute.xlu0 %2674
  %2676 = vrot.lane.b32.xlu0 %v2502, 80
  %v2677 = vpop.permute.xlu0 %2676
  %2678 = vrot.lane.b32.xlu0 %v2503, 80
  %v2679 = vpop.permute.xlu0 %2678
  %2680 = vrot.lane.b32.xlu0 %v2504, 80
  %v2681 = vpop.permute.xlu0 %2680
  %2682 = vrot.lane.b32.xlu0 %v2505, 80
  %v2683 = vpop.permute.xlu0 %2682
  %2684 = vrot.lane.b32.xlu0 %v2506, 80
  %v2685 = vpop.permute.xlu0 %2684
  %2686 = vrot.lane.b32.xlu0 %v2507, 80
  %v2687 = vpop.permute.xlu0 %2686
  %2688 = vrot.lane.b32.xlu0 %v2508, 80
  %v2689 = vpop.permute.xlu0 %2688
  %2690 = vrot.lane.b32.xlu0 %v2509, 80
  %v2691 = vpop.permute.xlu0 %2690
  %2692 = vrot.lane.b32.xlu0 %v2510, 80
  %v2693 = vpop.permute.xlu0 %2692
  %2694 = vrot.lane.b32.xlu0 %v2511, 80
  %v2695 = vpop.permute.xlu0 %2694
  %2696 = vrot.lane.b32.xlu0 %v2512, 80
  %v2697 = vpop.permute.xlu0 %2696
  %2698 = vrot.lane.b32.xlu0 %v2513, 80
  %v2699 = vpop.permute.xlu0 %2698
  %2700 = vrot.lane.b32.xlu0 %v2514, 80
  %v2701 = vpop.permute.xlu0 %2700
  %2702 = vrot.lane.b32.xlu0 %v2515, 80
  %v2703 = vpop.permute.xlu0 %2702
  %2704 = vrot.lane.b32.xlu0 %v2516, 80
  %v2705 = vpop.permute.xlu0 %2704
  %2706 = vrot.lane.b32.xlu0 %v2517, 80
  %v2707 = vpop.permute.xlu0 %2706
  %2708 = vrot.lane.b32.xlu0 %v2518, 80
  %v2709 = vpop.permute.xlu0 %2708
  %2710 = vrot.lane.b32.xlu0 %v2519, 80
  %v2711 = vpop.permute.xlu0 %2710
  %vm2776 = vcmask 786048
  %2777 = vst.msk [vmem:[#allocation3] sm:$0xff] %vm2776, %v2585
  %2778 = vst.msk [vmem:[#allocation3 + $0x10] sm:$0xff] %vm2776, %v2587
  %2779 = vst.msk [vmem:[#allocation3 + $0x20] sm:$0xff] %vm2776, %v2589
  %2780 = vst.msk [vmem:[#allocation3 + $0x30] sm:$0xff] %vm2776, %v2591
  %2781 = vst.msk [vmem:[#allocation3 + $0x40] sm:$0xff] %vm2776, %v2593
  %2782 = vst.msk [vmem:[#allocation3 + $0x50] sm:$0xff] %vm2776, %v2595
  %2783 = vst.msk [vmem:[#allocation3 + $0x60] sm:$0xff] %vm2776, %v2597
  %2784 = vst.msk [vmem:[#allocation3 + $0x70] sm:$0xff] %vm2776, %v2599
  %2785 = vst.msk [vmem:[#allocation3 + $0x80] sm:$0xff] %vm2776, %v2601
  %2786 = vst.msk [vmem:[#allocation3 + $0x90] sm:$0xff] %vm2776, %v2603
  %2787 = vst.msk [vmem:[#allocation3 + $0xa0] sm:$0xff] %vm2776, %v2605
  %2788 = vst.msk [vmem:[#allocation3 + $0xb0] sm:$0xff] %vm2776, %v2607
  %2789 = vst.msk [vmem:[#allocation3 + $0xc0] sm:$0xff] %vm2776, %v2609
  %2790 = vst.msk [vmem:[#allocation3 + $0xd0] sm:$0xff] %vm2776, %v2611
  %2791 = vst.msk [vmem:[#allocation3 + $0xe0] sm:$0xff] %vm2776, %v2613
  %2792 = vst.msk [vmem:[#allocation3 + $0xf0] sm:$0xff] %vm2776, %v2615
  %2793 = vst.msk [vmem:[#allocation3 + $0x100] sm:$0xff] %vm2776, %v2617
  %2794 = vst.msk [vmem:[#allocation3 + $0x110] sm:$0xff] %vm2776, %v2619
  %2795 = vst.msk [vmem:[#allocation3 + $0x120] sm:$0xff] %vm2776, %v2621
  %2796 = vst.msk [vmem:[#allocation3 + $0x130] sm:$0xff] %vm2776, %v2623
  %2797 = vst.msk [vmem:[#allocation3 + $0x140] sm:$0xff] %vm2776, %v2625
  %2798 = vst.msk [vmem:[#allocation3 + $0x150] sm:$0xff] %vm2776, %v2627
  %2799 = vst.msk [vmem:[#allocation3 + $0x160] sm:$0xff] %vm2776, %v2629
  %2800 = vst.msk [vmem:[#allocation3 + $0x170] sm:$0xff] %vm2776, %v2631
  %2801 = vst.msk [vmem:[#allocation3 + $0x180] sm:$0xff] %vm2776, %v2633
  %2802 = vst.msk [vmem:[#allocation3 + $0x190] sm:$0xff] %vm2776, %v2635
  %2803 = vst.msk [vmem:[#allocation3 + $0x1a0] sm:$0xff] %vm2776, %v2637
  %2804 = vst.msk [vmem:[#allocation3 + $0x1b0] sm:$0xff] %vm2776, %v2639
  %2805 = vst.msk [vmem:[#allocation3 + $0x1c0] sm:$0xff] %vm2776, %v2641
  %2806 = vst.msk [vmem:[#allocation3 + $0x1d0] sm:$0xff] %vm2776, %v2643
  %2807 = vst.msk [vmem:[#allocation3 + $0x1e0] sm:$0xff] %vm2776, %v2645
  %2808 = vst.msk [vmem:[#allocation3 + $0x1f0] sm:$0xff] %vm2776, %v2647
  %2809 = vst.msk [vmem:[#allocation3 + $0x200] sm:$0xff] %vm2776, %v2649
  %2810 = vst.msk [vmem:[#allocation3 + $0x210] sm:$0xff] %vm2776, %v2651
  %2811 = vst.msk [vmem:[#allocation3 + $0x220] sm:$0xff] %vm2776, %v2653
  %2812 = vst.msk [vmem:[#allocation3 + $0x230] sm:$0xff] %vm2776, %v2655
  %2813 = vst.msk [vmem:[#allocation3 + $0x240] sm:$0xff] %vm2776, %v2657
  %2814 = vst.msk [vmem:[#allocation3 + $0x250] sm:$0xff] %vm2776, %v2659
  %2815 = vst.msk [vmem:[#allocation3 + $0x260] sm:$0xff] %vm2776, %v2661
  %2816 = vst.msk [vmem:[#allocation3 + $0x270] sm:$0xff] %vm2776, %v2663
  %2817 = vst.msk [vmem:[#allocation3 + $0x280] sm:$0xff] %vm2776, %v2665
  %2818 = vst.msk [vmem:[#allocation3 + $0x290] sm:$0xff] %vm2776, %v2667
  %2819 = vst.msk [vmem:[#allocation3 + $0x2a0] sm:$0xff] %vm2776, %v2669
  %2820 = vst.msk [vmem:[#allocation3 + $0x2b0] sm:$0xff] %vm2776, %v2671
  %2821 = vst.msk [vmem:[#allocation3 + $0x2c0] sm:$0xff] %vm2776, %v2673
  %2822 = vst.msk [vmem:[#allocation3 + $0x2d0] sm:$0xff] %vm2776, %v2675
  %2823 = vst.msk [vmem:[#allocation3 + $0x2e0] sm:$0xff] %vm2776, %v2677
  %2824 = vst.msk [vmem:[#allocation3 + $0x2f0] sm:$0xff] %vm2776, %v2679
  %2825 = vst.msk [vmem:[#allocation3 + $0x300] sm:$0xff] %vm2776, %v2681
  %2826 = vst.msk [vmem:[#allocation3 + $0x310] sm:$0xff] %vm2776, %v2683
  %2827 = vst.msk [vmem:[#allocation3 + $0x320] sm:$0xff] %vm2776, %v2685
  %2828 = vst.msk [vmem:[#allocation3 + $0x330] sm:$0xff] %vm2776, %v2687
  %2829 = vst.msk [vmem:[#allocation3 + $0x340] sm:$0xff] %vm2776, %v2689
  %2830 = vst.msk [vmem:[#allocation3 + $0x350] sm:$0xff] %vm2776, %v2691
  %2831 = vst.msk [vmem:[#allocation3 + $0x360] sm:$0xff] %vm2776, %v2693
  %2832 = vst.msk [vmem:[#allocation3 + $0x370] sm:$0xff] %vm2776, %v2695
  %2833 = vst.msk [vmem:[#allocation3 + $0x380] sm:$0xff] %vm2776, %v2697
  %2834 = vst.msk [vmem:[#allocation3 + $0x390] sm:$0xff] %vm2776, %v2699
  %2835 = vst.msk [vmem:[#allocation3 + $0x3a0] sm:$0xff] %vm2776, %v2701
  %2836 = vst.msk [vmem:[#allocation3 + $0x3b0] sm:$0xff] %vm2776, %v2703
  %2837 = vst.msk [vmem:[#allocation3 + $0x3c0] sm:$0xff] %vm2776, %v2705
  %2838 = vst.msk [vmem:[#allocation3 + $0x3d0] sm:$0xff] %vm2776, %v2707
  %2839 = vst.msk [vmem:[#allocation3 + $0x3e0] sm:$0xff] %vm2776, %v2709
  %2840 = vst.msk [vmem:[#allocation3 + $0x3f0] sm:$0xff] %vm2776, %v2711
  %s2841 = scalar_lea.vmem [#allocation2], 48
  %v2842 = vld [vmem:[%s2841] sm:$0xff]
  %v2843 = vld [vmem:[%s2841 + $0x8] sm:$0xff]
  %v2844 = vld [vmem:[%s2841 + $0x18] sm:$0xff]
  %v2845 = vld [vmem:[%s2841 + $0x20] sm:$0xff]
  %v2846 = vld [vmem:[%s2841 + $0x30] sm:$0xff]
  %v2847 = vld [vmem:[%s2841 + $0x38] sm:$0xff]
  %v2848 = vld [vmem:[%s2841 + $0x48] sm:$0xff]
  %v2849 = vld [vmem:[%s2841 + $0x50] sm:$0xff]
  %v2850 = vld [vmem:[%s2841 + $0x60] sm:$0xff]
  %v2851 = vld [vmem:[%s2841 + $0x68] sm:$0xff]
  %v2852 = vld [vmem:[%s2841 + $0x78] sm:$0xff]
  %v2853 = vld [vmem:[%s2841 + $0x80] sm:$0xff]
  %v2854 = vld [vmem:[%s2841 + $0x90] sm:$0xff]
  %v2855 = vld [vmem:[%s2841 + $0x98] sm:$0xff]
  %v2856 = vld [vmem:[%s2841 + $0xa8] sm:$0xff]
  %v2857 = vld [vmem:[%s2841 + $0xb0] sm:$0xff]
  %v2858 = vld [vmem:[%s2841 + $0xc0] sm:$0xff]
  %v2859 = vld [vmem:[%s2841 + $0xc8] sm:$0xff]
  %v2860 = vld [vmem:[%s2841 + $0xd8] sm:$0xff]
  %v2861 = vld [vmem:[%s2841 + $0xe0] sm:$0xff]
  %v2862 = vld [vmem:[%s2841 + $0xf0] sm:$0xff]
  %v2863 = vld [vmem:[%s2841 + $0xf8] sm:$0xff]
  %v2864 = vld [vmem:[%s2841 + $0x108] sm:$0xff]
  %v2865 = vld [vmem:[%s2841 + $0x110] sm:$0xff]
  %v2866 = vld [vmem:[%s2841 + $0x120] sm:$0xff]
  %v2867 = vld [vmem:[%s2841 + $0x128] sm:$0xff]
  %v2868 = vld [vmem:[%s2841 + $0x138] sm:$0xff]
  %v2869 = vld [vmem:[%s2841 + $0x140] sm:$0xff]
  %v2870 = vld [vmem:[%s2841 + $0x150] sm:$0xff]
  %v2871 = vld [vmem:[%s2841 + $0x158] sm:$0xff]
  %v2872 = vld [vmem:[%s2841 + $0x168] sm:$0xff]
  %v2873 = vld [vmem:[%s2841 + $0x170] sm:$0xff]
  %v2874 = vld [vmem:[%s2841 + $0x1b0] sm:$0xff]
  %v2875 = vld [vmem:[%s2841 + $0x1b8] sm:$0xff]
  %v2876 = vld [vmem:[%s2841 + $0x1c8] sm:$0xff]
  %v2877 = vld [vmem:[%s2841 + $0x1d0] sm:$0xff]
  %v2878 = vld [vmem:[%s2841 + $0x1e0] sm:$0xff]
  %v2879 = vld [vmem:[%s2841 + $0x1e8] sm:$0xff]
  %v2880 = vld [vmem:[%s2841 + $0x1f8] sm:$0xff]
  %v2881 = vld [vmem:[%s2841 + $0x200] sm:$0xff]
  %v2882 = vld [vmem:[%s2841 + $0x210] sm:$0xff]
  %v2883 = vld [vmem:[%s2841 + $0x218] sm:$0xff]
  %v2884 = vld [vmem:[%s2841 + $0x228] sm:$0xff]
  %v2885 = vld [vmem:[%s2841 + $0x230] sm:$0xff]
  %v2886 = vld [vmem:[%s2841 + $0x240] sm:$0xff]
  %v2887 = vld [vmem:[%s2841 + $0x248] sm:$0xff]
  %v2888 = vld [vmem:[%s2841 + $0x258] sm:$0xff]
  %v2889 = vld [vmem:[%s2841 + $0x260] sm:$0xff]
  %v2890 = vld [vmem:[%s2841 + $0x270] sm:$0xff]
  %v2891 = vld [vmem:[%s2841 + $0x278] sm:$0xff]
  %v2892 = vld [vmem:[%s2841 + $0x288] sm:$0xff]
  %v2893 = vld [vmem:[%s2841 + $0x290] sm:$0xff]
  %v2894 = vld [vmem:[%s2841 + $0x2a0] sm:$0xff]
  %v2895 = vld [vmem:[%s2841 + $0x2a8] sm:$0xff]
  %v2896 = vld [vmem:[%s2841 + $0x2b8] sm:$0xff]
  %v2897 = vld [vmem:[%s2841 + $0x2c0] sm:$0xff]
  %v2898 = vld [vmem:[%s2841 + $0x2d0] sm:$0xff]
  %v2899 = vld [vmem:[%s2841 + $0x2d8] sm:$0xff]
  %v2900 = vld [vmem:[%s2841 + $0x2e8] sm:$0xff]
  %v2901 = vld [vmem:[%s2841 + $0x2f0] sm:$0xff]
  %v2902 = vld [vmem:[%s2841 + $0x300] sm:$0xff]
  %v2903 = vld [vmem:[%s2841 + $0x308] sm:$0xff]
  %v2904 = vld [vmem:[%s2841 + $0x318] sm:$0xff]
  %v2905 = vld [vmem:[%s2841 + $0x320] sm:$0xff]
  %2970 = vrot.lane.b32.xlu0 %v2842, 96
  %v2971 = vpop.permute.xlu0 %2970
  %2972 = vrot.lane.b32.xlu0 %v2843, 96
  %v2973 = vpop.permute.xlu0 %2972
  %2974 = vrot.lane.b32.xlu0 %v2844, 96
  %v2975 = vpop.permute.xlu0 %2974
  %2976 = vrot.lane.b32.xlu0 %v2845, 96
  %v2977 = vpop.permute.xlu0 %2976
  %2978 = vrot.lane.b32.xlu0 %v2846, 96
  %v2979 = vpop.permute.xlu0 %2978
  %2980 = vrot.lane.b32.xlu0 %v2847, 96
  %v2981 = vpop.permute.xlu0 %2980
  %2982 = vrot.lane.b32.xlu0 %v2848, 96
  %v2983 = vpop.permute.xlu0 %2982
  %2984 = vrot.lane.b32.xlu0 %v2849, 96
  %v2985 = vpop.permute.xlu0 %2984
  %2986 = vrot.lane.b32.xlu0 %v2850, 96
  %v2987 = vpop.permute.xlu0 %2986
  %2988 = vrot.lane.b32.xlu0 %v2851, 96
  %v2989 = vpop.permute.xlu0 %2988
  %2990 = vrot.lane.b32.xlu0 %v2852, 96
  %v2991 = vpop.permute.xlu0 %2990
  %2992 = vrot.lane.b32.xlu0 %v2853, 96
  %v2993 = vpop.permute.xlu0 %2992
  %2994 = vrot.lane.b32.xlu0 %v2854, 96
  %v2995 = vpop.permute.xlu0 %2994
  %2996 = vrot.lane.b32.xlu0 %v2855, 96
  %v2997 = vpop.permute.xlu0 %2996
  %2998 = vrot.lane.b32.xlu0 %v2856, 96
  %v2999 = vpop.permute.xlu0 %2998
  %3000 = vrot.lane.b32.xlu0 %v2857, 96
  %v3001 = vpop.permute.xlu0 %3000
  %3002 = vrot.lane.b32.xlu0 %v2858, 96
  %v3003 = vpop.permute.xlu0 %3002
  %3004 = vrot.lane.b32.xlu0 %v2859, 96
  %v3005 = vpop.permute.xlu0 %3004
  %3006 = vrot.lane.b32.xlu0 %v2860, 96
  %v3007 = vpop.permute.xlu0 %3006
  %3008 = vrot.lane.b32.xlu0 %v2861, 96
  %v3009 = vpop.permute.xlu0 %3008
  %3010 = vrot.lane.b32.xlu0 %v2862, 96
  %v3011 = vpop.permute.xlu0 %3010
  %3012 = vrot.lane.b32.xlu0 %v2863, 96
  %v3013 = vpop.permute.xlu0 %3012
  %3014 = vrot.lane.b32.xlu0 %v2864, 96
  %v3015 = vpop.permute.xlu0 %3014
  %3016 = vrot.lane.b32.xlu0 %v2865, 96
  %v3017 = vpop.permute.xlu0 %3016
  %3018 = vrot.lane.b32.xlu0 %v2866, 96
  %v3019 = vpop.permute.xlu0 %3018
  %3020 = vrot.lane.b32.xlu0 %v2867, 96
  %v3021 = vpop.permute.xlu0 %3020
  %3022 = vrot.lane.b32.xlu0 %v2868, 96
  %v3023 = vpop.permute.xlu0 %3022
  %3024 = vrot.lane.b32.xlu0 %v2869, 96
  %v3025 = vpop.permute.xlu0 %3024
  %3026 = vrot.lane.b32.xlu0 %v2870, 96
  %v3027 = vpop.permute.xlu0 %3026
  %3028 = vrot.lane.b32.xlu0 %v2871, 96
  %v3029 = vpop.permute.xlu0 %3028
  %3030 = vrot.lane.b32.xlu0 %v2872, 96
  %v3031 = vpop.permute.xlu0 %3030
  %3032 = vrot.lane.b32.xlu0 %v2873, 96
  %v3033 = vpop.permute.xlu0 %3032
  %3034 = vrot.lane.b32.xlu0 %v2874, 96
  %v3035 = vpop.permute.xlu0 %3034
  %3036 = vrot.lane.b32.xlu0 %v2875, 96
  %v3037 = vpop.permute.xlu0 %3036
  %3038 = vrot.lane.b32.xlu0 %v2876, 96
  %v3039 = vpop.permute.xlu0 %3038
  %3040 = vrot.lane.b32.xlu0 %v2877, 96
  %v3041 = vpop.permute.xlu0 %3040
  %3042 = vrot.lane.b32.xlu0 %v2878, 96
  %v3043 = vpop.permute.xlu0 %3042
  %3044 = vrot.lane.b32.xlu0 %v2879, 96
  %v3045 = vpop.permute.xlu0 %3044
  %3046 = vrot.lane.b32.xlu0 %v2880, 96
  %v3047 = vpop.permute.xlu0 %3046
  %3048 = vrot.lane.b32.xlu0 %v2881, 96
  %v3049 = vpop.permute.xlu0 %3048
  %3050 = vrot.lane.b32.xlu0 %v2882, 96
  %v3051 = vpop.permute.xlu0 %3050
  %3052 = vrot.lane.b32.xlu0 %v2883, 96
  %v3053 = vpop.permute.xlu0 %3052
  %3054 = vrot.lane.b32.xlu0 %v2884, 96
  %v3055 = vpop.permute.xlu0 %3054
  %3056 = vrot.lane.b32.xlu0 %v2885, 96
  %v3057 = vpop.permute.xlu0 %3056
  %3058 = vrot.lane.b32.xlu0 %v2886, 96
  %v3059 = vpop.permute.xlu0 %3058
  %3060 = vrot.lane.b32.xlu0 %v2887, 96
  %v3061 = vpop.permute.xlu0 %3060
  %3062 = vrot.lane.b32.xlu0 %v2888, 96
  %v3063 = vpop.permute.xlu0 %3062
  %3064 = vrot.lane.b32.xlu0 %v2889, 96
  %v3065 = vpop.permute.xlu0 %3064
  %3066 = vrot.lane.b32.xlu0 %v2890, 96
  %v3067 = vpop.permute.xlu0 %3066
  %3068 = vrot.lane.b32.xlu0 %v2891, 96
  %v3069 = vpop.permute.xlu0 %3068
  %3070 = vrot.lane.b32.xlu0 %v2892, 96
  %v3071 = vpop.permute.xlu0 %3070
  %3072 = vrot.lane.b32.xlu0 %v2893, 96
  %v3073 = vpop.permute.xlu0 %3072
  %3074 = vrot.lane.b32.xlu0 %v2894, 96
  %v3075 = vpop.permute.xlu0 %3074
  %3076 = vrot.lane.b32.xlu0 %v2895, 96
  %v3077 = vpop.permute.xlu0 %3076
  %3078 = vrot.lane.b32.xlu0 %v2896, 96
  %v3079 = vpop.permute.xlu0 %3078
  %3080 = vrot.lane.b32.xlu0 %v2897, 96
  %v3081 = vpop.permute.xlu0 %3080
  %3082 = vrot.lane.b32.xlu0 %v2898, 96
  %v3083 = vpop.permute.xlu0 %3082
  %3084 = vrot.lane.b32.xlu0 %v2899, 96
  %v3085 = vpop.permute.xlu0 %3084
  %3086 = vrot.lane.b32.xlu0 %v2900, 96
  %v3087 = vpop.permute.xlu0 %3086
  %3088 = vrot.lane.b32.xlu0 %v2901, 96
  %v3089 = vpop.permute.xlu0 %3088
  %3090 = vrot.lane.b32.xlu0 %v2902, 96
  %v3091 = vpop.permute.xlu0 %3090
  %3092 = vrot.lane.b32.xlu0 %v2903, 96
  %v3093 = vpop.permute.xlu0 %3092
  %3094 = vrot.lane.b32.xlu0 %v2904, 96
  %v3095 = vpop.permute.xlu0 %3094
  %3096 = vrot.lane.b32.xlu0 %v2905, 96
  %v3097 = vpop.permute.xlu0 %3096
  %vm3162 = vcmask 917248
  %3163 = vst.msk [vmem:[#allocation3] sm:$0xff] %vm3162, %v2971
  %3164 = vst.msk [vmem:[#allocation3 + $0x10] sm:$0xff] %vm3162, %v2973
  %3165 = vst.msk [vmem:[#allocation3 + $0x20] sm:$0xff] %vm3162, %v2975
  %3166 = vst.msk [vmem:[#allocation3 + $0x30] sm:$0xff] %vm3162, %v2977
  %3167 = vst.msk [vmem:[#allocation3 + $0x40] sm:$0xff] %vm3162, %v2979
  %3168 = vst.msk [vmem:[#allocation3 + $0x50] sm:$0xff] %vm3162, %v2981
  %3169 = vst.msk [vmem:[#allocation3 + $0x60] sm:$0xff] %vm3162, %v2983
  %3170 = vst.msk [vmem:[#allocation3 + $0x70] sm:$0xff] %vm3162, %v2985
  %3171 = vst.msk [vmem:[#allocation3 + $0x80] sm:$0xff] %vm3162, %v2987
  %3172 = vst.msk [vmem:[#allocation3 + $0x90] sm:$0xff] %vm3162, %v2989
  %3173 = vst.msk [vmem:[#allocation3 + $0xa0] sm:$0xff] %vm3162, %v2991
  %3174 = vst.msk [vmem:[#allocation3 + $0xb0] sm:$0xff] %vm3162, %v2993
  %3175 = vst.msk [vmem:[#allocation3 + $0xc0] sm:$0xff] %vm3162, %v2995
  %3176 = vst.msk [vmem:[#allocation3 + $0xd0] sm:$0xff] %vm3162, %v2997
  %3177 = vst.msk [vmem:[#allocation3 + $0xe0] sm:$0xff] %vm3162, %v2999
  %3178 = vst.msk [vmem:[#allocation3 + $0xf0] sm:$0xff] %vm3162, %v3001
  %3179 = vst.msk [vmem:[#allocation3 + $0x100] sm:$0xff] %vm3162, %v3003
  %3180 = vst.msk [vmem:[#allocation3 + $0x110] sm:$0xff] %vm3162, %v3005
  %3181 = vst.msk [vmem:[#allocation3 + $0x120] sm:$0xff] %vm3162, %v3007
  %3182 = vst.msk [vmem:[#allocation3 + $0x130] sm:$0xff] %vm3162, %v3009
  %3183 = vst.msk [vmem:[#allocation3 + $0x140] sm:$0xff] %vm3162, %v3011
  %3184 = vst.msk [vmem:[#allocation3 + $0x150] sm:$0xff] %vm3162, %v3013
  %3185 = vst.msk [vmem:[#allocation3 + $0x160] sm:$0xff] %vm3162, %v3015
  %3186 = vst.msk [vmem:[#allocation3 + $0x170] sm:$0xff] %vm3162, %v3017
  %3187 = vst.msk [vmem:[#allocation3 + $0x180] sm:$0xff] %vm3162, %v3019
  %3188 = vst.msk [vmem:[#allocation3 + $0x190] sm:$0xff] %vm3162, %v3021
  %3189 = vst.msk [vmem:[#allocation3 + $0x1a0] sm:$0xff] %vm3162, %v3023
  %3190 = vst.msk [vmem:[#allocation3 + $0x1b0] sm:$0xff] %vm3162, %v3025
  %3191 = vst.msk [vmem:[#allocation3 + $0x1c0] sm:$0xff] %vm3162, %v3027
  %3192 = vst.msk [vmem:[#allocation3 + $0x1d0] sm:$0xff] %vm3162, %v3029
  %3193 = vst.msk [vmem:[#allocation3 + $0x1e0] sm:$0xff] %vm3162, %v3031
  %3194 = vst.msk [vmem:[#allocation3 + $0x1f0] sm:$0xff] %vm3162, %v3033
  %3195 = vst.msk [vmem:[#allocation3 + $0x200] sm:$0xff] %vm3162, %v3035
  %3196 = vst.msk [vmem:[#allocation3 + $0x210] sm:$0xff] %vm3162, %v3037
  %3197 = vst.msk [vmem:[#allocation3 + $0x220] sm:$0xff] %vm3162, %v3039
  %3198 = vst.msk [vmem:[#allocation3 + $0x230] sm:$0xff] %vm3162, %v3041
  %3199 = vst.msk [vmem:[#allocation3 + $0x240] sm:$0xff] %vm3162, %v3043
  %3200 = vst.msk [vmem:[#allocation3 + $0x250] sm:$0xff] %vm3162, %v3045
  %3201 = vst.msk [vmem:[#allocation3 + $0x260] sm:$0xff] %vm3162, %v3047
  %3202 = vst.msk [vmem:[#allocation3 + $0x270] sm:$0xff] %vm3162, %v3049
  %3203 = vst.msk [vmem:[#allocation3 + $0x280] sm:$0xff] %vm3162, %v3051
  %3204 = vst.msk [vmem:[#allocation3 + $0x290] sm:$0xff] %vm3162, %v3053
  %3205 = vst.msk [vmem:[#allocation3 + $0x2a0] sm:$0xff] %vm3162, %v3055
  %3206 = vst.msk [vmem:[#allocation3 + $0x2b0] sm:$0xff] %vm3162, %v3057
  %3207 = vst.msk [vmem:[#allocation3 + $0x2c0] sm:$0xff] %vm3162, %v3059
  %3208 = vst.msk [vmem:[#allocation3 + $0x2d0] sm:$0xff] %vm3162, %v3061
  %3209 = vst.msk [vmem:[#allocation3 + $0x2e0] sm:$0xff] %vm3162, %v3063
  %3210 = vst.msk [vmem:[#allocation3 + $0x2f0] sm:$0xff] %vm3162, %v3065
  %3211 = vst.msk [vmem:[#allocation3 + $0x300] sm:$0xff] %vm3162, %v3067
  %3212 = vst.msk [vmem:[#allocation3 + $0x310] sm:$0xff] %vm3162, %v3069
  %3213 = vst.msk [vmem:[#allocation3 + $0x320] sm:$0xff] %vm3162, %v3071
  %3214 = vst.msk [vmem:[#allocation3 + $0x330] sm:$0xff] %vm3162, %v3073
  %3215 = vst.msk [vmem:[#allocation3 + $0x340] sm:$0xff] %vm3162, %v3075
  %3216 = vst.msk [vmem:[#allocation3 + $0x350] sm:$0xff] %vm3162, %v3077
  %3217 = vst.msk [vmem:[#allocation3 + $0x360] sm:$0xff] %vm3162, %v3079
  %3218 = vst.msk [vmem:[#allocation3 + $0x370] sm:$0xff] %vm3162, %v3081
  %3219 = vst.msk [vmem:[#allocation3 + $0x380] sm:$0xff] %vm3162, %v3083
  %3220 = vst.msk [vmem:[#allocation3 + $0x390] sm:$0xff] %vm3162, %v3085
  %3221 = vst.msk [vmem:[#allocation3 + $0x3a0] sm:$0xff] %vm3162, %v3087
  %3222 = vst.msk [vmem:[#allocation3 + $0x3b0] sm:$0xff] %vm3162, %v3089
  %3223 = vst.msk [vmem:[#allocation3 + $0x3c0] sm:$0xff] %vm3162, %v3091
  %3224 = vst.msk [vmem:[#allocation3 + $0x3d0] sm:$0xff] %vm3162, %v3093
  %3225 = vst.msk [vmem:[#allocation3 + $0x3e0] sm:$0xff] %vm3162, %v3095
  %3226 = vst.msk [vmem:[#allocation3 + $0x3f0] sm:$0xff] %vm3162, %v3097
  %v3227 = vld [vmem:[%s2841 + $0x1] sm:$0xff]
  %v3228 = vld [vmem:[%s2841 + $0x9] sm:$0xff]
  %v3229 = vld [vmem:[%s2841 + $0x19] sm:$0xff]
  %v3230 = vld [vmem:[%s2841 + $0x21] sm:$0xff]
  %v3231 = vld [vmem:[%s2841 + $0x31] sm:$0xff]
  %v3232 = vld [vmem:[%s2841 + $0x39] sm:$0xff]
  %v3233 = vld [vmem:[%s2841 + $0x49] sm:$0xff]
  %v3234 = vld [vmem:[%s2841 + $0x51] sm:$0xff]
  %v3235 = vld [vmem:[%s2841 + $0x61] sm:$0xff]
  %v3236 = vld [vmem:[%s2841 + $0x69] sm:$0xff]
  %v3237 = vld [vmem:[%s2841 + $0x79] sm:$0xff]
  %v3238 = vld [vmem:[%s2841 + $0x81] sm:$0xff]
  %v3239 = vld [vmem:[%s2841 + $0x91] sm:$0xff]
  %v3240 = vld [vmem:[%s2841 + $0x99] sm:$0xff]
  %v3241 = vld [vmem:[%s2841 + $0xa9] sm:$0xff]
  %v3242 = vld [vmem:[%s2841 + $0xb1] sm:$0xff]
  %v3243 = vld [vmem:[%s2841 + $0xc1] sm:$0xff]
  %v3244 = vld [vmem:[%s2841 + $0xc9] sm:$0xff]
  %v3245 = vld [vmem:[%s2841 + $0xd9] sm:$0xff]
  %v3246 = vld [vmem:[%s2841 + $0xe1] sm:$0xff]
  %v3247 = vld [vmem:[%s2841 + $0xf1] sm:$0xff]
  %v3248 = vld [vmem:[%s2841 + $0xf9] sm:$0xff]
  %v3249 = vld [vmem:[%s2841 + $0x109] sm:$0xff]
  %v3250 = vld [vmem:[%s2841 + $0x111] sm:$0xff]
  %v3251 = vld [vmem:[%s2841 + $0x121] sm:$0xff]
  %v3252 = vld [vmem:[%s2841 + $0x129] sm:$0xff]
  %v3253 = vld [vmem:[%s2841 + $0x139] sm:$0xff]
  %v3254 = vld [vmem:[%s2841 + $0x141] sm:$0xff]
  %v3255 = vld [vmem:[%s2841 + $0x151] sm:$0xff]
  %v3256 = vld [vmem:[%s2841 + $0x159] sm:$0xff]
  %v3257 = vld [vmem:[%s2841 + $0x169] sm:$0xff]
  %v3258 = vld [vmem:[%s2841 + $0x171] sm:$0xff]
  %v3259 = vld [vmem:[%s2841 + $0x1b1] sm:$0xff]
  %v3260 = vld [vmem:[%s2841 + $0x1b9] sm:$0xff]
  %v3261 = vld [vmem:[%s2841 + $0x1c9] sm:$0xff]
  %v3262 = vld [vmem:[%s2841 + $0x1d1] sm:$0xff]
  %v3263 = vld [vmem:[%s2841 + $0x1e1] sm:$0xff]
  %v3264 = vld [vmem:[%s2841 + $0x1e9] sm:$0xff]
  %v3265 = vld [vmem:[%s2841 + $0x1f9] sm:$0xff]
  %v3266 = vld [vmem:[%s2841 + $0x201] sm:$0xff]
  %v3267 = vld [vmem:[%s2841 + $0x211] sm:$0xff]
  %v3268 = vld [vmem:[%s2841 + $0x219] sm:$0xff]
  %v3269 = vld [vmem:[%s2841 + $0x229] sm:$0xff]
  %v3270 = vld [vmem:[%s2841 + $0x231] sm:$0xff]
  %v3271 = vld [vmem:[%s2841 + $0x241] sm:$0xff]
  %v3272 = vld [vmem:[%s2841 + $0x249] sm:$0xff]
  %v3273 = vld [vmem:[%s2841 + $0x259] sm:$0xff]
  %v3274 = vld [vmem:[%s2841 + $0x261] sm:$0xff]
  %v3275 = vld [vmem:[%s2841 + $0x271] sm:$0xff]
  %v3276 = vld [vmem:[%s2841 + $0x279] sm:$0xff]
  %v3277 = vld [vmem:[%s2841 + $0x289] sm:$0xff]
  %v3278 = vld [vmem:[%s2841 + $0x291] sm:$0xff]
  %v3279 = vld [vmem:[%s2841 + $0x2a1] sm:$0xff]
  %v3280 = vld [vmem:[%s2841 + $0x2a9] sm:$0xff]
  %v3281 = vld [vmem:[%s2841 + $0x2b9] sm:$0xff]
  %v3282 = vld [vmem:[%s2841 + $0x2c1] sm:$0xff]
  %v3283 = vld [vmem:[%s2841 + $0x2d1] sm:$0xff]
  %v3284 = vld [vmem:[%s2841 + $0x2d9] sm:$0xff]
  %v3285 = vld [vmem:[%s2841 + $0x2e9] sm:$0xff]
  %v3286 = vld [vmem:[%s2841 + $0x2f1] sm:$0xff]
  %v3287 = vld [vmem:[%s2841 + $0x301] sm:$0xff]
  %v3288 = vld [vmem:[%s2841 + $0x309] sm:$0xff]
  %v3289 = vld [vmem:[%s2841 + $0x319] sm:$0xff]
  %v3290 = vld [vmem:[%s2841 + $0x321] sm:$0xff]
  %3355 = vrot.lane.b32.xlu0 %v3227, 112
  %v3356 = vpop.permute.xlu0 %3355
  %3357 = vrot.lane.b32.xlu0 %v3228, 112
  %v3358 = vpop.permute.xlu0 %3357
  %3359 = vrot.lane.b32.xlu0 %v3229, 112
  %v3360 = vpop.permute.xlu0 %3359
  %3361 = vrot.lane.b32.xlu0 %v3230, 112
  %v3362 = vpop.permute.xlu0 %3361
  %3363 = vrot.lane.b32.xlu0 %v3231, 112
  %v3364 = vpop.permute.xlu0 %3363
  %3365 = vrot.lane.b32.xlu0 %v3232, 112
  %v3366 = vpop.permute.xlu0 %3365
  %3367 = vrot.lane.b32.xlu0 %v3233, 112
  %v3368 = vpop.permute.xlu0 %3367
  %3369 = vrot.lane.b32.xlu0 %v3234, 112
  %v3370 = vpop.permute.xlu0 %3369
  %3371 = vrot.lane.b32.xlu0 %v3235, 112
  %v3372 = vpop.permute.xlu0 %3371
  %3373 = vrot.lane.b32.xlu0 %v3236, 112
  %v3374 = vpop.permute.xlu0 %3373
  %3375 = vrot.lane.b32.xlu0 %v3237, 112
  %v3376 = vpop.permute.xlu0 %3375
  %3377 = vrot.lane.b32.xlu0 %v3238, 112
  %v3378 = vpop.permute.xlu0 %3377
  %3379 = vrot.lane.b32.xlu0 %v3239, 112
  %v3380 = vpop.permute.xlu0 %3379
  %3381 = vrot.lane.b32.xlu0 %v3240, 112
  %v3382 = vpop.permute.xlu0 %3381
  %3383 = vrot.lane.b32.xlu0 %v3241, 112
  %v3384 = vpop.permute.xlu0 %3383
  %3385 = vrot.lane.b32.xlu0 %v3242, 112
  %v3386 = vpop.permute.xlu0 %3385
  %3387 = vrot.lane.b32.xlu0 %v3243, 112
  %v3388 = vpop.permute.xlu0 %3387
  %3389 = vrot.lane.b32.xlu0 %v3244, 112
  %v3390 = vpop.permute.xlu0 %3389
  %3391 = vrot.lane.b32.xlu0 %v3245, 112
  %v3392 = vpop.permute.xlu0 %3391
  %3393 = vrot.lane.b32.xlu0 %v3246, 112
  %v3394 = vpop.permute.xlu0 %3393
  %3395 = vrot.lane.b32.xlu0 %v3247, 112
  %v3396 = vpop.permute.xlu0 %3395
  %3397 = vrot.lane.b32.xlu0 %v3248, 112
  %v3398 = vpop.permute.xlu0 %3397
  %3399 = vrot.lane.b32.xlu0 %v3249, 112
  %v3400 = vpop.permute.xlu0 %3399
  %3401 = vrot.lane.b32.xlu0 %v3250, 112
  %v3402 = vpop.permute.xlu0 %3401
  %3403 = vrot.lane.b32.xlu0 %v3251, 112
  %v3404 = vpop.permute.xlu0 %3403
  %3405 = vrot.lane.b32.xlu0 %v3252, 112
  %v3406 = vpop.permute.xlu0 %3405
  %3407 = vrot.lane.b32.xlu0 %v3253, 112
  %v3408 = vpop.permute.xlu0 %3407
  %3409 = vrot.lane.b32.xlu0 %v3254, 112
  %v3410 = vpop.permute.xlu0 %3409
  %3411 = vrot.lane.b32.xlu0 %v3255, 112
  %v3412 = vpop.permute.xlu0 %3411
  %3413 = vrot.lane.b32.xlu0 %v3256, 112
  %v3414 = vpop.permute.xlu0 %3413
  %3415 = vrot.lane.b32.xlu0 %v3257, 112
  %v3416 = vpop.permute.xlu0 %3415
  %3417 = vrot.lane.b32.xlu0 %v3258, 112
  %v3418 = vpop.permute.xlu0 %3417
  %3419 = vrot.lane.b32.xlu0 %v3259, 112
  %v3420 = vpop.permute.xlu0 %3419
  %3421 = vrot.lane.b32.xlu0 %v3260, 112
  %v3422 = vpop.permute.xlu0 %3421
  %3423 = vrot.lane.b32.xlu0 %v3261, 112
  %v3424 = vpop.permute.xlu0 %3423
  %3425 = vrot.lane.b32.xlu0 %v3262, 112
  %v3426 = vpop.permute.xlu0 %3425
  %3427 = vrot.lane.b32.xlu0 %v3263, 112
  %v3428 = vpop.permute.xlu0 %3427
  %3429 = vrot.lane.b32.xlu0 %v3264, 112
  %v3430 = vpop.permute.xlu0 %3429
  %3431 = vrot.lane.b32.xlu0 %v3265, 112
  %v3432 = vpop.permute.xlu0 %3431
  %3433 = vrot.lane.b32.xlu0 %v3266, 112
  %v3434 = vpop.permute.xlu0 %3433
  %3435 = vrot.lane.b32.xlu0 %v3267, 112
  %v3436 = vpop.permute.xlu0 %3435
  %3437 = vrot.lane.b32.xlu0 %v3268, 112
  %v3438 = vpop.permute.xlu0 %3437
  %3439 = vrot.lane.b32.xlu0 %v3269, 112
  %v3440 = vpop.permute.xlu0 %3439
  %3441 = vrot.lane.b32.xlu0 %v3270, 112
  %v3442 = vpop.permute.xlu0 %3441
  %3443 = vrot.lane.b32.xlu0 %v3271, 112
  %v3444 = vpop.permute.xlu0 %3443
  %3445 = vrot.lane.b32.xlu0 %v3272, 112
  %v3446 = vpop.permute.xlu0 %3445
  %3447 = vrot.lane.b32.xlu0 %v3273, 112
  %v3448 = vpop.permute.xlu0 %3447
  %3449 = vrot.lane.b32.xlu0 %v3274, 112
  %v3450 = vpop.permute.xlu0 %3449
  %3451 = vrot.lane.b32.xlu0 %v3275, 112
  %v3452 = vpop.permute.xlu0 %3451
  %3453 = vrot.lane.b32.xlu0 %v3276, 112
  %v3454 = vpop.permute.xlu0 %3453
  %3455 = vrot.lane.b32.xlu0 %v3277, 112
  %v3456 = vpop.permute.xlu0 %3455
  %3457 = vrot.lane.b32.xlu0 %v3278, 112
  %v3458 = vpop.permute.xlu0 %3457
  %3459 = vrot.lane.b32.xlu0 %v3279, 112
  %v3460 = vpop.permute.xlu0 %3459
  %3461 = vrot.lane.b32.xlu0 %v3280, 112
  %v3462 = vpop.permute.xlu0 %3461
  %3463 = vrot.lane.b32.xlu0 %v3281, 112
  %v3464 = vpop.permute.xlu0 %3463
  %3465 = vrot.lane.b32.xlu0 %v3282, 112
  %v3466 = vpop.permute.xlu0 %3465
  %3467 = vrot.lane.b32.xlu0 %v3283, 112
  %v3468 = vpop.permute.xlu0 %3467
  %3469 = vrot.lane.b32.xlu0 %v3284, 112
  %v3470 = vpop.permute.xlu0 %3469
  %3471 = vrot.lane.b32.xlu0 %v3285, 112
  %v3472 = vpop.permute.xlu0 %3471
  %3473 = vrot.lane.b32.xlu0 %v3286, 112
  %v3474 = vpop.permute.xlu0 %3473
  %3475 = vrot.lane.b32.xlu0 %v3287, 112
  %v3476 = vpop.permute.xlu0 %3475
  %3477 = vrot.lane.b32.xlu0 %v3288, 112
  %v3478 = vpop.permute.xlu0 %3477
  %3479 = vrot.lane.b32.xlu0 %v3289, 112
  %v3480 = vpop.permute.xlu0 %3479
  %3481 = vrot.lane.b32.xlu0 %v3290, 112
  %v3482 = vpop.permute.xlu0 %3481
  %vm3547 = vcmask 1048448
  %3548 = vst.msk [vmem:[#allocation3] sm:$0xff] %vm3547, %v3356
  %3549 = vst.msk [vmem:[#allocation3 + $0x10] sm:$0xff] %vm3547, %v3358
  %3550 = vst.msk [vmem:[#allocation3 + $0x20] sm:$0xff] %vm3547, %v3360
  %3551 = vst.msk [vmem:[#allocation3 + $0x30] sm:$0xff] %vm3547, %v3362
  %3552 = vst.msk [vmem:[#allocation3 + $0x40] sm:$0xff] %vm3547, %v3364
  %3553 = vst.msk [vmem:[#allocation3 + $0x50] sm:$0xff] %vm3547, %v3366
  %3554 = vst.msk [vmem:[#allocation3 + $0x60] sm:$0xff] %vm3547, %v3368
  %3555 = vst.msk [vmem:[#allocation3 + $0x70] sm:$0xff] %vm3547, %v3370
  %3556 = vst.msk [vmem:[#allocation3 + $0x80] sm:$0xff] %vm3547, %v3372
  %3557 = vst.msk [vmem:[#allocation3 + $0x90] sm:$0xff] %vm3547, %v3374
  %3558 = vst.msk [vmem:[#allocation3 + $0xa0] sm:$0xff] %vm3547, %v3376
  %3559 = vst.msk [vmem:[#allocation3 + $0xb0] sm:$0xff] %vm3547, %v3378
  %3560 = vst.msk [vmem:[#allocation3 + $0xc0] sm:$0xff] %vm3547, %v3380
  %3561 = vst.msk [vmem:[#allocation3 + $0xd0] sm:$0xff] %vm3547, %v3382
  %3562 = vst.msk [vmem:[#allocation3 + $0xe0] sm:$0xff] %vm3547, %v3384
  %3563 = vst.msk [vmem:[#allocation3 + $0xf0] sm:$0xff] %vm3547, %v3386
  %3564 = vst.msk [vmem:[#allocation3 + $0x100] sm:$0xff] %vm3547, %v3388
  %3565 = vst.msk [vmem:[#allocation3 + $0x110] sm:$0xff] %vm3547, %v3390
  %3566 = vst.msk [vmem:[#allocation3 + $0x120] sm:$0xff] %vm3547, %v3392
  %3567 = vst.msk [vmem:[#allocation3 + $0x130] sm:$0xff] %vm3547, %v3394
  %3568 = vst.msk [vmem:[#allocation3 + $0x140] sm:$0xff] %vm3547, %v3396
  %3569 = vst.msk [vmem:[#allocation3 + $0x150] sm:$0xff] %vm3547, %v3398
  %3570 = vst.msk [vmem:[#allocation3 + $0x160] sm:$0xff] %vm3547, %v3400
  %3571 = vst.msk [vmem:[#allocation3 + $0x170] sm:$0xff] %vm3547, %v3402
  %3572 = vst.msk [vmem:[#allocation3 + $0x180] sm:$0xff] %vm3547, %v3404
  %3573 = vst.msk [vmem:[#allocation3 + $0x190] sm:$0xff] %vm3547, %v3406
  %3574 = vst.msk [vmem:[#allocation3 + $0x1a0] sm:$0xff] %vm3547, %v3408
  %3575 = vst.msk [vmem:[#allocation3 + $0x1b0] sm:$0xff] %vm3547, %v3410
  %3576 = vst.msk [vmem:[#allocation3 + $0x1c0] sm:$0xff] %vm3547, %v3412
  %3577 = vst.msk [vmem:[#allocation3 + $0x1d0] sm:$0xff] %vm3547, %v3414
  %3578 = vst.msk [vmem:[#allocation3 + $0x1e0] sm:$0xff] %vm3547, %v3416
  %3579 = vst.msk [vmem:[#allocation3 + $0x1f0] sm:$0xff] %vm3547, %v3418
  %3580 = vst.msk [vmem:[#allocation3 + $0x200] sm:$0xff] %vm3547, %v3420
  %3581 = vst.msk [vmem:[#allocation3 + $0x210] sm:$0xff] %vm3547, %v3422
  %3582 = vst.msk [vmem:[#allocation3 + $0x220] sm:$0xff] %vm3547, %v3424
  %3583 = vst.msk [vmem:[#allocation3 + $0x230] sm:$0xff] %vm3547, %v3426
  %3584 = vst.msk [vmem:[#allocation3 + $0x240] sm:$0xff] %vm3547, %v3428
  %3585 = vst.msk [vmem:[#allocation3 + $0x250] sm:$0xff] %vm3547, %v3430
  %3586 = vst.msk [vmem:[#allocation3 + $0x260] sm:$0xff] %vm3547, %v3432
  %3587 = vst.msk [vmem:[#allocation3 + $0x270] sm:$0xff] %vm3547, %v3434
  %3588 = vst.msk [vmem:[#allocation3 + $0x280] sm:$0xff] %vm3547, %v3436
  %3589 = vst.msk [vmem:[#allocation3 + $0x290] sm:$0xff] %vm3547, %v3438
  %3590 = vst.msk [vmem:[#allocation3 + $0x2a0] sm:$0xff] %vm3547, %v3440
  %3591 = vst.msk [vmem:[#allocation3 + $0x2b0] sm:$0xff] %vm3547, %v3442
  %3592 = vst.msk [vmem:[#allocation3 + $0x2c0] sm:$0xff] %vm3547, %v3444
  %3593 = vst.msk [vmem:[#allocation3 + $0x2d0] sm:$0xff] %vm3547, %v3446
  %3594 = vst.msk [vmem:[#allocation3 + $0x2e0] sm:$0xff] %vm3547, %v3448
  %3595 = vst.msk [vmem:[#allocation3 + $0x2f0] sm:$0xff] %vm3547, %v3450
  %3596 = vst.msk [vmem:[#allocation3 + $0x300] sm:$0xff] %vm3547, %v3452
  %3597 = vst.msk [vmem:[#allocation3 + $0x310] sm:$0xff] %vm3547, %v3454
  %3598 = vst.msk [vmem:[#allocation3 + $0x320] sm:$0xff] %vm3547, %v3456
  %3599 = vst.msk [vmem:[#allocation3 + $0x330] sm:$0xff] %vm3547, %v3458
  %3600 = vst.msk [vmem:[#allocation3 + $0x340] sm:$0xff] %vm3547, %v3460
  %3601 = vst.msk [vmem:[#allocation3 + $0x350] sm:$0xff] %vm3547, %v3462
  %3602 = vst.msk [vmem:[#allocation3 + $0x360] sm:$0xff] %vm3547, %v3464
  %3603 = vst.msk [vmem:[#allocation3 + $0x370] sm:$0xff] %vm3547, %v3466
  %3604 = vst.msk [vmem:[#allocation3 + $0x380] sm:$0xff] %vm3547, %v3468
  %3605 = vst.msk [vmem:[#allocation3 + $0x390] sm:$0xff] %vm3547, %v3470
  %3606 = vst.msk [vmem:[#allocation3 + $0x3a0] sm:$0xff] %vm3547, %v3472
  %3607 = vst.msk [vmem:[#allocation3 + $0x3b0] sm:$0xff] %vm3547, %v3474
  %3608 = vst.msk [vmem:[#allocation3 + $0x3c0] sm:$0xff] %vm3547, %v3476
  %3609 = vst.msk [vmem:[#allocation3 + $0x3d0] sm:$0xff] %vm3547, %v3478
  %3610 = vst.msk [vmem:[#allocation3 + $0x3e0] sm:$0xff] %vm3547, %v3480
  %3611 = vst.msk [vmem:[#allocation3 + $0x3f0] sm:$0xff] %vm3547, %v3482
  %v3612 = vld [vmem:[%s2841 + $0x2] sm:$0xff]
  %v3613 = vld [vmem:[%s2841 + $0xa] sm:$0xff]
  %v3614 = vld [vmem:[%s2841 + $0x1a] sm:$0xff]
  %v3615 = vld [vmem:[%s2841 + $0x22] sm:$0xff]
  %v3616 = vld [vmem:[%s2841 + $0x32] sm:$0xff]
  %v3617 = vld [vmem:[%s2841 + $0x3a] sm:$0xff]
  %v3618 = vld [vmem:[%s2841 + $0x4a] sm:$0xff]
  %v3619 = vld [vmem:[%s2841 + $0x52] sm:$0xff]
  %v3620 = vld [vmem:[%s2841 + $0x62] sm:$0xff]
  %v3621 = vld [vmem:[%s2841 + $0x6a] sm:$0xff]
  %v3622 = vld [vmem:[%s2841 + $0x7a] sm:$0xff]
  %v3623 = vld [vmem:[%s2841 + $0x82] sm:$0xff]
  %v3624 = vld [vmem:[%s2841 + $0x92] sm:$0xff]
  %v3625 = vld [vmem:[%s2841 + $0x9a] sm:$0xff]
  %v3626 = vld [vmem:[%s2841 + $0xaa] sm:$0xff]
  %v3627 = vld [vmem:[%s2841 + $0xb2] sm:$0xff]
  %v3628 = vld [vmem:[%s2841 + $0xc2] sm:$0xff]
  %v3629 = vld [vmem:[%s2841 + $0xca] sm:$0xff]
  %v3630 = vld [vmem:[%s2841 + $0xda] sm:$0xff]
  %v3631 = vld [vmem:[%s2841 + $0xe2] sm:$0xff]
  %v3632 = vld [vmem:[%s2841 + $0xf2] sm:$0xff]
  %v3633 = vld [vmem:[%s2841 + $0xfa] sm:$0xff]
  %v3634 = vld [vmem:[%s2841 + $0x10a] sm:$0xff]
  %v3635 = vld [vmem:[%s2841 + $0x112] sm:$0xff]
  %v3636 = vld [vmem:[%s2841 + $0x122] sm:$0xff]
  %v3637 = vld [vmem:[%s2841 + $0x12a] sm:$0xff]
  %v3638 = vld [vmem:[%s2841 + $0x13a] sm:$0xff]
  %v3639 = vld [vmem:[%s2841 + $0x142] sm:$0xff]
  %v3640 = vld [vmem:[%s2841 + $0x152] sm:$0xff]
  %v3641 = vld [vmem:[%s2841 + $0x15a] sm:$0xff]
  %v3642 = vld [vmem:[%s2841 + $0x16a] sm:$0xff]
  %v3643 = vld [vmem:[%s2841 + $0x172] sm:$0xff]
  %v3644 = vld [vmem:[%s2841 + $0x1b2] sm:$0xff]
  %v3645 = vld [vmem:[%s2841 + $0x1ba] sm:$0xff]
  %v3646 = vld [vmem:[%s2841 + $0x1ca] sm:$0xff]
  %v3647 = vld [vmem:[%s2841 + $0x1d2] sm:$0xff]
  %v3648 = vld [vmem:[%s2841 + $0x1e2] sm:$0xff]
  %v3649 = vld [vmem:[%s2841 + $0x1ea] sm:$0xff]
  %v3650 = vld [vmem:[%s2841 + $0x1fa] sm:$0xff]
  %v3651 = vld [vmem:[%s2841 + $0x202] sm:$0xff]
  %v3652 = vld [vmem:[%s2841 + $0x212] sm:$0xff]
  %v3653 = vld [vmem:[%s2841 + $0x21a] sm:$0xff]
  %v3654 = vld [vmem:[%s2841 + $0x22a] sm:$0xff]
  %v3655 = vld [vmem:[%s2841 + $0x232] sm:$0xff]
  %v3656 = vld [vmem:[%s2841 + $0x242] sm:$0xff]
  %v3657 = vld [vmem:[%s2841 + $0x24a] sm:$0xff]
  %v3658 = vld [vmem:[%s2841 + $0x25a] sm:$0xff]
  %v3659 = vld [vmem:[%s2841 + $0x262] sm:$0xff]
  %v3660 = vld [vmem:[%s2841 + $0x272] sm:$0xff]
  %v3661 = vld [vmem:[%s2841 + $0x27a] sm:$0xff]
  %v3662 = vld [vmem:[%s2841 + $0x28a] sm:$0xff]
  %v3663 = vld [vmem:[%s2841 + $0x292] sm:$0xff]
  %v3664 = vld [vmem:[%s2841 + $0x2a2] sm:$0xff]
  %v3665 = vld [vmem:[%s2841 + $0x2aa] sm:$0xff]
  %v3666 = vld [vmem:[%s2841 + $0x2ba] sm:$0xff]
  %v3667 = vld [vmem:[%s2841 + $0x2c2] sm:$0xff]
  %v3668 = vld [vmem:[%s2841 + $0x2d2] sm:$0xff]
  %v3669 = vld [vmem:[%s2841 + $0x2da] sm:$0xff]
  %v3670 = vld [vmem:[%s2841 + $0x2ea] sm:$0xff]
  %v3671 = vld [vmem:[%s2841 + $0x2f2] sm:$0xff]
  %v3672 = vld [vmem:[%s2841 + $0x302] sm:$0xff]
  %v3673 = vld [vmem:[%s2841 + $0x30a] sm:$0xff]
  %v3674 = vld [vmem:[%s2841 + $0x31a] sm:$0xff]
  %v3675 = vld [vmem:[%s2841 + $0x322] sm:$0xff]
  %3676 = vst.msk [vmem:[#allocation3 + $0x8] sm:$0xff] %vm613, %v3612
  %3677 = vst.msk [vmem:[#allocation3 + $0x18] sm:$0xff] %vm613, %v3613
  %3678 = vst.msk [vmem:[#allocation3 + $0x28] sm:$0xff] %vm613, %v3614
  %3679 = vst.msk [vmem:[#allocation3 + $0x38] sm:$0xff] %vm613, %v3615
  %3680 = vst.msk [vmem:[#allocation3 + $0x48] sm:$0xff] %vm613, %v3616
  %3681 = vst.msk [vmem:[#allocation3 + $0x58] sm:$0xff] %vm613, %v3617
  %3682 = vst.msk [vmem:[#allocation3 + $0x68] sm:$0xff] %vm613, %v3618
  %3683 = vst.msk [vmem:[#allocation3 + $0x78] sm:$0xff] %vm613, %v3619
  %3684 = vst.msk [vmem:[#allocation3 + $0x88] sm:$0xff] %vm613, %v3620
  %3685 = vst.msk [vmem:[#allocation3 + $0x98] sm:$0xff] %vm613, %v3621
  %3686 = vst.msk [vmem:[#allocation3 + $0xa8] sm:$0xff] %vm613, %v3622
  %3687 = vst.msk [vmem:[#allocation3 + $0xb8] sm:$0xff] %vm613, %v3623
  %3688 = vst.msk [vmem:[#allocation3 + $0xc8] sm:$0xff] %vm613, %v3624
  %3689 = vst.msk [vmem:[#allocation3 + $0xd8] sm:$0xff] %vm613, %v3625
  %3690 = vst.msk [vmem:[#allocation3 + $0xe8] sm:$0xff] %vm613, %v3626
  %3691 = vst.msk [vmem:[#allocation3 + $0xf8] sm:$0xff] %vm613, %v3627
  %3692 = vst.msk [vmem:[#allocation3 + $0x108] sm:$0xff] %vm613, %v3628
  %3693 = vst.msk [vmem:[#allocation3 + $0x118] sm:$0xff] %vm613, %v3629
  %3694 = vst.msk [vmem:[#allocation3 + $0x128] sm:$0xff] %vm613, %v3630
  %3695 = vst.msk [vmem:[#allocation3 + $0x138] sm:$0xff] %vm613, %v3631
  %3696 = vst.msk [vmem:[#allocation3 + $0x148] sm:$0xff] %vm613, %v3632
  %3697 = vst.msk [vmem:[#allocation3 + $0x158] sm:$0xff] %vm613, %v3633
  %3698 = vst.msk [vmem:[#allocation3 + $0x168] sm:$0xff] %vm613, %v3634
  %3699 = vst.msk [vmem:[#allocation3 + $0x178] sm:$0xff] %vm613, %v3635
  %3700 = vst.msk [vmem:[#allocation3 + $0x188] sm:$0xff] %vm613, %v3636
  %3701 = vst.msk [vmem:[#allocation3 + $0x198] sm:$0xff] %vm613, %v3637
  %3702 = vst.msk [vmem:[#allocation3 + $0x1a8] sm:$0xff] %vm613, %v3638
  %3703 = vst.msk [vmem:[#allocation3 + $0x1b8] sm:$0xff] %vm613, %v3639
  %3704 = vst.msk [vmem:[#allocation3 + $0x1c8] sm:$0xff] %vm613, %v3640
  %3705 = vst.msk [vmem:[#allocation3 + $0x1d8] sm:$0xff] %vm613, %v3641
  %3706 = vst.msk [vmem:[#allocation3 + $0x1e8] sm:$0xff] %vm613, %v3642
  %3707 = vst.msk [vmem:[#allocation3 + $0x1f8] sm:$0xff] %vm613, %v3643
  %3708 = vst.msk [vmem:[#allocation3 + $0x208] sm:$0xff] %vm613, %v3644
  %3709 = vst.msk [vmem:[#allocation3 + $0x218] sm:$0xff] %vm613, %v3645
  %3710 = vst.msk [vmem:[#allocation3 + $0x228] sm:$0xff] %vm613, %v3646
  %3711 = vst.msk [vmem:[#allocation3 + $0x238] sm:$0xff] %vm613, %v3647
  %3712 = vst.msk [vmem:[#allocation3 + $0x248] sm:$0xff] %vm613, %v3648
  %3713 = vst.msk [vmem:[#allocation3 + $0x258] sm:$0xff] %vm613, %v3649
  %3714 = vst.msk [vmem:[#allocation3 + $0x268] sm:$0xff] %vm613, %v3650
  %3715 = vst.msk [vmem:[#allocation3 + $0x278] sm:$0xff] %vm613, %v3651
  %3716 = vst.msk [vmem:[#allocation3 + $0x288] sm:$0xff] %vm613, %v3652
  %3717 = vst.msk [vmem:[#allocation3 + $0x298] sm:$0xff] %vm613, %v3653
  %3718 = vst.msk [vmem:[#allocation3 + $0x2a8] sm:$0xff] %vm613, %v3654
  %3719 = vst.msk [vmem:[#allocation3 + $0x2b8] sm:$0xff] %vm613, %v3655
  %3720 = vst.msk [vmem:[#allocation3 + $0x2c8] sm:$0xff] %vm613, %v3656
  %3721 = vst.msk [vmem:[#allocation3 + $0x2d8] sm:$0xff] %vm613, %v3657
  %3722 = vst.msk [vmem:[#allocation3 + $0x2e8] sm:$0xff] %vm613, %v3658
  %3723 = vst.msk [vmem:[#allocation3 + $0x2f8] sm:$0xff] %vm613, %v3659
  %3724 = vst.msk [vmem:[#allocation3 + $0x308] sm:$0xff] %vm613, %v3660
  %3725 = vst.msk [vmem:[#allocation3 + $0x318] sm:$0xff] %vm613, %v3661
  %3726 = vst.msk [vmem:[#allocation3 + $0x328] sm:$0xff] %vm613, %v3662
  %3727 = vst.msk [vmem:[#allocation3 + $0x338] sm:$0xff] %vm613, %v3663
  %3728 = vst.msk [vmem:[#allocation3 + $0x348] sm:$0xff] %vm613, %v3664
  %3729 = vst.msk [vmem:[#allocation3 + $0x358] sm:$0xff] %vm613, %v3665
  %3730 = vst.msk [vmem:[#allocation3 + $0x368] sm:$0xff] %vm613, %v3666
  %3731 = vst.msk [vmem:[#allocation3 + $0x378] sm:$0xff] %vm613, %v3667
  %3732 = vst.msk [vmem:[#allocation3 + $0x388] sm:$0xff] %vm613, %v3668
  %3733 = vst.msk [vmem:[#allocation3 + $0x398] sm:$0xff] %vm613, %v3669
  %3734 = vst.msk [vmem:[#allocation3 + $0x3a8] sm:$0xff] %vm613, %v3670
  %3735 = vst.msk [vmem:[#allocation3 + $0x3b8] sm:$0xff] %vm613, %v3671
  %3736 = vst.msk [vmem:[#allocation3 + $0x3c8] sm:$0xff] %vm613, %v3672
  %3737 = vst.msk [vmem:[#allocation3 + $0x3d8] sm:$0xff] %vm613, %v3673
  %3738 = vst.msk [vmem:[#allocation3 + $0x3e8] sm:$0xff] %vm613, %v3674
  %3739 = vst.msk [vmem:[#allocation3 + $0x3f8] sm:$0xff] %vm613, %v3675
  %v3740 = vld [vmem:[#allocation3] sm:$0xff]
  %v3741 = vld [vmem:[#allocation3 + $0x8] sm:$0xff]
  %v3742 = vld [vmem:[#allocation3 + $0x10] sm:$0xff]
  %v3743 = vld [vmem:[#allocation3 + $0x18] sm:$0xff]
  %v3744 = vld [vmem:[#allocation3 + $0x20] sm:$0xff]
  %v3745 = vld [vmem:[#allocation3 + $0x28] sm:$0xff]
  %v3746 = vld [vmem:[#allocation3 + $0x30] sm:$0xff]
  %v3747 = vld [vmem:[#allocation3 + $0x38] sm:$0xff]
  %v3748 = vld [vmem:[#allocation3 + $0x40] sm:$0xff]
  %v3749 = vld [vmem:[#allocation3 + $0x48] sm:$0xff]
  %v3750 = vld [vmem:[#allocation3 + $0x50] sm:$0xff]
  %v3751 = vld [vmem:[#allocation3 + $0x58] sm:$0xff]
  %v3752 = vld [vmem:[#allocation3 + $0x60] sm:$0xff]
  %v3753 = vld [vmem:[#allocation3 + $0x68] sm:$0xff]
  %v3754 = vld [vmem:[#allocation3 + $0x70] sm:$0xff]
  %v3755 = vld [vmem:[#allocation3 + $0x78] sm:$0xff]
  %v3756 = vld [vmem:[#allocation3 + $0x80] sm:$0xff]
  %v3757 = vld [vmem:[#allocation3 + $0x88] sm:$0xff]
  %v3758 = vld [vmem:[#allocation3 + $0x90] sm:$0xff]
  %v3759 = vld [vmem:[#allocation3 + $0x98] sm:$0xff]
  %v3760 = vld [vmem:[#allocation3 + $0xa0] sm:$0xff]
  %v3761 = vld [vmem:[#allocation3 + $0xa8] sm:$0xff]
  %v3762 = vld [vmem:[#allocation3 + $0xb0] sm:$0xff]
  %v3763 = vld [vmem:[#allocation3 + $0xb8] sm:$0xff]
  %v3764 = vld [vmem:[#allocation3 + $0xc0] sm:$0xff]
  %v3765 = vld [vmem:[#allocation3 + $0xc8] sm:$0xff]
  %v3766 = vld [vmem:[#allocation3 + $0xd0] sm:$0xff]
  %v3767 = vld [vmem:[#allocation3 + $0xd8] sm:$0xff]
  %v3768 = vld [vmem:[#allocation3 + $0xe0] sm:$0xff]
  %v3769 = vld [vmem:[#allocation3 + $0xe8] sm:$0xff]
  %v3770 = vld [vmem:[#allocation3 + $0xf0] sm:$0xff]
  %v3771 = vld [vmem:[#allocation3 + $0xf8] sm:$0xff]
  %v3772 = vld [vmem:[#allocation3 + $0x100] sm:$0xff]
  %v3773 = vld [vmem:[#allocation3 + $0x108] sm:$0xff]
  %v3774 = vld [vmem:[#allocation3 + $0x110] sm:$0xff]
  %v3775 = vld [vmem:[#allocation3 + $0x118] sm:$0xff]
  %v3776 = vld [vmem:[#allocation3 + $0x120] sm:$0xff]
  %v3777 = vld [vmem:[#allocation3 + $0x128] sm:$0xff]
  %v3778 = vld [vmem:[#allocation3 + $0x130] sm:$0xff]
  %v3779 = vld [vmem:[#allocation3 + $0x138] sm:$0xff]
  %v3780 = vld [vmem:[#allocation3 + $0x140] sm:$0xff]
  %v3781 = vld [vmem:[#allocation3 + $0x148] sm:$0xff]
  %v3782 = vld [vmem:[#allocation3 + $0x150] sm:$0xff]
  %v3783 = vld [vmem:[#allocation3 + $0x158] sm:$0xff]
  %v3784 = vld [vmem:[#allocation3 + $0x160] sm:$0xff]
  %v3785 = vld [vmem:[#allocation3 + $0x168] sm:$0xff]
  %v3786 = vld [vmem:[#allocation3 + $0x170] sm:$0xff]
  %v3787 = vld [vmem:[#allocation3 + $0x178] sm:$0xff]
  %v3788 = vld [vmem:[#allocation3 + $0x180] sm:$0xff]
  %v3789 = vld [vmem:[#allocation3 + $0x188] sm:$0xff]
  %v3790 = vld [vmem:[#allocation3 + $0x190] sm:$0xff]
  %v3791 = vld [vmem:[#allocation3 + $0x198] sm:$0xff]
  %v3792 = vld [vmem:[#allocation3 + $0x1a0] sm:$0xff]
  %v3793 = vld [vmem:[#allocation3 + $0x1a8] sm:$0xff]
  %v3794 = vld [vmem:[#allocation3 + $0x1b0] sm:$0xff]
  %v3795 = vld [vmem:[#allocation3 + $0x1b8] sm:$0xff]
  %v3796 = vld [vmem:[#allocation3 + $0x1c0] sm:$0xff]
  %v3797 = vld [vmem:[#allocation3 + $0x1c8] sm:$0xff]
  %v3798 = vld [vmem:[#allocation3 + $0x1d0] sm:$0xff]
  %v3799 = vld [vmem:[#allocation3 + $0x1d8] sm:$0xff]
  %v3800 = vld [vmem:[#allocation3 + $0x1e0] sm:$0xff]
  %v3801 = vld [vmem:[#allocation3 + $0x1e8] sm:$0xff]
  %v3802 = vld [vmem:[#allocation3 + $0x1f0] sm:$0xff]
  %v3803 = vld [vmem:[#allocation3 + $0x1f8] sm:$0xff]
  %v3804 = vld [vmem:[#allocation3 + $0x200] sm:$0xff]
  %v3805 = vld [vmem:[#allocation3 + $0x208] sm:$0xff]
  %v3806 = vld [vmem:[#allocation3 + $0x210] sm:$0xff]
  %v3807 = vld [vmem:[#allocation3 + $0x218] sm:$0xff]
  %v3808 = vld [vmem:[#allocation3 + $0x220] sm:$0xff]
  %v3809 = vld [vmem:[#allocation3 + $0x228] sm:$0xff]
  %v3810 = vld [vmem:[#allocation3 + $0x230] sm:$0xff]
  %v3811 = vld [vmem:[#allocation3 + $0x238] sm:$0xff]
  %v3812 = vld [vmem:[#allocation3 + $0x240] sm:$0xff]
  %v3813 = vld [vmem:[#allocation3 + $0x248] sm:$0xff]
  %v3814 = vld [vmem:[#allocation3 + $0x250] sm:$0xff]
  %v3815 = vld [vmem:[#allocation3 + $0x258] sm:$0xff]
  %v3816 = vld [vmem:[#allocation3 + $0x260] sm:$0xff]
  %v3817 = vld [vmem:[#allocation3 + $0x268] sm:$0xff]
  %v3818 = vld [vmem:[#allocation3 + $0x270] sm:$0xff]
  %v3819 = vld [vmem:[#allocation3 + $0x278] sm:$0xff]
  %v3820 = vld [vmem:[#allocation3 + $0x280] sm:$0xff]
  %v3821 = vld [vmem:[#allocation3 + $0x288] sm:$0xff]
  %v3822 = vld [vmem:[#allocation3 + $0x290] sm:$0xff]
  %v3823 = vld [vmem:[#allocation3 + $0x298] sm:$0xff]
  %v3824 = vld [vmem:[#allocation3 + $0x2a0] sm:$0xff]
  %v3825 = vld [vmem:[#allocation3 + $0x2a8] sm:$0xff]
  %v3826 = vld [vmem:[#allocation3 + $0x2b0] sm:$0xff]
  %v3827 = vld [vmem:[#allocation3 + $0x2b8] sm:$0xff]
  %v3828 = vld [vmem:[#allocation3 + $0x2c0] sm:$0xff]
  %v3829 = vld [vmem:[#allocation3 + $0x2c8] sm:$0xff]
  %v3830 = vld [vmem:[#allocation3 + $0x2d0] sm:$0xff]
  %v3831 = vld [vmem:[#allocation3 + $0x2d8] sm:$0xff]
  %v3832 = vld [vmem:[#allocation3 + $0x2e0] sm:$0xff]
  %v3833 = vld [vmem:[#allocation3 + $0x2e8] sm:$0xff]
  %v3834 = vld [vmem:[#allocation3 + $0x2f0] sm:$0xff]
  %v3835 = vld [vmem:[#allocation3 + $0x2f8] sm:$0xff]
  %v3836 = vld [vmem:[#allocation3 + $0x300] sm:$0xff]
  %v3837 = vld [vmem:[#allocation3 + $0x308] sm:$0xff]
  %v3838 = vld [vmem:[#allocation3 + $0x310] sm:$0xff]
  %v3839 = vld [vmem:[#allocation3 + $0x318] sm:$0xff]
  %v3840 = vld [vmem:[#allocation3 + $0x320] sm:$0xff]
  %v3841 = vld [vmem:[#allocation3 + $0x328] sm:$0xff]
  %v3842 = vld [vmem:[#allocation3 + $0x330] sm:$0xff]
  %v3843 = vld [vmem:[#allocation3 + $0x338] sm:$0xff]
  %v3844 = vld [vmem:[#allocation3 + $0x340] sm:$0xff]
  %v3845 = vld [vmem:[#allocation3 + $0x348] sm:$0xff]
  %v3846 = vld [vmem:[#allocation3 + $0x350] sm:$0xff]
  %v3847 = vld [vmem:[#allocation3 + $0x358] sm:$0xff]
  %v3848 = vld [vmem:[#allocation3 + $0x360] sm:$0xff]
  %v3849 = vld [vmem:[#allocation3 + $0x368] sm:$0xff]
  %v3850 = vld [vmem:[#allocation3 + $0x370] sm:$0xff]
  %v3851 = vld [vmem:[#allocation3 + $0x378] sm:$0xff]
  %v3852 = vld [vmem:[#allocation3 + $0x380] sm:$0xff]
  %v3853 = vld [vmem:[#allocation3 + $0x388] sm:$0xff]
  %v3854 = vld [vmem:[#allocation3 + $0x390] sm:$0xff]
  %v3855 = vld [vmem:[#allocation3 + $0x398] sm:$0xff]
  %v3856 = vld [vmem:[#allocation3 + $0x3a0] sm:$0xff]
  %v3857 = vld [vmem:[#allocation3 + $0x3a8] sm:$0xff]
  %v3858 = vld [vmem:[#allocation3 + $0x3b0] sm:$0xff]
  %v3859 = vld [vmem:[#allocation3 + $0x3b8] sm:$0xff]
  %v3860 = vld [vmem:[#allocation3 + $0x3c0] sm:$0xff]
  %v3861 = vld [vmem:[#allocation3 + $0x3c8] sm:$0xff]
  %v3862 = vld [vmem:[#allocation3 + $0x3d0] sm:$0xff]
  %v3863 = vld [vmem:[#allocation3 + $0x3d8] sm:$0xff]
  %v3864 = vld [vmem:[#allocation3 + $0x3e0] sm:$0xff]
  %v3865 = vld [vmem:[#allocation3 + $0x3e8] sm:$0xff]
  %v3866 = vld [vmem:[#allocation3 + $0x3f0] sm:$0xff]
  %v3867 = vld [vmem:[#allocation3 + $0x3f8] sm:$0xff]
  %v3868 = vpack.c.bf16 %v3742, %v3740
  %v3869 = vpack.c.bf16 %v3743, %v3741
  %v3870 = vpack.c.bf16 %v3746, %v3744
  %v3871 = vpack.c.bf16 %v3747, %v3745
  %v3872 = vpack.c.bf16 %v3750, %v3748
  %v3873 = vpack.c.bf16 %v3751, %v3749
  %v3874 = vpack.c.bf16 %v3754, %v3752
  %v3875 = vpack.c.bf16 %v3755, %v3753
  %v3876 = vpack.c.bf16 %v3758, %v3756
  %v3877 = vpack.c.bf16 %v3759, %v3757
  %v3878 = vpack.c.bf16 %v3762, %v3760
  %v3879 = vpack.c.bf16 %v3763, %v3761
  %v3880 = vpack.c.bf16 %v3766, %v3764
  %v3881 = vpack.c.bf16 %v3767, %v3765
  %v3882 = vpack.c.bf16 %v3770, %v3768
  %v3883 = vpack.c.bf16 %v3771, %v3769
  %v3884 = vpack.c.bf16 %v3774, %v3772
  %v3885 = vpack.c.bf16 %v3775, %v3773
  %v3886 = vpack.c.bf16 %v3778, %v3776
  %v3887 = vpack.c.bf16 %v3779, %v3777
  %v3888 = vpack.c.bf16 %v3782, %v3780
  %v3889 = vpack.c.bf16 %v3783, %v3781
  %v3890 = vpack.c.bf16 %v3786, %v3784
  %v3891 = vpack.c.bf16 %v3787, %v3785
  %v3892 = vpack.c.bf16 %v3790, %v3788
  %v3893 = vpack.c.bf16 %v3791, %v3789
  %v3894 = vpack.c.bf16 %v3794, %v3792
  %v3895 = vpack.c.bf16 %v3795, %v3793
  %v3896 = vpack.c.bf16 %v3798, %v3796
  %v3897 = vpack.c.bf16 %v3799, %v3797
  %v3898 = vpack.c.bf16 %v3802, %v3800
  %v3899 = vpack.c.bf16 %v3803, %v3801
  %v3900 = vpack.c.bf16 %v3806, %v3804
  %v3901 = vpack.c.bf16 %v3807, %v3805
  %v3902 = vpack.c.bf16 %v3810, %v3808
  %v3903 = vpack.c.bf16 %v3811, %v3809
  %v3904 = vpack.c.bf16 %v3814, %v3812
  %v3905 = vpack.c.bf16 %v3815, %v3813
  %v3906 = vpack.c.bf16 %v3818, %v3816
  %v3907 = vpack.c.bf16 %v3819, %v3817
  %v3908 = vpack.c.bf16 %v3822, %v3820
  %v3909 = vpack.c.bf16 %v3823, %v3821
  %v3910 = vpack.c.bf16 %v3826, %v3824
  %v3911 = vpack.c.bf16 %v3827, %v3825
  %v3912 = vpack.c.bf16 %v3830, %v3828
  %v3913 = vpack.c.bf16 %v3831, %v3829
  %v3914 = vpack.c.bf16 %v3834, %v3832
  %v3915 = vpack.c.bf16 %v3835, %v3833
  %v3916 = vpack.c.bf16 %v3838, %v3836
  %v3917 = vpack.c.bf16 %v3839, %v3837
  %v3918 = vpack.c.bf16 %v3842, %v3840
  %v3919 = vpack.c.bf16 %v3843, %v3841
  %v3920 = vpack.c.bf16 %v3846, %v3844
  %v3921 = vpack.c.bf16 %v3847, %v3845
  %v3922 = vpack.c.bf16 %v3850, %v3848
  %v3923 = vpack.c.bf16 %v3851, %v3849
  %v3924 = vpack.c.bf16 %v3854, %v3852
  %v3925 = vpack.c.bf16 %v3855, %v3853
  %v3926 = vpack.c.bf16 %v3858, %v3856
  %v3927 = vpack.c.bf16 %v3859, %v3857
  %v3928 = vpack.c.bf16 %v3862, %v3860
  %v3929 = vpack.c.bf16 %v3863, %v3861
  %v3930 = vpack.c.bf16 %v3866, %v3864
  %v3931 = vpack.c.bf16 %v3867, %v3865
  %v3932 = vld [vmem:[%s3] sm:$0xf]
  %v3933 = vld [vmem:[%s3 + $0x4] sm:$0xf]
  %v3934 = vld [vmem:[%s3 + $0x8] sm:$0xf]
  %v3935 = vld [vmem:[%s3 + $0xc] sm:$0xf]
  %v3936 = vld [vmem:[%s3 + $0x10] sm:$0xf]
  %v3937 = vld [vmem:[%s3 + $0x14] sm:$0xf]
  %v3938 = vld [vmem:[%s3 + $0x18] sm:$0xf]
  %v3939 = vld [vmem:[%s3 + $0x1c] sm:$0xf]
  %v3940 = vld [vmem:[%s3 + $0x20] sm:$0xf]
  %v3941 = vld [vmem:[%s3 + $0x24] sm:$0xf]
  %v3942 = vld [vmem:[%s3 + $0x28] sm:$0xf]
  %v3943 = vld [vmem:[%s3 + $0x2c] sm:$0xf]
  %v3944 = vld [vmem:[%s3 + $0x30] sm:$0xf]
  %v3945 = vld [vmem:[%s3 + $0x34] sm:$0xf]
  %v3946 = vld [vmem:[%s3 + $0x38] sm:$0xf]
  %v3947 = vld [vmem:[%s3 + $0x3c] sm:$0xf]
  %v3948 = vld [vmem:[%s3 + $0x40] sm:$0xf]
  %v3949 = vld [vmem:[%s3 + $0x44] sm:$0xf]
  %v3950 = vld [vmem:[%s4] sm:$0x1]
  %v3952 = vperm.slane %v3950, 0
  %v3972 = vunpack.c.l.b16 %v3932
  %v3973 = vunpack.c.l.b16 %v3933
  %v3974 = vunpack.c.l.b16 %v3934
  %v3975 = vunpack.c.l.b16 %v3935
  %v3976 = vunpack.c.l.b16 %v3936
  %v3977 = vunpack.c.l.b16 %v3937
  %v3978 = vunpack.c.l.b16 %v3938
  %v3979 = vunpack.c.l.b16 %v3939
  %v3980 = vunpack.c.l.b16 %v3940
  %v3981 = vunpack.c.l.b16 %v3941
  %v3982 = vunpack.c.l.b16 %v3942
  %v3983 = vunpack.c.l.b16 %v3943
  %v3984 = vunpack.c.l.b16 %v3944
  %v3985 = vunpack.c.l.b16 %v3945
  %v3986 = vunpack.c.l.b16 %v3946
  %v3987 = vunpack.c.l.b16 %v3947
  %v3988 = vunpack.c.l.b16 %v3948
  %v3989 = vunpack.c.l.b16 %v3949
  %v3990 = vpack.c.b16 %v3973, %v3972
  %v3991 = vpack.c.b16 %v3975, %v3974
  %v3992 = vpack.c.b16 %v3977, %v3976
  %v3993 = vpack.c.b16 %v3979, %v3978
  %v3994 = vpack.c.b16 %v3981, %v3980
  %v3995 = vpack.c.b16 %v3983, %v3982
  %v3996 = vpack.c.b16 %v3985, %v3984
  %v3997 = vpack.c.b16 %v3987, %v3986
  %v3998 = vpack.c.b16 %v3989, %v3988
  %v4009 = vsel %vm613, %v3869, 0
  %v4012 = vsel %vm613, %v3871, 0
  %v4015 = vsel %vm613, %v3873, 0
  %v4018 = vsel %vm613, %v3875, 0
  %v4021 = vsel %vm613, %v3877, 0
  %v4024 = vsel %vm613, %v3879, 0
  %v4027 = vsel %vm613, %v3881, 0
  %v4030 = vsel %vm613, %v3883, 0
  %v4033 = vsel %vm613, %v3885, 0
  %v4036 = vsel %vm613, %v3887, 0
  %v4039 = vsel %vm613, %v3889, 0
  %v4042 = vsel %vm613, %v3891, 0
  %v4045 = vsel %vm613, %v3893, 0
  %v4048 = vsel %vm613, %v3895, 0
  %v4051 = vsel %vm613, %v3897, 0
  %v4054 = vsel %vm613, %v3899, 0
  %v4057 = vsel %vm613, %v3901, 0
  %v4060 = vsel %vm613, %v3903, 0
  %v4063 = vsel %vm613, %v3905, 0
  %v4066 = vsel %vm613, %v3907, 0
  %v4069 = vsel %vm613, %v3909, 0
  %v4072 = vsel %vm613, %v3911, 0
  %v4075 = vsel %vm613, %v3913, 0
  %v4078 = vsel %vm613, %v3915, 0
  %v4081 = vsel %vm613, %v3917, 0
  %v4084 = vsel %vm613, %v3919, 0
  %v4087 = vsel %vm613, %v3921, 0
  %v4090 = vsel %vm613, %v3923, 0
  %v4093 = vsel %vm613, %v3925, 0
  %v4096 = vsel %vm613, %v3927, 0
  %v4099 = vsel %vm613, %v3929, 0
  %v4102 = vsel %vm613, %v3931, 0
  %4104 = vmatpush.bf16.msra.mxu0 %v3997
  %4105 = vmatpush.bf16.msra.mxu0 %v3996
  %4106 = vmatpush.bf16.msra.mxu0 %v3995
  %4107 = vmatpush.bf16.msra.mxu0 %v3994
  %4108 = vmatpush.bf16.msra.mxu0 %v3993
  %4109 = vmatpush.bf16.msra.mxu0 %v3992
  %4110 = vmatpush.bf16.msra.mxu0 %v3991
  %4111 = vmatpush.bf16.msra.mxu0 %v3990
  %4112 = vmatmul.bf16.gmra.mxu0 %v3868
  %v4113 = vpop.f32.mrf.mxu0
  %v4114 = vadd.f32 %v3952, %v4113
  %v4115 = vpop.f32.mrf.mxu0
  %v4116 = vadd.f32 %v3952, %v4115
  %4117 = vmatmul.bf16.gmra.mxu0 %v3870
  %v4118 = vpop.f32.mrf.mxu0
  %v4119 = vadd.f32 %v3952, %v4118
  %v4120 = vpop.f32.mrf.mxu0
  %v4121 = vadd.f32 %v3952, %v4120
  %4122 = vmatmul.bf16.gmra.mxu0 %v3872
  %v4123 = vpop.f32.mrf.mxu0
  %v4124 = vadd.f32 %v3952, %v4123
  %v4125 = vpop.f32.mrf.mxu0
  %v4126 = vadd.f32 %v3952, %v4125
  %4127 = vmatmul.bf16.gmra.mxu0 %v3874
  %v4128 = vpop.f32.mrf.mxu0
  %v4129 = vadd.f32 %v3952, %v4128
  %v4130 = vpop.f32.mrf.mxu0
  %v4131 = vadd.f32 %v3952, %v4130
  %4132 = vmatmul.bf16.gmra.mxu0 %v3876
  %v4133 = vpop.f32.mrf.mxu0
  %v4134 = vadd.f32 %v3952, %v4133
  %v4135 = vpop.f32.mrf.mxu0
  %v4136 = vadd.f32 %v3952, %v4135
  %4137 = vmatmul.bf16.gmra.mxu0 %v3878
  %v4138 = vpop.f32.mrf.mxu0
  %v4139 = vadd.f32 %v3952, %v4138
  %v4140 = vpop.f32.mrf.mxu0
  %v4141 = vadd.f32 %v3952, %v4140
  %4142 = vmatmul.bf16.gmra.mxu0 %v3880
  %v4143 = vpop.f32.mrf.mxu0
  %v4144 = vadd.f32 %v3952, %v4143
  %v4145 = vpop.f32.mrf.mxu0
  %v4146 = vadd.f32 %v3952, %v4145
  %4147 = vmatmul.bf16.gmra.mxu0 %v3882
  %v4148 = vpop.f32.mrf.mxu0
  %v4149 = vadd.f32 %v3952, %v4148
  %v4150 = vpop.f32.mrf.mxu0
  %v4151 = vadd.f32 %v3952, %v4150
  %4152 = vmatmul.bf16.gmra.mxu0 %v3884
  %v4153 = vpop.f32.mrf.mxu0
  %v4154 = vadd.f32 %v3952, %v4153
  %v4155 = vpop.f32.mrf.mxu0
  %v4156 = vadd.f32 %v3952, %v4155
  %4157 = vmatmul.bf16.gmra.mxu0 %v3886
  %v4158 = vpop.f32.mrf.mxu0
  %v4159 = vadd.f32 %v3952, %v4158
  %v4160 = vpop.f32.mrf.mxu0
  %v4161 = vadd.f32 %v3952, %v4160
  %4162 = vmatmul.bf16.gmra.mxu0 %v3888
  %v4163 = vpop.f32.mrf.mxu0
  %v4164 = vadd.f32 %v3952, %v4163
  %v4165 = vpop.f32.mrf.mxu0
  %v4166 = vadd.f32 %v3952, %v4165
  %4167 = vmatmul.bf16.gmra.mxu0 %v3890
  %v4168 = vpop.f32.mrf.mxu0
  %v4169 = vadd.f32 %v3952, %v4168
  %v4170 = vpop.f32.mrf.mxu0
  %v4171 = vadd.f32 %v3952, %v4170
  %4172 = vmatmul.bf16.gmra.mxu0 %v3892
  %v4173 = vpop.f32.mrf.mxu0
  %v4174 = vadd.f32 %v3952, %v4173
  %v4175 = vpop.f32.mrf.mxu0
  %v4176 = vadd.f32 %v3952, %v4175
  %4177 = vmatmul.bf16.gmra.mxu0 %v3894
  %v4178 = vpop.f32.mrf.mxu0
  %v4179 = vadd.f32 %v3952, %v4178
  %v4180 = vpop.f32.mrf.mxu0
  %v4181 = vadd.f32 %v3952, %v4180
  %4182 = vmatmul.bf16.gmra.mxu0 %v3896
  %v4183 = vpop.f32.mrf.mxu0
  %v4184 = vadd.f32 %v3952, %v4183
  %v4185 = vpop.f32.mrf.mxu0
  %v4186 = vadd.f32 %v3952, %v4185
  %4187 = vmatmul.bf16.gmra.mxu0 %v3898
  %v4188 = vpop.f32.mrf.mxu0
  %v4189 = vadd.f32 %v3952, %v4188
  %v4190 = vpop.f32.mrf.mxu0
  %v4191 = vadd.f32 %v3952, %v4190
  %4192 = vmatmul.bf16.gmra.mxu0 %v3900
  %v4193 = vpop.f32.mrf.mxu0
  %v4194 = vadd.f32 %v3952, %v4193
  %v4195 = vpop.f32.mrf.mxu0
  %v4196 = vadd.f32 %v3952, %v4195
  %4197 = vmatmul.bf16.gmra.mxu0 %v3902
  %v4198 = vpop.f32.mrf.mxu0
  %v4199 = vadd.f32 %v3952, %v4198
  %v4200 = vpop.f32.mrf.mxu0
  %v4201 = vadd.f32 %v3952, %v4200
  %4202 = vmatmul.bf16.gmra.mxu0 %v3904
  %v4203 = vpop.f32.mrf.mxu0
  %v4204 = vadd.f32 %v3952, %v4203
  %v4205 = vpop.f32.mrf.mxu0
  %v4206 = vadd.f32 %v3952, %v4205
  %4207 = vmatmul.bf16.gmra.mxu0 %v3906
  %v4208 = vpop.f32.mrf.mxu0
  %v4209 = vadd.f32 %v3952, %v4208
  %v4210 = vpop.f32.mrf.mxu0
  %v4211 = vadd.f32 %v3952, %v4210
  %4212 = vmatmul.bf16.gmra.mxu0 %v3908
  %v4213 = vpop.f32.mrf.mxu0
  %v4214 = vadd.f32 %v3952, %v4213
  %v4215 = vpop.f32.mrf.mxu0
  %v4216 = vadd.f32 %v3952, %v4215
  %4217 = vmatmul.bf16.gmra.mxu0 %v3910
  %v4218 = vpop.f32.mrf.mxu0
  %v4219 = vadd.f32 %v3952, %v4218
  %v4220 = vpop.f32.mrf.mxu0
  %v4221 = vadd.f32 %v3952, %v4220
  %4222 = vmatmul.bf16.gmra.mxu0 %v3912
  %v4223 = vpop.f32.mrf.mxu0
  %v4224 = vadd.f32 %v3952, %v4223
  %v4225 = vpop.f32.mrf.mxu0
  %v4226 = vadd.f32 %v3952, %v4225
  %4227 = vmatmul.bf16.gmra.mxu0 %v3914
  %v4228 = vpop.f32.mrf.mxu0
  %v4229 = vadd.f32 %v3952, %v4228
  %v4230 = vpop.f32.mrf.mxu0
  %v4231 = vadd.f32 %v3952, %v4230
  %4232 = vmatmul.bf16.gmra.mxu0 %v3916
  %v4233 = vpop.f32.mrf.mxu0
  %v4234 = vadd.f32 %v3952, %v4233
  %v4235 = vpop.f32.mrf.mxu0
  %v4236 = vadd.f32 %v3952, %v4235
  %4237 = vmatmul.bf16.gmra.mxu0 %v3918
  %v4238 = vpop.f32.mrf.mxu0
  %v4239 = vadd.f32 %v3952, %v4238
  %v4240 = vpop.f32.mrf.mxu0
  %v4241 = vadd.f32 %v3952, %v4240
  %4242 = vmatmul.bf16.gmra.mxu0 %v3920
  %v4243 = vpop.f32.mrf.mxu0
  %v4244 = vadd.f32 %v3952, %v4243
  %v4245 = vpop.f32.mrf.mxu0
  %v4246 = vadd.f32 %v3952, %v4245
  %4247 = vmatmul.bf16.gmra.mxu0 %v3922
  %v4248 = vpop.f32.mrf.mxu0
  %v4249 = vadd.f32 %v3952, %v4248
  %v4250 = vpop.f32.mrf.mxu0
  %v4251 = vadd.f32 %v3952, %v4250
  %4252 = vmatmul.bf16.gmra.mxu0 %v3924
  %v4253 = vpop.f32.mrf.mxu0
  %v4254 = vadd.f32 %v3952, %v4253
  %v4255 = vpop.f32.mrf.mxu0
  %v4256 = vadd.f32 %v3952, %v4255
  %4257 = vmatmul.bf16.gmra.mxu0 %v3926
  %v4258 = vpop.f32.mrf.mxu0
  %v4259 = vadd.f32 %v3952, %v4258
  %v4260 = vpop.f32.mrf.mxu0
  %v4261 = vadd.f32 %v3952, %v4260
  %4262 = vmatmul.bf16.gmra.mxu0 %v3928
  %v4263 = vpop.f32.mrf.mxu0
  %v4264 = vadd.f32 %v3952, %v4263
  %v4265 = vpop.f32.mrf.mxu0
  %v4266 = vadd.f32 %v3952, %v4265
  %4267 = vmatmul.bf16.gmra.mxu0 %v3930
  %v4268 = vpop.f32.mrf.mxu0
  %v4269 = vadd.f32 %v3952, %v4268
  %v4270 = vpop.f32.mrf.mxu0
  %v4271 = vadd.f32 %v3952, %v4270
  %4272 = vdwg.mxu0
  %4273 = vmatpush.bf16.msra.mxu0 0
  %4274 = vmatpush.bf16.msra.mxu0 0
  %4275 = vmatpush.bf16.msra.mxu0 0
  %4276 = vmatpush.bf16.msra.mxu0 0
  %4277 = vmatpush.bf16.msra.mxu0 0
  %4278 = vmatpush.bf16.msra.mxu0 0
  %4279 = vmatpush.bf16.msra.mxu0 0
  %4280 = vmatpush.bf16.msra.mxu0 %v3998
  %4281 = vmatmul.bf16.gmra.mxu0 %v4009
  %v4282 = vpop.f32.mrf.mxu0
  %v4283 = vadd.f32 %v4114, %v4282
  %v4284 = vpop.f32.mrf.mxu0
  %v4285 = vadd.f32 %v4116, %v4284
  %4286 = vmatmul.bf16.gmra.mxu0 %v4012
  %v4287 = vpop.f32.mrf.mxu0
  %v4288 = vadd.f32 %v4119, %v4287
  %v4289 = vpop.f32.mrf.mxu0
  %v4290 = vadd.f32 %v4121, %v4289
  %4291 = vmatmul.bf16.gmra.mxu0 %v4015
  %v4292 = vpop.f32.mrf.mxu0
  %v4293 = vadd.f32 %v4124, %v4292
  %v4294 = vpop.f32.mrf.mxu0
  %v4295 = vadd.f32 %v4126, %v4294
  %4296 = vmatmul.bf16.gmra.mxu0 %v4018
  %v4297 = vpop.f32.mrf.mxu0
  %v4298 = vadd.f32 %v4129, %v4297
  %v4299 = vpop.f32.mrf.mxu0
  %v4300 = vadd.f32 %v4131, %v4299
  %4301 = vmatmul.bf16.gmra.mxu0 %v4021
  %v4302 = vpop.f32.mrf.mxu0
  %v4303 = vadd.f32 %v4134, %v4302
  %v4304 = vpop.f32.mrf.mxu0
  %v4305 = vadd.f32 %v4136, %v4304
  %4306 = vmatmul.bf16.gmra.mxu0 %v4024
  %v4307 = vpop.f32.mrf.mxu0
  %v4308 = vadd.f32 %v4139, %v4307
  %v4309 = vpop.f32.mrf.mxu0
  %v4310 = vadd.f32 %v4141, %v4309
  %4311 = vmatmul.bf16.gmra.mxu0 %v4027
  %v4312 = vpop.f32.mrf.mxu0
  %v4313 = vadd.f32 %v4144, %v4312
  %v4314 = vpop.f32.mrf.mxu0
  %v4315 = vadd.f32 %v4146, %v4314
  %4316 = vmatmul.bf16.gmra.mxu0 %v4030
  %v4317 = vpop.f32.mrf.mxu0
  %v4318 = vadd.f32 %v4149, %v4317
  %v4319 = vpop.f32.mrf.mxu0
  %v4320 = vadd.f32 %v4151, %v4319
  %4321 = vmatmul.bf16.gmra.mxu0 %v4033
  %v4322 = vpop.f32.mrf.mxu0
  %v4323 = vadd.f32 %v4154, %v4322
  %v4324 = vpop.f32.mrf.mxu0
  %v4325 = vadd.f32 %v4156, %v4324
  %4326 = vmatmul.bf16.gmra.mxu0 %v4036
  %v4327 = vpop.f32.mrf.mxu0
  %v4328 = vadd.f32 %v4159, %v4327
  %v4329 = vpop.f32.mrf.mxu0
  %v4330 = vadd.f32 %v4161, %v4329
  %4331 = vmatmul.bf16.gmra.mxu0 %v4039
  %v4332 = vpop.f32.mrf.mxu0
  %v4333 = vadd.f32 %v4164, %v4332
  %v4334 = vpop.f32.mrf.mxu0
  %v4335 = vadd.f32 %v4166, %v4334
  %4336 = vmatmul.bf16.gmra.mxu0 %v4042
  %v4337 = vpop.f32.mrf.mxu0
  %v4338 = vadd.f32 %v4169, %v4337
  %v4339 = vpop.f32.mrf.mxu0
  %v4340 = vadd.f32 %v4171, %v4339
  %4341 = vmatmul.bf16.gmra.mxu0 %v4045
  %v4342 = vpop.f32.mrf.mxu0
  %v4343 = vadd.f32 %v4174, %v4342
  %v4344 = vpop.f32.mrf.mxu0
  %v4345 = vadd.f32 %v4176, %v4344
  %4346 = vmatmul.bf16.gmra.mxu0 %v4048
  %v4347 = vpop.f32.mrf.mxu0
  %v4348 = vadd.f32 %v4179, %v4347
  %v4349 = vpop.f32.mrf.mxu0
  %v4350 = vadd.f32 %v4181, %v4349
  %4351 = vmatmul.bf16.gmra.mxu0 %v4051
  %v4352 = vpop.f32.mrf.mxu0
  %v4353 = vadd.f32 %v4184, %v4352
  %v4354 = vpop.f32.mrf.mxu0
  %v4355 = vadd.f32 %v4186, %v4354
  %4356 = vmatmul.bf16.gmra.mxu0 %v4054
  %v4357 = vpop.f32.mrf.mxu0
  %v4358 = vadd.f32 %v4189, %v4357
  %v4359 = vpop.f32.mrf.mxu0
  %v4360 = vadd.f32 %v4191, %v4359
  %4361 = vmatmul.bf16.gmra.mxu0 %v4057
  %v4362 = vpop.f32.mrf.mxu0
  %v4363 = vadd.f32 %v4194, %v4362
  %v4364 = vpop.f32.mrf.mxu0
  %v4365 = vadd.f32 %v4196, %v4364
  %4366 = vmatmul.bf16.gmra.mxu0 %v4060
  %v4367 = vpop.f32.mrf.mxu0
  %v4368 = vadd.f32 %v4199, %v4367
  %v4369 = vpop.f32.mrf.mxu0
  %v4370 = vadd.f32 %v4201, %v4369
  %4371 = vmatmul.bf16.gmra.mxu0 %v4063
  %v4372 = vpop.f32.mrf.mxu0
  %v4373 = vadd.f32 %v4204, %v4372
  %v4374 = vpop.f32.mrf.mxu0
  %v4375 = vadd.f32 %v4206, %v4374
  %4376 = vmatmul.bf16.gmra.mxu0 %v4066
  %v4377 = vpop.f32.mrf.mxu0
  %v4378 = vadd.f32 %v4209, %v4377
  %v4379 = vpop.f32.mrf.mxu0
  %v4380 = vadd.f32 %v4211, %v4379
  %4381 = vmatmul.bf16.gmra.mxu0 %v4069
  %v4382 = vpop.f32.mrf.mxu0
  %v4383 = vadd.f32 %v4214, %v4382
  %v4384 = vpop.f32.mrf.mxu0
  %v4385 = vadd.f32 %v4216, %v4384
  %4386 = vmatmul.bf16.gmra.mxu0 %v4072
  %v4387 = vpop.f32.mrf.mxu0
  %v4388 = vadd.f32 %v4219, %v4387
  %v4389 = vpop.f32.mrf.mxu0
  %v4390 = vadd.f32 %v4221, %v4389
  %4391 = vmatmul.bf16.gmra.mxu0 %v4075
  %v4392 = vpop.f32.mrf.mxu0
  %v4393 = vadd.f32 %v4224, %v4392
  %v4394 = vpop.f32.mrf.mxu0
  %v4395 = vadd.f32 %v4226, %v4394
  %4396 = vmatmul.bf16.gmra.mxu0 %v4078
  %v4397 = vpop.f32.mrf.mxu0
  %v4398 = vadd.f32 %v4229, %v4397
  %v4399 = vpop.f32.mrf.mxu0
  %v4400 = vadd.f32 %v4231, %v4399
  %4401 = vmatmul.bf16.gmra.mxu0 %v4081
  %v4402 = vpop.f32.mrf.mxu0
  %v4403 = vadd.f32 %v4234, %v4402
  %v4404 = vpop.f32.mrf.mxu0
  %v4405 = vadd.f32 %v4236, %v4404
  %4406 = vmatmul.bf16.gmra.mxu0 %v4084
  %v4407 = vpop.f32.mrf.mxu0
  %v4408 = vadd.f32 %v4239, %v4407
  %v4409 = vpop.f32.mrf.mxu0
  %v4410 = vadd.f32 %v4241, %v4409
  %4411 = vmatmul.bf16.gmra.mxu0 %v4087
  %v4412 = vpop.f32.mrf.mxu0
  %v4413 = vadd.f32 %v4244, %v4412
  %v4414 = vpop.f32.mrf.mxu0
  %v4415 = vadd.f32 %v4246, %v4414
  %4416 = vmatmul.bf16.gmra.mxu0 %v4090
  %v4417 = vpop.f32.mrf.mxu0
  %v4418 = vadd.f32 %v4249, %v4417
  %v4419 = vpop.f32.mrf.mxu0
  %v4420 = vadd.f32 %v4251, %v4419
  %4421 = vmatmul.bf16.gmra.mxu0 %v4093
  %v4422 = vpop.f32.mrf.mxu0
  %v4423 = vadd.f32 %v4254, %v4422
  %v4424 = vpop.f32.mrf.mxu0
  %v4425 = vadd.f32 %v4256, %v4424
  %4426 = vmatmul.bf16.gmra.mxu0 %v4096
  %v4427 = vpop.f32.mrf.mxu0
  %v4428 = vadd.f32 %v4259, %v4427
  %v4429 = vpop.f32.mrf.mxu0
  %v4430 = vadd.f32 %v4261, %v4429
  %4431 = vmatmul.bf16.gmra.mxu0 %v4099
  %v4432 = vpop.f32.mrf.mxu0
  %v4433 = vadd.f32 %v4264, %v4432
  %v4434 = vpop.f32.mrf.mxu0
  %v4435 = vadd.f32 %v4266, %v4434
  %4436 = vmatmul.bf16.gmra.mxu0 %v4102
  %v4437 = vpop.f32.mrf.mxu0
  %v4438 = vadd.f32 %v4269, %v4437
  %v4439 = vpop.f32.mrf.mxu0
  %v4440 = vadd.f32 %v4271, %v4439
  %4441 = vdwg.mxu0
  %v4442 = vmax.f32 %v4283, 0.0
  %v4443 = vmax.f32 %v4285, 0.0
  %v4444 = vmax.f32 %v4288, 0.0
  %v4445 = vmax.f32 %v4290, 0.0
  %v4446 = vmax.f32 %v4293, 0.0
  %v4447 = vmax.f32 %v4295, 0.0
  %v4448 = vmax.f32 %v4298, 0.0
  %v4449 = vmax.f32 %v4300, 0.0
  %v4450 = vmax.f32 %v4303, 0.0
  %v4451 = vmax.f32 %v4305, 0.0
  %v4452 = vmax.f32 %v4308, 0.0
  %v4453 = vmax.f32 %v4310, 0.0
  %v4454 = vmax.f32 %v4313, 0.0
  %v4455 = vmax.f32 %v4315, 0.0
  %v4456 = vmax.f32 %v4318, 0.0
  %v4457 = vmax.f32 %v4320, 0.0
  %v4458 = vmax.f32 %v4323, 0.0
  %v4459 = vmax.f32 %v4325, 0.0
  %v4460 = vmax.f32 %v4328, 0.0
  %v4461 = vmax.f32 %v4330, 0.0
  %v4462 = vmax.f32 %v4333, 0.0
  %v4463 = vmax.f32 %v4335, 0.0
  %v4464 = vmax.f32 %v4338, 0.0
  %v4465 = vmax.f32 %v4340, 0.0
  %v4466 = vmax.f32 %v4343, 0.0
  %v4467 = vmax.f32 %v4345, 0.0
  %v4468 = vmax.f32 %v4348, 0.0
  %v4469 = vmax.f32 %v4350, 0.0
  %v4470 = vmax.f32 %v4353, 0.0
  %v4471 = vmax.f32 %v4355, 0.0
  %v4472 = vmax.f32 %v4358, 0.0
  %v4473 = vmax.f32 %v4360, 0.0
  %v4474 = vmax.f32 %v4363, 0.0
  %v4475 = vmax.f32 %v4365, 0.0
  %v4476 = vmax.f32 %v4368, 0.0
  %v4477 = vmax.f32 %v4370, 0.0
  %v4478 = vmax.f32 %v4373, 0.0
  %v4479 = vmax.f32 %v4375, 0.0
  %v4480 = vmax.f32 %v4378, 0.0
  %v4481 = vmax.f32 %v4380, 0.0
  %v4482 = vmax.f32 %v4383, 0.0
  %v4483 = vmax.f32 %v4385, 0.0
  %v4484 = vmax.f32 %v4388, 0.0
  %v4485 = vmax.f32 %v4390, 0.0
  %v4486 = vmax.f32 %v4393, 0.0
  %v4487 = vmax.f32 %v4395, 0.0
  %v4488 = vmax.f32 %v4398, 0.0
  %v4489 = vmax.f32 %v4400, 0.0
  %v4490 = vmax.f32 %v4403, 0.0
  %v4491 = vmax.f32 %v4405, 0.0
  %v4492 = vmax.f32 %v4408, 0.0
  %v4493 = vmax.f32 %v4410, 0.0
  %v4494 = vmax.f32 %v4413, 0.0
  %v4495 = vmax.f32 %v4415, 0.0
  %v4496 = vmax.f32 %v4418, 0.0
  %v4497 = vmax.f32 %v4420, 0.0
  %v4498 = vmax.f32 %v4423, 0.0
  %v4499 = vmax.f32 %v4425, 0.0
  %v4500 = vmax.f32 %v4428, 0.0
  %v4501 = vmax.f32 %v4430, 0.0
  %v4502 = vmax.f32 %v4433, 0.0
  %v4503 = vmax.f32 %v4435, 0.0
  %v4504 = vmax.f32 %v4438, 0.0
  %v4505 = vmax.f32 %v4440, 0.0
  %4506 = vst.msk [vmem:[%s723 + $0x1] sm:$0xff] %vm613, %v4442
  %4507 = vst.msk [vmem:[%s723 + $0x9] sm:$0xff] %vm613, %v4443
  %4508 = vst.msk [vmem:[%s723 + $0x19] sm:$0xff] %vm613, %v4444
  %4509 = vst.msk [vmem:[%s723 + $0x21] sm:$0xff] %vm613, %v4445
  %4510 = vst.msk [vmem:[%s723 + $0x31] sm:$0xff] %vm613, %v4446
  %4511 = vst.msk [vmem:[%s723 + $0x39] sm:$0xff] %vm613, %v4447
  %4512 = vst.msk [vmem:[%s723 + $0x49] sm:$0xff] %vm613, %v4448
  %4513 = vst.msk [vmem:[%s723 + $0x51] sm:$0xff] %vm613, %v4449
  %4514 = vst.msk [vmem:[%s723 + $0x61] sm:$0xff] %vm613, %v4450
  %4515 = vst.msk [vmem:[%s723 + $0x69] sm:$0xff] %vm613, %v4451
  %4516 = vst.msk [vmem:[%s723 + $0x79] sm:$0xff] %vm613, %v4452
  %4517 = vst.msk [vmem:[%s723 + $0x81] sm:$0xff] %vm613, %v4453
  %4518 = vst.msk [vmem:[%s723 + $0x91] sm:$0xff] %vm613, %v4454
  %4519 = vst.msk [vmem:[%s723 + $0x99] sm:$0xff] %vm613, %v4455
  %4520 = vst.msk [vmem:[%s723 + $0xa9] sm:$0xff] %vm613, %v4456
  %4521 = vst.msk [vmem:[%s723 + $0xb1] sm:$0xff] %vm613, %v4457
  %4522 = vst.msk [vmem:[%s723 + $0xc1] sm:$0xff] %vm613, %v4458
  %4523 = vst.msk [vmem:[%s723 + $0xc9] sm:$0xff] %vm613, %v4459
  %4524 = vst.msk [vmem:[%s723 + $0xd9] sm:$0xff] %vm613, %v4460
  %4525 = vst.msk [vmem:[%s723 + $0xe1] sm:$0xff] %vm613, %v4461
  %4526 = vst.msk [vmem:[%s723 + $0xf1] sm:$0xff] %vm613, %v4462
  %4527 = vst.msk [vmem:[%s723 + $0xf9] sm:$0xff] %vm613, %v4463
  %4528 = vst.msk [vmem:[%s723 + $0x109] sm:$0xff] %vm613, %v4464
  %4529 = vst.msk [vmem:[%s723 + $0x111] sm:$0xff] %vm613, %v4465
  %4530 = vst.msk [vmem:[%s723 + $0x121] sm:$0xff] %vm613, %v4466
  %4531 = vst.msk [vmem:[%s723 + $0x129] sm:$0xff] %vm613, %v4467
  %4532 = vst.msk [vmem:[%s723 + $0x139] sm:$0xff] %vm613, %v4468
  %4533 = vst.msk [vmem:[%s723 + $0x141] sm:$0xff] %vm613, %v4469
  %4534 = vst.msk [vmem:[%s723 + $0x151] sm:$0xff] %vm613, %v4470
  %4535 = vst.msk [vmem:[%s723 + $0x159] sm:$0xff] %vm613, %v4471
  %4536 = vst.msk [vmem:[%s723 + $0x169] sm:$0xff] %vm613, %v4472
  %4537 = vst.msk [vmem:[%s723 + $0x171] sm:$0xff] %vm613, %v4473
  %4538 = vst.msk [vmem:[%s723 + $0x1b1] sm:$0xff] %vm613, %v4474
  %4539 = vst.msk [vmem:[%s723 + $0x1b9] sm:$0xff] %vm613, %v4475
  %4540 = vst.msk [vmem:[%s723 + $0x1c9] sm:$0xff] %vm613, %v4476
  %4541 = vst.msk [vmem:[%s723 + $0x1d1] sm:$0xff] %vm613, %v4477
  %4542 = vst.msk [vmem:[%s723 + $0x1e1] sm:$0xff] %vm613, %v4478
  %4543 = vst.msk [vmem:[%s723 + $0x1e9] sm:$0xff] %vm613, %v4479
  %4544 = vst.msk [vmem:[%s723 + $0x1f9] sm:$0xff] %vm613, %v4480
  %4545 = vst.msk [vmem:[%s723 + $0x201] sm:$0xff] %vm613, %v4481
  %4546 = vst.msk [vmem:[%s723 + $0x211] sm:$0xff] %vm613, %v4482
  %4547 = vst.msk [vmem:[%s723 + $0x219] sm:$0xff] %vm613, %v4483
  %4548 = vst.msk [vmem:[%s723 + $0x229] sm:$0xff] %vm613, %v4484
  %4549 = vst.msk [vmem:[%s723 + $0x231] sm:$0xff] %vm613, %v4485
  %4550 = vst.msk [vmem:[%s723 + $0x241] sm:$0xff] %vm613, %v4486
  %4551 = vst.msk [vmem:[%s723 + $0x249] sm:$0xff] %vm613, %v4487
  %4552 = vst.msk [vmem:[%s723 + $0x259] sm:$0xff] %vm613, %v4488
  %4553 = vst.msk [vmem:[%s723 + $0x261] sm:$0xff] %vm613, %v4489
  %4554 = vst.msk [vmem:[%s723 + $0x271] sm:$0xff] %vm613, %v4490
  %4555 = vst.msk [vmem:[%s723 + $0x279] sm:$0xff] %vm613, %v4491
  %4556 = vst.msk [vmem:[%s723 + $0x289] sm:$0xff] %vm613, %v4492
  %4557 = vst.msk [vmem:[%s723 + $0x291] sm:$0xff] %vm613, %v4493
  %4558 = vst.msk [vmem:[%s723 + $0x2a1] sm:$0xff] %vm613, %v4494
  %4559 = vst.msk [vmem:[%s723 + $0x2a9] sm:$0xff] %vm613, %v4495
  %4560 = vst.msk [vmem:[%s723 + $0x2b9] sm:$0xff] %vm613, %v4496
  %4561 = vst.msk [vmem:[%s723 + $0x2c1] sm:$0xff] %vm613, %v4497
  %4562 = vst.msk [vmem:[%s723 + $0x2d1] sm:$0xff] %vm613, %v4498
  %4563 = vst.msk [vmem:[%s723 + $0x2d9] sm:$0xff] %vm613, %v4499
  %4564 = vst.msk [vmem:[%s723 + $0x2e9] sm:$0xff] %vm613, %v4500
  %4565 = vst.msk [vmem:[%s723 + $0x2f1] sm:$0xff] %vm613, %v4501
  %4566 = vst.msk [vmem:[%s723 + $0x301] sm:$0xff] %vm613, %v4502
  %4567 = vst.msk [vmem:[%s723 + $0x309] sm:$0xff] %vm613, %v4503
  %4568 = vst.msk [vmem:[%s723 + $0x319] sm:$0xff] %vm613, %v4504
  %4569 = vst.msk [vmem:[%s723 + $0x321] sm:$0xff] %vm613, %v4505
  %v4570 = vld [vmem:[#allocation2] sm:$0xff]
  %v4571 = vld [vmem:[#allocation2 + $0x8] sm:$0xff]
  %v4572 = vld [vmem:[#allocation2 + $0x18] sm:$0xff]
  %v4573 = vld [vmem:[#allocation2 + $0x20] sm:$0xff]
  %v4574 = vld [vmem:[#allocation2 + $0x30] sm:$0xff]
  %v4575 = vld [vmem:[#allocation2 + $0x38] sm:$0xff]
  %v4576 = vld [vmem:[#allocation2 + $0x48] sm:$0xff]
  %v4577 = vld [vmem:[#allocation2 + $0x50] sm:$0xff]
  %v4578 = vld [vmem:[#allocation2 + $0x60] sm:$0xff]
  %v4579 = vld [vmem:[#allocation2 + $0x68] sm:$0xff]
  %v4580 = vld [vmem:[#allocation2 + $0x78] sm:$0xff]
  %v4581 = vld [vmem:[#allocation2 + $0x80] sm:$0xff]
  %v4582 = vld [vmem:[#allocation2 + $0x90] sm:$0xff]
  %v4583 = vld [vmem:[#allocation2 + $0x98] sm:$0xff]
  %v4584 = vld [vmem:[#allocation2 + $0xa8] sm:$0xff]
  %v4585 = vld [vmem:[#allocation2 + $0xb0] sm:$0xff]
  %v4586 = vld [vmem:[#allocation2 + $0xc0] sm:$0xff]
  %v4587 = vld [vmem:[#allocation2 + $0xc8] sm:$0xff]
  %v4588 = vld [vmem:[#allocation2 + $0xd8] sm:$0xff]
  %v4589 = vld [vmem:[#allocation2 + $0xe0] sm:$0xff]
  %v4590 = vld [vmem:[#allocation2 + $0xf0] sm:$0xff]
  %v4591 = vld [vmem:[#allocation2 + $0xf8] sm:$0xff]
  %v4592 = vld [vmem:[#allocation2 + $0x108] sm:$0xff]
  %v4593 = vld [vmem:[#allocation2 + $0x110] sm:$0xff]
  %v4594 = vld [vmem:[#allocation2 + $0x120] sm:$0xff]
  %v4595 = vld [vmem:[#allocation2 + $0x128] sm:$0xff]
  %v4596 = vld [vmem:[#allocation2 + $0x138] sm:$0xff]
  %v4597 = vld [vmem:[#allocation2 + $0x140] sm:$0xff]
  %v4598 = vld [vmem:[#allocation2 + $0x150] sm:$0xff]
  %v4599 = vld [vmem:[#allocation2 + $0x158] sm:$0xff]
  %v4600 = vld [vmem:[#allocation2 + $0x168] sm:$0xff]
  %v4601 = vld [vmem:[#allocation2 + $0x170] sm:$0xff]
  %v4602 = vld [vmem:[#allocation2 + $0x1b0] sm:$0xff]
  %v4603 = vld [vmem:[#allocation2 + $0x1b8] sm:$0xff]
  %v4604 = vld [vmem:[#allocation2 + $0x1c8] sm:$0xff]
  %v4605 = vld [vmem:[#allocation2 + $0x1d0] sm:$0xff]
  %v4606 = vld [vmem:[#allocation2 + $0x1e0] sm:$0xff]
  %v4607 = vld [vmem:[#allocation2 + $0x1e8] sm:$0xff]
  %v4608 = vld [vmem:[#allocation2 + $0x1f8] sm:$0xff]
  %v4609 = vld [vmem:[#allocation2 + $0x200] sm:$0xff]
  %v4610 = vld [vmem:[#allocation2 + $0x210] sm:$0xff]
  %v4611 = vld [vmem:[#allocation2 + $0x218] sm:$0xff]
  %v4612 = vld [vmem:[#allocation2 + $0x228] sm:$0xff]
  %v4613 = vld [vmem:[#allocation2 + $0x230] sm:$0xff]
  %v4614 = vld [vmem:[#allocation2 + $0x240] sm:$0xff]
  %v4615 = vld [vmem:[#allocation2 + $0x248] sm:$0xff]
  %v4616 = vld [vmem:[#allocation2 + $0x258] sm:$0xff]
  %v4617 = vld [vmem:[#allocation2 + $0x260] sm:$0xff]
  %v4618 = vld [vmem:[#allocation2 + $0x270] sm:$0xff]
  %v4619 = vld [vmem:[#allocation2 + $0x278] sm:$0xff]
  %v4620 = vld [vmem:[#allocation2 + $0x288] sm:$0xff]
  %v4621 = vld [vmem:[#allocation2 + $0x290] sm:$0xff]
  %v4622 = vld [vmem:[#allocation2 + $0x2a0] sm:$0xff]
  %v4623 = vld [vmem:[#allocation2 + $0x2a8] sm:$0xff]
  %v4624 = vld [vmem:[#allocation2 + $0x2b8] sm:$0xff]
  %v4625 = vld [vmem:[#allocation2 + $0x2c0] sm:$0xff]
  %v4626 = vld [vmem:[#allocation2 + $0x2d0] sm:$0xff]
  %v4627 = vld [vmem:[#allocation2 + $0x2d8] sm:$0xff]
  %v4628 = vld [vmem:[#allocation2 + $0x2e8] sm:$0xff]
  %v4629 = vld [vmem:[#allocation2 + $0x2f0] sm:$0xff]
  %v4630 = vld [vmem:[#allocation2 + $0x300] sm:$0xff]
  %v4631 = vld [vmem:[#allocation2 + $0x308] sm:$0xff]
  %v4632 = vld [vmem:[#allocation2 + $0x318] sm:$0xff]
  %v4633 = vld [vmem:[#allocation2 + $0x320] sm:$0xff]
  %4634 = vst.msk [vmem:[#allocation3] sm:$0xff] %vm613, %v4570
  %4635 = vst.msk [vmem:[#allocation3 + $0x10] sm:$0xff] %vm613, %v4571
  %4636 = vst.msk [vmem:[#allocation3 + $0x20] sm:$0xff] %vm613, %v4572
  %4637 = vst.msk [vmem:[#allocation3 + $0x30] sm:$0xff] %vm613, %v4573
  %4638 = vst.msk [vmem:[#allocation3 + $0x40] sm:$0xff] %vm613, %v4574
  %4639 = vst.msk [vmem:[#allocation3 + $0x50] sm:$0xff] %vm613, %v4575
  %4640 = vst.msk [vmem:[#allocation3 + $0x60] sm:$0xff] %vm613, %v4576
  %4641 = vst.msk [vmem:[#allocation3 + $0x70] sm:$0xff] %vm613, %v4577
  %4642 = vst.msk [vmem:[#allocation3 + $0x80] sm:$0xff] %vm613, %v4578
  %4643 = vst.msk [vmem:[#allocation3 + $0x90] sm:$0xff] %vm613, %v4579
  %4644 = vst.msk [vmem:[#allocation3 + $0xa0] sm:$0xff] %vm613, %v4580
  %4645 = vst.msk [vmem:[#allocation3 + $0xb0] sm:$0xff] %vm613, %v4581
  %4646 = vst.msk [vmem:[#allocation3 + $0xc0] sm:$0xff] %vm613, %v4582
  %4647 = vst.msk [vmem:[#allocation3 + $0xd0] sm:$0xff] %vm613, %v4583
  %4648 = vst.msk [vmem:[#allocation3 + $0xe0] sm:$0xff] %vm613, %v4584
  %4649 = vst.msk [vmem:[#allocation3 + $0xf0] sm:$0xff] %vm613, %v4585
  %4650 = vst.msk [vmem:[#allocation3 + $0x100] sm:$0xff] %vm613, %v4586
  %4651 = vst.msk [vmem:[#allocation3 + $0x110] sm:$0xff] %vm613, %v4587
  %4652 = vst.msk [vmem:[#allocation3 + $0x120] sm:$0xff] %vm613, %v4588
  %4653 = vst.msk [vmem:[#allocation3 + $0x130] sm:$0xff] %vm613, %v4589
  %4654 = vst.msk [vmem:[#allocation3 + $0x140] sm:$0xff] %vm613, %v4590
  %4655 = vst.msk [vmem:[#allocation3 + $0x150] sm:$0xff] %vm613, %v4591
  %4656 = vst.msk [vmem:[#allocation3 + $0x160] sm:$0xff] %vm613, %v4592
  %4657 = vst.msk [vmem:[#allocation3 + $0x170] sm:$0xff] %vm613, %v4593
  %4658 = vst.msk [vmem:[#allocation3 + $0x180] sm:$0xff] %vm613, %v4594
  %4659 = vst.msk [vmem:[#allocation3 + $0x190] sm:$0xff] %vm613, %v4595
  %4660 = vst.msk [vmem:[#allocation3 + $0x1a0] sm:$0xff] %vm613, %v4596
  %4661 = vst.msk [vmem:[#allocation3 + $0x1b0] sm:$0xff] %vm613, %v4597
  %4662 = vst.msk [vmem:[#allocation3 + $0x1c0] sm:$0xff] %vm613, %v4598
  %4663 = vst.msk [vmem:[#allocation3 + $0x1d0] sm:$0xff] %vm613, %v4599
  %4664 = vst.msk [vmem:[#allocation3 + $0x1e0] sm:$0xff] %vm613, %v4600
  %4665 = vst.msk [vmem:[#allocation3 + $0x1f0] sm:$0xff] %vm613, %v4601
  %4666 = vst.msk [vmem:[#allocation3 + $0x200] sm:$0xff] %vm613, %v4602
  %4667 = vst.msk [vmem:[#allocation3 + $0x210] sm:$0xff] %vm613, %v4603
  %4668 = vst.msk [vmem:[#allocation3 + $0x220] sm:$0xff] %vm613, %v4604
  %4669 = vst.msk [vmem:[#allocation3 + $0x230] sm:$0xff] %vm613, %v4605
  %4670 = vst.msk [vmem:[#allocation3 + $0x240] sm:$0xff] %vm613, %v4606
  %4671 = vst.msk [vmem:[#allocation3 + $0x250] sm:$0xff] %vm613, %v4607
  %4672 = vst.msk [vmem:[#allocation3 + $0x260] sm:$0xff] %vm613, %v4608
  %4673 = vst.msk [vmem:[#allocation3 + $0x270] sm:$0xff] %vm613, %v4609
  %4674 = vst.msk [vmem:[#allocation3 + $0x280] sm:$0xff] %vm613, %v4610
  %4675 = vst.msk [vmem:[#allocation3 + $0x290] sm:$0xff] %vm613, %v4611
  %4676 = vst.msk [vmem:[#allocation3 + $0x2a0] sm:$0xff] %vm613, %v4612
  %4677 = vst.msk [vmem:[#allocation3 + $0x2b0] sm:$0xff] %vm613, %v4613
  %4678 = vst.msk [vmem:[#allocation3 + $0x2c0] sm:$0xff] %vm613, %v4614
  %4679 = vst.msk [vmem:[#allocation3 + $0x2d0] sm:$0xff] %vm613, %v4615
  %4680 = vst.msk [vmem:[#allocation3 + $0x2e0] sm:$0xff] %vm613, %v4616
  %4681 = vst.msk [vmem:[#allocation3 + $0x2f0] sm:$0xff] %vm613, %v4617
  %4682 = vst.msk [vmem:[#allocation3 + $0x300] sm:$0xff] %vm613, %v4618
  %4683 = vst.msk [vmem:[#allocation3 + $0x310] sm:$0xff] %vm613, %v4619
  %4684 = vst.msk [vmem:[#allocation3 + $0x320] sm:$0xff] %vm613, %v4620
  %4685 = vst.msk [vmem:[#allocation3 + $0x330] sm:$0xff] %vm613, %v4621
  %4686 = vst.msk [vmem:[#allocation3 + $0x340] sm:$0xff] %vm613, %v4622
  %4687 = vst.msk [vmem:[#allocation3 + $0x350] sm:$0xff] %vm613, %v4623
  %4688 = vst.msk [vmem:[#allocation3 + $0x360] sm:$0xff] %vm613, %v4624
  %4689 = vst.msk [vmem:[#allocation3 + $0x370] sm:$0xff] %vm613, %v4625
  %4690 = vst.msk [vmem:[#allocation3 + $0x380] sm:$0xff] %vm613, %v4626
  %4691 = vst.msk [vmem:[#allocation3 + $0x390] sm:$0xff] %vm613, %v4627
  %4692 = vst.msk [vmem:[#allocation3 + $0x3a0] sm:$0xff] %vm613, %v4628
  %4693 = vst.msk [vmem:[#allocation3 + $0x3b0] sm:$0xff] %vm613, %v4629
  %4694 = vst.msk [vmem:[#allocation3 + $0x3c0] sm:$0xff] %vm613, %v4630
  %4695 = vst.msk [vmem:[#allocation3 + $0x3d0] sm:$0xff] %vm613, %v4631
  %4696 = vst.msk [vmem:[#allocation3 + $0x3e0] sm:$0xff] %vm613, %v4632
  %4697 = vst.msk [vmem:[#allocation3 + $0x3f0] sm:$0xff] %vm613, %v4633
  %v4698 = vld [vmem:[#allocation2 + $0x1] sm:$0xff]
  %v4699 = vld [vmem:[#allocation2 + $0x9] sm:$0xff]
  %v4700 = vld [vmem:[#allocation2 + $0x19] sm:$0xff]
  %v4701 = vld [vmem:[#allocation2 + $0x21] sm:$0xff]
  %v4702 = vld [vmem:[#allocation2 + $0x31] sm:$0xff]
  %v4703 = vld [vmem:[#allocation2 + $0x39] sm:$0xff]
  %v4704 = vld [vmem:[#allocation2 + $0x49] sm:$0xff]
  %v4705 = vld [vmem:[#allocation2 + $0x51] sm:$0xff]
  %v4706 = vld [vmem:[#allocation2 + $0x61] sm:$0xff]
  %v4707 = vld [vmem:[#allocation2 + $0x69] sm:$0xff]
  %v4708 = vld [vmem:[#allocation2 + $0x79] sm:$0xff]
  %v4709 = vld [vmem:[#allocation2 + $0x81] sm:$0xff]
  %v4710 = vld [vmem:[#allocation2 + $0x91] sm:$0xff]
  %v4711 = vld [vmem:[#allocation2 + $0x99] sm:$0xff]
  %v4712 = vld [vmem:[#allocation2 + $0xa9] sm:$0xff]
  %v4713 = vld [vmem:[#allocation2 + $0xb1] sm:$0xff]
  %v4714 = vld [vmem:[#allocation2 + $0xc1] sm:$0xff]
  %v4715 = vld [vmem:[#allocation2 + $0xc9] sm:$0xff]
  %v4716 = vld [vmem:[#allocation2 + $0xd9] sm:$0xff]
  %v4717 = vld [vmem:[#allocation2 + $0xe1] sm:$0xff]
  %v4718 = vld [vmem:[#allocation2 + $0xf1] sm:$0xff]
  %v4719 = vld [vmem:[#allocation2 + $0xf9] sm:$0xff]
  %v4720 = vld [vmem:[#allocation2 + $0x109] sm:$0xff]
  %v4721 = vld [vmem:[#allocation2 + $0x111] sm:$0xff]
  %v4722 = vld [vmem:[#allocation2 + $0x121] sm:$0xff]
  %v4723 = vld [vmem:[#allocation2 + $0x129] sm:$0xff]
  %v4724 = vld [vmem:[#allocation2 + $0x139] sm:$0xff]
  %v4725 = vld [vmem:[#allocation2 + $0x141] sm:$0xff]
  %v4726 = vld [vmem:[#allocation2 + $0x151] sm:$0xff]
  %v4727 = vld [vmem:[#allocation2 + $0x159] sm:$0xff]
  %v4728 = vld [vmem:[#allocation2 + $0x169] sm:$0xff]
  %v4729 = vld [vmem:[#allocation2 + $0x171] sm:$0xff]
  %v4730 = vld [vmem:[#allocation2 + $0x1b1] sm:$0xff]
  %v4731 = vld [vmem:[#allocation2 + $0x1b9] sm:$0xff]
  %v4732 = vld [vmem:[#allocation2 + $0x1c9] sm:$0xff]
  %v4733 = vld [vmem:[#allocation2 + $0x1d1] sm:$0xff]
  %v4734 = vld [vmem:[#allocation2 + $0x1e1] sm:$0xff]
  %v4735 = vld [vmem:[#allocation2 + $0x1e9] sm:$0xff]
  %v4736 = vld [vmem:[#allocation2 + $0x1f9] sm:$0xff]
  %v4737 = vld [vmem:[#allocation2 + $0x201] sm:$0xff]
  %v4738 = vld [vmem:[#allocation2 + $0x211] sm:$0xff]
  %v4739 = vld [vmem:[#allocation2 + $0x219] sm:$0xff]
  %v4740 = vld [vmem:[#allocation2 + $0x229] sm:$0xff]
  %v4741 = vld [vmem:[#allocation2 + $0x231] sm:$0xff]
  %v4742 = vld [vmem:[#allocation2 + $0x241] sm:$0xff]
  %v4743 = vld [vmem:[#allocation2 + $0x249] sm:$0xff]
  %v4744 = vld [vmem:[#allocation2 + $0x259] sm:$0xff]
  %v4745 = vld [vmem:[#allocation2 + $0x261] sm:$0xff]
  %v4746 = vld [vmem:[#allocation2 + $0x271] sm:$0xff]
  %v4747 = vld [vmem:[#allocation2 + $0x279] sm:$0xff]
  %v4748 = vld [vmem:[#allocation2 + $0x289] sm:$0xff]
  %v4749 = vld [vmem:[#allocation2 + $0x291] sm:$0xff]
  %v4750 = vld [vmem:[#allocation2 + $0x2a1] sm:$0xff]
  %v4751 = vld [vmem:[#allocation2 + $0x2a9] sm:$0xff]
  %v4752 = vld [vmem:[#allocation2 + $0x2b9] sm:$0xff]
  %v4753 = vld [vmem:[#allocation2 + $0x2c1] sm:$0xff]
  %v4754 = vld [vmem:[#allocation2 + $0x2d1] sm:$0xff]
  %v4755 = vld [vmem:[#allocation2 + $0x2d9] sm:$0xff]
  %v4756 = vld [vmem:[#allocation2 + $0x2e9] sm:$0xff]
  %v4757 = vld [vmem:[#allocation2 + $0x2f1] sm:$0xff]
  %v4758 = vld [vmem:[#allocation2 + $0x301] sm:$0xff]
  %v4759 = vld [vmem:[#allocation2 + $0x309] sm:$0xff]
  %v4760 = vld [vmem:[#allocation2 + $0x319] sm:$0xff]
  %v4761 = vld [vmem:[#allocation2 + $0x321] sm:$0xff]
  %4826 = vrot.lane.b32.xlu0 %v4698, 16
  %v4827 = vpop.permute.xlu0 %4826
  %4828 = vrot.lane.b32.xlu0 %v4699, 16
  %v4829 = vpop.permute.xlu0 %4828
  %4830 = vrot.lane.b32.xlu0 %v4700, 16
  %v4831 = vpop.permute.xlu0 %4830
  %4832 = vrot.lane.b32.xlu0 %v4701, 16
  %v4833 = vpop.permute.xlu0 %4832
  %4834 = vrot.lane.b32.xlu0 %v4702, 16
  %v4835 = vpop.permute.xlu0 %4834
  %4836 = vrot.lane.b32.xlu0 %v4703, 16
  %v4837 = vpop.permute.xlu0 %4836
  %4838 = vrot.lane.b32.xlu0 %v4704, 16
  %v4839 = vpop.permute.xlu0 %4838
  %4840 = vrot.lane.b32.xlu0 %v4705, 16
  %v4841 = vpop.permute.xlu0 %4840
  %4842 = vrot.lane.b32.xlu0 %v4706, 16
  %v4843 = vpop.permute.xlu0 %4842
  %4844 = vrot.lane.b32.xlu0 %v4707, 16
  %v4845 = vpop.permute.xlu0 %4844
  %4846 = vrot.lane.b32.xlu0 %v4708, 16
  %v4847 = vpop.permute.xlu0 %4846
  %4848 = vrot.lane.b32.xlu0 %v4709, 16
  %v4849 = vpop.permute.xlu0 %4848
  %4850 = vrot.lane.b32.xlu0 %v4710, 16
  %v4851 = vpop.permute.xlu0 %4850
  %4852 = vrot.lane.b32.xlu0 %v4711, 16
  %v4853 = vpop.permute.xlu0 %4852
  %4854 = vrot.lane.b32.xlu0 %v4712, 16
  %v4855 = vpop.permute.xlu0 %4854
  %4856 = vrot.lane.b32.xlu0 %v4713, 16
  %v4857 = vpop.permute.xlu0 %4856
  %4858 = vrot.lane.b32.xlu0 %v4714, 16
  %v4859 = vpop.permute.xlu0 %4858
  %4860 = vrot.lane.b32.xlu0 %v4715, 16
  %v4861 = vpop.permute.xlu0 %4860
  %4862 = vrot.lane.b32.xlu0 %v4716, 16
  %v4863 = vpop.permute.xlu0 %4862
  %4864 = vrot.lane.b32.xlu0 %v4717, 16
  %v4865 = vpop.permute.xlu0 %4864
  %4866 = vrot.lane.b32.xlu0 %v4718, 16
  %v4867 = vpop.permute.xlu0 %4866
  %4868 = vrot.lane.b32.xlu0 %v4719, 16
  %v4869 = vpop.permute.xlu0 %4868
  %4870 = vrot.lane.b32.xlu0 %v4720, 16
  %v4871 = vpop.permute.xlu0 %4870
  %4872 = vrot.lane.b32.xlu0 %v4721, 16
  %v4873 = vpop.permute.xlu0 %4872
  %4874 = vrot.lane.b32.xlu0 %v4722, 16
  %v4875 = vpop.permute.xlu0 %4874
  %4876 = vrot.lane.b32.xlu0 %v4723, 16
  %v4877 = vpop.permute.xlu0 %4876
  %4878 = vrot.lane.b32.xlu0 %v4724, 16
  %v4879 = vpop.permute.xlu0 %4878
  %4880 = vrot.lane.b32.xlu0 %v4725, 16
  %v4881 = vpop.permute.xlu0 %4880
  %4882 = vrot.lane.b32.xlu0 %v4726, 16
  %v4883 = vpop.permute.xlu0 %4882
  %4884 = vrot.lane.b32.xlu0 %v4727, 16
  %v4885 = vpop.permute.xlu0 %4884
  %4886 = vrot.lane.b32.xlu0 %v4728, 16
  %v4887 = vpop.permute.xlu0 %4886
  %4888 = vrot.lane.b32.xlu0 %v4729, 16
  %v4889 = vpop.permute.xlu0 %4888
  %4890 = vrot.lane.b32.xlu0 %v4730, 16
  %v4891 = vpop.permute.xlu0 %4890
  %4892 = vrot.lane.b32.xlu0 %v4731, 16
  %v4893 = vpop.permute.xlu0 %4892
  %4894 = vrot.lane.b32.xlu0 %v4732, 16
  %v4895 = vpop.permute.xlu0 %4894
  %4896 = vrot.lane.b32.xlu0 %v4733, 16
  %v4897 = vpop.permute.xlu0 %4896
  %4898 = vrot.lane.b32.xlu0 %v4734, 16
  %v4899 = vpop.permute.xlu0 %4898
  %4900 = vrot.lane.b32.xlu0 %v4735, 16
  %v4901 = vpop.permute.xlu0 %4900
  %4902 = vrot.lane.b32.xlu0 %v4736, 16
  %v4903 = vpop.permute.xlu0 %4902
  %4904 = vrot.lane.b32.xlu0 %v4737, 16
  %v4905 = vpop.permute.xlu0 %4904
  %4906 = vrot.lane.b32.xlu0 %v4738, 16
  %v4907 = vpop.permute.xlu0 %4906
  %4908 = vrot.lane.b32.xlu0 %v4739, 16
  %v4909 = vpop.permute.xlu0 %4908
  %4910 = vrot.lane.b32.xlu0 %v4740, 16
  %v4911 = vpop.permute.xlu0 %4910
  %4912 = vrot.lane.b32.xlu0 %v4741, 16
  %v4913 = vpop.permute.xlu0 %4912
  %4914 = vrot.lane.b32.xlu0 %v4742, 16
  %v4915 = vpop.permute.xlu0 %4914
  %4916 = vrot.lane.b32.xlu0 %v4743, 16
  %v4917 = vpop.permute.xlu0 %4916
  %4918 = vrot.lane.b32.xlu0 %v4744, 16
  %v4919 = vpop.permute.xlu0 %4918
  %4920 = vrot.lane.b32.xlu0 %v4745, 16
  %v4921 = vpop.permute.xlu0 %4920
  %4922 = vrot.lane.b32.xlu0 %v4746, 16
  %v4923 = vpop.permute.xlu0 %4922
  %4924 = vrot.lane.b32.xlu0 %v4747, 16
  %v4925 = vpop.permute.xlu0 %4924
  %4926 = vrot.lane.b32.xlu0 %v4748, 16
  %v4927 = vpop.permute.xlu0 %4926
  %4928 = vrot.lane.b32.xlu0 %v4749, 16
  %v4929 = vpop.permute.xlu0 %4928
  %4930 = vrot.lane.b32.xlu0 %v4750, 16
  %v4931 = vpop.permute.xlu0 %4930
  %4932 = vrot.lane.b32.xlu0 %v4751, 16
  %v4933 = vpop.permute.xlu0 %4932
  %4934 = vrot.lane.b32.xlu0 %v4752, 16
  %v4935 = vpop.permute.xlu0 %4934
  %4936 = vrot.lane.b32.xlu0 %v4753, 16
  %v4937 = vpop.permute.xlu0 %4936
  %4938 = vrot.lane.b32.xlu0 %v4754, 16
  %v4939 = vpop.permute.xlu0 %4938
  %4940 = vrot.lane.b32.xlu0 %v4755, 16
  %v4941 = vpop.permute.xlu0 %4940
  %4942 = vrot.lane.b32.xlu0 %v4756, 16
  %v4943 = vpop.permute.xlu0 %4942
  %4944 = vrot.lane.b32.xlu0 %v4757, 16
  %v4945 = vpop.permute.xlu0 %4944
  %4946 = vrot.lane.b32.xlu0 %v4758, 16
  %v4947 = vpop.permute.xlu0 %4946
  %4948 = vrot.lane.b32.xlu0 %v4759, 16
  %v4949 = vpop.permute.xlu0 %4948
  %4950 = vrot.lane.b32.xlu0 %v4760, 16
  %v4951 = vpop.permute.xlu0 %4950
  %4952 = vrot.lane.b32.xlu0 %v4761, 16
  %v4953 = vpop.permute.xlu0 %4952
  %5018 = vst.msk [vmem:[#allocation3] sm:$0xff] %vm1236, %v4827
  %5019 = vst.msk [vmem:[#allocation3 + $0x10] sm:$0xff] %vm1236, %v4829
  %5020 = vst.msk [vmem:[#allocation3 + $0x20] sm:$0xff] %vm1236, %v4831
  %5021 = vst.msk [vmem:[#allocation3 + $0x30] sm:$0xff] %vm1236, %v4833
  %5022 = vst.msk [vmem:[#allocation3 + $0x40] sm:$0xff] %vm1236, %v4835
  %5023 = vst.msk [vmem:[#allocation3 + $0x50] sm:$0xff] %vm1236, %v4837
  %5024 = vst.msk [vmem:[#allocation3 + $0x60] sm:$0xff] %vm1236, %v4839
  %5025 = vst.msk [vmem:[#allocation3 + $0x70] sm:$0xff] %vm1236, %v4841
  %5026 = vst.msk [vmem:[#allocation3 + $0x80] sm:$0xff] %vm1236, %v4843
  %5027 = vst.msk [vmem:[#allocation3 + $0x90] sm:$0xff] %vm1236, %v4845
  %5028 = vst.msk [vmem:[#allocation3 + $0xa0] sm:$0xff] %vm1236, %v4847
  %5029 = vst.msk [vmem:[#allocation3 + $0xb0] sm:$0xff] %vm1236, %v4849
  %5030 = vst.msk [vmem:[#allocation3 + $0xc0] sm:$0xff] %vm1236, %v4851
  %5031 = vst.msk [vmem:[#allocation3 + $0xd0] sm:$0xff] %vm1236, %v4853
  %5032 = vst.msk [vmem:[#allocation3 + $0xe0] sm:$0xff] %vm1236, %v4855
  %5033 = vst.msk [vmem:[#allocation3 + $0xf0] sm:$0xff] %vm1236, %v4857
  %5034 = vst.msk [vmem:[#allocation3 + $0x100] sm:$0xff] %vm1236, %v4859
  %5035 = vst.msk [vmem:[#allocation3 + $0x110] sm:$0xff] %vm1236, %v4861
  %5036 = vst.msk [vmem:[#allocation3 + $0x120] sm:$0xff] %vm1236, %v4863
  %5037 = vst.msk [vmem:[#allocation3 + $0x130] sm:$0xff] %vm1236, %v4865
  %5038 = vst.msk [vmem:[#allocation3 + $0x140] sm:$0xff] %vm1236, %v4867
  %5039 = vst.msk [vmem:[#allocation3 + $0x150] sm:$0xff] %vm1236, %v4869
  %5040 = vst.msk [vmem:[#allocation3 + $0x160] sm:$0xff] %vm1236, %v4871
  %5041 = vst.msk [vmem:[#allocation3 + $0x170] sm:$0xff] %vm1236, %v4873
  %5042 = vst.msk [vmem:[#allocation3 + $0x180] sm:$0xff] %vm1236, %v4875
  %5043 = vst.msk [vmem:[#allocation3 + $0x190] sm:$0xff] %vm1236, %v4877
  %5044 = vst.msk [vmem:[#allocation3 + $0x1a0] sm:$0xff] %vm1236, %v4879
  %5045 = vst.msk [vmem:[#allocation3 + $0x1b0] sm:$0xff] %vm1236, %v4881
  %5046 = vst.msk [vmem:[#allocation3 + $0x1c0] sm:$0xff] %vm1236, %v4883
  %5047 = vst.msk [vmem:[#allocation3 + $0x1d0] sm:$0xff] %vm1236, %v4885
  %5048 = vst.msk [vmem:[#allocation3 + $0x1e0] sm:$0xff] %vm1236, %v4887
  %5049 = vst.msk [vmem:[#allocation3 + $0x1f0] sm:$0xff] %vm1236, %v4889
  %5050 = vst.msk [vmem:[#allocation3 + $0x200] sm:$0xff] %vm1236, %v4891
  %5051 = vst.msk [vmem:[#allocation3 + $0x210] sm:$0xff] %vm1236, %v4893
  %5052 = vst.msk [vmem:[#allocation3 + $0x220] sm:$0xff] %vm1236, %v4895
  %5053 = vst.msk [vmem:[#allocation3 + $0x230] sm:$0xff] %vm1236, %v4897
  %5054 = vst.msk [vmem:[#allocation3 + $0x240] sm:$0xff] %vm1236, %v4899
  %5055 = vst.msk [vmem:[#allocation3 + $0x250] sm:$0xff] %vm1236, %v4901
  %5056 = vst.msk [vmem:[#allocation3 + $0x260] sm:$0xff] %vm1236, %v4903
  %5057 = vst.msk [vmem:[#allocation3 + $0x270] sm:$0xff] %vm1236, %v4905
  %5058 = vst.msk [vmem:[#allocation3 + $0x280] sm:$0xff] %vm1236, %v4907
  %5059 = vst.msk [vmem:[#allocation3 + $0x290] sm:$0xff] %vm1236, %v4909
  %5060 = vst.msk [vmem:[#allocation3 + $0x2a0] sm:$0xff] %vm1236, %v4911
  %5061 = vst.msk [vmem:[#allocation3 + $0x2b0] sm:$0xff] %vm1236, %v4913
  %5062 = vst.msk [vmem:[#allocation3 + $0x2c0] sm:$0xff] %vm1236, %v4915
  %5063 = vst.msk [vmem:[#allocation3 + $0x2d0] sm:$0xff] %vm1236, %v4917
  %5064 = vst.msk [vmem:[#allocation3 + $0x2e0] sm:$0xff] %vm1236, %v4919
  %5065 = vst.msk [vmem:[#allocation3 + $0x2f0] sm:$0xff] %vm1236, %v4921
  %5066 = vst.msk [vmem:[#allocation3 + $0x300] sm:$0xff] %vm1236, %v4923
  %5067 = vst.msk [vmem:[#allocation3 + $0x310] sm:$0xff] %vm1236, %v4925
  %5068 = vst.msk [vmem:[#allocation3 + $0x320] sm:$0xff] %vm1236, %v4927
  %5069 = vst.msk [vmem:[#allocation3 + $0x330] sm:$0xff] %vm1236, %v4929
  %5070 = vst.msk [vmem:[#allocation3 + $0x340] sm:$0xff] %vm1236, %v4931
  %5071 = vst.msk [vmem:[#allocation3 + $0x350] sm:$0xff] %vm1236, %v4933
  %5072 = vst.msk [vmem:[#allocation3 + $0x360] sm:$0xff] %vm1236, %v4935
  %5073 = vst.msk [vmem:[#allocation3 + $0x370] sm:$0xff] %vm1236, %v4937
  %5074 = vst.msk [vmem:[#allocation3 + $0x380] sm:$0xff] %vm1236, %v4939
  %5075 = vst.msk [vmem:[#allocation3 + $0x390] sm:$0xff] %vm1236, %v4941
  %5076 = vst.msk [vmem:[#allocation3 + $0x3a0] sm:$0xff] %vm1236, %v4943
  %5077 = vst.msk [vmem:[#allocation3 + $0x3b0] sm:$0xff] %vm1236, %v4945
  %5078 = vst.msk [vmem:[#allocation3 + $0x3c0] sm:$0xff] %vm1236, %v4947
  %5079 = vst.msk [vmem:[#allocation3 + $0x3d0] sm:$0xff] %vm1236, %v4949
  %5080 = vst.msk [vmem:[#allocation3 + $0x3e0] sm:$0xff] %vm1236, %v4951
  %5081 = vst.msk [vmem:[#allocation3 + $0x3f0] sm:$0xff] %vm1236, %v4953
  %v5082 = vld [vmem:[#allocation2 + $0x2] sm:$0xff]
  %v5083 = vld [vmem:[#allocation2 + $0xa] sm:$0xff]
  %v5084 = vld [vmem:[#allocation2 + $0x1a] sm:$0xff]
  %v5085 = vld [vmem:[#allocation2 + $0x22] sm:$0xff]
  %v5086 = vld [vmem:[#allocation2 + $0x32] sm:$0xff]
  %v5087 = vld [vmem:[#allocation2 + $0x3a] sm:$0xff]
  %v5088 = vld [vmem:[#allocation2 + $0x4a] sm:$0xff]
  %v5089 = vld [vmem:[#allocation2 + $0x52] sm:$0xff]
  %v5090 = vld [vmem:[#allocation2 + $0x62] sm:$0xff]
  %v5091 = vld [vmem:[#allocation2 + $0x6a] sm:$0xff]
  %v5092 = vld [vmem:[#allocation2 + $0x7a] sm:$0xff]
  %v5093 = vld [vmem:[#allocation2 + $0x82] sm:$0xff]
  %v5094 = vld [vmem:[#allocation2 + $0x92] sm:$0xff]
  %v5095 = vld [vmem:[#allocation2 + $0x9a] sm:$0xff]
  %v5096 = vld [vmem:[#allocation2 + $0xaa] sm:$0xff]
  %v5097 = vld [vmem:[#allocation2 + $0xb2] sm:$0xff]
  %v5098 = vld [vmem:[#allocation2 + $0xc2] sm:$0xff]
  %v5099 = vld [vmem:[#allocation2 + $0xca] sm:$0xff]
  %v5100 = vld [vmem:[#allocation2 + $0xda] sm:$0xff]
  %v5101 = vld [vmem:[#allocation2 + $0xe2] sm:$0xff]
  %v5102 = vld [vmem:[#allocation2 + $0xf2] sm:$0xff]
  %v5103 = vld [vmem:[#allocation2 + $0xfa] sm:$0xff]
  %v5104 = vld [vmem:[#allocation2 + $0x10a] sm:$0xff]
  %v5105 = vld [vmem:[#allocation2 + $0x112] sm:$0xff]
  %v5106 = vld [vmem:[#allocation2 + $0x122] sm:$0xff]
  %v5107 = vld [vmem:[#allocation2 + $0x12a] sm:$0xff]
  %v5108 = vld [vmem:[#allocation2 + $0x13a] sm:$0xff]
  %v5109 = vld [vmem:[#allocation2 + $0x142] sm:$0xff]
  %v5110 = vld [vmem:[#allocation2 + $0x152] sm:$0xff]
  %v5111 = vld [vmem:[#allocation2 + $0x15a] sm:$0xff]
  %v5112 = vld [vmem:[#allocation2 + $0x16a] sm:$0xff]
  %v5113 = vld [vmem:[#allocation2 + $0x172] sm:$0xff]
  %v5114 = vld [vmem:[#allocation2 + $0x1b2] sm:$0xff]
  %v5115 = vld [vmem:[#allocation2 + $0x1ba] sm:$0xff]
  %v5116 = vld [vmem:[#allocation2 + $0x1ca] sm:$0xff]
  %v5117 = vld [vmem:[#allocation2 + $0x1d2] sm:$0xff]
  %v5118 = vld [vmem:[#allocation2 + $0x1e2] sm:$0xff]
  %v5119 = vld [vmem:[#allocation2 + $0x1ea] sm:$0xff]
  %v5120 = vld [vmem:[#allocation2 + $0x1fa] sm:$0xff]
  %v5121 = vld [vmem:[#allocation2 + $0x202] sm:$0xff]
  %v5122 = vld [vmem:[#allocation2 + $0x212] sm:$0xff]
  %v5123 = vld [vmem:[#allocation2 + $0x21a] sm:$0xff]
  %v5124 = vld [vmem:[#allocation2 + $0x22a] sm:$0xff]
  %v5125 = vld [vmem:[#allocation2 + $0x232] sm:$0xff]
  %v5126 = vld [vmem:[#allocation2 + $0x242] sm:$0xff]
  %v5127 = vld [vmem:[#allocation2 + $0x24a] sm:$0xff]
  %v5128 = vld [vmem:[#allocation2 + $0x25a] sm:$0xff]
  %v5129 = vld [vmem:[#allocation2 + $0x262] sm:$0xff]
  %v5130 = vld [vmem:[#allocation2 + $0x272] sm:$0xff]
  %v5131 = vld [vmem:[#allocation2 + $0x27a] sm:$0xff]
  %v5132 = vld [vmem:[#allocation2 + $0x28a] sm:$0xff]
  %v5133 = vld [vmem:[#allocation2 + $0x292] sm:$0xff]
  %v5134 = vld [vmem:[#allocation2 + $0x2a2] sm:$0xff]
  %v5135 = vld [vmem:[#allocation2 + $0x2aa] sm:$0xff]
  %v5136 = vld [vmem:[#allocation2 + $0x2ba] sm:$0xff]
  %v5137 = vld [vmem:[#allocation2 + $0x2c2] sm:$0xff]
  %v5138 = vld [vmem:[#allocation2 + $0x2d2] sm:$0xff]
  %v5139 = vld [vmem:[#allocation2 + $0x2da] sm:$0xff]
  %v5140 = vld [vmem:[#allocation2 + $0x2ea] sm:$0xff]
  %v5141 = vld [vmem:[#allocation2 + $0x2f2] sm:$0xff]
  %v5142 = vld [vmem:[#allocation2 + $0x302] sm:$0xff]
  %v5143 = vld [vmem:[#allocation2 + $0x30a] sm:$0xff]
  %v5144 = vld [vmem:[#allocation2 + $0x31a] sm:$0xff]
  %v5145 = vld [vmem:[#allocation2 + $0x322] sm:$0xff]
  %5210 = vrot.lane.b32.xlu0 %v5082, 32
  %v5211 = vpop.permute.xlu0 %5210
  %5212 = vrot.lane.b32.xlu0 %v5083, 32
  %v5213 = vpop.permute.xlu0 %5212
  %5214 = vrot.lane.b32.xlu0 %v5084, 32
  %v5215 = vpop.permute.xlu0 %5214
  %5216 = vrot.lane.b32.xlu0 %v5085, 32
  %v5217 = vpop.permute.xlu0 %5216
  %5218 = vrot.lane.b32.xlu0 %v5086, 32
  %v5219 = vpop.permute.xlu0 %5218
  %5220 = vrot.lane.b32.xlu0 %v5087, 32
  %v5221 = vpop.permute.xlu0 %5220
  %5222 = vrot.lane.b32.xlu0 %v5088, 32
  %v5223 = vpop.permute.xlu0 %5222
  %5224 = vrot.lane.b32.xlu0 %v5089, 32
  %v5225 = vpop.permute.xlu0 %5224
  %5226 = vrot.lane.b32.xlu0 %v5090, 32
  %v5227 = vpop.permute.xlu0 %5226
  %5228 = vrot.lane.b32.xlu0 %v5091, 32
  %v5229 = vpop.permute.xlu0 %5228
  %5230 = vrot.lane.b32.xlu0 %v5092, 32
  %v5231 = vpop.permute.xlu0 %5230
  %5232 = vrot.lane.b32.xlu0 %v5093, 32
  %v5233 = vpop.permute.xlu0 %5232
  %5234 = vrot.lane.b32.xlu0 %v5094, 32
  %v5235 = vpop.permute.xlu0 %5234
  %5236 = vrot.lane.b32.xlu0 %v5095, 32
  %v5237 = vpop.permute.xlu0 %5236
  %5238 = vrot.lane.b32.xlu0 %v5096, 32
  %v5239 = vpop.permute.xlu0 %5238
  %5240 = vrot.lane.b32.xlu0 %v5097, 32
  %v5241 = vpop.permute.xlu0 %5240
  %5242 = vrot.lane.b32.xlu0 %v5098, 32
  %v5243 = vpop.permute.xlu0 %5242
  %5244 = vrot.lane.b32.xlu0 %v5099, 32
  %v5245 = vpop.permute.xlu0 %5244
  %5246 = vrot.lane.b32.xlu0 %v5100, 32
  %v5247 = vpop.permute.xlu0 %5246
  %5248 = vrot.lane.b32.xlu0 %v5101, 32
  %v5249 = vpop.permute.xlu0 %5248
  %5250 = vrot.lane.b32.xlu0 %v5102, 32
  %v5251 = vpop.permute.xlu0 %5250
  %5252 = vrot.lane.b32.xlu0 %v5103, 32
  %v5253 = vpop.permute.xlu0 %5252
  %5254 = vrot.lane.b32.xlu0 %v5104, 32
  %v5255 = vpop.permute.xlu0 %5254
  %5256 = vrot.lane.b32.xlu0 %v5105, 32
  %v5257 = vpop.permute.xlu0 %5256
  %5258 = vrot.lane.b32.xlu0 %v5106, 32
  %v5259 = vpop.permute.xlu0 %5258
  %5260 = vrot.lane.b32.xlu0 %v5107, 32
  %v5261 = vpop.permute.xlu0 %5260
  %5262 = vrot.lane.b32.xlu0 %v5108, 32
  %v5263 = vpop.permute.xlu0 %5262
  %5264 = vrot.lane.b32.xlu0 %v5109, 32
  %v5265 = vpop.permute.xlu0 %5264
  %5266 = vrot.lane.b32.xlu0 %v5110, 32
  %v5267 = vpop.permute.xlu0 %5266
  %5268 = vrot.lane.b32.xlu0 %v5111, 32
  %v5269 = vpop.permute.xlu0 %5268
  %5270 = vrot.lane.b32.xlu0 %v5112, 32
  %v5271 = vpop.permute.xlu0 %5270
  %5272 = vrot.lane.b32.xlu0 %v5113, 32
  %v5273 = vpop.permute.xlu0 %5272
  %5274 = vrot.lane.b32.xlu0 %v5114, 32
  %v5275 = vpop.permute.xlu0 %5274
  %5276 = vrot.lane.b32.xlu0 %v5115, 32
  %v5277 = vpop.permute.xlu0 %5276
  %5278 = vrot.lane.b32.xlu0 %v5116, 32
  %v5279 = vpop.permute.xlu0 %5278
  %5280 = vrot.lane.b32.xlu0 %v5117, 32
  %v5281 = vpop.permute.xlu0 %5280
  %5282 = vrot.lane.b32.xlu0 %v5118, 32
  %v5283 = vpop.permute.xlu0 %5282
  %5284 = vrot.lane.b32.xlu0 %v5119, 32
  %v5285 = vpop.permute.xlu0 %5284
  %5286 = vrot.lane.b32.xlu0 %v5120, 32
  %v5287 = vpop.permute.xlu0 %5286
  %5288 = vrot.lane.b32.xlu0 %v5121, 32
  %v5289 = vpop.permute.xlu0 %5288
  %5290 = vrot.lane.b32.xlu0 %v5122, 32
  %v5291 = vpop.permute.xlu0 %5290
  %5292 = vrot.lane.b32.xlu0 %v5123, 32
  %v5293 = vpop.permute.xlu0 %5292
  %5294 = vrot.lane.b32.xlu0 %v5124, 32
  %v5295 = vpop.permute.xlu0 %5294
  %5296 = vrot.lane.b32.xlu0 %v5125, 32
  %v5297 = vpop.permute.xlu0 %5296
  %5298 = vrot.lane.b32.xlu0 %v5126, 32
  %v5299 = vpop.permute.xlu0 %5298
  %5300 = vrot.lane.b32.xlu0 %v5127, 32
  %v5301 = vpop.permute.xlu0 %5300
  %5302 = vrot.lane.b32.xlu0 %v5128, 32
  %v5303 = vpop.permute.xlu0 %5302
  %5304 = vrot.lane.b32.xlu0 %v5129, 32
  %v5305 = vpop.permute.xlu0 %5304
  %5306 = vrot.lane.b32.xlu0 %v5130, 32
  %v5307 = vpop.permute.xlu0 %5306
  %5308 = vrot.lane.b32.xlu0 %v5131, 32
  %v5309 = vpop.permute.xlu0 %5308
  %5310 = vrot.lane.b32.xlu0 %v5132, 32
  %v5311 = vpop.permute.xlu0 %5310
  %5312 = vrot.lane.b32.xlu0 %v5133, 32
  %v5313 = vpop.permute.xlu0 %5312
  %5314 = vrot.lane.b32.xlu0 %v5134, 32
  %v5315 = vpop.permute.xlu0 %5314
  %5316 = vrot.lane.b32.xlu0 %v5135, 32
  %v5317 = vpop.permute.xlu0 %5316
  %5318 = vrot.lane.b32.xlu0 %v5136, 32
  %v5319 = vpop.permute.xlu0 %5318
  %5320 = vrot.lane.b32.xlu0 %v5137, 32
  %v5321 = vpop.permute.xlu0 %5320
  %5322 = vrot.lane.b32.xlu0 %v5138, 32
  %v5323 = vpop.permute.xlu0 %5322
  %5324 = vrot.lane.b32.xlu0 %v5139, 32
  %v5325 = vpop.permute.xlu0 %5324
  %5326 = vrot.lane.b32.xlu0 %v5140, 32
  %v5327 = vpop.permute.xlu0 %5326
  %5328 = vrot.lane.b32.xlu0 %v5141, 32
  %v5329 = vpop.permute.xlu0 %5328
  %5330 = vrot.lane.b32.xlu0 %v5142, 32
  %v5331 = vpop.permute.xlu0 %5330
  %5332 = vrot.lane.b32.xlu0 %v5143, 32
  %v5333 = vpop.permute.xlu0 %5332
  %5334 = vrot.lane.b32.xlu0 %v5144, 32
  %v5335 = vpop.permute.xlu0 %5334
  %5336 = vrot.lane.b32.xlu0 %v5145, 32
  %v5337 = vpop.permute.xlu0 %5336
  %5402 = vst.msk [vmem:[#allocation3] sm:$0xff] %vm1621, %v5211
  %5403 = vst.msk [vmem:[#allocation3 + $0x10] sm:$0xff] %vm1621, %v5213
  %5404 = vst.msk [vmem:[#allocation3 + $0x20] sm:$0xff] %vm1621, %v5215
  %5405 = vst.msk [vmem:[#allocation3 + $0x30] sm:$0xff] %vm1621, %v5217
  %5406 = vst.msk [vmem:[#allocation3 + $0x40] sm:$0xff] %vm1621, %v5219
  %5407 = vst.msk [vmem:[#allocation3 + $0x50] sm:$0xff] %vm1621, %v5221
  %5408 = vst.msk [vmem:[#allocation3 + $0x60] sm:$0xff] %vm1621, %v5223
  %5409 = vst.msk [vmem:[#allocation3 + $0x70] sm:$0xff] %vm1621, %v5225
  %5410 = vst.msk [vmem:[#allocation3 + $0x80] sm:$0xff] %vm1621, %v5227
  %5411 = vst.msk [vmem:[#allocation3 + $0x90] sm:$0xff] %vm1621, %v5229
  %5412 = vst.msk [vmem:[#allocation3 + $0xa0] sm:$0xff] %vm1621, %v5231
  %5413 = vst.msk [vmem:[#allocation3 + $0xb0] sm:$0xff] %vm1621, %v5233
  %5414 = vst.msk [vmem:[#allocation3 + $0xc0] sm:$0xff] %vm1621, %v5235
  %5415 = vst.msk [vmem:[#allocation3 + $0xd0] sm:$0xff] %vm1621, %v5237
  %5416 = vst.msk [vmem:[#allocation3 + $0xe0] sm:$0xff] %vm1621, %v5239
  %5417 = vst.msk [vmem:[#allocation3 + $0xf0] sm:$0xff] %vm1621, %v5241
  %5418 = vst.msk [vmem:[#allocation3 + $0x100] sm:$0xff] %vm1621, %v5243
  %5419 = vst.msk [vmem:[#allocation3 + $0x110] sm:$0xff] %vm1621, %v5245
  %5420 = vst.msk [vmem:[#allocation3 + $0x120] sm:$0xff] %vm1621, %v5247
  %5421 = vst.msk [vmem:[#allocation3 + $0x130] sm:$0xff] %vm1621, %v5249
  %5422 = vst.msk [vmem:[#allocation3 + $0x140] sm:$0xff] %vm1621, %v5251
  %5423 = vst.msk [vmem:[#allocation3 + $0x150] sm:$0xff] %vm1621, %v5253
  %5424 = vst.msk [vmem:[#allocation3 + $0x160] sm:$0xff] %vm1621, %v5255
  %5425 = vst.msk [vmem:[#allocation3 + $0x170] sm:$0xff] %vm1621, %v5257
  %5426 = vst.msk [vmem:[#allocation3 + $0x180] sm:$0xff] %vm1621, %v5259
  %5427 = vst.msk [vmem:[#allocation3 + $0x190] sm:$0xff] %vm1621, %v5261
  %5428 = vst.msk [vmem:[#allocation3 + $0x1a0] sm:$0xff] %vm1621, %v5263
  %5429 = vst.msk [vmem:[#allocation3 + $0x1b0] sm:$0xff] %vm1621, %v5265
  %5430 = vst.msk [vmem:[#allocation3 + $0x1c0] sm:$0xff] %vm1621, %v5267
  %5431 = vst.msk [vmem:[#allocation3 + $0x1d0] sm:$0xff] %vm1621, %v5269
  %5432 = vst.msk [vmem:[#allocation3 + $0x1e0] sm:$0xff] %vm1621, %v5271
  %5433 = vst.msk [vmem:[#allocation3 + $0x1f0] sm:$0xff] %vm1621, %v5273
  %5434 = vst.msk [vmem:[#allocation3 + $0x200] sm:$0xff] %vm1621, %v5275
  %5435 = vst.msk [vmem:[#allocation3 + $0x210] sm:$0xff] %vm1621, %v5277
  %5436 = vst.msk [vmem:[#allocation3 + $0x220] sm:$0xff] %vm1621, %v5279
  %5437 = vst.msk [vmem:[#allocation3 + $0x230] sm:$0xff] %vm1621, %v5281
  %5438 = vst.msk [vmem:[#allocation3 + $0x240] sm:$0xff] %vm1621, %v5283
  %5439 = vst.msk [vmem:[#allocation3 + $0x250] sm:$0xff] %vm1621, %v5285
  %5440 = vst.msk [vmem:[#allocation3 + $0x260] sm:$0xff] %vm1621, %v5287
  %5441 = vst.msk [vmem:[#allocation3 + $0x270] sm:$0xff] %vm1621, %v5289
  %5442 = vst.msk [vmem:[#allocation3 + $0x280] sm:$0xff] %vm1621, %v5291
  %5443 = vst.msk [vmem:[#allocation3 + $0x290] sm:$0xff] %vm1621, %v5293
  %5444 = vst.msk [vmem:[#allocation3 + $0x2a0] sm:$0xff] %vm1621, %v5295
  %5445 = vst.msk [vmem:[#allocation3 + $0x2b0] sm:$0xff] %vm1621, %v5297
  %5446 = vst.msk [vmem:[#allocation3 + $0x2c0] sm:$0xff] %vm1621, %v5299
  %5447 = vst.msk [vmem:[#allocation3 + $0x2d0] sm:$0xff] %vm1621, %v5301
  %5448 = vst.msk [vmem:[#allocation3 + $0x2e0] sm:$0xff] %vm1621, %v5303
  %5449 = vst.msk [vmem:[#allocation3 + $0x2f0] sm:$0xff] %vm1621, %v5305
  %5450 = vst.msk [vmem:[#allocation3 + $0x300] sm:$0xff] %vm1621, %v5307
  %5451 = vst.msk [vmem:[#allocation3 + $0x310] sm:$0xff] %vm1621, %v5309
  %5452 = vst.msk [vmem:[#allocation3 + $0x320] sm:$0xff] %vm1621, %v5311
  %5453 = vst.msk [vmem:[#allocation3 + $0x330] sm:$0xff] %vm1621, %v5313
  %5454 = vst.msk [vmem:[#allocation3 + $0x340] sm:$0xff] %vm1621, %v5315
  %5455 = vst.msk [vmem:[#allocation3 + $0x350] sm:$0xff] %vm1621, %v5317
  %5456 = vst.msk [vmem:[#allocation3 + $0x360] sm:$0xff] %vm1621, %v5319
  %5457 = vst.msk [vmem:[#allocation3 + $0x370] sm:$0xff] %vm1621, %v5321
  %5458 = vst.msk [vmem:[#allocation3 + $0x380] sm:$0xff] %vm1621, %v5323
  %5459 = vst.msk [vmem:[#allocation3 + $0x390] sm:$0xff] %vm1621, %v5325
  %5460 = vst.msk [vmem:[#allocation3 + $0x3a0] sm:$0xff] %vm1621, %v5327
  %5461 = vst.msk [vmem:[#allocation3 + $0x3b0] sm:$0xff] %vm1621, %v5329
  %5462 = vst.msk [vmem:[#allocation3 + $0x3c0] sm:$0xff] %vm1621, %v5331
  %5463 = vst.msk [vmem:[#allocation3 + $0x3d0] sm:$0xff] %vm1621, %v5333
  %5464 = vst.msk [vmem:[#allocation3 + $0x3e0] sm:$0xff] %vm1621, %v5335
  %5465 = vst.msk [vmem:[#allocation3 + $0x3f0] sm:$0xff] %vm1621, %v5337
  %v5466 = vld [vmem:[%s723] sm:$0xff]
  %v5467 = vld [vmem:[%s723 + $0x8] sm:$0xff]
  %v5468 = vld [vmem:[%s723 + $0x18] sm:$0xff]
  %v5469 = vld [vmem:[%s723 + $0x20] sm:$0xff]
  %v5470 = vld [vmem:[%s723 + $0x30] sm:$0xff]
  %v5471 = vld [vmem:[%s723 + $0x38] sm:$0xff]
  %v5472 = vld [vmem:[%s723 + $0x48] sm:$0xff]
  %v5473 = vld [vmem:[%s723 + $0x50] sm:$0xff]
  %v5474 = vld [vmem:[%s723 + $0x60] sm:$0xff]
  %v5475 = vld [vmem:[%s723 + $0x68] sm:$0xff]
  %v5476 = vld [vmem:[%s723 + $0x78] sm:$0xff]
  %v5477 = vld [vmem:[%s723 + $0x80] sm:$0xff]
  %v5478 = vld [vmem:[%s723 + $0x90] sm:$0xff]
  %v5479 = vld [vmem:[%s723 + $0x98] sm:$0xff]
  %v5480 = vld [vmem:[%s723 + $0xa8] sm:$0xff]
  %v5481 = vld [vmem:[%s723 + $0xb0] sm:$0xff]
  %v5482 = vld [vmem:[%s723 + $0xc0] sm:$0xff]
  %v5483 = vld [vmem:[%s723 + $0xc8] sm:$0xff]
  %v5484 = vld [vmem:[%s723 + $0xd8] sm:$0xff]
  %v5485 = vld [vmem:[%s723 + $0xe0] sm:$0xff]
  %v5486 = vld [vmem:[%s723 + $0xf0] sm:$0xff]
  %v5487 = vld [vmem:[%s723 + $0xf8] sm:$0xff]
  %v5488 = vld [vmem:[%s723 + $0x108] sm:$0xff]
  %v5489 = vld [vmem:[%s723 + $0x110] sm:$0xff]
  %v5490 = vld [vmem:[%s723 + $0x120] sm:$0xff]
  %v5491 = vld [vmem:[%s723 + $0x128] sm:$0xff]
  %v5492 = vld [vmem:[%s723 + $0x138] sm:$0xff]
  %v5493 = vld [vmem:[%s723 + $0x140] sm:$0xff]
  %v5494 = vld [vmem:[%s723 + $0x150] sm:$0xff]
  %v5495 = vld [vmem:[%s723 + $0x158] sm:$0xff]
  %v5496 = vld [vmem:[%s723 + $0x168] sm:$0xff]
  %v5497 = vld [vmem:[%s723 + $0x170] sm:$0xff]
  %v5498 = vld [vmem:[%s723 + $0x1b0] sm:$0xff]
  %v5499 = vld [vmem:[%s723 + $0x1b8] sm:$0xff]
  %v5500 = vld [vmem:[%s723 + $0x1c8] sm:$0xff]
  %v5501 = vld [vmem:[%s723 + $0x1d0] sm:$0xff]
  %v5502 = vld [vmem:[%s723 + $0x1e0] sm:$0xff]
  %v5503 = vld [vmem:[%s723 + $0x1e8] sm:$0xff]
  %v5504 = vld [vmem:[%s723 + $0x1f8] sm:$0xff]
  %v5505 = vld [vmem:[%s723 + $0x200] sm:$0xff]
  %v5506 = vld [vmem:[%s723 + $0x210] sm:$0xff]
  %v5507 = vld [vmem:[%s723 + $0x218] sm:$0xff]
  %v5508 = vld [vmem:[%s723 + $0x228] sm:$0xff]
  %v5509 = vld [vmem:[%s723 + $0x230] sm:$0xff]
  %v5510 = vld [vmem:[%s723 + $0x240] sm:$0xff]
  %v5511 = vld [vmem:[%s723 + $0x248] sm:$0xff]
  %v5512 = vld [vmem:[%s723 + $0x258] sm:$0xff]
  %v5513 = vld [vmem:[%s723 + $0x260] sm:$0xff]
  %v5514 = vld [vmem:[%s723 + $0x270] sm:$0xff]
  %v5515 = vld [vmem:[%s723 + $0x278] sm:$0xff]
  %v5516 = vld [vmem:[%s723 + $0x288] sm:$0xff]
  %v5517 = vld [vmem:[%s723 + $0x290] sm:$0xff]
  %v5518 = vld [vmem:[%s723 + $0x2a0] sm:$0xff]
  %v5519 = vld [vmem:[%s723 + $0x2a8] sm:$0xff]
  %v5520 = vld [vmem:[%s723 + $0x2b8] sm:$0xff]
  %v5521 = vld [vmem:[%s723 + $0x2c0] sm:$0xff]
  %v5522 = vld [vmem:[%s723 + $0x2d0] sm:$0xff]
  %v5523 = vld [vmem:[%s723 + $0x2d8] sm:$0xff]
  %v5524 = vld [vmem:[%s723 + $0x2e8] sm:$0xff]
  %v5525 = vld [vmem:[%s723 + $0x2f0] sm:$0xff]
  %v5526 = vld [vmem:[%s723 + $0x300] sm:$0xff]
  %v5527 = vld [vmem:[%s723 + $0x308] sm:$0xff]
  %v5528 = vld [vmem:[%s723 + $0x318] sm:$0xff]
  %v5529 = vld [vmem:[%s723 + $0x320] sm:$0xff]
  %5594 = vrot.lane.b32.xlu0 %v5466, 48
  %v5595 = vpop.permute.xlu0 %5594
  %5596 = vrot.lane.b32.xlu0 %v5467, 48
  %v5597 = vpop.permute.xlu0 %5596
  %5598 = vrot.lane.b32.xlu0 %v5468, 48
  %v5599 = vpop.permute.xlu0 %5598
  %5600 = vrot.lane.b32.xlu0 %v5469, 48
  %v5601 = vpop.permute.xlu0 %5600
  %5602 = vrot.lane.b32.xlu0 %v5470, 48
  %v5603 = vpop.permute.xlu0 %5602
  %5604 = vrot.lane.b32.xlu0 %v5471, 48
  %v5605 = vpop.permute.xlu0 %5604
  %5606 = vrot.lane.b32.xlu0 %v5472, 48
  %v5607 = vpop.permute.xlu0 %5606
  %5608 = vrot.lane.b32.xlu0 %v5473, 48
  %v5609 = vpop.permute.xlu0 %5608
  %5610 = vrot.lane.b32.xlu0 %v5474, 48
  %v5611 = vpop.permute.xlu0 %5610
  %5612 = vrot.lane.b32.xlu0 %v5475, 48
  %v5613 = vpop.permute.xlu0 %5612
  %5614 = vrot.lane.b32.xlu0 %v5476, 48
  %v5615 = vpop.permute.xlu0 %5614
  %5616 = vrot.lane.b32.xlu0 %v5477, 48
  %v5617 = vpop.permute.xlu0 %5616
  %5618 = vrot.lane.b32.xlu0 %v5478, 48
  %v5619 = vpop.permute.xlu0 %5618
  %5620 = vrot.lane.b32.xlu0 %v5479, 48
  %v5621 = vpop.permute.xlu0 %5620
  %5622 = vrot.lane.b32.xlu0 %v5480, 48
  %v5623 = vpop.permute.xlu0 %5622
  %5624 = vrot.lane.b32.xlu0 %v5481, 48
  %v5625 = vpop.permute.xlu0 %5624
  %5626 = vrot.lane.b32.xlu0 %v5482, 48
  %v5627 = vpop.permute.xlu0 %5626
  %5628 = vrot.lane.b32.xlu0 %v5483, 48
  %v5629 = vpop.permute.xlu0 %5628
  %5630 = vrot.lane.b32.xlu0 %v5484, 48
  %v5631 = vpop.permute.xlu0 %5630
  %5632 = vrot.lane.b32.xlu0 %v5485, 48
  %v5633 = vpop.permute.xlu0 %5632
  %5634 = vrot.lane.b32.xlu0 %v5486, 48
  %v5635 = vpop.permute.xlu0 %5634
  %5636 = vrot.lane.b32.xlu0 %v5487, 48
  %v5637 = vpop.permute.xlu0 %5636
  %5638 = vrot.lane.b32.xlu0 %v5488, 48
  %v5639 = vpop.permute.xlu0 %5638
  %5640 = vrot.lane.b32.xlu0 %v5489, 48
  %v5641 = vpop.permute.xlu0 %5640
  %5642 = vrot.lane.b32.xlu0 %v5490, 48
  %v5643 = vpop.permute.xlu0 %5642
  %5644 = vrot.lane.b32.xlu0 %v5491, 48
  %v5645 = vpop.permute.xlu0 %5644
  %5646 = vrot.lane.b32.xlu0 %v5492, 48
  %v5647 = vpop.permute.xlu0 %5646
  %5648 = vrot.lane.b32.xlu0 %v5493, 48
  %v5649 = vpop.permute.xlu0 %5648
  %5650 = vrot.lane.b32.xlu0 %v5494, 48
  %v5651 = vpop.permute.xlu0 %5650
  %5652 = vrot.lane.b32.xlu0 %v5495, 48
  %v5653 = vpop.permute.xlu0 %5652
  %5654 = vrot.lane.b32.xlu0 %v5496, 48
  %v5655 = vpop.permute.xlu0 %5654
  %5656 = vrot.lane.b32.xlu0 %v5497, 48
  %v5657 = vpop.permute.xlu0 %5656
  %5658 = vrot.lane.b32.xlu0 %v5498, 48
  %v5659 = vpop.permute.xlu0 %5658
  %5660 = vrot.lane.b32.xlu0 %v5499, 48
  %v5661 = vpop.permute.xlu0 %5660
  %5662 = vrot.lane.b32.xlu0 %v5500, 48
  %v5663 = vpop.permute.xlu0 %5662
  %5664 = vrot.lane.b32.xlu0 %v5501, 48
  %v5665 = vpop.permute.xlu0 %5664
  %5666 = vrot.lane.b32.xlu0 %v5502, 48
  %v5667 = vpop.permute.xlu0 %5666
  %5668 = vrot.lane.b32.xlu0 %v5503, 48
  %v5669 = vpop.permute.xlu0 %5668
  %5670 = vrot.lane.b32.xlu0 %v5504, 48
  %v5671 = vpop.permute.xlu0 %5670
  %5672 = vrot.lane.b32.xlu0 %v5505, 48
  %v5673 = vpop.permute.xlu0 %5672
  %5674 = vrot.lane.b32.xlu0 %v5506, 48
  %v5675 = vpop.permute.xlu0 %5674
  %5676 = vrot.lane.b32.xlu0 %v5507, 48
  %v5677 = vpop.permute.xlu0 %5676
  %5678 = vrot.lane.b32.xlu0 %v5508, 48
  %v5679 = vpop.permute.xlu0 %5678
  %5680 = vrot.lane.b32.xlu0 %v5509, 48
  %v5681 = vpop.permute.xlu0 %5680
  %5682 = vrot.lane.b32.xlu0 %v5510, 48
  %v5683 = vpop.permute.xlu0 %5682
  %5684 = vrot.lane.b32.xlu0 %v5511, 48
  %v5685 = vpop.permute.xlu0 %5684
  %5686 = vrot.lane.b32.xlu0 %v5512, 48
  %v5687 = vpop.permute.xlu0 %5686
  %5688 = vrot.lane.b32.xlu0 %v5513, 48
  %v5689 = vpop.permute.xlu0 %5688
  %5690 = vrot.lane.b32.xlu0 %v5514, 48
  %v5691 = vpop.permute.xlu0 %5690
  %5692 = vrot.lane.b32.xlu0 %v5515, 48
  %v5693 = vpop.permute.xlu0 %5692
  %5694 = vrot.lane.b32.xlu0 %v5516, 48
  %v5695 = vpop.permute.xlu0 %5694
  %5696 = vrot.lane.b32.xlu0 %v5517, 48
  %v5697 = vpop.permute.xlu0 %5696
  %5698 = vrot.lane.b32.xlu0 %v5518, 48
  %v5699 = vpop.permute.xlu0 %5698
  %5700 = vrot.lane.b32.xlu0 %v5519, 48
  %v5701 = vpop.permute.xlu0 %5700
  %5702 = vrot.lane.b32.xlu0 %v5520, 48
  %v5703 = vpop.permute.xlu0 %5702
  %5704 = vrot.lane.b32.xlu0 %v5521, 48
  %v5705 = vpop.permute.xlu0 %5704
  %5706 = vrot.lane.b32.xlu0 %v5522, 48
  %v5707 = vpop.permute.xlu0 %5706
  %5708 = vrot.lane.b32.xlu0 %v5523, 48
  %v5709 = vpop.permute.xlu0 %5708
  %5710 = vrot.lane.b32.xlu0 %v5524, 48
  %v5711 = vpop.permute.xlu0 %5710
  %5712 = vrot.lane.b32.xlu0 %v5525, 48
  %v5713 = vpop.permute.xlu0 %5712
  %5714 = vrot.lane.b32.xlu0 %v5526, 48
  %v5715 = vpop.permute.xlu0 %5714
  %5716 = vrot.lane.b32.xlu0 %v5527, 48
  %v5717 = vpop.permute.xlu0 %5716
  %5718 = vrot.lane.b32.xlu0 %v5528, 48
  %v5719 = vpop.permute.xlu0 %5718
  %5720 = vrot.lane.b32.xlu0 %v5529, 48
  %v5721 = vpop.permute.xlu0 %5720
  %5786 = vst.msk [vmem:[#allocation3] sm:$0xff] %vm2006, %v5595
  %5787 = vst.msk [vmem:[#allocation3 + $0x10] sm:$0xff] %vm2006, %v5597
  %5788 = vst.msk [vmem:[#allocation3 + $0x20] sm:$0xff] %vm2006, %v5599
  %5789 = vst.msk [vmem:[#allocation3 + $0x30] sm:$0xff] %vm2006, %v5601
  %5790 = vst.msk [vmem:[#allocation3 + $0x40] sm:$0xff] %vm2006, %v5603
  %5791 = vst.msk [vmem:[#allocation3 + $0x50] sm:$0xff] %vm2006, %v5605
  %5792 = vst.msk [vmem:[#allocation3 + $0x60] sm:$0xff] %vm2006, %v5607
  %5793 = vst.msk [vmem:[#allocation3 + $0x70] sm:$0xff] %vm2006, %v5609
  %5794 = vst.msk [vmem:[#allocation3 + $0x80] sm:$0xff] %vm2006, %v5611
  %5795 = vst.msk [vmem:[#allocation3 + $0x90] sm:$0xff] %vm2006, %v5613
  %5796 = vst.msk [vmem:[#allocation3 + $0xa0] sm:$0xff] %vm2006, %v5615
  %5797 = vst.msk [vmem:[#allocation3 + $0xb0] sm:$0xff] %vm2006, %v5617
  %5798 = vst.msk [vmem:[#allocation3 + $0xc0] sm:$0xff] %vm2006, %v5619
  %5799 = vst.msk [vmem:[#allocation3 + $0xd0] sm:$0xff] %vm2006, %v5621
  %5800 = vst.msk [vmem:[#allocation3 + $0xe0] sm:$0xff] %vm2006, %v5623
  %5801 = vst.msk [vmem:[#allocation3 + $0xf0] sm:$0xff] %vm2006, %v5625
  %5802 = vst.msk [vmem:[#allocation3 + $0x100] sm:$0xff] %vm2006, %v5627
  %5803 = vst.msk [vmem:[#allocation3 + $0x110] sm:$0xff] %vm2006, %v5629
  %5804 = vst.msk [vmem:[#allocation3 + $0x120] sm:$0xff] %vm2006, %v5631
  %5805 = vst.msk [vmem:[#allocation3 + $0x130] sm:$0xff] %vm2006, %v5633
  %5806 = vst.msk [vmem:[#allocation3 + $0x140] sm:$0xff] %vm2006, %v5635
  %5807 = vst.msk [vmem:[#allocation3 + $0x150] sm:$0xff] %vm2006, %v5637
  %5808 = vst.msk [vmem:[#allocation3 + $0x160] sm:$0xff] %vm2006, %v5639
  %5809 = vst.msk [vmem:[#allocation3 + $0x170] sm:$0xff] %vm2006, %v5641
  %5810 = vst.msk [vmem:[#allocation3 + $0x180] sm:$0xff] %vm2006, %v5643
  %5811 = vst.msk [vmem:[#allocation3 + $0x190] sm:$0xff] %vm2006, %v5645
  %5812 = vst.msk [vmem:[#allocation3 + $0x1a0] sm:$0xff] %vm2006, %v5647
  %5813 = vst.msk [vmem:[#allocation3 + $0x1b0] sm:$0xff] %vm2006, %v5649
  %5814 = vst.msk [vmem:[#allocation3 + $0x1c0] sm:$0xff] %vm2006, %v5651
  %5815 = vst.msk [vmem:[#allocation3 + $0x1d0] sm:$0xff] %vm2006, %v5653
  %5816 = vst.msk [vmem:[#allocation3 + $0x1e0] sm:$0xff] %vm2006, %v5655
  %5817 = vst.msk [vmem:[#allocation3 + $0x1f0] sm:$0xff] %vm2006, %v5657
  %5818 = vst.msk [vmem:[#allocation3 + $0x200] sm:$0xff] %vm2006, %v5659
  %5819 = vst.msk [vmem:[#allocation3 + $0x210] sm:$0xff] %vm2006, %v5661
  %5820 = vst.msk [vmem:[#allocation3 + $0x220] sm:$0xff] %vm2006, %v5663
  %5821 = vst.msk [vmem:[#allocation3 + $0x230] sm:$0xff] %vm2006, %v5665
  %5822 = vst.msk [vmem:[#allocation3 + $0x240] sm:$0xff] %vm2006, %v5667
  %5823 = vst.msk [vmem:[#allocation3 + $0x250] sm:$0xff] %vm2006, %v5669
  %5824 = vst.msk [vmem:[#allocation3 + $0x260] sm:$0xff] %vm2006, %v5671
  %5825 = vst.msk [vmem:[#allocation3 + $0x270] sm:$0xff] %vm2006, %v5673
  %5826 = vst.msk [vmem:[#allocation3 + $0x280] sm:$0xff] %vm2006, %v5675
  %5827 = vst.msk [vmem:[#allocation3 + $0x290] sm:$0xff] %vm2006, %v5677
  %5828 = vst.msk [vmem:[#allocation3 + $0x2a0] sm:$0xff] %vm2006, %v5679
  %5829 = vst.msk [vmem:[#allocation3 + $0x2b0] sm:$0xff] %vm2006, %v5681
  %5830 = vst.msk [vmem:[#allocation3 + $0x2c0] sm:$0xff] %vm2006, %v5683
  %5831 = vst.msk [vmem:[#allocation3 + $0x2d0] sm:$0xff] %vm2006, %v5685
  %5832 = vst.msk [vmem:[#allocation3 + $0x2e0] sm:$0xff] %vm2006, %v5687
  %5833 = vst.msk [vmem:[#allocation3 + $0x2f0] sm:$0xff] %vm2006, %v5689
  %5834 = vst.msk [vmem:[#allocation3 + $0x300] sm:$0xff] %vm2006, %v5691
  %5835 = vst.msk [vmem:[#allocation3 + $0x310] sm:$0xff] %vm2006, %v5693
  %5836 = vst.msk [vmem:[#allocation3 + $0x320] sm:$0xff] %vm2006, %v5695
  %5837 = vst.msk [vmem:[#allocation3 + $0x330] sm:$0xff] %vm2006, %v5697
  %5838 = vst.msk [vmem:[#allocation3 + $0x340] sm:$0xff] %vm2006, %v5699
  %5839 = vst.msk [vmem:[#allocation3 + $0x350] sm:$0xff] %vm2006, %v5701
  %5840 = vst.msk [vmem:[#allocation3 + $0x360] sm:$0xff] %vm2006, %v5703
  %5841 = vst.msk [vmem:[#allocation3 + $0x370] sm:$0xff] %vm2006, %v5705
  %5842 = vst.msk [vmem:[#allocation3 + $0x380] sm:$0xff] %vm2006, %v5707
  %5843 = vst.msk [vmem:[#allocation3 + $0x390] sm:$0xff] %vm2006, %v5709
  %5844 = vst.msk [vmem:[#allocation3 + $0x3a0] sm:$0xff] %vm2006, %v5711
  %5845 = vst.msk [vmem:[#allocation3 + $0x3b0] sm:$0xff] %vm2006, %v5713
  %5846 = vst.msk [vmem:[#allocation3 + $0x3c0] sm:$0xff] %vm2006, %v5715
  %5847 = vst.msk [vmem:[#allocation3 + $0x3d0] sm:$0xff] %vm2006, %v5717
  %5848 = vst.msk [vmem:[#allocation3 + $0x3e0] sm:$0xff] %vm2006, %v5719
  %5849 = vst.msk [vmem:[#allocation3 + $0x3f0] sm:$0xff] %vm2006, %v5721
  %v5850 = vld [vmem:[%s723 + $0x1] sm:$0xff]
  %v5851 = vld [vmem:[%s723 + $0x9] sm:$0xff]
  %v5852 = vld [vmem:[%s723 + $0x19] sm:$0xff]
  %v5853 = vld [vmem:[%s723 + $0x21] sm:$0xff]
  %v5854 = vld [vmem:[%s723 + $0x31] sm:$0xff]
  %v5855 = vld [vmem:[%s723 + $0x39] sm:$0xff]
  %v5856 = vld [vmem:[%s723 + $0x49] sm:$0xff]
  %v5857 = vld [vmem:[%s723 + $0x51] sm:$0xff]
  %v5858 = vld [vmem:[%s723 + $0x61] sm:$0xff]
  %v5859 = vld [vmem:[%s723 + $0x69] sm:$0xff]
  %v5860 = vld [vmem:[%s723 + $0x79] sm:$0xff]
  %v5861 = vld [vmem:[%s723 + $0x81] sm:$0xff]
  %v5862 = vld [vmem:[%s723 + $0x91] sm:$0xff]
  %v5863 = vld [vmem:[%s723 + $0x99] sm:$0xff]
  %v5864 = vld [vmem:[%s723 + $0xa9] sm:$0xff]
  %v5865 = vld [vmem:[%s723 + $0xb1] sm:$0xff]
  %v5866 = vld [vmem:[%s723 + $0xc1] sm:$0xff]
  %v5867 = vld [vmem:[%s723 + $0xc9] sm:$0xff]
  %v5868 = vld [vmem:[%s723 + $0xd9] sm:$0xff]
  %v5869 = vld [vmem:[%s723 + $0xe1] sm:$0xff]
  %v5870 = vld [vmem:[%s723 + $0xf1] sm:$0xff]
  %v5871 = vld [vmem:[%s723 + $0xf9] sm:$0xff]
  %v5872 = vld [vmem:[%s723 + $0x109] sm:$0xff]
  %v5873 = vld [vmem:[%s723 + $0x111] sm:$0xff]
  %v5874 = vld [vmem:[%s723 + $0x121] sm:$0xff]
  %v5875 = vld [vmem:[%s723 + $0x129] sm:$0xff]
  %v5876 = vld [vmem:[%s723 + $0x139] sm:$0xff]
  %v5877 = vld [vmem:[%s723 + $0x141] sm:$0xff]
  %v5878 = vld [vmem:[%s723 + $0x151] sm:$0xff]
  %v5879 = vld [vmem:[%s723 + $0x159] sm:$0xff]
  %v5880 = vld [vmem:[%s723 + $0x169] sm:$0xff]
  %v5881 = vld [vmem:[%s723 + $0x171] sm:$0xff]
  %v5882 = vld [vmem:[%s723 + $0x1b1] sm:$0xff]
  %v5883 = vld [vmem:[%s723 + $0x1b9] sm:$0xff]
  %v5884 = vld [vmem:[%s723 + $0x1c9] sm:$0xff]
  %v5885 = vld [vmem:[%s723 + $0x1d1] sm:$0xff]
  %v5886 = vld [vmem:[%s723 + $0x1e1] sm:$0xff]
  %v5887 = vld [vmem:[%s723 + $0x1e9] sm:$0xff]
  %v5888 = vld [vmem:[%s723 + $0x1f9] sm:$0xff]
  %v5889 = vld [vmem:[%s723 + $0x201] sm:$0xff]
  %v5890 = vld [vmem:[%s723 + $0x211] sm:$0xff]
  %v5891 = vld [vmem:[%s723 + $0x219] sm:$0xff]
  %v5892 = vld [vmem:[%s723 + $0x229] sm:$0xff]
  %v5893 = vld [vmem:[%s723 + $0x231] sm:$0xff]
  %v5894 = vld [vmem:[%s723 + $0x241] sm:$0xff]
  %v5895 = vld [vmem:[%s723 + $0x249] sm:$0xff]
  %v5896 = vld [vmem:[%s723 + $0x259] sm:$0xff]
  %v5897 = vld [vmem:[%s723 + $0x261] sm:$0xff]
  %v5898 = vld [vmem:[%s723 + $0x271] sm:$0xff]
  %v5899 = vld [vmem:[%s723 + $0x279] sm:$0xff]
  %v5900 = vld [vmem:[%s723 + $0x289] sm:$0xff]
  %v5901 = vld [vmem:[%s723 + $0x291] sm:$0xff]
  %v5902 = vld [vmem:[%s723 + $0x2a1] sm:$0xff]
  %v5903 = vld [vmem:[%s723 + $0x2a9] sm:$0xff]
  %v5904 = vld [vmem:[%s723 + $0x2b9] sm:$0xff]
  %v5905 = vld [vmem:[%s723 + $0x2c1] sm:$0xff]
  %v5906 = vld [vmem:[%s723 + $0x2d1] sm:$0xff]
  %v5907 = vld [vmem:[%s723 + $0x2d9] sm:$0xff]
  %v5908 = vld [vmem:[%s723 + $0x2e9] sm:$0xff]
  %v5909 = vld [vmem:[%s723 + $0x2f1] sm:$0xff]
  %v5910 = vld [vmem:[%s723 + $0x301] sm:$0xff]
  %v5911 = vld [vmem:[%s723 + $0x309] sm:$0xff]
  %v5912 = vld [vmem:[%s723 + $0x319] sm:$0xff]
  %v5913 = vld [vmem:[%s723 + $0x321] sm:$0xff]
  %5978 = vrot.lane.b32.xlu0 %v5850, 64
  %v5979 = vpop.permute.xlu0 %5978
  %5980 = vrot.lane.b32.xlu0 %v5851, 64
  %v5981 = vpop.permute.xlu0 %5980
  %5982 = vrot.lane.b32.xlu0 %v5852, 64
  %v5983 = vpop.permute.xlu0 %5982
  %5984 = vrot.lane.b32.xlu0 %v5853, 64
  %v5985 = vpop.permute.xlu0 %5984
  %5986 = vrot.lane.b32.xlu0 %v5854, 64
  %v5987 = vpop.permute.xlu0 %5986
  %5988 = vrot.lane.b32.xlu0 %v5855, 64
  %v5989 = vpop.permute.xlu0 %5988
  %5990 = vrot.lane.b32.xlu0 %v5856, 64
  %v5991 = vpop.permute.xlu0 %5990
  %5992 = vrot.lane.b32.xlu0 %v5857, 64
  %v5993 = vpop.permute.xlu0 %5992
  %5994 = vrot.lane.b32.xlu0 %v5858, 64
  %v5995 = vpop.permute.xlu0 %5994
  %5996 = vrot.lane.b32.xlu0 %v5859, 64
  %v5997 = vpop.permute.xlu0 %5996
  %5998 = vrot.lane.b32.xlu0 %v5860, 64
  %v5999 = vpop.permute.xlu0 %5998
  %6000 = vrot.lane.b32.xlu0 %v5861, 64
  %v6001 = vpop.permute.xlu0 %6000
  %6002 = vrot.lane.b32.xlu0 %v5862, 64
  %v6003 = vpop.permute.xlu0 %6002
  %6004 = vrot.lane.b32.xlu0 %v5863, 64
  %v6005 = vpop.permute.xlu0 %6004
  %6006 = vrot.lane.b32.xlu0 %v5864, 64
  %v6007 = vpop.permute.xlu0 %6006
  %6008 = vrot.lane.b32.xlu0 %v5865, 64
  %v6009 = vpop.permute.xlu0 %6008
  %6010 = vrot.lane.b32.xlu0 %v5866, 64
  %v6011 = vpop.permute.xlu0 %6010
  %6012 = vrot.lane.b32.xlu0 %v5867, 64
  %v6013 = vpop.permute.xlu0 %6012
  %6014 = vrot.lane.b32.xlu0 %v5868, 64
  %v6015 = vpop.permute.xlu0 %6014
  %6016 = vrot.lane.b32.xlu0 %v5869, 64
  %v6017 = vpop.permute.xlu0 %6016
  %6018 = vrot.lane.b32.xlu0 %v5870, 64
  %v6019 = vpop.permute.xlu0 %6018
  %6020 = vrot.lane.b32.xlu0 %v5871, 64
  %v6021 = vpop.permute.xlu0 %6020
  %6022 = vrot.lane.b32.xlu0 %v5872, 64
  %v6023 = vpop.permute.xlu0 %6022
  %6024 = vrot.lane.b32.xlu0 %v5873, 64
  %v6025 = vpop.permute.xlu0 %6024
  %6026 = vrot.lane.b32.xlu0 %v5874, 64
  %v6027 = vpop.permute.xlu0 %6026
  %6028 = vrot.lane.b32.xlu0 %v5875, 64
  %v6029 = vpop.permute.xlu0 %6028
  %6030 = vrot.lane.b32.xlu0 %v5876, 64
  %v6031 = vpop.permute.xlu0 %6030
  %6032 = vrot.lane.b32.xlu0 %v5877, 64
  %v6033 = vpop.permute.xlu0 %6032
  %6034 = vrot.lane.b32.xlu0 %v5878, 64
  %v6035 = vpop.permute.xlu0 %6034
  %6036 = vrot.lane.b32.xlu0 %v5879, 64
  %v6037 = vpop.permute.xlu0 %6036
  %6038 = vrot.lane.b32.xlu0 %v5880, 64
  %v6039 = vpop.permute.xlu0 %6038
  %6040 = vrot.lane.b32.xlu0 %v5881, 64
  %v6041 = vpop.permute.xlu0 %6040
  %6042 = vrot.lane.b32.xlu0 %v5882, 64
  %v6043 = vpop.permute.xlu0 %6042
  %6044 = vrot.lane.b32.xlu0 %v5883, 64
  %v6045 = vpop.permute.xlu0 %6044
  %6046 = vrot.lane.b32.xlu0 %v5884, 64
  %v6047 = vpop.permute.xlu0 %6046
  %6048 = vrot.lane.b32.xlu0 %v5885, 64
  %v6049 = vpop.permute.xlu0 %6048
  %6050 = vrot.lane.b32.xlu0 %v5886, 64
  %v6051 = vpop.permute.xlu0 %6050
  %6052 = vrot.lane.b32.xlu0 %v5887, 64
  %v6053 = vpop.permute.xlu0 %6052
  %6054 = vrot.lane.b32.xlu0 %v5888, 64
  %v6055 = vpop.permute.xlu0 %6054
  %6056 = vrot.lane.b32.xlu0 %v5889, 64
  %v6057 = vpop.permute.xlu0 %6056
  %6058 = vrot.lane.b32.xlu0 %v5890, 64
  %v6059 = vpop.permute.xlu0 %6058
  %6060 = vrot.lane.b32.xlu0 %v5891, 64
  %v6061 = vpop.permute.xlu0 %6060
  %6062 = vrot.lane.b32.xlu0 %v5892, 64
  %v6063 = vpop.permute.xlu0 %6062
  %6064 = vrot.lane.b32.xlu0 %v5893, 64
  %v6065 = vpop.permute.xlu0 %6064
  %6066 = vrot.lane.b32.xlu0 %v5894, 64
  %v6067 = vpop.permute.xlu0 %6066
  %6068 = vrot.lane.b32.xlu0 %v5895, 64
  %v6069 = vpop.permute.xlu0 %6068
  %6070 = vrot.lane.b32.xlu0 %v5896, 64
  %v6071 = vpop.permute.xlu0 %6070
  %6072 = vrot.lane.b32.xlu0 %v5897, 64
  %v6073 = vpop.permute.xlu0 %6072
  %6074 = vrot.lane.b32.xlu0 %v5898, 64
  %v6075 = vpop.permute.xlu0 %6074
  %6076 = vrot.lane.b32.xlu0 %v5899, 64
  %v6077 = vpop.permute.xlu0 %6076
  %6078 = vrot.lane.b32.xlu0 %v5900, 64
  %v6079 = vpop.permute.xlu0 %6078
  %6080 = vrot.lane.b32.xlu0 %v5901, 64
  %v6081 = vpop.permute.xlu0 %6080
  %6082 = vrot.lane.b32.xlu0 %v5902, 64
  %v6083 = vpop.permute.xlu0 %6082
  %6084 = vrot.lane.b32.xlu0 %v5903, 64
  %v6085 = vpop.permute.xlu0 %6084
  %6086 = vrot.lane.b32.xlu0 %v5904, 64
  %v6087 = vpop.permute.xlu0 %6086
  %6088 = vrot.lane.b32.xlu0 %v5905, 64
  %v6089 = vpop.permute.xlu0 %6088
  %6090 = vrot.lane.b32.xlu0 %v5906, 64
  %v6091 = vpop.permute.xlu0 %6090
  %6092 = vrot.lane.b32.xlu0 %v5907, 64
  %v6093 = vpop.permute.xlu0 %6092
  %6094 = vrot.lane.b32.xlu0 %v5908, 64
  %v6095 = vpop.permute.xlu0 %6094
  %6096 = vrot.lane.b32.xlu0 %v5909, 64
  %v6097 = vpop.permute.xlu0 %6096
  %6098 = vrot.lane.b32.xlu0 %v5910, 64
  %v6099 = vpop.permute.xlu0 %6098
  %6100 = vrot.lane.b32.xlu0 %v5911, 64
  %v6101 = vpop.permute.xlu0 %6100
  %6102 = vrot.lane.b32.xlu0 %v5912, 64
  %v6103 = vpop.permute.xlu0 %6102
  %6104 = vrot.lane.b32.xlu0 %v5913, 64
  %v6105 = vpop.permute.xlu0 %6104
  %6170 = vst.msk [vmem:[#allocation3] sm:$0xff] %vm2391, %v5979
  %6171 = vst.msk [vmem:[#allocation3 + $0x10] sm:$0xff] %vm2391, %v5981
  %6172 = vst.msk [vmem:[#allocation3 + $0x20] sm:$0xff] %vm2391, %v5983
  %6173 = vst.msk [vmem:[#allocation3 + $0x30] sm:$0xff] %vm2391, %v5985
  %6174 = vst.msk [vmem:[#allocation3 + $0x40] sm:$0xff] %vm2391, %v5987
  %6175 = vst.msk [vmem:[#allocation3 + $0x50] sm:$0xff] %vm2391, %v5989
  %6176 = vst.msk [vmem:[#allocation3 + $0x60] sm:$0xff] %vm2391, %v5991
  %6177 = vst.msk [vmem:[#allocation3 + $0x70] sm:$0xff] %vm2391, %v5993
  %6178 = vst.msk [vmem:[#allocation3 + $0x80] sm:$0xff] %vm2391, %v5995
  %6179 = vst.msk [vmem:[#allocation3 + $0x90] sm:$0xff] %vm2391, %v5997
  %6180 = vst.msk [vmem:[#allocation3 + $0xa0] sm:$0xff] %vm2391, %v5999
  %6181 = vst.msk [vmem:[#allocation3 + $0xb0] sm:$0xff] %vm2391, %v6001
  %6182 = vst.msk [vmem:[#allocation3 + $0xc0] sm:$0xff] %vm2391, %v6003
  %6183 = vst.msk [vmem:[#allocation3 + $0xd0] sm:$0xff] %vm2391, %v6005
  %6184 = vst.msk [vmem:[#allocation3 + $0xe0] sm:$0xff] %vm2391, %v6007
  %6185 = vst.msk [vmem:[#allocation3 + $0xf0] sm:$0xff] %vm2391, %v6009
  %6186 = vst.msk [vmem:[#allocation3 + $0x100] sm:$0xff] %vm2391, %v6011
  %6187 = vst.msk [vmem:[#allocation3 + $0x110] sm:$0xff] %vm2391, %v6013
  %6188 = vst.msk [vmem:[#allocation3 + $0x120] sm:$0xff] %vm2391, %v6015
  %6189 = vst.msk [vmem:[#allocation3 + $0x130] sm:$0xff] %vm2391, %v6017
  %6190 = vst.msk [vmem:[#allocation3 + $0x140] sm:$0xff] %vm2391, %v6019
  %6191 = vst.msk [vmem:[#allocation3 + $0x150] sm:$0xff] %vm2391, %v6021
  %6192 = vst.msk [vmem:[#allocation3 + $0x160] sm:$0xff] %vm2391, %v6023
  %6193 = vst.msk [vmem:[#allocation3 + $0x170] sm:$0xff] %vm2391, %v6025
  %6194 = vst.msk [vmem:[#allocation3 + $0x180] sm:$0xff] %vm2391, %v6027
  %6195 = vst.msk [vmem:[#allocation3 + $0x190] sm:$0xff] %vm2391, %v6029
  %6196 = vst.msk [vmem:[#allocation3 + $0x1a0] sm:$0xff] %vm2391, %v6031
  %6197 = vst.msk [vmem:[#allocation3 + $0x1b0] sm:$0xff] %vm2391, %v6033
  %6198 = vst.msk [vmem:[#allocation3 + $0x1c0] sm:$0xff] %vm2391, %v6035
  %6199 = vst.msk [vmem:[#allocation3 + $0x1d0] sm:$0xff] %vm2391, %v6037
  %6200 = vst.msk [vmem:[#allocation3 + $0x1e0] sm:$0xff] %vm2391, %v6039
  %6201 = vst.msk [vmem:[#allocation3 + $0x1f0] sm:$0xff] %vm2391, %v6041
  %6202 = vst.msk [vmem:[#allocation3 + $0x200] sm:$0xff] %vm2391, %v6043
  %6203 = vst.msk [vmem:[#allocation3 + $0x210] sm:$0xff] %vm2391, %v6045
  %6204 = vst.msk [vmem:[#allocation3 + $0x220] sm:$0xff] %vm2391, %v6047
  %6205 = vst.msk [vmem:[#allocation3 + $0x230] sm:$0xff] %vm2391, %v6049
  %6206 = vst.msk [vmem:[#allocation3 + $0x240] sm:$0xff] %vm2391, %v6051
  %6207 = vst.msk [vmem:[#allocation3 + $0x250] sm:$0xff] %vm2391, %v6053
  %6208 = vst.msk [vmem:[#allocation3 + $0x260] sm:$0xff] %vm2391, %v6055
  %6209 = vst.msk [vmem:[#allocation3 + $0x270] sm:$0xff] %vm2391, %v6057
  %6210 = vst.msk [vmem:[#allocation3 + $0x280] sm:$0xff] %vm2391, %v6059
  %6211 = vst.msk [vmem:[#allocation3 + $0x290] sm:$0xff] %vm2391, %v6061
  %6212 = vst.msk [vmem:[#allocation3 + $0x2a0] sm:$0xff] %vm2391, %v6063
  %6213 = vst.msk [vmem:[#allocation3 + $0x2b0] sm:$0xff] %vm2391, %v6065
  %6214 = vst.msk [vmem:[#allocation3 + $0x2c0] sm:$0xff] %vm2391, %v6067
  %6215 = vst.msk [vmem:[#allocation3 + $0x2d0] sm:$0xff] %vm2391, %v6069
  %6216 = vst.msk [vmem:[#allocation3 + $0x2e0] sm:$0xff] %vm2391, %v6071
  %6217 = vst.msk [vmem:[#allocation3 + $0x2f0] sm:$0xff] %vm2391, %v6073
  %6218 = vst.msk [vmem:[#allocation3 + $0x300] sm:$0xff] %vm2391, %v6075
  %6219 = vst.msk [vmem:[#allocation3 + $0x310] sm:$0xff] %vm2391, %v6077
  %6220 = vst.msk [vmem:[#allocation3 + $0x320] sm:$0xff] %vm2391, %v6079
  %6221 = vst.msk [vmem:[#allocation3 + $0x330] sm:$0xff] %vm2391, %v6081
  %6222 = vst.msk [vmem:[#allocation3 + $0x340] sm:$0xff] %vm2391, %v6083
  %6223 = vst.msk [vmem:[#allocation3 + $0x350] sm:$0xff] %vm2391, %v6085
  %6224 = vst.msk [vmem:[#allocation3 + $0x360] sm:$0xff] %vm2391, %v6087
  %6225 = vst.msk [vmem:[#allocation3 + $0x370] sm:$0xff] %vm2391, %v6089
  %6226 = vst.msk [vmem:[#allocation3 + $0x380] sm:$0xff] %vm2391, %v6091
  %6227 = vst.msk [vmem:[#allocation3 + $0x390] sm:$0xff] %vm2391, %v6093
  %6228 = vst.msk [vmem:[#allocation3 + $0x3a0] sm:$0xff] %vm2391, %v6095
  %6229 = vst.msk [vmem:[#allocation3 + $0x3b0] sm:$0xff] %vm2391, %v6097
  %6230 = vst.msk [vmem:[#allocation3 + $0x3c0] sm:$0xff] %vm2391, %v6099
  %6231 = vst.msk [vmem:[#allocation3 + $0x3d0] sm:$0xff] %vm2391, %v6101
  %6232 = vst.msk [vmem:[#allocation3 + $0x3e0] sm:$0xff] %vm2391, %v6103
  %6233 = vst.msk [vmem:[#allocation3 + $0x3f0] sm:$0xff] %vm2391, %v6105
  %v6234 = vld [vmem:[%s723 + $0x2] sm:$0xff]
  %v6235 = vld [vmem:[%s723 + $0xa] sm:$0xff]
  %v6236 = vld [vmem:[%s723 + $0x1a] sm:$0xff]
  %v6237 = vld [vmem:[%s723 + $0x22] sm:$0xff]
  %v6238 = vld [vmem:[%s723 + $0x32] sm:$0xff]
  %v6239 = vld [vmem:[%s723 + $0x3a] sm:$0xff]
  %v6240 = vld [vmem:[%s723 + $0x4a] sm:$0xff]
  %v6241 = vld [vmem:[%s723 + $0x52] sm:$0xff]
  %v6242 = vld [vmem:[%s723 + $0x62] sm:$0xff]
  %v6243 = vld [vmem:[%s723 + $0x6a] sm:$0xff]
  %v6244 = vld [vmem:[%s723 + $0x7a] sm:$0xff]
  %v6245 = vld [vmem:[%s723 + $0x82] sm:$0xff]
  %v6246 = vld [vmem:[%s723 + $0x92] sm:$0xff]
  %v6247 = vld [vmem:[%s723 + $0x9a] sm:$0xff]
  %v6248 = vld [vmem:[%s723 + $0xaa] sm:$0xff]
  %v6249 = vld [vmem:[%s723 + $0xb2] sm:$0xff]
  %v6250 = vld [vmem:[%s723 + $0xc2] sm:$0xff]
  %v6251 = vld [vmem:[%s723 + $0xca] sm:$0xff]
  %v6252 = vld [vmem:[%s723 + $0xda] sm:$0xff]
  %v6253 = vld [vmem:[%s723 + $0xe2] sm:$0xff]
  %v6254 = vld [vmem:[%s723 + $0xf2] sm:$0xff]
  %v6255 = vld [vmem:[%s723 + $0xfa] sm:$0xff]
  %v6256 = vld [vmem:[%s723 + $0x10a] sm:$0xff]
  %v6257 = vld [vmem:[%s723 + $0x112] sm:$0xff]
  %v6258 = vld [vmem:[%s723 + $0x122] sm:$0xff]
  %v6259 = vld [vmem:[%s723 + $0x12a] sm:$0xff]
  %v6260 = vld [vmem:[%s723 + $0x13a] sm:$0xff]
  %v6261 = vld [vmem:[%s723 + $0x142] sm:$0xff]
  %v6262 = vld [vmem:[%s723 + $0x152] sm:$0xff]
  %v6263 = vld [vmem:[%s723 + $0x15a] sm:$0xff]
  %v6264 = vld [vmem:[%s723 + $0x16a] sm:$0xff]
  %v6265 = vld [vmem:[%s723 + $0x172] sm:$0xff]
  %v6266 = vld [vmem:[%s723 + $0x1b2] sm:$0xff]
  %v6267 = vld [vmem:[%s723 + $0x1ba] sm:$0xff]
  %v6268 = vld [vmem:[%s723 + $0x1ca] sm:$0xff]
  %v6269 = vld [vmem:[%s723 + $0x1d2] sm:$0xff]
  %v6270 = vld [vmem:[%s723 + $0x1e2] sm:$0xff]
  %v6271 = vld [vmem:[%s723 + $0x1ea] sm:$0xff]
  %v6272 = vld [vmem:[%s723 + $0x1fa] sm:$0xff]
  %v6273 = vld [vmem:[%s723 + $0x202] sm:$0xff]
  %v6274 = vld [vmem:[%s723 + $0x212] sm:$0xff]
  %v6275 = vld [vmem:[%s723 + $0x21a] sm:$0xff]
  %v6276 = vld [vmem:[%s723 + $0x22a] sm:$0xff]
  %v6277 = vld [vmem:[%s723 + $0x232] sm:$0xff]
  %v6278 = vld [vmem:[%s723 + $0x242] sm:$0xff]
  %v6279 = vld [vmem:[%s723 + $0x24a] sm:$0xff]
  %v6280 = vld [vmem:[%s723 + $0x25a] sm:$0xff]
  %v6281 = vld [vmem:[%s723 + $0x262] sm:$0xff]
  %v6282 = vld [vmem:[%s723 + $0x272] sm:$0xff]
  %v6283 = vld [vmem:[%s723 + $0x27a] sm:$0xff]
  %v6284 = vld [vmem:[%s723 + $0x28a] sm:$0xff]
  %v6285 = vld [vmem:[%s723 + $0x292] sm:$0xff]
  %v6286 = vld [vmem:[%s723 + $0x2a2] sm:$0xff]
  %v6287 = vld [vmem:[%s723 + $0x2aa] sm:$0xff]
  %v6288 = vld [vmem:[%s723 + $0x2ba] sm:$0xff]
  %v6289 = vld [vmem:[%s723 + $0x2c2] sm:$0xff]
  %v6290 = vld [vmem:[%s723 + $0x2d2] sm:$0xff]
  %v6291 = vld [vmem:[%s723 + $0x2da] sm:$0xff]
  %v6292 = vld [vmem:[%s723 + $0x2ea] sm:$0xff]
  %v6293 = vld [vmem:[%s723 + $0x2f2] sm:$0xff]
  %v6294 = vld [vmem:[%s723 + $0x302] sm:$0xff]
  %v6295 = vld [vmem:[%s723 + $0x30a] sm:$0xff]
  %v6296 = vld [vmem:[%s723 + $0x31a] sm:$0xff]
  %v6297 = vld [vmem:[%s723 + $0x322] sm:$0xff]
  %6362 = vrot.lane.b32.xlu0 %v6234, 80
  %v6363 = vpop.permute.xlu0 %6362
  %6364 = vrot.lane.b32.xlu0 %v6235, 80
  %v6365 = vpop.permute.xlu0 %6364
  %6366 = vrot.lane.b32.xlu0 %v6236, 80
  %v6367 = vpop.permute.xlu0 %6366
  %6368 = vrot.lane.b32.xlu0 %v6237, 80
  %v6369 = vpop.permute.xlu0 %6368
  %6370 = vrot.lane.b32.xlu0 %v6238, 80
  %v6371 = vpop.permute.xlu0 %6370
  %6372 = vrot.lane.b32.xlu0 %v6239, 80
  %v6373 = vpop.permute.xlu0 %6372
  %6374 = vrot.lane.b32.xlu0 %v6240, 80
  %v6375 = vpop.permute.xlu0 %6374
  %6376 = vrot.lane.b32.xlu0 %v6241, 80
  %v6377 = vpop.permute.xlu0 %6376
  %6378 = vrot.lane.b32.xlu0 %v6242, 80
  %v6379 = vpop.permute.xlu0 %6378
  %6380 = vrot.lane.b32.xlu0 %v6243, 80
  %v6381 = vpop.permute.xlu0 %6380
  %6382 = vrot.lane.b32.xlu0 %v6244, 80
  %v6383 = vpop.permute.xlu0 %6382
  %6384 = vrot.lane.b32.xlu0 %v6245, 80
  %v6385 = vpop.permute.xlu0 %6384
  %6386 = vrot.lane.b32.xlu0 %v6246, 80
  %v6387 = vpop.permute.xlu0 %6386
  %6388 = vrot.lane.b32.xlu0 %v6247, 80
  %v6389 = vpop.permute.xlu0 %6388
  %6390 = vrot.lane.b32.xlu0 %v6248, 80
  %v6391 = vpop.permute.xlu0 %6390
  %6392 = vrot.lane.b32.xlu0 %v6249, 80
  %v6393 = vpop.permute.xlu0 %6392
  %6394 = vrot.lane.b32.xlu0 %v6250, 80
  %v6395 = vpop.permute.xlu0 %6394
  %6396 = vrot.lane.b32.xlu0 %v6251, 80
  %v6397 = vpop.permute.xlu0 %6396
  %6398 = vrot.lane.b32.xlu0 %v6252, 80
  %v6399 = vpop.permute.xlu0 %6398
  %6400 = vrot.lane.b32.xlu0 %v6253, 80
  %v6401 = vpop.permute.xlu0 %6400
  %6402 = vrot.lane.b32.xlu0 %v6254, 80
  %v6403 = vpop.permute.xlu0 %6402
  %6404 = vrot.lane.b32.xlu0 %v6255, 80
  %v6405 = vpop.permute.xlu0 %6404
  %6406 = vrot.lane.b32.xlu0 %v6256, 80
  %v6407 = vpop.permute.xlu0 %6406
  %6408 = vrot.lane.b32.xlu0 %v6257, 80
  %v6409 = vpop.permute.xlu0 %6408
  %6410 = vrot.lane.b32.xlu0 %v6258, 80
  %v6411 = vpop.permute.xlu0 %6410
  %6412 = vrot.lane.b32.xlu0 %v6259, 80
  %v6413 = vpop.permute.xlu0 %6412
  %6414 = vrot.lane.b32.xlu0 %v6260, 80
  %v6415 = vpop.permute.xlu0 %6414
  %6416 = vrot.lane.b32.xlu0 %v6261, 80
  %v6417 = vpop.permute.xlu0 %6416
  %6418 = vrot.lane.b32.xlu0 %v6262, 80
  %v6419 = vpop.permute.xlu0 %6418
  %6420 = vrot.lane.b32.xlu0 %v6263, 80
  %v6421 = vpop.permute.xlu0 %6420
  %6422 = vrot.lane.b32.xlu0 %v6264, 80
  %v6423 = vpop.permute.xlu0 %6422
  %6424 = vrot.lane.b32.xlu0 %v6265, 80
  %v6425 = vpop.permute.xlu0 %6424
  %6426 = vrot.lane.b32.xlu0 %v6266, 80
  %v6427 = vpop.permute.xlu0 %6426
  %6428 = vrot.lane.b32.xlu0 %v6267, 80
  %v6429 = vpop.permute.xlu0 %6428
  %6430 = vrot.lane.b32.xlu0 %v6268, 80
  %v6431 = vpop.permute.xlu0 %6430
  %6432 = vrot.lane.b32.xlu0 %v6269, 80
  %v6433 = vpop.permute.xlu0 %6432
  %6434 = vrot.lane.b32.xlu0 %v6270, 80
  %v6435 = vpop.permute.xlu0 %6434
  %6436 = vrot.lane.b32.xlu0 %v6271, 80
  %v6437 = vpop.permute.xlu0 %6436
  %6438 = vrot.lane.b32.xlu0 %v6272, 80
  %v6439 = vpop.permute.xlu0 %6438
  %6440 = vrot.lane.b32.xlu0 %v6273, 80
  %v6441 = vpop.permute.xlu0 %6440
  %6442 = vrot.lane.b32.xlu0 %v6274, 80
  %v6443 = vpop.permute.xlu0 %6442
  %6444 = vrot.lane.b32.xlu0 %v6275, 80
  %v6445 = vpop.permute.xlu0 %6444
  %6446 = vrot.lane.b32.xlu0 %v6276, 80
  %v6447 = vpop.permute.xlu0 %6446
  %6448 = vrot.lane.b32.xlu0 %v6277, 80
  %v6449 = vpop.permute.xlu0 %6448
  %6450 = vrot.lane.b32.xlu0 %v6278, 80
  %v6451 = vpop.permute.xlu0 %6450
  %6452 = vrot.lane.b32.xlu0 %v6279, 80
  %v6453 = vpop.permute.xlu0 %6452
  %6454 = vrot.lane.b32.xlu0 %v6280, 80
  %v6455 = vpop.permute.xlu0 %6454
  %6456 = vrot.lane.b32.xlu0 %v6281, 80
  %v6457 = vpop.permute.xlu0 %6456
  %6458 = vrot.lane.b32.xlu0 %v6282, 80
  %v6459 = vpop.permute.xlu0 %6458
  %6460 = vrot.lane.b32.xlu0 %v6283, 80
  %v6461 = vpop.permute.xlu0 %6460
  %6462 = vrot.lane.b32.xlu0 %v6284, 80
  %v6463 = vpop.permute.xlu0 %6462
  %6464 = vrot.lane.b32.xlu0 %v6285, 80
  %v6465 = vpop.permute.xlu0 %6464
  %6466 = vrot.lane.b32.xlu0 %v6286, 80
  %v6467 = vpop.permute.xlu0 %6466
  %6468 = vrot.lane.b32.xlu0 %v6287, 80
  %v6469 = vpop.permute.xlu0 %6468
  %6470 = vrot.lane.b32.xlu0 %v6288, 80
  %v6471 = vpop.permute.xlu0 %6470
  %6472 = vrot.lane.b32.xlu0 %v6289, 80
  %v6473 = vpop.permute.xlu0 %6472
  %6474 = vrot.lane.b32.xlu0 %v6290, 80
  %v6475 = vpop.permute.xlu0 %6474
  %6476 = vrot.lane.b32.xlu0 %v6291, 80
  %v6477 = vpop.permute.xlu0 %6476
  %6478 = vrot.lane.b32.xlu0 %v6292, 80
  %v6479 = vpop.permute.xlu0 %6478
  %6480 = vrot.lane.b32.xlu0 %v6293, 80
  %v6481 = vpop.permute.xlu0 %6480
  %6482 = vrot.lane.b32.xlu0 %v6294, 80
  %v6483 = vpop.permute.xlu0 %6482
  %6484 = vrot.lane.b32.xlu0 %v6295, 80
  %v6485 = vpop.permute.xlu0 %6484
  %6486 = vrot.lane.b32.xlu0 %v6296, 80
  %v6487 = vpop.permute.xlu0 %6486
  %6488 = vrot.lane.b32.xlu0 %v6297, 80
  %v6489 = vpop.permute.xlu0 %6488
  %6554 = vst.msk [vmem:[#allocation3] sm:$0xff] %vm2776, %v6363
  %6555 = vst.msk [vmem:[#allocation3 + $0x10] sm:$0xff] %vm2776, %v6365
  %6556 = vst.msk [vmem:[#allocation3 + $0x20] sm:$0xff] %vm2776, %v6367
  %6557 = vst.msk [vmem:[#allocation3 + $0x30] sm:$0xff] %vm2776, %v6369
  %6558 = vst.msk [vmem:[#allocation3 + $0x40] sm:$0xff] %vm2776, %v6371
  %6559 = vst.msk [vmem:[#allocation3 + $0x50] sm:$0xff] %vm2776, %v6373
  %6560 = vst.msk [vmem:[#allocation3 + $0x60] sm:$0xff] %vm2776, %v6375
  %6561 = vst.msk [vmem:[#allocation3 + $0x70] sm:$0xff] %vm2776, %v6377
  %6562 = vst.msk [vmem:[#allocation3 + $0x80] sm:$0xff] %vm2776, %v6379
  %6563 = vst.msk [vmem:[#allocation3 + $0x90] sm:$0xff] %vm2776, %v6381
  %6564 = vst.msk [vmem:[#allocation3 + $0xa0] sm:$0xff] %vm2776, %v6383
  %6565 = vst.msk [vmem:[#allocation3 + $0xb0] sm:$0xff] %vm2776, %v6385
  %6566 = vst.msk [vmem:[#allocation3 + $0xc0] sm:$0xff] %vm2776, %v6387
  %6567 = vst.msk [vmem:[#allocation3 + $0xd0] sm:$0xff] %vm2776, %v6389
  %6568 = vst.msk [vmem:[#allocation3 + $0xe0] sm:$0xff] %vm2776, %v6391
  %6569 = vst.msk [vmem:[#allocation3 + $0xf0] sm:$0xff] %vm2776, %v6393
  %6570 = vst.msk [vmem:[#allocation3 + $0x100] sm:$0xff] %vm2776, %v6395
  %6571 = vst.msk [vmem:[#allocation3 + $0x110] sm:$0xff] %vm2776, %v6397
  %6572 = vst.msk [vmem:[#allocation3 + $0x120] sm:$0xff] %vm2776, %v6399
  %6573 = vst.msk [vmem:[#allocation3 + $0x130] sm:$0xff] %vm2776, %v6401
  %6574 = vst.msk [vmem:[#allocation3 + $0x140] sm:$0xff] %vm2776, %v6403
  %6575 = vst.msk [vmem:[#allocation3 + $0x150] sm:$0xff] %vm2776, %v6405
  %6576 = vst.msk [vmem:[#allocation3 + $0x160] sm:$0xff] %vm2776, %v6407
  %6577 = vst.msk [vmem:[#allocation3 + $0x170] sm:$0xff] %vm2776, %v6409
  %6578 = vst.msk [vmem:[#allocation3 + $0x180] sm:$0xff] %vm2776, %v6411
  %6579 = vst.msk [vmem:[#allocation3 + $0x190] sm:$0xff] %vm2776, %v6413
  %6580 = vst.msk [vmem:[#allocation3 + $0x1a0] sm:$0xff] %vm2776, %v6415
  %6581 = vst.msk [vmem:[#allocation3 + $0x1b0] sm:$0xff] %vm2776, %v6417
  %6582 = vst.msk [vmem:[#allocation3 + $0x1c0] sm:$0xff] %vm2776, %v6419
  %6583 = vst.msk [vmem:[#allocation3 + $0x1d0] sm:$0xff] %vm2776, %v6421
  %6584 = vst.msk [vmem:[#allocation3 + $0x1e0] sm:$0xff] %vm2776, %v6423
  %6585 = vst.msk [vmem:[#allocation3 + $0x1f0] sm:$0xff] %vm2776, %v6425
  %6586 = vst.msk [vmem:[#allocation3 + $0x200] sm:$0xff] %vm2776, %v6427
  %6587 = vst.msk [vmem:[#allocation3 + $0x210] sm:$0xff] %vm2776, %v6429
  %6588 = vst.msk [vmem:[#allocation3 + $0x220] sm:$0xff] %vm2776, %v6431
  %6589 = vst.msk [vmem:[#allocation3 + $0x230] sm:$0xff] %vm2776, %v6433
  %6590 = vst.msk [vmem:[#allocation3 + $0x240] sm:$0xff] %vm2776, %v6435
  %6591 = vst.msk [vmem:[#allocation3 + $0x250] sm:$0xff] %vm2776, %v6437
  %6592 = vst.msk [vmem:[#allocation3 + $0x260] sm:$0xff] %vm2776, %v6439
  %6593 = vst.msk [vmem:[#allocation3 + $0x270] sm:$0xff] %vm2776, %v6441
  %6594 = vst.msk [vmem:[#allocation3 + $0x280] sm:$0xff] %vm2776, %v6443
  %6595 = vst.msk [vmem:[#allocation3 + $0x290] sm:$0xff] %vm2776, %v6445
  %6596 = vst.msk [vmem:[#allocation3 + $0x2a0] sm:$0xff] %vm2776, %v6447
  %6597 = vst.msk [vmem:[#allocation3 + $0x2b0] sm:$0xff] %vm2776, %v6449
  %6598 = vst.msk [vmem:[#allocation3 + $0x2c0] sm:$0xff] %vm2776, %v6451
  %6599 = vst.msk [vmem:[#allocation3 + $0x2d0] sm:$0xff] %vm2776, %v6453
  %6600 = vst.msk [vmem:[#allocation3 + $0x2e0] sm:$0xff] %vm2776, %v6455
  %6601 = vst.msk [vmem:[#allocation3 + $0x2f0] sm:$0xff] %vm2776, %v6457
  %6602 = vst.msk [vmem:[#allocation3 + $0x300] sm:$0xff] %vm2776, %v6459
  %6603 = vst.msk [vmem:[#allocation3 + $0x310] sm:$0xff] %vm2776, %v6461
  %6604 = vst.msk [vmem:[#allocation3 + $0x320] sm:$0xff] %vm2776, %v6463
  %6605 = vst.msk [vmem:[#allocation3 + $0x330] sm:$0xff] %vm2776, %v6465
  %6606 = vst.msk [vmem:[#allocation3 + $0x340] sm:$0xff] %vm2776, %v6467
  %6607 = vst.msk [vmem:[#allocation3 + $0x350] sm:$0xff] %vm2776, %v6469
  %6608 = vst.msk [vmem:[#allocation3 + $0x360] sm:$0xff] %vm2776, %v6471
  %6609 = vst.msk [vmem:[#allocation3 + $0x370] sm:$0xff] %vm2776, %v6473
  %6610 = vst.msk [vmem:[#allocation3 + $0x380] sm:$0xff] %vm2776, %v6475
  %6611 = vst.msk [vmem:[#allocation3 + $0x390] sm:$0xff] %vm2776, %v6477
  %6612 = vst.msk [vmem:[#allocation3 + $0x3a0] sm:$0xff] %vm2776, %v6479
  %6613 = vst.msk [vmem:[#allocation3 + $0x3b0] sm:$0xff] %vm2776, %v6481
  %6614 = vst.msk [vmem:[#allocation3 + $0x3c0] sm:$0xff] %vm2776, %v6483
  %6615 = vst.msk [vmem:[#allocation3 + $0x3d0] sm:$0xff] %vm2776, %v6485
  %6616 = vst.msk [vmem:[#allocation3 + $0x3e0] sm:$0xff] %vm2776, %v6487
  %6617 = vst.msk [vmem:[#allocation3 + $0x3f0] sm:$0xff] %vm2776, %v6489
  %v6618 = vld [vmem:[%s2841] sm:$0xff]
  %v6619 = vld [vmem:[%s2841 + $0x8] sm:$0xff]
  %v6620 = vld [vmem:[%s2841 + $0x18] sm:$0xff]
  %v6621 = vld [vmem:[%s2841 + $0x20] sm:$0xff]
  %v6622 = vld [vmem:[%s2841 + $0x30] sm:$0xff]
  %v6623 = vld [vmem:[%s2841 + $0x38] sm:$0xff]
  %v6624 = vld [vmem:[%s2841 + $0x48] sm:$0xff]
  %v6625 = vld [vmem:[%s2841 + $0x50] sm:$0xff]
  %v6626 = vld [vmem:[%s2841 + $0x60] sm:$0xff]
  %v6627 = vld [vmem:[%s2841 + $0x68] sm:$0xff]
  %v6628 = vld [vmem:[%s2841 + $0x78] sm:$0xff]
  %v6629 = vld [vmem:[%s2841 + $0x80] sm:$0xff]
  %v6630 = vld [vmem:[%s2841 + $0x90] sm:$0xff]
  %v6631 = vld [vmem:[%s2841 + $0x98] sm:$0xff]
  %v6632 = vld [vmem:[%s2841 + $0xa8] sm:$0xff]
  %v6633 = vld [vmem:[%s2841 + $0xb0] sm:$0xff]
  %v6634 = vld [vmem:[%s2841 + $0xc0] sm:$0xff]
  %v6635 = vld [vmem:[%s2841 + $0xc8] sm:$0xff]
  %v6636 = vld [vmem:[%s2841 + $0xd8] sm:$0xff]
  %v6637 = vld [vmem:[%s2841 + $0xe0] sm:$0xff]
  %v6638 = vld [vmem:[%s2841 + $0xf0] sm:$0xff]
  %v6639 = vld [vmem:[%s2841 + $0xf8] sm:$0xff]
  %v6640 = vld [vmem:[%s2841 + $0x108] sm:$0xff]
  %v6641 = vld [vmem:[%s2841 + $0x110] sm:$0xff]
  %v6642 = vld [vmem:[%s2841 + $0x120] sm:$0xff]
  %v6643 = vld [vmem:[%s2841 + $0x128] sm:$0xff]
  %v6644 = vld [vmem:[%s2841 + $0x138] sm:$0xff]
  %v6645 = vld [vmem:[%s2841 + $0x140] sm:$0xff]
  %v6646 = vld [vmem:[%s2841 + $0x150] sm:$0xff]
  %v6647 = vld [vmem:[%s2841 + $0x158] sm:$0xff]
  %v6648 = vld [vmem:[%s2841 + $0x168] sm:$0xff]
  %v6649 = vld [vmem:[%s2841 + $0x170] sm:$0xff]
  %v6650 = vld [vmem:[%s2841 + $0x1b0] sm:$0xff]
  %v6651 = vld [vmem:[%s2841 + $0x1b8] sm:$0xff]
  %v6652 = vld [vmem:[%s2841 + $0x1c8] sm:$0xff]
  %v6653 = vld [vmem:[%s2841 + $0x1d0] sm:$0xff]
  %v6654 = vld [vmem:[%s2841 + $0x1e0] sm:$0xff]
  %v6655 = vld [vmem:[%s2841 + $0x1e8] sm:$0xff]
  %v6656 = vld [vmem:[%s2841 + $0x1f8] sm:$0xff]
  %v6657 = vld [vmem:[%s2841 + $0x200] sm:$0xff]
  %v6658 = vld [vmem:[%s2841 + $0x210] sm:$0xff]
  %v6659 = vld [vmem:[%s2841 + $0x218] sm:$0xff]
  %v6660 = vld [vmem:[%s2841 + $0x228] sm:$0xff]
  %v6661 = vld [vmem:[%s2841 + $0x230] sm:$0xff]
  %v6662 = vld [vmem:[%s2841 + $0x240] sm:$0xff]
  %v6663 = vld [vmem:[%s2841 + $0x248] sm:$0xff]
  %v6664 = vld [vmem:[%s2841 + $0x258] sm:$0xff]
  %v6665 = vld [vmem:[%s2841 + $0x260] sm:$0xff]
  %v6666 = vld [vmem:[%s2841 + $0x270] sm:$0xff]
  %v6667 = vld [vmem:[%s2841 + $0x278] sm:$0xff]
  %v6668 = vld [vmem:[%s2841 + $0x288] sm:$0xff]
  %v6669 = vld [vmem:[%s2841 + $0x290] sm:$0xff]
  %v6670 = vld [vmem:[%s2841 + $0x2a0] sm:$0xff]
  %v6671 = vld [vmem:[%s2841 + $0x2a8] sm:$0xff]
  %v6672 = vld [vmem:[%s2841 + $0x2b8] sm:$0xff]
  %v6673 = vld [vmem:[%s2841 + $0x2c0] sm:$0xff]
  %v6674 = vld [vmem:[%s2841 + $0x2d0] sm:$0xff]
  %v6675 = vld [vmem:[%s2841 + $0x2d8] sm:$0xff]
  %v6676 = vld [vmem:[%s2841 + $0x2e8] sm:$0xff]
  %v6677 = vld [vmem:[%s2841 + $0x2f0] sm:$0xff]
  %v6678 = vld [vmem:[%s2841 + $0x300] sm:$0xff]
  %v6679 = vld [vmem:[%s2841 + $0x308] sm:$0xff]
  %v6680 = vld [vmem:[%s2841 + $0x318] sm:$0xff]
  %v6681 = vld [vmem:[%s2841 + $0x320] sm:$0xff]
  %6746 = vrot.lane.b32.xlu0 %v6618, 96
  %v6747 = vpop.permute.xlu0 %6746
  %6748 = vrot.lane.b32.xlu0 %v6619, 96
  %v6749 = vpop.permute.xlu0 %6748
  %6750 = vrot.lane.b32.xlu0 %v6620, 96
  %v6751 = vpop.permute.xlu0 %6750
  %6752 = vrot.lane.b32.xlu0 %v6621, 96
  %v6753 = vpop.permute.xlu0 %6752
  %6754 = vrot.lane.b32.xlu0 %v6622, 96
  %v6755 = vpop.permute.xlu0 %6754
  %6756 = vrot.lane.b32.xlu0 %v6623, 96
  %v6757 = vpop.permute.xlu0 %6756
  %6758 = vrot.lane.b32.xlu0 %v6624, 96
  %v6759 = vpop.permute.xlu0 %6758
  %6760 = vrot.lane.b32.xlu0 %v6625, 96
  %v6761 = vpop.permute.xlu0 %6760
  %6762 = vrot.lane.b32.xlu0 %v6626, 96
  %v6763 = vpop.permute.xlu0 %6762
  %6764 = vrot.lane.b32.xlu0 %v6627, 96
  %v6765 = vpop.permute.xlu0 %6764
  %6766 = vrot.lane.b32.xlu0 %v6628, 96
  %v6767 = vpop.permute.xlu0 %6766
  %6768 = vrot.lane.b32.xlu0 %v6629, 96
  %v6769 = vpop.permute.xlu0 %6768
  %6770 = vrot.lane.b32.xlu0 %v6630, 96
  %v6771 = vpop.permute.xlu0 %6770
  %6772 = vrot.lane.b32.xlu0 %v6631, 96
  %v6773 = vpop.permute.xlu0 %6772
  %6774 = vrot.lane.b32.xlu0 %v6632, 96
  %v6775 = vpop.permute.xlu0 %6774
  %6776 = vrot.lane.b32.xlu0 %v6633, 96
  %v6777 = vpop.permute.xlu0 %6776
  %6778 = vrot.lane.b32.xlu0 %v6634, 96
  %v6779 = vpop.permute.xlu0 %6778
  %6780 = vrot.lane.b32.xlu0 %v6635, 96
  %v6781 = vpop.permute.xlu0 %6780
  %6782 = vrot.lane.b32.xlu0 %v6636, 96
  %v6783 = vpop.permute.xlu0 %6782
  %6784 = vrot.lane.b32.xlu0 %v6637, 96
  %v6785 = vpop.permute.xlu0 %6784
  %6786 = vrot.lane.b32.xlu0 %v6638, 96
  %v6787 = vpop.permute.xlu0 %6786
  %6788 = vrot.lane.b32.xlu0 %v6639, 96
  %v6789 = vpop.permute.xlu0 %6788
  %6790 = vrot.lane.b32.xlu0 %v6640, 96
  %v6791 = vpop.permute.xlu0 %6790
  %6792 = vrot.lane.b32.xlu0 %v6641, 96
  %v6793 = vpop.permute.xlu0 %6792
  %6794 = vrot.lane.b32.xlu0 %v6642, 96
  %v6795 = vpop.permute.xlu0 %6794
  %6796 = vrot.lane.b32.xlu0 %v6643, 96
  %v6797 = vpop.permute.xlu0 %6796
  %6798 = vrot.lane.b32.xlu0 %v6644, 96
  %v6799 = vpop.permute.xlu0 %6798
  %6800 = vrot.lane.b32.xlu0 %v6645, 96
  %v6801 = vpop.permute.xlu0 %6800
  %6802 = vrot.lane.b32.xlu0 %v6646, 96
  %v6803 = vpop.permute.xlu0 %6802
  %6804 = vrot.lane.b32.xlu0 %v6647, 96
  %v6805 = vpop.permute.xlu0 %6804
  %6806 = vrot.lane.b32.xlu0 %v6648, 96
  %v6807 = vpop.permute.xlu0 %6806
  %6808 = vrot.lane.b32.xlu0 %v6649, 96
  %v6809 = vpop.permute.xlu0 %6808
  %6810 = vrot.lane.b32.xlu0 %v6650, 96
  %v6811 = vpop.permute.xlu0 %6810
  %6812 = vrot.lane.b32.xlu0 %v6651, 96
  %v6813 = vpop.permute.xlu0 %6812
  %6814 = vrot.lane.b32.xlu0 %v6652, 96
  %v6815 = vpop.permute.xlu0 %6814
  %6816 = vrot.lane.b32.xlu0 %v6653, 96
  %v6817 = vpop.permute.xlu0 %6816
  %6818 = vrot.lane.b32.xlu0 %v6654, 96
  %v6819 = vpop.permute.xlu0 %6818
  %6820 = vrot.lane.b32.xlu0 %v6655, 96
  %v6821 = vpop.permute.xlu0 %6820
  %6822 = vrot.lane.b32.xlu0 %v6656, 96
  %v6823 = vpop.permute.xlu0 %6822
  %6824 = vrot.lane.b32.xlu0 %v6657, 96
  %v6825 = vpop.permute.xlu0 %6824
  %6826 = vrot.lane.b32.xlu0 %v6658, 96
  %v6827 = vpop.permute.xlu0 %6826
  %6828 = vrot.lane.b32.xlu0 %v6659, 96
  %v6829 = vpop.permute.xlu0 %6828
  %6830 = vrot.lane.b32.xlu0 %v6660, 96
  %v6831 = vpop.permute.xlu0 %6830
  %6832 = vrot.lane.b32.xlu0 %v6661, 96
  %v6833 = vpop.permute.xlu0 %6832
  %6834 = vrot.lane.b32.xlu0 %v6662, 96
  %v6835 = vpop.permute.xlu0 %6834
  %6836 = vrot.lane.b32.xlu0 %v6663, 96
  %v6837 = vpop.permute.xlu0 %6836
  %6838 = vrot.lane.b32.xlu0 %v6664, 96
  %v6839 = vpop.permute.xlu0 %6838
  %6840 = vrot.lane.b32.xlu0 %v6665, 96
  %v6841 = vpop.permute.xlu0 %6840
  %6842 = vrot.lane.b32.xlu0 %v6666, 96
  %v6843 = vpop.permute.xlu0 %6842
  %6844 = vrot.lane.b32.xlu0 %v6667, 96
  %v6845 = vpop.permute.xlu0 %6844
  %6846 = vrot.lane.b32.xlu0 %v6668, 96
  %v6847 = vpop.permute.xlu0 %6846
  %6848 = vrot.lane.b32.xlu0 %v6669, 96
  %v6849 = vpop.permute.xlu0 %6848
  %6850 = vrot.lane.b32.xlu0 %v6670, 96
  %v6851 = vpop.permute.xlu0 %6850
  %6852 = vrot.lane.b32.xlu0 %v6671, 96
  %v6853 = vpop.permute.xlu0 %6852
  %6854 = vrot.lane.b32.xlu0 %v6672, 96
  %v6855 = vpop.permute.xlu0 %6854
  %6856 = vrot.lane.b32.xlu0 %v6673, 96
  %v6857 = vpop.permute.xlu0 %6856
  %6858 = vrot.lane.b32.xlu0 %v6674, 96
  %v6859 = vpop.permute.xlu0 %6858
  %6860 = vrot.lane.b32.xlu0 %v6675, 96
  %v6861 = vpop.permute.xlu0 %6860
  %6862 = vrot.lane.b32.xlu0 %v6676, 96
  %v6863 = vpop.permute.xlu0 %6862
  %6864 = vrot.lane.b32.xlu0 %v6677, 96
  %v6865 = vpop.permute.xlu0 %6864
  %6866 = vrot.lane.b32.xlu0 %v6678, 96
  %v6867 = vpop.permute.xlu0 %6866
  %6868 = vrot.lane.b32.xlu0 %v6679, 96
  %v6869 = vpop.permute.xlu0 %6868
  %6870 = vrot.lane.b32.xlu0 %v6680, 96
  %v6871 = vpop.permute.xlu0 %6870
  %6872 = vrot.lane.b32.xlu0 %v6681, 96
  %v6873 = vpop.permute.xlu0 %6872
  %6938 = vst.msk [vmem:[#allocation3] sm:$0xff] %vm3162, %v6747
  %6939 = vst.msk [vmem:[#allocation3 + $0x10] sm:$0xff] %vm3162, %v6749
  %6940 = vst.msk [vmem:[#allocation3 + $0x20] sm:$0xff] %vm3162, %v6751
  %6941 = vst.msk [vmem:[#allocation3 + $0x30] sm:$0xff] %vm3162, %v6753
  %6942 = vst.msk [vmem:[#allocation3 + $0x40] sm:$0xff] %vm3162, %v6755
  %6943 = vst.msk [vmem:[#allocation3 + $0x50] sm:$0xff] %vm3162, %v6757
  %6944 = vst.msk [vmem:[#allocation3 + $0x60] sm:$0xff] %vm3162, %v6759
  %6945 = vst.msk [vmem:[#allocation3 + $0x70] sm:$0xff] %vm3162, %v6761
  %6946 = vst.msk [vmem:[#allocation3 + $0x80] sm:$0xff] %vm3162, %v6763
  %6947 = vst.msk [vmem:[#allocation3 + $0x90] sm:$0xff] %vm3162, %v6765
  %6948 = vst.msk [vmem:[#allocation3 + $0xa0] sm:$0xff] %vm3162, %v6767
  %6949 = vst.msk [vmem:[#allocation3 + $0xb0] sm:$0xff] %vm3162, %v6769
  %6950 = vst.msk [vmem:[#allocation3 + $0xc0] sm:$0xff] %vm3162, %v6771
  %6951 = vst.msk [vmem:[#allocation3 + $0xd0] sm:$0xff] %vm3162, %v6773
  %6952 = vst.msk [vmem:[#allocation3 + $0xe0] sm:$0xff] %vm3162, %v6775
  %6953 = vst.msk [vmem:[#allocation3 + $0xf0] sm:$0xff] %vm3162, %v6777
  %6954 = vst.msk [vmem:[#allocation3 + $0x100] sm:$0xff] %vm3162, %v6779
  %6955 = vst.msk [vmem:[#allocation3 + $0x110] sm:$0xff] %vm3162, %v6781
  %6956 = vst.msk [vmem:[#allocation3 + $0x120] sm:$0xff] %vm3162, %v6783
  %6957 = vst.msk [vmem:[#allocation3 + $0x130] sm:$0xff] %vm3162, %v6785
  %6958 = vst.msk [vmem:[#allocation3 + $0x140] sm:$0xff] %vm3162, %v6787
  %6959 = vst.msk [vmem:[#allocation3 + $0x150] sm:$0xff] %vm3162, %v6789
  %6960 = vst.msk [vmem:[#allocation3 + $0x160] sm:$0xff] %vm3162, %v6791
  %6961 = vst.msk [vmem:[#allocation3 + $0x170] sm:$0xff] %vm3162, %v6793
  %6962 = vst.msk [vmem:[#allocation3 + $0x180] sm:$0xff] %vm3162, %v6795
  %6963 = vst.msk [vmem:[#allocation3 + $0x190] sm:$0xff] %vm3162, %v6797
  %6964 = vst.msk [vmem:[#allocation3 + $0x1a0] sm:$0xff] %vm3162, %v6799
  %6965 = vst.msk [vmem:[#allocation3 + $0x1b0] sm:$0xff] %vm3162, %v6801
  %6966 = vst.msk [vmem:[#allocation3 + $0x1c0] sm:$0xff] %vm3162, %v6803
  %6967 = vst.msk [vmem:[#allocation3 + $0x1d0] sm:$0xff] %vm3162, %v6805
  %6968 = vst.msk [vmem:[#allocation3 + $0x1e0] sm:$0xff] %vm3162, %v6807
  %6969 = vst.msk [vmem:[#allocation3 + $0x1f0] sm:$0xff] %vm3162, %v6809
  %6970 = vst.msk [vmem:[#allocation3 + $0x200] sm:$0xff] %vm3162, %v6811
  %6971 = vst.msk [vmem:[#allocation3 + $0x210] sm:$0xff] %vm3162, %v6813
  %6972 = vst.msk [vmem:[#allocation3 + $0x220] sm:$0xff] %vm3162, %v6815
  %6973 = vst.msk [vmem:[#allocation3 + $0x230] sm:$0xff] %vm3162, %v6817
  %6974 = vst.msk [vmem:[#allocation3 + $0x240] sm:$0xff] %vm3162, %v6819
  %6975 = vst.msk [vmem:[#allocation3 + $0x250] sm:$0xff] %vm3162, %v6821
  %6976 = vst.msk [vmem:[#allocation3 + $0x260] sm:$0xff] %vm3162, %v6823
  %6977 = vst.msk [vmem:[#allocation3 + $0x270] sm:$0xff] %vm3162, %v6825
  %6978 = vst.msk [vmem:[#allocation3 + $0x280] sm:$0xff] %vm3162, %v6827
  %6979 = vst.msk [vmem:[#allocation3 + $0x290] sm:$0xff] %vm3162, %v6829
  %6980 = vst.msk [vmem:[#allocation3 + $0x2a0] sm:$0xff] %vm3162, %v6831
  %6981 = vst.msk [vmem:[#allocation3 + $0x2b0] sm:$0xff] %vm3162, %v6833
  %6982 = vst.msk [vmem:[#allocation3 + $0x2c0] sm:$0xff] %vm3162, %v6835
  %6983 = vst.msk [vmem:[#allocation3 + $0x2d0] sm:$0xff] %vm3162, %v6837
  %6984 = vst.msk [vmem:[#allocation3 + $0x2e0] sm:$0xff] %vm3162, %v6839
  %6985 = vst.msk [vmem:[#allocation3 + $0x2f0] sm:$0xff] %vm3162, %v6841
  %6986 = vst.msk [vmem:[#allocation3 + $0x300] sm:$0xff] %vm3162, %v6843
  %6987 = vst.msk [vmem:[#allocation3 + $0x310] sm:$0xff] %vm3162, %v6845
  %6988 = vst.msk [vmem:[#allocation3 + $0x320] sm:$0xff] %vm3162, %v6847
  %6989 = vst.msk [vmem:[#allocation3 + $0x330] sm:$0xff] %vm3162, %v6849
  %6990 = vst.msk [vmem:[#allocation3 + $0x340] sm:$0xff] %vm3162, %v6851
  %6991 = vst.msk [vmem:[#allocation3 + $0x350] sm:$0xff] %vm3162, %v6853
  %6992 = vst.msk [vmem:[#allocation3 + $0x360] sm:$0xff] %vm3162, %v6855
  %6993 = vst.msk [vmem:[#allocation3 + $0x370] sm:$0xff] %vm3162, %v6857
  %6994 = vst.msk [vmem:[#allocation3 + $0x380] sm:$0xff] %vm3162, %v6859
  %6995 = vst.msk [vmem:[#allocation3 + $0x390] sm:$0xff] %vm3162, %v6861
  %6996 = vst.msk [vmem:[#allocation3 + $0x3a0] sm:$0xff] %vm3162, %v6863
  %6997 = vst.msk [vmem:[#allocation3 + $0x3b0] sm:$0xff] %vm3162, %v6865
  %6998 = vst.msk [vmem:[#allocation3 + $0x3c0] sm:$0xff] %vm3162, %v6867
  %6999 = vst.msk [vmem:[#allocation3 + $0x3d0] sm:$0xff] %vm3162, %v6869
  %7000 = vst.msk [vmem:[#allocation3 + $0x3e0] sm:$0xff] %vm3162, %v6871
  %7001 = vst.msk [vmem:[#allocation3 + $0x3f0] sm:$0xff] %vm3162, %v6873
  %v7002 = vld [vmem:[%s2841 + $0x1] sm:$0xff]
  %v7003 = vld [vmem:[%s2841 + $0x9] sm:$0xff]
  %v7004 = vld [vmem:[%s2841 + $0x19] sm:$0xff]
  %v7005 = vld [vmem:[%s2841 + $0x21] sm:$0xff]
  %v7006 = vld [vmem:[%s2841 + $0x31] sm:$0xff]
  %v7007 = vld [vmem:[%s2841 + $0x39] sm:$0xff]
  %v7008 = vld [vmem:[%s2841 + $0x49] sm:$0xff]
  %v7009 = vld [vmem:[%s2841 + $0x51] sm:$0xff]
  %v7010 = vld [vmem:[%s2841 + $0x61] sm:$0xff]
  %v7011 = vld [vmem:[%s2841 + $0x69] sm:$0xff]
  %v7012 = vld [vmem:[%s2841 + $0x79] sm:$0xff]
  %v7013 = vld [vmem:[%s2841 + $0x81] sm:$0xff]
  %v7014 = vld [vmem:[%s2841 + $0x91] sm:$0xff]
  %v7015 = vld [vmem:[%s2841 + $0x99] sm:$0xff]
  %v7016 = vld [vmem:[%s2841 + $0xa9] sm:$0xff]
  %v7017 = vld [vmem:[%s2841 + $0xb1] sm:$0xff]
  %v7018 = vld [vmem:[%s2841 + $0xc1] sm:$0xff]
  %v7019 = vld [vmem:[%s2841 + $0xc9] sm:$0xff]
  %v7020 = vld [vmem:[%s2841 + $0xd9] sm:$0xff]
  %v7021 = vld [vmem:[%s2841 + $0xe1] sm:$0xff]
  %v7022 = vld [vmem:[%s2841 + $0xf1] sm:$0xff]
  %v7023 = vld [vmem:[%s2841 + $0xf9] sm:$0xff]
  %v7024 = vld [vmem:[%s2841 + $0x109] sm:$0xff]
  %v7025 = vld [vmem:[%s2841 + $0x111] sm:$0xff]
  %v7026 = vld [vmem:[%s2841 + $0x121] sm:$0xff]
  %v7027 = vld [vmem:[%s2841 + $0x129] sm:$0xff]
  %v7028 = vld [vmem:[%s2841 + $0x139] sm:$0xff]
  %v7029 = vld [vmem:[%s2841 + $0x141] sm:$0xff]
  %v7030 = vld [vmem:[%s2841 + $0x151] sm:$0xff]
  %v7031 = vld [vmem:[%s2841 + $0x159] sm:$0xff]
  %v7032 = vld [vmem:[%s2841 + $0x169] sm:$0xff]
  %v7033 = vld [vmem:[%s2841 + $0x171] sm:$0xff]
  %v7034 = vld [vmem:[%s2841 + $0x1b1] sm:$0xff]
  %v7035 = vld [vmem:[%s2841 + $0x1b9] sm:$0xff]
  %v7036 = vld [vmem:[%s2841 + $0x1c9] sm:$0xff]
  %v7037 = vld [vmem:[%s2841 + $0x1d1] sm:$0xff]
  %v7038 = vld [vmem:[%s2841 + $0x1e1] sm:$0xff]
  %v7039 = vld [vmem:[%s2841 + $0x1e9] sm:$0xff]
  %v7040 = vld [vmem:[%s2841 + $0x1f9] sm:$0xff]
  %v7041 = vld [vmem:[%s2841 + $0x201] sm:$0xff]
  %v7042 = vld [vmem:[%s2841 + $0x211] sm:$0xff]
  %v7043 = vld [vmem:[%s2841 + $0x219] sm:$0xff]
  %v7044 = vld [vmem:[%s2841 + $0x229] sm:$0xff]
  %v7045 = vld [vmem:[%s2841 + $0x231] sm:$0xff]
  %v7046 = vld [vmem:[%s2841 + $0x241] sm:$0xff]
  %v7047 = vld [vmem:[%s2841 + $0x249] sm:$0xff]
  %v7048 = vld [vmem:[%s2841 + $0x259] sm:$0xff]
  %v7049 = vld [vmem:[%s2841 + $0x261] sm:$0xff]
  %v7050 = vld [vmem:[%s2841 + $0x271] sm:$0xff]
  %v7051 = vld [vmem:[%s2841 + $0x279] sm:$0xff]
  %v7052 = vld [vmem:[%s2841 + $0x289] sm:$0xff]
  %v7053 = vld [vmem:[%s2841 + $0x291] sm:$0xff]
  %v7054 = vld [vmem:[%s2841 + $0x2a1] sm:$0xff]
  %v7055 = vld [vmem:[%s2841 + $0x2a9] sm:$0xff]
  %v7056 = vld [vmem:[%s2841 + $0x2b9] sm:$0xff]
  %v7057 = vld [vmem:[%s2841 + $0x2c1] sm:$0xff]
  %v7058 = vld [vmem:[%s2841 + $0x2d1] sm:$0xff]
  %v7059 = vld [vmem:[%s2841 + $0x2d9] sm:$0xff]
  %v7060 = vld [vmem:[%s2841 + $0x2e9] sm:$0xff]
  %v7061 = vld [vmem:[%s2841 + $0x2f1] sm:$0xff]
  %v7062 = vld [vmem:[%s2841 + $0x301] sm:$0xff]
  %v7063 = vld [vmem:[%s2841 + $0x309] sm:$0xff]
  %v7064 = vld [vmem:[%s2841 + $0x319] sm:$0xff]
  %v7065 = vld [vmem:[%s2841 + $0x321] sm:$0xff]
  %7130 = vrot.lane.b32.xlu0 %v7002, 112
  %v7131 = vpop.permute.xlu0 %7130
  %7132 = vrot.lane.b32.xlu0 %v7003, 112
  %v7133 = vpop.permute.xlu0 %7132
  %7134 = vrot.lane.b32.xlu0 %v7004, 112
  %v7135 = vpop.permute.xlu0 %7134
  %7136 = vrot.lane.b32.xlu0 %v7005, 112
  %v7137 = vpop.permute.xlu0 %7136
  %7138 = vrot.lane.b32.xlu0 %v7006, 112
  %v7139 = vpop.permute.xlu0 %7138
  %7140 = vrot.lane.b32.xlu0 %v7007, 112
  %v7141 = vpop.permute.xlu0 %7140
  %7142 = vrot.lane.b32.xlu0 %v7008, 112
  %v7143 = vpop.permute.xlu0 %7142
  %7144 = vrot.lane.b32.xlu0 %v7009, 112
  %v7145 = vpop.permute.xlu0 %7144
  %7146 = vrot.lane.b32.xlu0 %v7010, 112
  %v7147 = vpop.permute.xlu0 %7146
  %7148 = vrot.lane.b32.xlu0 %v7011, 112
  %v7149 = vpop.permute.xlu0 %7148
  %7150 = vrot.lane.b32.xlu0 %v7012, 112
  %v7151 = vpop.permute.xlu0 %7150
  %7152 = vrot.lane.b32.xlu0 %v7013, 112
  %v7153 = vpop.permute.xlu0 %7152
  %7154 = vrot.lane.b32.xlu0 %v7014, 112
  %v7155 = vpop.permute.xlu0 %7154
  %7156 = vrot.lane.b32.xlu0 %v7015, 112
  %v7157 = vpop.permute.xlu0 %7156
  %7158 = vrot.lane.b32.xlu0 %v7016, 112
  %v7159 = vpop.permute.xlu0 %7158
  %7160 = vrot.lane.b32.xlu0 %v7017, 112
  %v7161 = vpop.permute.xlu0 %7160
  %7162 = vrot.lane.b32.xlu0 %v7018, 112
  %v7163 = vpop.permute.xlu0 %7162
  %7164 = vrot.lane.b32.xlu0 %v7019, 112
  %v7165 = vpop.permute.xlu0 %7164
  %7166 = vrot.lane.b32.xlu0 %v7020, 112
  %v7167 = vpop.permute.xlu0 %7166
  %7168 = vrot.lane.b32.xlu0 %v7021, 112
  %v7169 = vpop.permute.xlu0 %7168
  %7170 = vrot.lane.b32.xlu0 %v7022, 112
  %v7171 = vpop.permute.xlu0 %7170
  %7172 = vrot.lane.b32.xlu0 %v7023, 112
  %v7173 = vpop.permute.xlu0 %7172
  %7174 = vrot.lane.b32.xlu0 %v7024, 112
  %v7175 = vpop.permute.xlu0 %7174
  %7176 = vrot.lane.b32.xlu0 %v7025, 112
  %v7177 = vpop.permute.xlu0 %7176
  %7178 = vrot.lane.b32.xlu0 %v7026, 112
  %v7179 = vpop.permute.xlu0 %7178
  %7180 = vrot.lane.b32.xlu0 %v7027, 112
  %v7181 = vpop.permute.xlu0 %7180
  %7182 = vrot.lane.b32.xlu0 %v7028, 112
  %v7183 = vpop.permute.xlu0 %7182
  %7184 = vrot.lane.b32.xlu0 %v7029, 112
  %v7185 = vpop.permute.xlu0 %7184
  %7186 = vrot.lane.b32.xlu0 %v7030, 112
  %v7187 = vpop.permute.xlu0 %7186
  %7188 = vrot.lane.b32.xlu0 %v7031, 112
  %v7189 = vpop.permute.xlu0 %7188
  %7190 = vrot.lane.b32.xlu0 %v7032, 112
  %v7191 = vpop.permute.xlu0 %7190
  %7192 = vrot.lane.b32.xlu0 %v7033, 112
  %v7193 = vpop.permute.xlu0 %7192
  %7194 = vrot.lane.b32.xlu0 %v7034, 112
  %v7195 = vpop.permute.xlu0 %7194
  %7196 = vrot.lane.b32.xlu0 %v7035, 112
  %v7197 = vpop.permute.xlu0 %7196
  %7198 = vrot.lane.b32.xlu0 %v7036, 112
  %v7199 = vpop.permute.xlu0 %7198
  %7200 = vrot.lane.b32.xlu0 %v7037, 112
  %v7201 = vpop.permute.xlu0 %7200
  %7202 = vrot.lane.b32.xlu0 %v7038, 112
  %v7203 = vpop.permute.xlu0 %7202
  %7204 = vrot.lane.b32.xlu0 %v7039, 112
  %v7205 = vpop.permute.xlu0 %7204
  %7206 = vrot.lane.b32.xlu0 %v7040, 112
  %v7207 = vpop.permute.xlu0 %7206
  %7208 = vrot.lane.b32.xlu0 %v7041, 112
  %v7209 = vpop.permute.xlu0 %7208
  %7210 = vrot.lane.b32.xlu0 %v7042, 112
  %v7211 = vpop.permute.xlu0 %7210
  %7212 = vrot.lane.b32.xlu0 %v7043, 112
  %v7213 = vpop.permute.xlu0 %7212
  %7214 = vrot.lane.b32.xlu0 %v7044, 112
  %v7215 = vpop.permute.xlu0 %7214
  %7216 = vrot.lane.b32.xlu0 %v7045, 112
  %v7217 = vpop.permute.xlu0 %7216
  %7218 = vrot.lane.b32.xlu0 %v7046, 112
  %v7219 = vpop.permute.xlu0 %7218
  %7220 = vrot.lane.b32.xlu0 %v7047, 112
  %v7221 = vpop.permute.xlu0 %7220
  %7222 = vrot.lane.b32.xlu0 %v7048, 112
  %v7223 = vpop.permute.xlu0 %7222
  %7224 = vrot.lane.b32.xlu0 %v7049, 112
  %v7225 = vpop.permute.xlu0 %7224
  %7226 = vrot.lane.b32.xlu0 %v7050, 112
  %v7227 = vpop.permute.xlu0 %7226
  %7228 = vrot.lane.b32.xlu0 %v7051, 112
  %v7229 = vpop.permute.xlu0 %7228
  %7230 = vrot.lane.b32.xlu0 %v7052, 112
  %v7231 = vpop.permute.xlu0 %7230
  %7232 = vrot.lane.b32.xlu0 %v7053, 112
  %v7233 = vpop.permute.xlu0 %7232
  %7234 = vrot.lane.b32.xlu0 %v7054, 112
  %v7235 = vpop.permute.xlu0 %7234
  %7236 = vrot.lane.b32.xlu0 %v7055, 112
  %v7237 = vpop.permute.xlu0 %7236
  %7238 = vrot.lane.b32.xlu0 %v7056, 112
  %v7239 = vpop.permute.xlu0 %7238
  %7240 = vrot.lane.b32.xlu0 %v7057, 112
  %v7241 = vpop.permute.xlu0 %7240
  %7242 = vrot.lane.b32.xlu0 %v7058, 112
  %v7243 = vpop.permute.xlu0 %7242
  %7244 = vrot.lane.b32.xlu0 %v7059, 112
  %v7245 = vpop.permute.xlu0 %7244
  %7246 = vrot.lane.b32.xlu0 %v7060, 112
  %v7247 = vpop.permute.xlu0 %7246
  %7248 = vrot.lane.b32.xlu0 %v7061, 112
  %v7249 = vpop.permute.xlu0 %7248
  %7250 = vrot.lane.b32.xlu0 %v7062, 112
  %v7251 = vpop.permute.xlu0 %7250
  %7252 = vrot.lane.b32.xlu0 %v7063, 112
  %v7253 = vpop.permute.xlu0 %7252
  %7254 = vrot.lane.b32.xlu0 %v7064, 112
  %v7255 = vpop.permute.xlu0 %7254
  %7256 = vrot.lane.b32.xlu0 %v7065, 112
  %v7257 = vpop.permute.xlu0 %7256
  %7322 = vst.msk [vmem:[#allocation3] sm:$0xff] %vm3547, %v7131
  %7323 = vst.msk [vmem:[#allocation3 + $0x10] sm:$0xff] %vm3547, %v7133
  %7324 = vst.msk [vmem:[#allocation3 + $0x20] sm:$0xff] %vm3547, %v7135
  %7325 = vst.msk [vmem:[#allocation3 + $0x30] sm:$0xff] %vm3547, %v7137
  %7326 = vst.msk [vmem:[#allocation3 + $0x40] sm:$0xff] %vm3547, %v7139
  %7327 = vst.msk [vmem:[#allocation3 + $0x50] sm:$0xff] %vm3547, %v7141
  %7328 = vst.msk [vmem:[#allocation3 + $0x60] sm:$0xff] %vm3547, %v7143
  %7329 = vst.msk [vmem:[#allocation3 + $0x70] sm:$0xff] %vm3547, %v7145
  %7330 = vst.msk [vmem:[#allocation3 + $0x80] sm:$0xff] %vm3547, %v7147
  %7331 = vst.msk [vmem:[#allocation3 + $0x90] sm:$0xff] %vm3547, %v7149
  %7332 = vst.msk [vmem:[#allocation3 + $0xa0] sm:$0xff] %vm3547, %v7151
  %7333 = vst.msk [vmem:[#allocation3 + $0xb0] sm:$0xff] %vm3547, %v7153
  %7334 = vst.msk [vmem:[#allocation3 + $0xc0] sm:$0xff] %vm3547, %v7155
  %7335 = vst.msk [vmem:[#allocation3 + $0xd0] sm:$0xff] %vm3547, %v7157
  %7336 = vst.msk [vmem:[#allocation3 + $0xe0] sm:$0xff] %vm3547, %v7159
  %7337 = vst.msk [vmem:[#allocation3 + $0xf0] sm:$0xff] %vm3547, %v7161
  %7338 = vst.msk [vmem:[#allocation3 + $0x100] sm:$0xff] %vm3547, %v7163
  %7339 = vst.msk [vmem:[#allocation3 + $0x110] sm:$0xff] %vm3547, %v7165
  %7340 = vst.msk [vmem:[#allocation3 + $0x120] sm:$0xff] %vm3547, %v7167
  %7341 = vst.msk [vmem:[#allocation3 + $0x130] sm:$0xff] %vm3547, %v7169
  %7342 = vst.msk [vmem:[#allocation3 + $0x140] sm:$0xff] %vm3547, %v7171
  %7343 = vst.msk [vmem:[#allocation3 + $0x150] sm:$0xff] %vm3547, %v7173
  %7344 = vst.msk [vmem:[#allocation3 + $0x160] sm:$0xff] %vm3547, %v7175
  %7345 = vst.msk [vmem:[#allocation3 + $0x170] sm:$0xff] %vm3547, %v7177
  %7346 = vst.msk [vmem:[#allocation3 + $0x180] sm:$0xff] %vm3547, %v7179
  %7347 = vst.msk [vmem:[#allocation3 + $0x190] sm:$0xff] %vm3547, %v7181
  %7348 = vst.msk [vmem:[#allocation3 + $0x1a0] sm:$0xff] %vm3547, %v7183
  %7349 = vst.msk [vmem:[#allocation3 + $0x1b0] sm:$0xff] %vm3547, %v7185
  %7350 = vst.msk [vmem:[#allocation3 + $0x1c0] sm:$0xff] %vm3547, %v7187
  %7351 = vst.msk [vmem:[#allocation3 + $0x1d0] sm:$0xff] %vm3547, %v7189
  %7352 = vst.msk [vmem:[#allocation3 + $0x1e0] sm:$0xff] %vm3547, %v7191
  %7353 = vst.msk [vmem:[#allocation3 + $0x1f0] sm:$0xff] %vm3547, %v7193
  %7354 = vst.msk [vmem:[#allocation3 + $0x200] sm:$0xff] %vm3547, %v7195
  %7355 = vst.msk [vmem:[#allocation3 + $0x210] sm:$0xff] %vm3547, %v7197
  %7356 = vst.msk [vmem:[#allocation3 + $0x220] sm:$0xff] %vm3547, %v7199
  %7357 = vst.msk [vmem:[#allocation3 + $0x230] sm:$0xff] %vm3547, %v7201
  %7358 = vst.msk [vmem:[#allocation3 + $0x240] sm:$0xff] %vm3547, %v7203
  %7359 = vst.msk [vmem:[#allocation3 + $0x250] sm:$0xff] %vm3547, %v7205
  %7360 = vst.msk [vmem:[#allocation3 + $0x260] sm:$0xff] %vm3547, %v7207
  %7361 = vst.msk [vmem:[#allocation3 + $0x270] sm:$0xff] %vm3547, %v7209
  %7362 = vst.msk [vmem:[#allocation3 + $0x280] sm:$0xff] %vm3547, %v7211
  %7363 = vst.msk [vmem:[#allocation3 + $0x290] sm:$0xff] %vm3547, %v7213
  %7364 = vst.msk [vmem:[#allocation3 + $0x2a0] sm:$0xff] %vm3547, %v7215
  %7365 = vst.msk [vmem:[#allocation3 + $0x2b0] sm:$0xff] %vm3547, %v7217
  %7366 = vst.msk [vmem:[#allocation3 + $0x2c0] sm:$0xff] %vm3547, %v7219
  %7367 = vst.msk [vmem:[#allocation3 + $0x2d0] sm:$0xff] %vm3547, %v7221
  %7368 = vst.msk [vmem:[#allocation3 + $0x2e0] sm:$0xff] %vm3547, %v7223
  %7369 = vst.msk [vmem:[#allocation3 + $0x2f0] sm:$0xff] %vm3547, %v7225
  %7370 = vst.msk [vmem:[#allocation3 + $0x300] sm:$0xff] %vm3547, %v7227
  %7371 = vst.msk [vmem:[#allocation3 + $0x310] sm:$0xff] %vm3547, %v7229
  %7372 = vst.msk [vmem:[#allocation3 + $0x320] sm:$0xff] %vm3547, %v7231
  %7373 = vst.msk [vmem:[#allocation3 + $0x330] sm:$0xff] %vm3547, %v7233
  %7374 = vst.msk [vmem:[#allocation3 + $0x340] sm:$0xff] %vm3547, %v7235
  %7375 = vst.msk [vmem:[#allocation3 + $0x350] sm:$0xff] %vm3547, %v7237
  %7376 = vst.msk [vmem:[#allocation3 + $0x360] sm:$0xff] %vm3547, %v7239
  %7377 = vst.msk [vmem:[#allocation3 + $0x370] sm:$0xff] %vm3547, %v7241
  %7378 = vst.msk [vmem:[#allocation3 + $0x380] sm:$0xff] %vm3547, %v7243
  %7379 = vst.msk [vmem:[#allocation3 + $0x390] sm:$0xff] %vm3547, %v7245
  %7380 = vst.msk [vmem:[#allocation3 + $0x3a0] sm:$0xff] %vm3547, %v7247
  %7381 = vst.msk [vmem:[#allocation3 + $0x3b0] sm:$0xff] %vm3547, %v7249
  %7382 = vst.msk [vmem:[#allocation3 + $0x3c0] sm:$0xff] %vm3547, %v7251
  %7383 = vst.msk [vmem:[#allocation3 + $0x3d0] sm:$0xff] %vm3547, %v7253
  %7384 = vst.msk [vmem:[#allocation3 + $0x3e0] sm:$0xff] %vm3547, %v7255
  %7385 = vst.msk [vmem:[#allocation3 + $0x3f0] sm:$0xff] %vm3547, %v7257
  %v7386 = vld [vmem:[%s2841 + $0x2] sm:$0xff]
  %v7387 = vld [vmem:[%s2841 + $0xa] sm:$0xff]
  %v7388 = vld [vmem:[%s2841 + $0x1a] sm:$0xff]
  %v7389 = vld [vmem:[%s2841 + $0x22] sm:$0xff]
  %v7390 = vld [vmem:[%s2841 + $0x32] sm:$0xff]
  %v7391 = vld [vmem:[%s2841 + $0x3a] sm:$0xff]
  %v7392 = vld [vmem:[%s2841 + $0x4a] sm:$0xff]
  %v7393 = vld [vmem:[%s2841 + $0x52] sm:$0xff]
  %v7394 = vld [vmem:[%s2841 + $0x62] sm:$0xff]
  %v7395 = vld [vmem:[%s2841 + $0x6a] sm:$0xff]
  %v7396 = vld [vmem:[%s2841 + $0x7a] sm:$0xff]
  %v7397 = vld [vmem:[%s2841 + $0x82] sm:$0xff]
  %v7398 = vld [vmem:[%s2841 + $0x92] sm:$0xff]
  %v7399 = vld [vmem:[%s2841 + $0x9a] sm:$0xff]
  %v7400 = vld [vmem:[%s2841 + $0xaa] sm:$0xff]
  %v7401 = vld [vmem:[%s2841 + $0xb2] sm:$0xff]
  %v7402 = vld [vmem:[%s2841 + $0xc2] sm:$0xff]
  %v7403 = vld [vmem:[%s2841 + $0xca] sm:$0xff]
  %v7404 = vld [vmem:[%s2841 + $0xda] sm:$0xff]
  %v7405 = vld [vmem:[%s2841 + $0xe2] sm:$0xff]
  %v7406 = vld [vmem:[%s2841 + $0xf2] sm:$0xff]
  %v7407 = vld [vmem:[%s2841 + $0xfa] sm:$0xff]
  %v7408 = vld [vmem:[%s2841 + $0x10a] sm:$0xff]
  %v7409 = vld [vmem:[%s2841 + $0x112] sm:$0xff]
  %v7410 = vld [vmem:[%s2841 + $0x122] sm:$0xff]
  %v7411 = vld [vmem:[%s2841 + $0x12a] sm:$0xff]
  %v7412 = vld [vmem:[%s2841 + $0x13a] sm:$0xff]
  %v7413 = vld [vmem:[%s2841 + $0x142] sm:$0xff]
  %v7414 = vld [vmem:[%s2841 + $0x152] sm:$0xff]
  %v7415 = vld [vmem:[%s2841 + $0x15a] sm:$0xff]
  %v7416 = vld [vmem:[%s2841 + $0x16a] sm:$0xff]
  %v7417 = vld [vmem:[%s2841 + $0x172] sm:$0xff]
  %v7418 = vld [vmem:[%s2841 + $0x1b2] sm:$0xff]
  %v7419 = vld [vmem:[%s2841 + $0x1ba] sm:$0xff]
  %v7420 = vld [vmem:[%s2841 + $0x1ca] sm:$0xff]
  %v7421 = vld [vmem:[%s2841 + $0x1d2] sm:$0xff]
  %v7422 = vld [vmem:[%s2841 + $0x1e2] sm:$0xff]
  %v7423 = vld [vmem:[%s2841 + $0x1ea] sm:$0xff]
  %v7424 = vld [vmem:[%s2841 + $0x1fa] sm:$0xff]
  %v7425 = vld [vmem:[%s2841 + $0x202] sm:$0xff]
  %v7426 = vld [vmem:[%s2841 + $0x212] sm:$0xff]
  %v7427 = vld [vmem:[%s2841 + $0x21a] sm:$0xff]
  %v7428 = vld [vmem:[%s2841 + $0x22a] sm:$0xff]
  %v7429 = vld [vmem:[%s2841 + $0x232] sm:$0xff]
  %v7430 = vld [vmem:[%s2841 + $0x242] sm:$0xff]
  %v7431 = vld [vmem:[%s2841 + $0x24a] sm:$0xff]
  %v7432 = vld [vmem:[%s2841 + $0x25a] sm:$0xff]
  %v7433 = vld [vmem:[%s2841 + $0x262] sm:$0xff]
  %v7434 = vld [vmem:[%s2841 + $0x272] sm:$0xff]
  %v7435 = vld [vmem:[%s2841 + $0x27a] sm:$0xff]
  %v7436 = vld [vmem:[%s2841 + $0x28a] sm:$0xff]
  %v7437 = vld [vmem:[%s2841 + $0x292] sm:$0xff]
  %v7438 = vld [vmem:[%s2841 + $0x2a2] sm:$0xff]
  %v7439 = vld [vmem:[%s2841 + $0x2aa] sm:$0xff]
  %v7440 = vld [vmem:[%s2841 + $0x2ba] sm:$0xff]
  %v7441 = vld [vmem:[%s2841 + $0x2c2] sm:$0xff]
  %v7442 = vld [vmem:[%s2841 + $0x2d2] sm:$0xff]
  %v7443 = vld [vmem:[%s2841 + $0x2da] sm:$0xff]
  %v7444 = vld [vmem:[%s2841 + $0x2ea] sm:$0xff]
  %v7445 = vld [vmem:[%s2841 + $0x2f2] sm:$0xff]
  %v7446 = vld [vmem:[%s2841 + $0x302] sm:$0xff]
  %v7447 = vld [vmem:[%s2841 + $0x30a] sm:$0xff]
  %v7448 = vld [vmem:[%s2841 + $0x31a] sm:$0xff]
  %v7449 = vld [vmem:[%s2841 + $0x322] sm:$0xff]
  %7450 = vst.msk [vmem:[#allocation3 + $0x8] sm:$0xff] %vm613, %v7386
  %7451 = vst.msk [vmem:[#allocation3 + $0x18] sm:$0xff] %vm613, %v7387
  %7452 = vst.msk [vmem:[#allocation3 + $0x28] sm:$0xff] %vm613, %v7388
  %7453 = vst.msk [vmem:[#allocation3 + $0x38] sm:$0xff] %vm613, %v7389
  %7454 = vst.msk [vmem:[#allocation3 + $0x48] sm:$0xff] %vm613, %v7390
  %7455 = vst.msk [vmem:[#allocation3 + $0x58] sm:$0xff] %vm613, %v7391
  %7456 = vst.msk [vmem:[#allocation3 + $0x68] sm:$0xff] %vm613, %v7392
  %7457 = vst.msk [vmem:[#allocation3 + $0x78] sm:$0xff] %vm613, %v7393
  %7458 = vst.msk [vmem:[#allocation3 + $0x88] sm:$0xff] %vm613, %v7394
  %7459 = vst.msk [vmem:[#allocation3 + $0x98] sm:$0xff] %vm613, %v7395
  %7460 = vst.msk [vmem:[#allocation3 + $0xa8] sm:$0xff] %vm613, %v7396
  %7461 = vst.msk [vmem:[#allocation3 + $0xb8] sm:$0xff] %vm613, %v7397
  %7462 = vst.msk [vmem:[#allocation3 + $0xc8] sm:$0xff] %vm613, %v7398
  %7463 = vst.msk [vmem:[#allocation3 + $0xd8] sm:$0xff] %vm613, %v7399
  %7464 = vst.msk [vmem:[#allocation3 + $0xe8] sm:$0xff] %vm613, %v7400
  %7465 = vst.msk [vmem:[#allocation3 + $0xf8] sm:$0xff] %vm613, %v7401
  %7466 = vst.msk [vmem:[#allocation3 + $0x108] sm:$0xff] %vm613, %v7402
  %7467 = vst.msk [vmem:[#allocation3 + $0x118] sm:$0xff] %vm613, %v7403
  %7468 = vst.msk [vmem:[#allocation3 + $0x128] sm:$0xff] %vm613, %v7404
  %7469 = vst.msk [vmem:[#allocation3 + $0x138] sm:$0xff] %vm613, %v7405
  %7470 = vst.msk [vmem:[#allocation3 + $0x148] sm:$0xff] %vm613, %v7406
  %7471 = vst.msk [vmem:[#allocation3 + $0x158] sm:$0xff] %vm613, %v7407
  %7472 = vst.msk [vmem:[#allocation3 + $0x168] sm:$0xff] %vm613, %v7408
  %7473 = vst.msk [vmem:[#allocation3 + $0x178] sm:$0xff] %vm613, %v7409
  %7474 = vst.msk [vmem:[#allocation3 + $0x188] sm:$0xff] %vm613, %v7410
  %7475 = vst.msk [vmem:[#allocation3 + $0x198] sm:$0xff] %vm613, %v7411
  %7476 = vst.msk [vmem:[#allocation3 + $0x1a8] sm:$0xff] %vm613, %v7412
  %7477 = vst.msk [vmem:[#allocation3 + $0x1b8] sm:$0xff] %vm613, %v7413
  %7478 = vst.msk [vmem:[#allocation3 + $0x1c8] sm:$0xff] %vm613, %v7414
  %7479 = vst.msk [vmem:[#allocation3 + $0x1d8] sm:$0xff] %vm613, %v7415
  %7480 = vst.msk [vmem:[#allocation3 + $0x1e8] sm:$0xff] %vm613, %v7416
  %7481 = vst.msk [vmem:[#allocation3 + $0x1f8] sm:$0xff] %vm613, %v7417
  %7482 = vst.msk [vmem:[#allocation3 + $0x208] sm:$0xff] %vm613, %v7418
  %7483 = vst.msk [vmem:[#allocation3 + $0x218] sm:$0xff] %vm613, %v7419
  %7484 = vst.msk [vmem:[#allocation3 + $0x228] sm:$0xff] %vm613, %v7420
  %7485 = vst.msk [vmem:[#allocation3 + $0x238] sm:$0xff] %vm613, %v7421
  %7486 = vst.msk [vmem:[#allocation3 + $0x248] sm:$0xff] %vm613, %v7422
  %7487 = vst.msk [vmem:[#allocation3 + $0x258] sm:$0xff] %vm613, %v7423
  %7488 = vst.msk [vmem:[#allocation3 + $0x268] sm:$0xff] %vm613, %v7424
  %7489 = vst.msk [vmem:[#allocation3 + $0x278] sm:$0xff] %vm613, %v7425
  %7490 = vst.msk [vmem:[#allocation3 + $0x288] sm:$0xff] %vm613, %v7426
  %7491 = vst.msk [vmem:[#allocation3 + $0x298] sm:$0xff] %vm613, %v7427
  %7492 = vst.msk [vmem:[#allocation3 + $0x2a8] sm:$0xff] %vm613, %v7428
  %7493 = vst.msk [vmem:[#allocation3 + $0x2b8] sm:$0xff] %vm613, %v7429
  %7494 = vst.msk [vmem:[#allocation3 + $0x2c8] sm:$0xff] %vm613, %v7430
  %7495 = vst.msk [vmem:[#allocation3 + $0x2d8] sm:$0xff] %vm613, %v7431
  %7496 = vst.msk [vmem:[#allocation3 + $0x2e8] sm:$0xff] %vm613, %v7432
  %7497 = vst.msk [vmem:[#allocation3 + $0x2f8] sm:$0xff] %vm613, %v7433
  %7498 = vst.msk [vmem:[#allocation3 + $0x308] sm:$0xff] %vm613, %v7434
  %7499 = vst.msk [vmem:[#allocation3 + $0x318] sm:$0xff] %vm613, %v7435
  %7500 = vst.msk [vmem:[#allocation3 + $0x328] sm:$0xff] %vm613, %v7436
  %7501 = vst.msk [vmem:[#allocation3 + $0x338] sm:$0xff] %vm613, %v7437
  %7502 = vst.msk [vmem:[#allocation3 + $0x348] sm:$0xff] %vm613, %v7438
  %7503 = vst.msk [vmem:[#allocation3 + $0x358] sm:$0xff] %vm613, %v7439
  %7504 = vst.msk [vmem:[#allocation3 + $0x368] sm:$0xff] %vm613, %v7440
  %7505 = vst.msk [vmem:[#allocation3 + $0x378] sm:$0xff] %vm613, %v7441
  %7506 = vst.msk [vmem:[#allocation3 + $0x388] sm:$0xff] %vm613, %v7442
  %7507 = vst.msk [vmem:[#allocation3 + $0x398] sm:$0xff] %vm613, %v7443
  %7508 = vst.msk [vmem:[#allocation3 + $0x3a8] sm:$0xff] %vm613, %v7444
  %7509 = vst.msk [vmem:[#allocation3 + $0x3b8] sm:$0xff] %vm613, %v7445
  %7510 = vst.msk [vmem:[#allocation3 + $0x3c8] sm:$0xff] %vm613, %v7446
  %7511 = vst.msk [vmem:[#allocation3 + $0x3d8] sm:$0xff] %vm613, %v7447
  %7512 = vst.msk [vmem:[#allocation3 + $0x3e8] sm:$0xff] %vm613, %v7448
  %7513 = vst.msk [vmem:[#allocation3 + $0x3f8] sm:$0xff] %vm613, %v7449
  %v7514 = vld [vmem:[#allocation3] sm:$0xff]
  %v7515 = vld [vmem:[#allocation3 + $0x8] sm:$0xff]
  %v7516 = vld [vmem:[#allocation3 + $0x10] sm:$0xff]
  %v7517 = vld [vmem:[#allocation3 + $0x18] sm:$0xff]
  %v7518 = vld [vmem:[#allocation3 + $0x20] sm:$0xff]
  %v7519 = vld [vmem:[#allocation3 + $0x28] sm:$0xff]
  %v7520 = vld [vmem:[#allocation3 + $0x30] sm:$0xff]
  %v7521 = vld [vmem:[#allocation3 + $0x38] sm:$0xff]
  %v7522 = vld [vmem:[#allocation3 + $0x40] sm:$0xff]
  %v7523 = vld [vmem:[#allocation3 + $0x48] sm:$0xff]
  %v7524 = vld [vmem:[#allocation3 + $0x50] sm:$0xff]
  %v7525 = vld [vmem:[#allocation3 + $0x58] sm:$0xff]
  %v7526 = vld [vmem:[#allocation3 + $0x60] sm:$0xff]
  %v7527 = vld [vmem:[#allocation3 + $0x68] sm:$0xff]
  %v7528 = vld [vmem:[#allocation3 + $0x70] sm:$0xff]
  %v7529 = vld [vmem:[#allocation3 + $0x78] sm:$0xff]
  %v7530 = vld [vmem:[#allocation3 + $0x80] sm:$0xff]
  %v7531 = vld [vmem:[#allocation3 + $0x88] sm:$0xff]
  %v7532 = vld [vmem:[#allocation3 + $0x90] sm:$0xff]
  %v7533 = vld [vmem:[#allocation3 + $0x98] sm:$0xff]
  %v7534 = vld [vmem:[#allocation3 + $0xa0] sm:$0xff]
  %v7535 = vld [vmem:[#allocation3 + $0xa8] sm:$0xff]
  %v7536 = vld [vmem:[#allocation3 + $0xb0] sm:$0xff]
  %v7537 = vld [vmem:[#allocation3 + $0xb8] sm:$0xff]
  %v7538 = vld [vmem:[#allocation3 + $0xc0] sm:$0xff]
  %v7539 = vld [vmem:[#allocation3 + $0xc8] sm:$0xff]
  %v7540 = vld [vmem:[#allocation3 + $0xd0] sm:$0xff]
  %v7541 = vld [vmem:[#allocation3 + $0xd8] sm:$0xff]
  %v7542 = vld [vmem:[#allocation3 + $0xe0] sm:$0xff]
  %v7543 = vld [vmem:[#allocation3 + $0xe8] sm:$0xff]
  %v7544 = vld [vmem:[#allocation3 + $0xf0] sm:$0xff]
  %v7545 = vld [vmem:[#allocation3 + $0xf8] sm:$0xff]
  %v7546 = vld [vmem:[#allocation3 + $0x100] sm:$0xff]
  %v7547 = vld [vmem:[#allocation3 + $0x108] sm:$0xff]
  %v7548 = vld [vmem:[#allocation3 + $0x110] sm:$0xff]
  %v7549 = vld [vmem:[#allocation3 + $0x118] sm:$0xff]
  %v7550 = vld [vmem:[#allocation3 + $0x120] sm:$0xff]
  %v7551 = vld [vmem:[#allocation3 + $0x128] sm:$0xff]
  %v7552 = vld [vmem:[#allocation3 + $0x130] sm:$0xff]
  %v7553 = vld [vmem:[#allocation3 + $0x138] sm:$0xff]
  %v7554 = vld [vmem:[#allocation3 + $0x140] sm:$0xff]
  %v7555 = vld [vmem:[#allocation3 + $0x148] sm:$0xff]
  %v7556 = vld [vmem:[#allocation3 + $0x150] sm:$0xff]
  %v7557 = vld [vmem:[#allocation3 + $0x158] sm:$0xff]
  %v7558 = vld [vmem:[#allocation3 + $0x160] sm:$0xff]
  %v7559 = vld [vmem:[#allocation3 + $0x168] sm:$0xff]
  %v7560 = vld [vmem:[#allocation3 + $0x170] sm:$0xff]
  %v7561 = vld [vmem:[#allocation3 + $0x178] sm:$0xff]
  %v7562 = vld [vmem:[#allocation3 + $0x180] sm:$0xff]
  %v7563 = vld [vmem:[#allocation3 + $0x188] sm:$0xff]
  %v7564 = vld [vmem:[#allocation3 + $0x190] sm:$0xff]
  %v7565 = vld [vmem:[#allocation3 + $0x198] sm:$0xff]
  %v7566 = vld [vmem:[#allocation3 + $0x1a0] sm:$0xff]
  %v7567 = vld [vmem:[#allocation3 + $0x1a8] sm:$0xff]
  %v7568 = vld [vmem:[#allocation3 + $0x1b0] sm:$0xff]
  %v7569 = vld [vmem:[#allocation3 + $0x1b8] sm:$0xff]
  %v7570 = vld [vmem:[#allocation3 + $0x1c0] sm:$0xff]
  %v7571 = vld [vmem:[#allocation3 + $0x1c8] sm:$0xff]
  %v7572 = vld [vmem:[#allocation3 + $0x1d0] sm:$0xff]
  %v7573 = vld [vmem:[#allocation3 + $0x1d8] sm:$0xff]
  %v7574 = vld [vmem:[#allocation3 + $0x1e0] sm:$0xff]
  %v7575 = vld [vmem:[#allocation3 + $0x1e8] sm:$0xff]
  %v7576 = vld [vmem:[#allocation3 + $0x1f0] sm:$0xff]
  %v7577 = vld [vmem:[#allocation3 + $0x1f8] sm:$0xff]
  %v7578 = vld [vmem:[#allocation3 + $0x200] sm:$0xff]
  %v7579 = vld [vmem:[#allocation3 + $0x208] sm:$0xff]
  %v7580 = vld [vmem:[#allocation3 + $0x210] sm:$0xff]
  %v7581 = vld [vmem:[#allocation3 + $0x218] sm:$0xff]
  %v7582 = vld [vmem:[#allocation3 + $0x220] sm:$0xff]
  %v7583 = vld [vmem:[#allocation3 + $0x228] sm:$0xff]
  %v7584 = vld [vmem:[#allocation3 + $0x230] sm:$0xff]
  %v7585 = vld [vmem:[#allocation3 + $0x238] sm:$0xff]
  %v7586 = vld [vmem:[#allocation3 + $0x240] sm:$0xff]
  %v7587 = vld [vmem:[#allocation3 + $0x248] sm:$0xff]
  %v7588 = vld [vmem:[#allocation3 + $0x250] sm:$0xff]
  %v7589 = vld [vmem:[#allocation3 + $0x258] sm:$0xff]
  %v7590 = vld [vmem:[#allocation3 + $0x260] sm:$0xff]
  %v7591 = vld [vmem:[#allocation3 + $0x268] sm:$0xff]
  %v7592 = vld [vmem:[#allocation3 + $0x270] sm:$0xff]
  %v7593 = vld [vmem:[#allocation3 + $0x278] sm:$0xff]
  %v7594 = vld [vmem:[#allocation3 + $0x280] sm:$0xff]
  %v7595 = vld [vmem:[#allocation3 + $0x288] sm:$0xff]
  %v7596 = vld [vmem:[#allocation3 + $0x290] sm:$0xff]
  %v7597 = vld [vmem:[#allocation3 + $0x298] sm:$0xff]
  %v7598 = vld [vmem:[#allocation3 + $0x2a0] sm:$0xff]
  %v7599 = vld [vmem:[#allocation3 + $0x2a8] sm:$0xff]
  %v7600 = vld [vmem:[#allocation3 + $0x2b0] sm:$0xff]
  %v7601 = vld [vmem:[#allocation3 + $0x2b8] sm:$0xff]
  %v7602 = vld [vmem:[#allocation3 + $0x2c0] sm:$0xff]
  %v7603 = vld [vmem:[#allocation3 + $0x2c8] sm:$0xff]
  %v7604 = vld [vmem:[#allocation3 + $0x2d0] sm:$0xff]
  %v7605 = vld [vmem:[#allocation3 + $0x2d8] sm:$0xff]
  %v7606 = vld [vmem:[#allocation3 + $0x2e0] sm:$0xff]
  %v7607 = vld [vmem:[#allocation3 + $0x2e8] sm:$0xff]
  %v7608 = vld [vmem:[#allocation3 + $0x2f0] sm:$0xff]
  %v7609 = vld [vmem:[#allocation3 + $0x2f8] sm:$0xff]
  %v7610 = vld [vmem:[#allocation3 + $0x300] sm:$0xff]
  %v7611 = vld [vmem:[#allocation3 + $0x308] sm:$0xff]
  %v7612 = vld [vmem:[#allocation3 + $0x310] sm:$0xff]
  %v7613 = vld [vmem:[#allocation3 + $0x318] sm:$0xff]
  %v7614 = vld [vmem:[#allocation3 + $0x320] sm:$0xff]
  %v7615 = vld [vmem:[#allocation3 + $0x328] sm:$0xff]
  %v7616 = vld [vmem:[#allocation3 + $0x330] sm:$0xff]
  %v7617 = vld [vmem:[#allocation3 + $0x338] sm:$0xff]
  %v7618 = vld [vmem:[#allocation3 + $0x340] sm:$0xff]
  %v7619 = vld [vmem:[#allocation3 + $0x348] sm:$0xff]
  %v7620 = vld [vmem:[#allocation3 + $0x350] sm:$0xff]
  %v7621 = vld [vmem:[#allocation3 + $0x358] sm:$0xff]
  %v7622 = vld [vmem:[#allocation3 + $0x360] sm:$0xff]
  %v7623 = vld [vmem:[#allocation3 + $0x368] sm:$0xff]
  %v7624 = vld [vmem:[#allocation3 + $0x370] sm:$0xff]
  %v7625 = vld [vmem:[#allocation3 + $0x378] sm:$0xff]
  %v7626 = vld [vmem:[#allocation3 + $0x380] sm:$0xff]
  %v7627 = vld [vmem:[#allocation3 + $0x388] sm:$0xff]
  %v7628 = vld [vmem:[#allocation3 + $0x390] sm:$0xff]
  %v7629 = vld [vmem:[#allocation3 + $0x398] sm:$0xff]
  %v7630 = vld [vmem:[#allocation3 + $0x3a0] sm:$0xff]
  %v7631 = vld [vmem:[#allocation3 + $0x3a8] sm:$0xff]
  %v7632 = vld [vmem:[#allocation3 + $0x3b0] sm:$0xff]
  %v7633 = vld [vmem:[#allocation3 + $0x3b8] sm:$0xff]
  %v7634 = vld [vmem:[#allocation3 + $0x3c0] sm:$0xff]
  %v7635 = vld [vmem:[#allocation3 + $0x3c8] sm:$0xff]
  %v7636 = vld [vmem:[#allocation3 + $0x3d0] sm:$0xff]
  %v7637 = vld [vmem:[#allocation3 + $0x3d8] sm:$0xff]
  %v7638 = vld [vmem:[#allocation3 + $0x3e0] sm:$0xff]
  %v7639 = vld [vmem:[#allocation3 + $0x3e8] sm:$0xff]
  %v7640 = vld [vmem:[#allocation3 + $0x3f0] sm:$0xff]
  %v7641 = vld [vmem:[#allocation3 + $0x3f8] sm:$0xff]
  %v7642 = vpack.c.bf16 %v7516, %v7514
  %v7643 = vpack.c.bf16 %v7517, %v7515
  %v7644 = vpack.c.bf16 %v7520, %v7518
  %v7645 = vpack.c.bf16 %v7521, %v7519
  %v7646 = vpack.c.bf16 %v7524, %v7522
  %v7647 = vpack.c.bf16 %v7525, %v7523
  %v7648 = vpack.c.bf16 %v7528, %v7526
  %v7649 = vpack.c.bf16 %v7529, %v7527
  %v7650 = vpack.c.bf16 %v7532, %v7530
  %v7651 = vpack.c.bf16 %v7533, %v7531
  %v7652 = vpack.c.bf16 %v7536, %v7534
  %v7653 = vpack.c.bf16 %v7537, %v7535
  %v7654 = vpack.c.bf16 %v7540, %v7538
  %v7655 = vpack.c.bf16 %v7541, %v7539
  %v7656 = vpack.c.bf16 %v7544, %v7542
  %v7657 = vpack.c.bf16 %v7545, %v7543
  %v7658 = vpack.c.bf16 %v7548, %v7546
  %v7659 = vpack.c.bf16 %v7549, %v7547
  %v7660 = vpack.c.bf16 %v7552, %v7550
  %v7661 = vpack.c.bf16 %v7553, %v7551
  %v7662 = vpack.c.bf16 %v7556, %v7554
  %v7663 = vpack.c.bf16 %v7557, %v7555
  %v7664 = vpack.c.bf16 %v7560, %v7558
  %v7665 = vpack.c.bf16 %v7561, %v7559
  %v7666 = vpack.c.bf16 %v7564, %v7562
  %v7667 = vpack.c.bf16 %v7565, %v7563
  %v7668 = vpack.c.bf16 %v7568, %v7566
  %v7669 = vpack.c.bf16 %v7569, %v7567
  %v7670 = vpack.c.bf16 %v7572, %v7570
  %v7671 = vpack.c.bf16 %v7573, %v7571
  %v7672 = vpack.c.bf16 %v7576, %v7574
  %v7673 = vpack.c.bf16 %v7577, %v7575
  %v7674 = vpack.c.bf16 %v7580, %v7578
  %v7675 = vpack.c.bf16 %v7581, %v7579
  %v7676 = vpack.c.bf16 %v7584, %v7582
  %v7677 = vpack.c.bf16 %v7585, %v7583
  %v7678 = vpack.c.bf16 %v7588, %v7586
  %v7679 = vpack.c.bf16 %v7589, %v7587
  %v7680 = vpack.c.bf16 %v7592, %v7590
  %v7681 = vpack.c.bf16 %v7593, %v7591
  %v7682 = vpack.c.bf16 %v7596, %v7594
  %v7683 = vpack.c.bf16 %v7597, %v7595
  %v7684 = vpack.c.bf16 %v7600, %v7598
  %v7685 = vpack.c.bf16 %v7601, %v7599
  %v7686 = vpack.c.bf16 %v7604, %v7602
  %v7687 = vpack.c.bf16 %v7605, %v7603
  %v7688 = vpack.c.bf16 %v7608, %v7606
  %v7689 = vpack.c.bf16 %v7609, %v7607
  %v7690 = vpack.c.bf16 %v7612, %v7610
  %v7691 = vpack.c.bf16 %v7613, %v7611
  %v7692 = vpack.c.bf16 %v7616, %v7614
  %v7693 = vpack.c.bf16 %v7617, %v7615
  %v7694 = vpack.c.bf16 %v7620, %v7618
  %v7695 = vpack.c.bf16 %v7621, %v7619
  %v7696 = vpack.c.bf16 %v7624, %v7622
  %v7697 = vpack.c.bf16 %v7625, %v7623
  %v7698 = vpack.c.bf16 %v7628, %v7626
  %v7699 = vpack.c.bf16 %v7629, %v7627
  %v7700 = vpack.c.bf16 %v7632, %v7630
  %v7701 = vpack.c.bf16 %v7633, %v7631
  %v7702 = vpack.c.bf16 %v7636, %v7634
  %v7703 = vpack.c.bf16 %v7637, %v7635
  %v7704 = vpack.c.bf16 %v7640, %v7638
  %v7705 = vpack.c.bf16 %v7641, %v7639
  %v7706 = vld [vmem:[%s5] sm:$0xf]
  %v7707 = vld [vmem:[%s5 + $0x4] sm:$0xf]
  %v7708 = vld [vmem:[%s5 + $0x8] sm:$0xf]
  %v7709 = vld [vmem:[%s5 + $0xc] sm:$0xf]
  %v7710 = vld [vmem:[%s5 + $0x10] sm:$0xf]
  %v7711 = vld [vmem:[%s5 + $0x14] sm:$0xf]
  %v7712 = vld [vmem:[%s5 + $0x18] sm:$0xf]
  %v7713 = vld [vmem:[%s5 + $0x1c] sm:$0xf]
  %v7714 = vld [vmem:[%s5 + $0x20] sm:$0xf]
  %v7715 = vld [vmem:[%s5 + $0x24] sm:$0xf]
  %v7716 = vld [vmem:[%s5 + $0x28] sm:$0xf]
  %v7717 = vld [vmem:[%s5 + $0x2c] sm:$0xf]
  %v7718 = vld [vmem:[%s5 + $0x30] sm:$0xf]
  %v7719 = vld [vmem:[%s5 + $0x34] sm:$0xf]
  %v7720 = vld [vmem:[%s5 + $0x38] sm:$0xf]
  %v7721 = vld [vmem:[%s5 + $0x3c] sm:$0xf]
  %v7722 = vld [vmem:[%s5 + $0x40] sm:$0xf]
  %v7723 = vld [vmem:[%s5 + $0x44] sm:$0xf]
  %v7724 = vld [vmem:[%s6] sm:$0x1]
  %v7726 = vperm.slane %v7724, 0
  %v7746 = vunpack.c.l.b16 %v7706
  %v7747 = vunpack.c.l.b16 %v7707
  %v7748 = vunpack.c.l.b16 %v7708
  %v7749 = vunpack.c.l.b16 %v7709
  %v7750 = vunpack.c.l.b16 %v7710
  %v7751 = vunpack.c.l.b16 %v7711
  %v7752 = vunpack.c.l.b16 %v7712
  %v7753 = vunpack.c.l.b16 %v7713
  %v7754 = vunpack.c.l.b16 %v7714
  %v7755 = vunpack.c.l.b16 %v7715
  %v7756 = vunpack.c.l.b16 %v7716
  %v7757 = vunpack.c.l.b16 %v7717
  %v7758 = vunpack.c.l.b16 %v7718
  %v7759 = vunpack.c.l.b16 %v7719
  %v7760 = vunpack.c.l.b16 %v7720
  %v7761 = vunpack.c.l.b16 %v7721
  %v7762 = vunpack.c.l.b16 %v7722
  %v7763 = vunpack.c.l.b16 %v7723
  %v7764 = vpack.c.b16 %v7747, %v7746
  %v7765 = vpack.c.b16 %v7749, %v7748
  %v7766 = vpack.c.b16 %v7751, %v7750
  %v7767 = vpack.c.b16 %v7753, %v7752
  %v7768 = vpack.c.b16 %v7755, %v7754
  %v7769 = vpack.c.b16 %v7757, %v7756
  %v7770 = vpack.c.b16 %v7759, %v7758
  %v7771 = vpack.c.b16 %v7761, %v7760
  %v7772 = vpack.c.b16 %v7763, %v7762
  %v7783 = vsel %vm613, %v7643, 0
  %v7786 = vsel %vm613, %v7645, 0
  %v7789 = vsel %vm613, %v7647, 0
  %v7792 = vsel %vm613, %v7649, 0
  %v7795 = vsel %vm613, %v7651, 0
  %v7798 = vsel %vm613, %v7653, 0
  %v7801 = vsel %vm613, %v7655, 0
  %v7804 = vsel %vm613, %v7657, 0
  %v7807 = vsel %vm613, %v7659, 0
  %v7810 = vsel %vm613, %v7661, 0
  %v7813 = vsel %vm613, %v7663, 0
  %v7816 = vsel %vm613, %v7665, 0
  %v7819 = vsel %vm613, %v7667, 0
  %v7822 = vsel %vm613, %v7669, 0
  %v7825 = vsel %vm613, %v7671, 0
  %v7828 = vsel %vm613, %v7673, 0
  %v7831 = vsel %vm613, %v7675, 0
  %v7834 = vsel %vm613, %v7677, 0
  %v7837 = vsel %vm613, %v7679, 0
  %v7840 = vsel %vm613, %v7681, 0
  %v7843 = vsel %vm613, %v7683, 0
  %v7846 = vsel %vm613, %v7685, 0
  %v7849 = vsel %vm613, %v7687, 0
  %v7852 = vsel %vm613, %v7689, 0
  %v7855 = vsel %vm613, %v7691, 0
  %v7858 = vsel %vm613, %v7693, 0
  %v7861 = vsel %vm613, %v7695, 0
  %v7864 = vsel %vm613, %v7697, 0
  %v7867 = vsel %vm613, %v7699, 0
  %v7870 = vsel %vm613, %v7701, 0
  %v7873 = vsel %vm613, %v7703, 0
  %v7876 = vsel %vm613, %v7705, 0
  %7878 = vmatpush.bf16.msra.mxu0 %v7771
  %7879 = vmatpush.bf16.msra.mxu0 %v7770
  %7880 = vmatpush.bf16.msra.mxu0 %v7769
  %7881 = vmatpush.bf16.msra.mxu0 %v7768
  %7882 = vmatpush.bf16.msra.mxu0 %v7767
  %7883 = vmatpush.bf16.msra.mxu0 %v7766
  %7884 = vmatpush.bf16.msra.mxu0 %v7765
  %7885 = vmatpush.bf16.msra.mxu0 %v7764
  %7886 = vmatmul.bf16.gmra.mxu0 %v7642
  %v7887 = vpop.f32.mrf.mxu0
  %v7888 = vadd.f32 %v7726, %v7887
  %v7889 = vpop.f32.mrf.mxu0
  %v7890 = vadd.f32 %v7726, %v7889
  %7891 = vmatmul.bf16.gmra.mxu0 %v7644
  %v7892 = vpop.f32.mrf.mxu0
  %v7893 = vadd.f32 %v7726, %v7892
  %v7894 = vpop.f32.mrf.mxu0
  %v7895 = vadd.f32 %v7726, %v7894
  %7896 = vmatmul.bf16.gmra.mxu0 %v7646
  %v7897 = vpop.f32.mrf.mxu0
  %v7898 = vadd.f32 %v7726, %v7897
  %v7899 = vpop.f32.mrf.mxu0
  %v7900 = vadd.f32 %v7726, %v7899
  %7901 = vmatmul.bf16.gmra.mxu0 %v7648
  %v7902 = vpop.f32.mrf.mxu0
  %v7903 = vadd.f32 %v7726, %v7902
  %v7904 = vpop.f32.mrf.mxu0
  %v7905 = vadd.f32 %v7726, %v7904
  %7906 = vmatmul.bf16.gmra.mxu0 %v7650
  %v7907 = vpop.f32.mrf.mxu0
  %v7908 = vadd.f32 %v7726, %v7907
  %v7909 = vpop.f32.mrf.mxu0
  %v7910 = vadd.f32 %v7726, %v7909
  %7911 = vmatmul.bf16.gmra.mxu0 %v7652
  %v7912 = vpop.f32.mrf.mxu0
  %v7913 = vadd.f32 %v7726, %v7912
  %v7914 = vpop.f32.mrf.mxu0
  %v7915 = vadd.f32 %v7726, %v7914
  %7916 = vmatmul.bf16.gmra.mxu0 %v7654
  %v7917 = vpop.f32.mrf.mxu0
  %v7918 = vadd.f32 %v7726, %v7917
  %v7919 = vpop.f32.mrf.mxu0
  %v7920 = vadd.f32 %v7726, %v7919
  %7921 = vmatmul.bf16.gmra.mxu0 %v7656
  %v7922 = vpop.f32.mrf.mxu0
  %v7923 = vadd.f32 %v7726, %v7922
  %v7924 = vpop.f32.mrf.mxu0
  %v7925 = vadd.f32 %v7726, %v7924
  %7926 = vmatmul.bf16.gmra.mxu0 %v7658
  %v7927 = vpop.f32.mrf.mxu0
  %v7928 = vadd.f32 %v7726, %v7927
  %v7929 = vpop.f32.mrf.mxu0
  %v7930 = vadd.f32 %v7726, %v7929
  %7931 = vmatmul.bf16.gmra.mxu0 %v7660
  %v7932 = vpop.f32.mrf.mxu0
  %v7933 = vadd.f32 %v7726, %v7932
  %v7934 = vpop.f32.mrf.mxu0
  %v7935 = vadd.f32 %v7726, %v7934
  %7936 = vmatmul.bf16.gmra.mxu0 %v7662
  %v7937 = vpop.f32.mrf.mxu0
  %v7938 = vadd.f32 %v7726, %v7937
  %v7939 = vpop.f32.mrf.mxu0
  %v7940 = vadd.f32 %v7726, %v7939
  %7941 = vmatmul.bf16.gmra.mxu0 %v7664
  %v7942 = vpop.f32.mrf.mxu0
  %v7943 = vadd.f32 %v7726, %v7942
  %v7944 = vpop.f32.mrf.mxu0
  %v7945 = vadd.f32 %v7726, %v7944
  %7946 = vmatmul.bf16.gmra.mxu0 %v7666
  %v7947 = vpop.f32.mrf.mxu0
  %v7948 = vadd.f32 %v7726, %v7947
  %v7949 = vpop.f32.mrf.mxu0
  %v7950 = vadd.f32 %v7726, %v7949
  %7951 = vmatmul.bf16.gmra.mxu0 %v7668
  %v7952 = vpop.f32.mrf.mxu0
  %v7953 = vadd.f32 %v7726, %v7952
  %v7954 = vpop.f32.mrf.mxu0
  %v7955 = vadd.f32 %v7726, %v7954
  %7956 = vmatmul.bf16.gmra.mxu0 %v7670
  %v7957 = vpop.f32.mrf.mxu0
  %v7958 = vadd.f32 %v7726, %v7957
  %v7959 = vpop.f32.mrf.mxu0
  %v7960 = vadd.f32 %v7726, %v7959
  %7961 = vmatmul.bf16.gmra.mxu0 %v7672
  %v7962 = vpop.f32.mrf.mxu0
  %v7963 = vadd.f32 %v7726, %v7962
  %v7964 = vpop.f32.mrf.mxu0
  %v7965 = vadd.f32 %v7726, %v7964
  %7966 = vmatmul.bf16.gmra.mxu0 %v7674
  %v7967 = vpop.f32.mrf.mxu0
  %v7968 = vadd.f32 %v7726, %v7967
  %v7969 = vpop.f32.mrf.mxu0
  %v7970 = vadd.f32 %v7726, %v7969
  %7971 = vmatmul.bf16.gmra.mxu0 %v7676
  %v7972 = vpop.f32.mrf.mxu0
  %v7973 = vadd.f32 %v7726, %v7972
  %v7974 = vpop.f32.mrf.mxu0
  %v7975 = vadd.f32 %v7726, %v7974
  %7976 = vmatmul.bf16.gmra.mxu0 %v7678
  %v7977 = vpop.f32.mrf.mxu0
  %v7978 = vadd.f32 %v7726, %v7977
  %v7979 = vpop.f32.mrf.mxu0
  %v7980 = vadd.f32 %v7726, %v7979
  %7981 = vmatmul.bf16.gmra.mxu0 %v7680
  %v7982 = vpop.f32.mrf.mxu0
  %v7983 = vadd.f32 %v7726, %v7982
  %v7984 = vpop.f32.mrf.mxu0
  %v7985 = vadd.f32 %v7726, %v7984
  %7986 = vmatmul.bf16.gmra.mxu0 %v7682
  %v7987 = vpop.f32.mrf.mxu0
  %v7988 = vadd.f32 %v7726, %v7987
  %v7989 = vpop.f32.mrf.mxu0
  %v7990 = vadd.f32 %v7726, %v7989
  %7991 = vmatmul.bf16.gmra.mxu0 %v7684
  %v7992 = vpop.f32.mrf.mxu0
  %v7993 = vadd.f32 %v7726, %v7992
  %v7994 = vpop.f32.mrf.mxu0
  %v7995 = vadd.f32 %v7726, %v7994
  %7996 = vmatmul.bf16.gmra.mxu0 %v7686
  %v7997 = vpop.f32.mrf.mxu0
  %v7998 = vadd.f32 %v7726, %v7997
  %v7999 = vpop.f32.mrf.mxu0
  %v8000 = vadd.f32 %v7726, %v7999
  %8001 = vmatmul.bf16.gmra.mxu0 %v7688
  %v8002 = vpop.f32.mrf.mxu0
  %v8003 = vadd.f32 %v7726, %v8002
  %v8004 = vpop.f32.mrf.mxu0
  %v8005 = vadd.f32 %v7726, %v8004
  %8006 = vmatmul.bf16.gmra.mxu0 %v7690
  %v8007 = vpop.f32.mrf.mxu0
  %v8008 = vadd.f32 %v7726, %v8007
  %v8009 = vpop.f32.mrf.mxu0
  %v8010 = vadd.f32 %v7726, %v8009
  %8011 = vmatmul.bf16.gmra.mxu0 %v7692
  %v8012 = vpop.f32.mrf.mxu0
  %v8013 = vadd.f32 %v7726, %v8012
  %v8014 = vpop.f32.mrf.mxu0
  %v8015 = vadd.f32 %v7726, %v8014
  %8016 = vmatmul.bf16.gmra.mxu0 %v7694
  %v8017 = vpop.f32.mrf.mxu0
  %v8018 = vadd.f32 %v7726, %v8017
  %v8019 = vpop.f32.mrf.mxu0
  %v8020 = vadd.f32 %v7726, %v8019
  %8021 = vmatmul.bf16.gmra.mxu0 %v7696
  %v8022 = vpop.f32.mrf.mxu0
  %v8023 = vadd.f32 %v7726, %v8022
  %v8024 = vpop.f32.mrf.mxu0
  %v8025 = vadd.f32 %v7726, %v8024
  %8026 = vmatmul.bf16.gmra.mxu0 %v7698
  %v8027 = vpop.f32.mrf.mxu0
  %v8028 = vadd.f32 %v7726, %v8027
  %v8029 = vpop.f32.mrf.mxu0
  %v8030 = vadd.f32 %v7726, %v8029
  %8031 = vmatmul.bf16.gmra.mxu0 %v7700
  %v8032 = vpop.f32.mrf.mxu0
  %v8033 = vadd.f32 %v7726, %v8032
  %v8034 = vpop.f32.mrf.mxu0
  %v8035 = vadd.f32 %v7726, %v8034
  %8036 = vmatmul.bf16.gmra.mxu0 %v7702
  %v8037 = vpop.f32.mrf.mxu0
  %v8038 = vadd.f32 %v7726, %v8037
  %v8039 = vpop.f32.mrf.mxu0
  %v8040 = vadd.f32 %v7726, %v8039
  %8041 = vmatmul.bf16.gmra.mxu0 %v7704
  %v8042 = vpop.f32.mrf.mxu0
  %v8043 = vadd.f32 %v7726, %v8042
  %v8044 = vpop.f32.mrf.mxu0
  %v8045 = vadd.f32 %v7726, %v8044
  %8046 = vdwg.mxu0
  %8047 = vmatpush.bf16.msra.mxu0 0
  %8048 = vmatpush.bf16.msra.mxu0 0
  %8049 = vmatpush.bf16.msra.mxu0 0
  %8050 = vmatpush.bf16.msra.mxu0 0
  %8051 = vmatpush.bf16.msra.mxu0 0
  %8052 = vmatpush.bf16.msra.mxu0 0
  %8053 = vmatpush.bf16.msra.mxu0 0
  %8054 = vmatpush.bf16.msra.mxu0 %v7772
  %8055 = vmatmul.bf16.gmra.mxu0 %v7783
  %v8056 = vpop.f32.mrf.mxu0
  %v8057 = vadd.f32 %v7888, %v8056
  %v8058 = vpop.f32.mrf.mxu0
  %v8059 = vadd.f32 %v7890, %v8058
  %8060 = vmatmul.bf16.gmra.mxu0 %v7786
  %v8061 = vpop.f32.mrf.mxu0
  %v8062 = vadd.f32 %v7893, %v8061
  %v8063 = vpop.f32.mrf.mxu0
  %v8064 = vadd.f32 %v7895, %v8063
  %8065 = vmatmul.bf16.gmra.mxu0 %v7789
  %v8066 = vpop.f32.mrf.mxu0
  %v8067 = vadd.f32 %v7898, %v8066
  %v8068 = vpop.f32.mrf.mxu0
  %v8069 = vadd.f32 %v7900, %v8068
  %8070 = vmatmul.bf16.gmra.mxu0 %v7792
  %v8071 = vpop.f32.mrf.mxu0
  %v8072 = vadd.f32 %v7903, %v8071
  %v8073 = vpop.f32.mrf.mxu0
  %v8074 = vadd.f32 %v7905, %v8073
  %8075 = vmatmul.bf16.gmra.mxu0 %v7795
  %v8076 = vpop.f32.mrf.mxu0
  %v8077 = vadd.f32 %v7908, %v8076
  %v8078 = vpop.f32.mrf.mxu0
  %v8079 = vadd.f32 %v7910, %v8078
  %8080 = vmatmul.bf16.gmra.mxu0 %v7798
  %v8081 = vpop.f32.mrf.mxu0
  %v8082 = vadd.f32 %v7913, %v8081
  %v8083 = vpop.f32.mrf.mxu0
  %v8084 = vadd.f32 %v7915, %v8083
  %8085 = vmatmul.bf16.gmra.mxu0 %v7801
  %v8086 = vpop.f32.mrf.mxu0
  %v8087 = vadd.f32 %v7918, %v8086
  %v8088 = vpop.f32.mrf.mxu0
  %v8089 = vadd.f32 %v7920, %v8088
  %8090 = vmatmul.bf16.gmra.mxu0 %v7804
  %v8091 = vpop.f32.mrf.mxu0
  %v8092 = vadd.f32 %v7923, %v8091
  %v8093 = vpop.f32.mrf.mxu0
  %v8094 = vadd.f32 %v7925, %v8093
  %8095 = vmatmul.bf16.gmra.mxu0 %v7807
  %v8096 = vpop.f32.mrf.mxu0
  %v8097 = vadd.f32 %v7928, %v8096
  %v8098 = vpop.f32.mrf.mxu0
  %v8099 = vadd.f32 %v7930, %v8098
  %8100 = vmatmul.bf16.gmra.mxu0 %v7810
  %v8101 = vpop.f32.mrf.mxu0
  %v8102 = vadd.f32 %v7933, %v8101
  %v8103 = vpop.f32.mrf.mxu0
  %v8104 = vadd.f32 %v7935, %v8103
  %8105 = vmatmul.bf16.gmra.mxu0 %v7813
  %v8106 = vpop.f32.mrf.mxu0
  %v8107 = vadd.f32 %v7938, %v8106
  %v8108 = vpop.f32.mrf.mxu0
  %v8109 = vadd.f32 %v7940, %v8108
  %8110 = vmatmul.bf16.gmra.mxu0 %v7816
  %v8111 = vpop.f32.mrf.mxu0
  %v8112 = vadd.f32 %v7943, %v8111
  %v8113 = vpop.f32.mrf.mxu0
  %v8114 = vadd.f32 %v7945, %v8113
  %8115 = vmatmul.bf16.gmra.mxu0 %v7819
  %v8116 = vpop.f32.mrf.mxu0
  %v8117 = vadd.f32 %v7948, %v8116
  %v8118 = vpop.f32.mrf.mxu0
  %v8119 = vadd.f32 %v7950, %v8118
  %8120 = vmatmul.bf16.gmra.mxu0 %v7822
  %v8121 = vpop.f32.mrf.mxu0
  %v8122 = vadd.f32 %v7953, %v8121
  %v8123 = vpop.f32.mrf.mxu0
  %v8124 = vadd.f32 %v7955, %v8123
  %8125 = vmatmul.bf16.gmra.mxu0 %v7825
  %v8126 = vpop.f32.mrf.mxu0
  %v8127 = vadd.f32 %v7958, %v8126
  %v8128 = vpop.f32.mrf.mxu0
  %v8129 = vadd.f32 %v7960, %v8128
  %8130 = vmatmul.bf16.gmra.mxu0 %v7828
  %v8131 = vpop.f32.mrf.mxu0
  %v8132 = vadd.f32 %v7963, %v8131
  %v8133 = vpop.f32.mrf.mxu0
  %v8134 = vadd.f32 %v7965, %v8133
  %8135 = vmatmul.bf16.gmra.mxu0 %v7831
  %v8136 = vpop.f32.mrf.mxu0
  %v8137 = vadd.f32 %v7968, %v8136
  %v8138 = vpop.f32.mrf.mxu0
  %v8139 = vadd.f32 %v7970, %v8138
  %8140 = vmatmul.bf16.gmra.mxu0 %v7834
  %v8141 = vpop.f32.mrf.mxu0
  %v8142 = vadd.f32 %v7973, %v8141
  %v8143 = vpop.f32.mrf.mxu0
  %v8144 = vadd.f32 %v7975, %v8143
  %8145 = vmatmul.bf16.gmra.mxu0 %v7837
  %v8146 = vpop.f32.mrf.mxu0
  %v8147 = vadd.f32 %v7978, %v8146
  %v8148 = vpop.f32.mrf.mxu0
  %v8149 = vadd.f32 %v7980, %v8148
  %8150 = vmatmul.bf16.gmra.mxu0 %v7840
  %v8151 = vpop.f32.mrf.mxu0
  %v8152 = vadd.f32 %v7983, %v8151
  %v8153 = vpop.f32.mrf.mxu0
  %v8154 = vadd.f32 %v7985, %v8153
  %8155 = vmatmul.bf16.gmra.mxu0 %v7843
  %v8156 = vpop.f32.mrf.mxu0
  %v8157 = vadd.f32 %v7988, %v8156
  %v8158 = vpop.f32.mrf.mxu0
  %v8159 = vadd.f32 %v7990, %v8158
  %8160 = vmatmul.bf16.gmra.mxu0 %v7846
  %v8161 = vpop.f32.mrf.mxu0
  %v8162 = vadd.f32 %v7993, %v8161
  %v8163 = vpop.f32.mrf.mxu0
  %v8164 = vadd.f32 %v7995, %v8163
  %8165 = vmatmul.bf16.gmra.mxu0 %v7849
  %v8166 = vpop.f32.mrf.mxu0
  %v8167 = vadd.f32 %v7998, %v8166
  %v8168 = vpop.f32.mrf.mxu0
  %v8169 = vadd.f32 %v8000, %v8168
  %8170 = vmatmul.bf16.gmra.mxu0 %v7852
  %v8171 = vpop.f32.mrf.mxu0
  %v8172 = vadd.f32 %v8003, %v8171
  %v8173 = vpop.f32.mrf.mxu0
  %v8174 = vadd.f32 %v8005, %v8173
  %8175 = vmatmul.bf16.gmra.mxu0 %v7855
  %v8176 = vpop.f32.mrf.mxu0
  %v8177 = vadd.f32 %v8008, %v8176
  %v8178 = vpop.f32.mrf.mxu0
  %v8179 = vadd.f32 %v8010, %v8178
  %8180 = vmatmul.bf16.gmra.mxu0 %v7858
  %v8181 = vpop.f32.mrf.mxu0
  %v8182 = vadd.f32 %v8013, %v8181
  %v8183 = vpop.f32.mrf.mxu0
  %v8184 = vadd.f32 %v8015, %v8183
  %8185 = vmatmul.bf16.gmra.mxu0 %v7861
  %v8186 = vpop.f32.mrf.mxu0
  %v8187 = vadd.f32 %v8018, %v8186
  %v8188 = vpop.f32.mrf.mxu0
  %v8189 = vadd.f32 %v8020, %v8188
  %8190 = vmatmul.bf16.gmra.mxu0 %v7864
  %v8191 = vpop.f32.mrf.mxu0
  %v8192 = vadd.f32 %v8023, %v8191
  %v8193 = vpop.f32.mrf.mxu0
  %v8194 = vadd.f32 %v8025, %v8193
  %8195 = vmatmul.bf16.gmra.mxu0 %v7867
  %v8196 = vpop.f32.mrf.mxu0
  %v8197 = vadd.f32 %v8028, %v8196
  %v8198 = vpop.f32.mrf.mxu0
  %v8199 = vadd.f32 %v8030, %v8198
  %8200 = vmatmul.bf16.gmra.mxu0 %v7870
  %v8201 = vpop.f32.mrf.mxu0
  %v8202 = vadd.f32 %v8033, %v8201
  %v8203 = vpop.f32.mrf.mxu0
  %v8204 = vadd.f32 %v8035, %v8203
  %8205 = vmatmul.bf16.gmra.mxu0 %v7873
  %v8206 = vpop.f32.mrf.mxu0
  %v8207 = vadd.f32 %v8038, %v8206
  %v8208 = vpop.f32.mrf.mxu0
  %v8209 = vadd.f32 %v8040, %v8208
  %8210 = vmatmul.bf16.gmra.mxu0 %v7876
  %v8211 = vpop.f32.mrf.mxu0
  %v8212 = vadd.f32 %v8043, %v8211
  %v8213 = vpop.f32.mrf.mxu0
  %v8214 = vadd.f32 %v8045, %v8213
  %8215 = vdwg.mxu0
  %v8216 = vadd.f32 %v8057, %v549
  %v8217 = vadd.f32 %v8059, %v550
  %v8218 = vadd.f32 %v8062, %v551
  %v8219 = vadd.f32 %v8064, %v552
  %v8220 = vadd.f32 %v8067, %v553
  %v8221 = vadd.f32 %v8069, %v554
  %v8222 = vadd.f32 %v8072, %v555
  %v8223 = vadd.f32 %v8074, %v556
  %v8224 = vadd.f32 %v8077, %v557
  %v8225 = vadd.f32 %v8079, %v558
  %v8226 = vadd.f32 %v8082, %v559
  %v8227 = vadd.f32 %v8084, %v560
  %v8228 = vadd.f32 %v8087, %v561
  %v8229 = vadd.f32 %v8089, %v562
  %v8230 = vadd.f32 %v8092, %v563
  %v8231 = vadd.f32 %v8094, %v564
  %v8232 = vadd.f32 %v8097, %v565
  %v8233 = vadd.f32 %v8099, %v566
  %v8234 = vadd.f32 %v8102, %v567
  %v8235 = vadd.f32 %v8104, %v568
  %v8236 = vadd.f32 %v8107, %v569
  %v8237 = vadd.f32 %v8109, %v570
  %v8238 = vadd.f32 %v8112, %v571
  %v8239 = vadd.f32 %v8114, %v572
  %v8240 = vadd.f32 %v8117, %v573
  %v8241 = vadd.f32 %v8119, %v574
  %v8242 = vadd.f32 %v8122, %v575
  %v8243 = vadd.f32 %v8124, %v576
  %v8244 = vadd.f32 %v8127, %v577
  %v8245 = vadd.f32 %v8129, %v578
  %v8246 = vadd.f32 %v8132, %v579
  %v8247 = vadd.f32 %v8134, %v580
  %v8248 = vadd.f32 %v8137, %v581
  %v8249 = vadd.f32 %v8139, %v582
  %v8250 = vadd.f32 %v8142, %v583
  %v8251 = vadd.f32 %v8144, %v584
  %v8252 = vadd.f32 %v8147, %v585
  %v8253 = vadd.f32 %v8149, %v586
  %v8254 = vadd.f32 %v8152, %v587
  %v8255 = vadd.f32 %v8154, %v588
  %v8256 = vadd.f32 %v8157, %v589
  %v8257 = vadd.f32 %v8159, %v590
  %v8258 = vadd.f32 %v8162, %v591
  %v8259 = vadd.f32 %v8164, %v592
  %v8260 = vadd.f32 %v8167, %v593
  %v8261 = vadd.f32 %v8169, %v594
  %v8262 = vadd.f32 %v8172, %v595
  %v8263 = vadd.f32 %v8174, %v596
  %v8264 = vadd.f32 %v8177, %v597
  %v8265 = vadd.f32 %v8179, %v598
  %v8266 = vadd.f32 %v8182, %v599
  %v8267 = vadd.f32 %v8184, %v600
  %v8268 = vadd.f32 %v8187, %v601
  %v8269 = vadd.f32 %v8189, %v602
  %v8270 = vadd.f32 %v8192, %v603
  %v8271 = vadd.f32 %v8194, %v604
  %v8272 = vadd.f32 %v8197, %v605
  %v8273 = vadd.f32 %v8199, %v606
  %v8274 = vadd.f32 %v8202, %v607
  %v8275 = vadd.f32 %v8204, %v608
  %v8276 = vadd.f32 %v8207, %v609
  %v8277 = vadd.f32 %v8209, %v610
  %v8278 = vadd.f32 %v8212, %v611
  %v8279 = vadd.f32 %v8214, %v612
  %v8280 = vmax.f32 %v8216, 0.0
  %v8281 = vmax.f32 %v8217, 0.0
  %v8282 = vmax.f32 %v8218, 0.0
  %v8283 = vmax.f32 %v8219, 0.0
  %v8284 = vmax.f32 %v8220, 0.0
  %v8285 = vmax.f32 %v8221, 0.0
  %v8286 = vmax.f32 %v8222, 0.0
  %v8287 = vmax.f32 %v8223, 0.0
  %v8288 = vmax.f32 %v8224, 0.0
  %v8289 = vmax.f32 %v8225, 0.0
  %v8290 = vmax.f32 %v8226, 0.0
  %v8291 = vmax.f32 %v8227, 0.0
  %v8292 = vmax.f32 %v8228, 0.0
  %v8293 = vmax.f32 %v8229, 0.0
  %v8294 = vmax.f32 %v8230, 0.0
  %v8295 = vmax.f32 %v8231, 0.0
  %v8296 = vmax.f32 %v8232, 0.0
  %v8297 = vmax.f32 %v8233, 0.0
  %v8298 = vmax.f32 %v8234, 0.0
  %v8299 = vmax.f32 %v8235, 0.0
  %v8300 = vmax.f32 %v8236, 0.0
  %v8301 = vmax.f32 %v8237, 0.0
  %v8302 = vmax.f32 %v8238, 0.0
  %v8303 = vmax.f32 %v8239, 0.0
  %v8304 = vmax.f32 %v8240, 0.0
  %v8305 = vmax.f32 %v8241, 0.0
  %v8306 = vmax.f32 %v8242, 0.0
  %v8307 = vmax.f32 %v8243, 0.0
  %v8308 = vmax.f32 %v8244, 0.0
  %v8309 = vmax.f32 %v8245, 0.0
  %v8310 = vmax.f32 %v8246, 0.0
  %v8311 = vmax.f32 %v8247, 0.0
  %v8312 = vmax.f32 %v8248, 0.0
  %v8313 = vmax.f32 %v8249, 0.0
  %v8314 = vmax.f32 %v8250, 0.0
  %v8315 = vmax.f32 %v8251, 0.0
  %v8316 = vmax.f32 %v8252, 0.0
  %v8317 = vmax.f32 %v8253, 0.0
  %v8318 = vmax.f32 %v8254, 0.0
  %v8319 = vmax.f32 %v8255, 0.0
  %v8320 = vmax.f32 %v8256, 0.0
  %v8321 = vmax.f32 %v8257, 0.0
  %v8322 = vmax.f32 %v8258, 0.0
  %v8323 = vmax.f32 %v8259, 0.0
  %v8324 = vmax.f32 %v8260, 0.0
  %v8325 = vmax.f32 %v8261, 0.0
  %v8326 = vmax.f32 %v8262, 0.0
  %v8327 = vmax.f32 %v8263, 0.0
  %v8328 = vmax.f32 %v8264, 0.0
  %v8329 = vmax.f32 %v8265, 0.0
  %v8330 = vmax.f32 %v8266, 0.0
  %v8331 = vmax.f32 %v8267, 0.0
  %v8332 = vmax.f32 %v8268, 0.0
  %v8333 = vmax.f32 %v8269, 0.0
  %v8334 = vmax.f32 %v8270, 0.0
  %v8335 = vmax.f32 %v8271, 0.0
  %v8336 = vmax.f32 %v8272, 0.0
  %v8337 = vmax.f32 %v8273, 0.0
  %v8338 = vmax.f32 %v8274, 0.0
  %v8339 = vmax.f32 %v8275, 0.0
  %v8340 = vmax.f32 %v8276, 0.0
  %v8341 = vmax.f32 %v8277, 0.0
  %v8342 = vmax.f32 %v8278, 0.0
  %v8343 = vmax.f32 %v8279, 0.0
  %v8344 = vsel %vm613, %v8280, 0.0
  %v8345 = vsel %vm613, %v8281, 0.0
  %v8346 = vadd.f32 %v8344, %v8345
  %v8347 = vsel %vm613, %v8282, 0.0
  %v8348 = vadd.f32 %v8346, %v8347
  %v8349 = vsel %vm613, %v8283, 0.0
  %v8350 = vadd.f32 %v8348, %v8349
  %v8351 = vsel %vm613, %v8284, 0.0
  %v8352 = vadd.f32 %v8350, %v8351
  %v8353 = vsel %vm613, %v8285, 0.0
  %v8354 = vadd.f32 %v8352, %v8353
  %v8355 = vsel %vm613, %v8286, 0.0
  %v8356 = vadd.f32 %v8354, %v8355
  %v8357 = vsel %vm613, %v8287, 0.0
  %v8358 = vadd.f32 %v8356, %v8357
  %v8359 = vsel %vm613, %v8288, 0.0
  %v8360 = vadd.f32 %v8358, %v8359
  %v8361 = vsel %vm613, %v8289, 0.0
  %v8362 = vadd.f32 %v8360, %v8361
  %v8363 = vsel %vm613, %v8290, 0.0
  %v8364 = vadd.f32 %v8362, %v8363
  %v8365 = vsel %vm613, %v8291, 0.0
  %v8366 = vadd.f32 %v8364, %v8365
  %v8367 = vsel %vm613, %v8292, 0.0
  %v8368 = vadd.f32 %v8366, %v8367
  %v8369 = vsel %vm613, %v8293, 0.0
  %v8370 = vadd.f32 %v8368, %v8369
  %v8371 = vsel %vm613, %v8294, 0.0
  %v8372 = vadd.f32 %v8370, %v8371
  %v8373 = vsel %vm613, %v8295, 0.0
  %v8374 = vadd.f32 %v8372, %v8373
  %v8375 = vsel %vm613, %v8296, 0.0
  %v8376 = vadd.f32 %v8374, %v8375
  %v8377 = vsel %vm613, %v8297, 0.0
  %v8378 = vadd.f32 %v8376, %v8377
  %v8379 = vsel %vm613, %v8298, 0.0
  %v8380 = vadd.f32 %v8378, %v8379
  %v8381 = vsel %vm613, %v8299, 0.0
  %v8382 = vadd.f32 %v8380, %v8381
  %v8383 = vsel %vm613, %v8300, 0.0
  %v8384 = vadd.f32 %v8382, %v8383
  %v8385 = vsel %vm613, %v8301, 0.0
  %v8386 = vadd.f32 %v8384, %v8385
  %v8387 = vsel %vm613, %v8302, 0.0
  %v8388 = vadd.f32 %v8386, %v8387
  %v8389 = vsel %vm613, %v8303, 0.0
  %v8390 = vadd.f32 %v8388, %v8389
  %v8391 = vsel %vm613, %v8304, 0.0
  %v8392 = vadd.f32 %v8390, %v8391
  %v8393 = vsel %vm613, %v8305, 0.0
  %v8394 = vadd.f32 %v8392, %v8393
  %v8395 = vsel %vm613, %v8306, 0.0
  %v8396 = vadd.f32 %v8394, %v8395
  %v8397 = vsel %vm613, %v8307, 0.0
  %v8398 = vadd.f32 %v8396, %v8397
  %v8399 = vsel %vm613, %v8308, 0.0
  %v8400 = vadd.f32 %v8398, %v8399
  %v8401 = vsel %vm613, %v8309, 0.0
  %v8402 = vadd.f32 %v8400, %v8401
  %v8403 = vsel %vm613, %v8310, 0.0
  %v8404 = vadd.f32 %v8402, %v8403
  %v8405 = vsel %vm613, %v8311, 0.0
  %v8406 = vadd.f32 %v8404, %v8405
  %v8407 = vrot.slane %v8406, 4
  %v8408 = vadd.f32 %v8406, %v8407
  %v8409 = vrot.slane %v8408, 2
  %v8410 = vadd.f32 %v8408, %v8409
  %v8411 = vrot.slane %v8410, 1
  %v8412 = vadd.f32 %v8410, %v8411
  %v8413 = vsel %vm613, %v8312, 0.0
  %v8414 = vsel %vm613, %v8313, 0.0
  %v8415 = vadd.f32 %v8413, %v8414
  %v8416 = vsel %vm613, %v8314, 0.0
  %v8417 = vadd.f32 %v8415, %v8416
  %v8418 = vsel %vm613, %v8315, 0.0
  %v8419 = vadd.f32 %v8417, %v8418
  %v8420 = vsel %vm613, %v8316, 0.0
  %v8421 = vadd.f32 %v8419, %v8420
  %v8422 = vsel %vm613, %v8317, 0.0
  %v8423 = vadd.f32 %v8421, %v8422
  %v8424 = vsel %vm613, %v8318, 0.0
  %v8425 = vadd.f32 %v8423, %v8424
  %v8426 = vsel %vm613, %v8319, 0.0
  %v8427 = vadd.f32 %v8425, %v8426
  %v8428 = vsel %vm613, %v8320, 0.0
  %v8429 = vadd.f32 %v8427, %v8428
  %v8430 = vsel %vm613, %v8321, 0.0
  %v8431 = vadd.f32 %v8429, %v8430
  %v8432 = vsel %vm613, %v8322, 0.0
  %v8433 = vadd.f32 %v8431, %v8432
  %v8434 = vsel %vm613, %v8323, 0.0
  %v8435 = vadd.f32 %v8433, %v8434
  %v8436 = vsel %vm613, %v8324, 0.0
  %v8437 = vadd.f32 %v8435, %v8436
  %v8438 = vsel %vm613, %v8325, 0.0
  %v8439 = vadd.f32 %v8437, %v8438
  %v8440 = vsel %vm613, %v8326, 0.0
  %v8441 = vadd.f32 %v8439, %v8440
  %v8442 = vsel %vm613, %v8327, 0.0
  %v8443 = vadd.f32 %v8441, %v8442
  %v8444 = vsel %vm613, %v8328, 0.0
  %v8445 = vadd.f32 %v8443, %v8444
  %v8446 = vsel %vm613, %v8329, 0.0
  %v8447 = vadd.f32 %v8445, %v8446
  %v8448 = vsel %vm613, %v8330, 0.0
  %v8449 = vadd.f32 %v8447, %v8448
  %v8450 = vsel %vm613, %v8331, 0.0
  %v8451 = vadd.f32 %v8449, %v8450
  %v8452 = vsel %vm613, %v8332, 0.0
  %v8453 = vadd.f32 %v8451, %v8452
  %v8454 = vsel %vm613, %v8333, 0.0
  %v8455 = vadd.f32 %v8453, %v8454
  %v8456 = vsel %vm613, %v8334, 0.0
  %v8457 = vadd.f32 %v8455, %v8456
  %v8458 = vsel %vm613, %v8335, 0.0
  %v8459 = vadd.f32 %v8457, %v8458
  %v8460 = vsel %vm613, %v8336, 0.0
  %v8461 = vadd.f32 %v8459, %v8460
  %v8462 = vsel %vm613, %v8337, 0.0
  %v8463 = vadd.f32 %v8461, %v8462
  %v8464 = vsel %vm613, %v8338, 0.0
  %v8465 = vadd.f32 %v8463, %v8464
  %v8466 = vsel %vm613, %v8339, 0.0
  %v8467 = vadd.f32 %v8465, %v8466
  %v8468 = vsel %vm613, %v8340, 0.0
  %v8469 = vadd.f32 %v8467, %v8468
  %v8470 = vsel %vm613, %v8341, 0.0
  %v8471 = vadd.f32 %v8469, %v8470
  %v8472 = vsel %vm613, %v8342, 0.0
  %v8473 = vadd.f32 %v8471, %v8472
  %v8474 = vsel %vm613, %v8343, 0.0
  %v8475 = vadd.f32 %v8473, %v8474
  %v8476 = vrot.slane %v8475, 4
  %v8477 = vadd.f32 %v8475, %v8476
  %v8478 = vrot.slane %v8477, 2
  %v8479 = vadd.f32 %v8477, %v8478
  %v8480 = vrot.slane %v8479, 1
  %v8481 = vadd.f32 %v8479, %v8480
  %v8482 = vrcp.pop 256.0
  %v8483 = vmul.f32 256.0, %v8482
  %v8484 = vsub.f32 1.0, %v8483
  %v8485 = vmul.f32 %v8482, %v8484
  %v8486 = vadd.f32 %v8482, %v8485
  %vm8487 = vweird.f32 %v8482
  %v8488 = vsel %vm8487, %v8482, %v8486
  %v8489 = vmul.f32 %v8412, %v8488
  %v8490 = vmul.f32 %v8481, %v8488
  %v8491 = vpack.c.bf16 %v8489, %v8489
  %v8492 = vpack.c.bf16 %v8490, %v8490
  %v8493 = vld [vmem:[%s7] sm:$0xf]
  %v8494 = vld [vmem:[%s7 + $0x4] sm:$0xf]
  %v8495 = vld [vmem:[%s8] sm:$0x1]
  %v8497 = vperm.slane %v8495, 0
  %v8501 = vunpack.c.l.b16 %v8491
  %v8502 = vunpack.c.l.b16 %v8492
  %vm8503 = vcmask 1041409
  %v8504 = vsel %vm8503, %v8502, %v8501
  %v8505 = vpack.c.b16 %v8504, %v8504
  %v8508 = vunpack.c.l.b16 %v8493
  %v8509 = vunpack.c.l.b16 %v8494
  %v8510 = vpack.c.b16 %v8509, %v8508
  %v8513 = vsel %vm613, %v8505, 0
  %8515 = vmatpush.bf16.msra.mxu0 0
  %8516 = vmatpush.bf16.msra.mxu0 0
  %8517 = vmatpush.bf16.msra.mxu0 0
  %8518 = vmatpush.bf16.msra.mxu0 0
  %8519 = vmatpush.bf16.msra.mxu0 0
  %8520 = vmatpush.bf16.msra.mxu0 0
  %8521 = vmatpush.bf16.msra.mxu0 0
  %8522 = vmatpush.bf16.msra.mxu0 %v8510
  %8523 = vmatmul.bf16.gmra.mxu0 %v8513
  %v8524 = vpop.f32.mrf.mxu0
  %v8525 = vadd.f32 %v8497, %v8524
  %v8526 = vpop.f32.mrf.mxu0
  %8527 = vdwg.mxu0
  %8528 = vst [vmem:[%s9] sm:$0x3] %v8525
  // Predicated region
  $region38: #{image_caption_forward.2} parent=0 // pred_check
    _
  $region39: #{image_caption_forward.2} parent=0 // pred_check_branch
    %8530 = sbr.rel (0) target = $region41
  $region40: #{image_caption_forward.2} parent=0 // pred_region
    _
  $region41: #{image_caption_forward.2} parent=0 // pred_fallthru
    _
  // Predicated region
  $region42: #{image_caption_forward.2} parent=0 // pred_check
    _
  $region43: #{image_caption_forward.2} parent=0 // pred_check_branch
    %8532 = sbr.rel (0) target = $region45
  $region44: #{image_caption_forward.2} parent=0 // pred_region
    _
  $region45: #{image_caption_forward.2} parent=0 // pred_fallthru
    _

</llo_original>
